<compile_context>
chip_gen: v7x
topology: tpu7x:2x2x1
jax: 0.10.0
libtpu: 0.0.40
codegen_flags: <defaults>
</compile_context>

<pallas_src>
import jax
import jax.numpy as jnp
from jax import lax
from jax.experimental import pallas as pl
from jax.experimental.pallas import tpu as pltpu

EPS = 1e-8
MAX_NORM = 1.0 - 1e-6


# ---------------------------------------------------------------------------
# the single fused kernel (one grid step = Bt batch elements)
# ---------------------------------------------------------------------------
def _fused_encoder_kernel(x_ref, w_in_ref, b_in_ref, r_ref, g_ref, m_ref,
                          w_out_ref, b_out_ref, o_ref):
    # x_ref     : (Bt, H, W*Cin)        bf16 input (NHWC, W and Cin fused)
    # w_in_ref  : (W*Cin, W*E)          bf16 block-diag folded 1x1 input proj
    # b_in_ref  : (1, W*E)              f32
    # r_ref     : (W*E, 128)            bf16 0/1 channel-group reduce matrix
    # g_ref     : (128, W*E)            bf16 0/1 channel-group broadcast matrix
    # m_ref     : (depth*3, W*E, W*E)   bf16 folded 3x3 conv weights (per ky)
    # w_out_ref : (W*E, W*Cout)         bf16 block-diag folded 1x1 output proj
    # b_out_ref : (1, W*Cout)           f32
    # o_ref     : (Bt, H, W*Cout)       f32
    f32, bf16 = jnp.float32, jnp.bfloat16
    Bt, H, WCin = x_ref.shape
    WE = w_in_ref.shape[1]
    M = Bt * H
    depth = m_ref.shape[0] // 3

    # ---- input 1x1 projection (bf16 MXU, f32 accumulate) --------------------
    x = x_ref[...].reshape(M, WCin)                                  # bf16
    y = jnp.dot(x, w_in_ref[...], preferred_element_type=f32) + b_in_ref[...]

    # ---- exp_map at origin, norm over CHANNELS (narrow-lane form) -----------
    # per-(row, spatial-x) sum of squares lives in a (M, 128) block; the
    # transcendentals run once per channel group and a 0/1 matmul broadcasts
    # the factor back over the E lanes of each group.
    n2 = jnp.dot((y * y).astype(bf16), r_ref[...], preferred_element_type=f32)
    n = jnp.maximum(jnp.sqrt(jnp.maximum(n2, 0.0)), EPS)
    fac = jnp.tanh(n) * pl.reciprocal(n, approx=True)               # (M, 128)
    h = jnp.dot(fac.astype(bf16), g_ref[...], preferred_element_type=f32) * y

    # ---- per-image boundary masks for the vertical (ky) taps ----------------
    ridx = lax.broadcasted_iota(jnp.int32, (M, 1), 0)
    is_top = (ridx % H) == 0
    is_bot = (ridx % H) == (H - 1)

    # ---- HyperbolicConv2d + ReLU blocks (depth is small & static) -----------
    for d in range(depth):
        # log_map at origin, norm over the H axis (reference quirk):
        # segmented per-image sublane reduction on the 3-D view.
        h3 = h.reshape(Bt, H, WE)
        n2h = jnp.sum(h3 * h3, axis=1, keepdims=True)                # (Bt,1,WE)
        nh = jnp.maximum(jnp.sqrt(n2h), EPS)
        sh = jnp.minimum(nh, MAX_NORM)
        fh = jnp.log((1.0 + sh) / (1.0 - sh)) * pl.reciprocal(nh, approx=True)
        t = (h3 * fh).reshape(M, WE)                                 # 2*atanh/||.||

        # 3x3 conv, padding=1, no bias: vertical taps via XLU sublane rolls
        # (masked at image boundaries), horizontal taps + channel mixing folded
        # into the per-ky band matrices (K = W*E, lane dense, bf16 on the MXU).
        t_up = jnp.where(is_top, 0.0, pltpu.roll(t, shift=1, axis=0))      # t[y-1]
        t_dn = jnp.where(is_bot, 0.0, pltpu.roll(t, shift=M - 1, axis=0))  # t[y+1]
        c = jnp.dot(t.astype(bf16), m_ref[d * 3 + 1], preferred_element_type=f32)
        c = c + jnp.dot(t_up.astype(bf16), m_ref[d * 3 + 0],
                        preferred_element_type=f32)
        c = c + jnp.dot(t_dn.astype(bf16), m_ref[d * 3 + 2],
                        preferred_element_type=f32)

        # exp_map at origin (norm over the H axis) then the block's ReLU
        c3 = c.reshape(Bt, H, WE)
        n2c = jnp.sum(c3 * c3, axis=1, keepdims=True)
        nc = jnp.maximum(jnp.sqrt(n2c), EPS)
        fc = jnp.tanh(nc) * pl.reciprocal(nc, approx=True)
        h = jnp.maximum((c3 * fc).reshape(M, WE), 0.0)

    # ---- final log_map over CHANNELS (narrow form) + 1x1 output projection --
    n2f = jnp.dot((h * h).astype(bf16), r_ref[...], preferred_element_type=f32)
    nf = jnp.maximum(jnp.sqrt(jnp.maximum(n2f, 0.0)), EPS)
    sf = jnp.minimum(nf, MAX_NORM)
    ff = jnp.log((1.0 + sf) / (1.0 - sf)) * pl.reciprocal(nf, approx=True)
    tf = jnp.dot(ff.astype(bf16), g_ref[...], preferred_element_type=f32) * h
    out = jnp.dot(tf.astype(bf16), w_out_ref[...],
                  preferred_element_type=f32) + b_out_ref[...]
    o_ref[...] = out.reshape(o_ref.shape).astype(o_ref.dtype)


# ---------------------------------------------------------------------------
# wrapper-side weight folding (plain JAX, weights only -- runs once per call)
# ---------------------------------------------------------------------------
def _fold_pointwise(w, W):
    # w: (Cin, Cout) 1x1-conv weight -> block-diagonal (W*Cin, W*Cout)
    cin, cout = w.shape
    eye = jnp.eye(W, dtype=jnp.float32)
    return jnp.einsum('xy,cf->xcyf', eye, w.astype(jnp.float32)
                      ).reshape(W * cin, W * cout)


def _group_reduce_matrix(W, E):
    # R[(x*E + c), x'] = 1 if x' == x  :  (y*y) @ R gives per-(row, x) channel
    # sum of squares in a narrow (M, 128) block.
    pad_w = ((W + 127) // 128) * 128
    r = jnp.kron(jnp.eye(W, dtype=jnp.float32), jnp.ones((E, 1), jnp.float32))
    return jnp.pad(r, ((0, 0), (0, pad_w - W)))


def _group_bcast_matrix(W, E):
    # G[x', (x*E + c)] = 1 if x' == x  :  fac @ G broadcasts the per-group
    # factor back over the E lanes of each group.
    pad_w = ((W + 127) // 128) * 128
    g = jnp.kron(jnp.eye(W, dtype=jnp.float32), jnp.ones((1, E), jnp.float32))
    return jnp.pad(g, ((0, pad_w - W), (0, 0)))


def _fold_conv_weights(w_hwio, W):
    # w_hwio: (3, 3, E, F) -> (3, W*E, W*F) band matrices with
    #   M[ky, xi*E + c, xo*F + f] = w[ky, xi-xo+1, c, f]  when |xi-xo| <= 1
    _, _, E, F = w_hwio.shape
    xi = jnp.arange(W)[:, None]            # x' (input column)
    xo = jnp.arange(W)[None, :]            # x  (output column)
    kx = xi - xo + 1                       # (W, W)
    valid = ((kx >= 0) & (kx <= 2)).astype(w_hwio.dtype)[:, :, None, None]
    kxc = jnp.clip(kx, 0, 2)
    bands = []
    for ky in range(3):
        band = w_hwio[ky][kxc] * valid                         # (W, W, E, F)
        bands.append(jnp.transpose(band, (0, 2, 1, 3)).reshape(W * E, W * F))
    return jnp.stack(bands, axis=0)                            # (3, W*E, W*F)


def _choose_block_batch(B, H, target_rows=256):
    # Pack several images' rows into one MXU M dimension (target ~256 rows on
    # v6e/v7x; multiples of 128 ideal on v5e) while keeping >= 2 grid steps so
    # both v7x TensorCores get work.
    best = 1
    for bt in range(1, B + 1):
        if B % bt != 0:
            continue
        if bt * H > max(target_rows, H):
            break
        if B // bt >= 2 or B == 1:
            best = bt
    return best


def _vmem_limit_bytes():
    # Size the scoped-VMEM limit from the chip (v7x: 64 MiB/TC, v5e/v6e: 128)
    # instead of hardcoding 32 MiB.
    try:
        cap = int(pltpu.get_tpu_info().vmem_capacity_bytes)
    except Exception:
        cap = 64 * 1024 * 1024
    return max(32 * 1024 * 1024, min(3 * cap // 4, 100 * 1024 * 1024))


# ---------------------------------------------------------------------------
# full forward pass
# ---------------------------------------------------------------------------
@jax.jit
def hyperbolic_cnn_encoder(x_nchw, params):
    B, Cin, H, W = x_nchw.shape
    E = params["w_in"].shape[1]
    Cout = params["w_out"].shape[1]
    depth = len(params["w_blocks"])
    Bt = _choose_block_batch(B, H)
    bf16, f32 = jnp.bfloat16, jnp.float32

    # NCHW -> NHWC -> fuse (W, Cin) into the lane dim; bf16 halves input DMA.
    x = jnp.transpose(x_nchw, (0, 2, 3, 1)).astype(bf16).reshape(B, H, W * Cin)

    pad_w = ((W + 127) // 128) * 128
    w_in_big = _fold_pointwise(params["w_in"], W).astype(bf16)         # (W*Cin, W*E)
    b_in_big = jnp.tile(params["b_in"], W).reshape(1, W * E).astype(f32)
    r_mat = _group_reduce_matrix(W, E).astype(bf16)                    # (W*E, pad_w)
    g_mat = _group_bcast_matrix(W, E).astype(bf16)                     # (pad_w, W*E)
    m_all = jnp.concatenate(
        [_fold_conv_weights(wb, W) for wb in params["w_blocks"]], axis=0
    ).astype(bf16)                                                     # (depth*3, W*E, W*E)
    w_out_big = _fold_pointwise(params["w_out"], W).astype(bf16)       # (W*E, W*Cout)
    b_out_big = jnp.tile(params["b_out"], W).reshape(1, W * Cout).astype(f32)

    out = pl.pallas_call(
        _fused_encoder_kernel,
        out_shape=jax.ShapeDtypeStruct((B, H, W * Cout), jnp.float32),
        grid=(B // Bt,),
        in_specs=[
            pl.BlockSpec((Bt, H, W * Cin), lambda b: (b, 0, 0)),
            pl.BlockSpec((W * Cin, W * E), lambda b: (0, 0)),
            pl.BlockSpec((1, W * E), lambda b: (0, 0)),
            pl.BlockSpec((W * E, pad_w), lambda b: (0, 0)),
            pl.BlockSpec((pad_w, W * E), lambda b: (0, 0)),
            pl.BlockSpec((depth * 3, W * E, W * E), lambda b: (0, 0, 0)),
            pl.BlockSpec((W * E, W * Cout), lambda b: (0, 0)),
            pl.BlockSpec((1, W * Cout), lambda b: (0, 0)),
        ],
        out_specs=pl.BlockSpec((Bt, H, W * Cout), lambda b: (b, 0, 0)),
        compiler_params=pltpu.CompilerParams(
            dimension_semantics=("parallel",),
            vmem_limit_bytes=_vmem_limit_bytes(),
        ),
    )(x, w_in_big, b_in_big, r_mat, g_mat, m_all, w_out_big, b_out_big)

    # (B, H, W*Cout) -> (B, H*W, Cout)  == flatten(2).transpose(1, 2)
    return out.reshape(B, H * W, Cout)


# ---------------------------------------------------------------------------
# parameter construction (deterministic, shapes mirror the module __init__)
# ---------------------------------------------------------------------------
def init_params(key, in_chans, embed_dim, depth, output_dim):
    ks = jax.random.split(key, 4 + depth)
    scale = 0.04
    return {
        "w_in": scale * jax.random.normal(ks[0], (in_chans, embed_dim), jnp.float32),
        "b_in": scale * jax.random.normal(ks[1], (embed_dim,), jnp.float32),
        "w_blocks": [
            scale * jax.random.normal(ks[2 + d], (3, 3, embed_dim, embed_dim), jnp.float32)
            for d in range(depth)
        ],
        "w_out": scale * jax.random.normal(ks[2 + depth], (embed_dim, output_dim), jnp.float32),
        "b_out": scale * jax.random.normal(ks[3 + depth], (output_dim,), jnp.float32),
    }


# ---------------------------------------------------------------------------
# pure-JAX f32 reference (direct 9-tap conv), used only for a numerical check
# ---------------------------------------------------------------------------
def _reference_forward(x_nchw, params):
    x = jnp.transpose(x_nchw, (0, 2, 3, 1)).astype(jnp.float32)    # NHWC
    B, H, W, _ = x.shape
    y = jnp.einsum('bhwc,ce->bhwe', x, params["w_in"]) + params["b_in"]
    n = jnp.maximum(jnp.linalg.norm(y, axis=-1, keepdims=True), EPS)
    h = jnp.tanh(n) * y / n
    for wb in params["w_blocks"]:
        n = jnp.maximum(jnp.linalg.norm(h, axis=1, keepdims=True), EPS)
        s = jnp.minimum(n, MAX_NORM)
        t = jnp.log((1.0 + s) / (1.0 - s)) * h / n
        tp = jnp.pad(t, ((0, 0), (1, 1), (1, 1), (0, 0)))
        c = jnp.zeros_like(t)
        for ky in range(3):
            for kx in range(3):
                c = c + jnp.einsum('bhwc,cf->bhwf',
                                   tp[:, ky:ky + H, kx:kx + W, :], wb[ky, kx])
        n = jnp.maximum(jnp.linalg.norm(c, axis=1, keepdims=True), EPS)
        h = jnp.maximum(jnp.tanh(n) * c / n, 0.0)
    n = jnp.maximum(jnp.linalg.norm(h, axis=-1, keepdims=True), EPS)
    s = jnp.minimum(n, MAX_NORM)
    t = jnp.log((1.0 + s) / (1.0 - s)) * h / n
    out = jnp.einsum('bhwe,ef->bhwf', t, params["w_out"]) + params["b_out"]
    return out.reshape(B, H * W, -1)


if __name__ == "__main__":
    # small shapes consistent with the module's forward (B=8 so batch-packing
    # keeps both v7x TensorCores busy: Bt=4 -> grid=(2,), M=Bt*H=64)
    B, Cin, H, W = 8, 8, 16, 16
    embed_dim, depth, output_dim = 32, 2, 16

    key = jax.random.PRNGKey(0)
    k_x, k_p = jax.random.split(key)
    x_visual = jax.random.normal(k_x, (B, Cin, H, W), jnp.float32)
    params = init_params(k_p, Cin, embed_dim, depth, output_dim)

    out = hyperbolic_cnn_encoder(x_visual, params)
    out = jax.block_until_ready(out)

    assert out.shape == (B, H * W, output_dim), out.shape
    assert bool(jnp.all(jnp.isfinite(out)))

    ref = _reference_forward(x_visual, params)
    max_err = float(jnp.max(jnp.abs(out - ref)))
    # tolerance sized for bf16 MXU operands + approx reciprocals vs f32 ref
    assert bool(jnp.allclose(out, ref, atol=2e-2, rtol=2e-2)), max_err
    print("KERNEL_OK")
</pallas_src>

<mosaic_0001>
module attributes {stable_mosaic.version = 11 : i64} {
  func.func @_fused_encoder_kernel(%arg0: i32, %arg1: memref<4x16x128xbf16, #tpu.memory_space<vmem>>, %arg2: memref<128x512xbf16, #tpu.memory_space<vmem>>, %arg3: memref<1x512xf32, #tpu.memory_space<vmem>>, %arg4: memref<512x128xbf16, #tpu.memory_space<vmem>>, %arg5: memref<128x512xbf16, #tpu.memory_space<vmem>>, %arg6: memref<6x512x512xbf16, #tpu.memory_space<vmem>>, %arg7: memref<512x256xbf16, #tpu.memory_space<vmem>>, %arg8: memref<1x256xf32, #tpu.memory_space<vmem>>, %arg9: memref<4x16x256xf32, #tpu.memory_space<vmem>>) attributes {dimension_semantics = [#tpu.dimension_semantics<parallel>], iteration_bounds = array<i64: 2>, scalar_prefetch = 0 : i64, scratch_operands = 0 : i64, tpu.core_type = #tpu.core_type<tc>, window_params = [{transform_indices = @transform_0, window_bounds = array<i64: 4, 16, 128>}, {pipeline_mode = #tpu.pipeline_mode<synchronous>, transform_indices = @transform_1, window_bounds = array<i64: 128, 512>}, {pipeline_mode = #tpu.pipeline_mode<synchronous>, transform_indices = @transform_2, window_bounds = array<i64: 1, 512>}, {pipeline_mode = #tpu.pipeline_mode<synchronous>, transform_indices = @transform_3, window_bounds = array<i64: 512, 128>}, {pipeline_mode = #tpu.pipeline_mode<synchronous>, transform_indices = @transform_4, window_bounds = array<i64: 128, 512>}, {pipeline_mode = #tpu.pipeline_mode<synchronous>, transform_indices = @transform_5, window_bounds = array<i64: 6, 512, 512>}, {pipeline_mode = #tpu.pipeline_mode<synchronous>, transform_indices = @transform_6, window_bounds = array<i64: 512, 256>}, {pipeline_mode = #tpu.pipeline_mode<synchronous>, transform_indices = @transform_7, window_bounds = array<i64: 1, 256>}, {transform_indices = @transform_8, window_bounds = array<i64: 4, 16, 256>}]} {
    %c0 = arith.constant 0 : index
    %c0_0 = arith.constant 0 : index
    %c0_1 = arith.constant 0 : index
    %0 = vector.load %arg1[%c0, %c0_0, %c0_1] : memref<4x16x128xbf16, #tpu.memory_space<vmem>>, vector<4x16x128xbf16>
    %1 = vector.shape_cast %0 : vector<4x16x128xbf16> to vector<64x128xbf16>
    %c0_2 = arith.constant 0 : index
    %c0_3 = arith.constant 0 : index
    %2 = vector.load %arg2[%c0_2, %c0_3] : memref<128x512xbf16, #tpu.memory_space<vmem>>, vector<128x512xbf16>
    %cst = arith.constant dense<0.000000e+00> : vector<64x512xf32>
    %3 = tpu.matmul %1, %2, %cst {dimension_numbers = #tpu.dot_dimension_numbers<[1], [0], [0], [1], [0, 0, 1, 1], [], []>} : vector<64x128xbf16>, vector<128x512xbf16>, vector<64x512xf32> -> vector<64x512xf32>
    %c0_4 = arith.constant 0 : index
    %c0_5 = arith.constant 0 : index
    %4 = vector.load %arg3[%c0_4, %c0_5] : memref<1x512xf32, #tpu.memory_space<vmem>>, vector<1x512xf32>
    %5 = vector.broadcast %4 : vector<1x512xf32> to vector<64x512xf32>
    %6 = arith.addf %3, %5 : vector<64x512xf32>
    %7 = arith.mulf %6, %6 : vector<64x512xf32>
    %8 = arith.truncf %7 : vector<64x512xf32> to vector<64x512xbf16>
    %c0_6 = arith.constant 0 : index
    %c0_7 = arith.constant 0 : index
    %9 = vector.load %arg4[%c0_6, %c0_7] : memref<512x128xbf16, #tpu.memory_space<vmem>>, vector<512x128xbf16>
    %cst_8 = arith.constant dense<0.000000e+00> : vector<64x128xf32>
    %10 = tpu.matmul %8, %9, %cst_8 {dimension_numbers = #tpu.dot_dimension_numbers<[1], [0], [0], [1], [0, 0, 1, 1], [], []>} : vector<64x512xbf16>, vector<512x128xbf16>, vector<64x128xf32> -> vector<64x128xf32>
    %cst_9 = arith.constant 0.000000e+00 : f32
    %11 = vector.broadcast %cst_9 : f32 to vector<64x128xf32>
    %12 = arith.maximumf %10, %11 : vector<64x128xf32>
    %13 = math.sqrt %12 : vector<64x128xf32>
    %cst_10 = arith.constant 9.99999993E-9 : f32
    %14 = vector.broadcast %cst_10 : f32 to vector<64x128xf32>
    %15 = arith.maximumf %13, %14 : vector<64x128xf32>
    %16 = math.tanh %15 : vector<64x128xf32>
    %17 = tpu.reciprocal %15 {approx = true} : vector<64x128xf32> -> vector<64x128xf32>
    %18 = arith.mulf %16, %17 : vector<64x128xf32>
    %19 = arith.truncf %18 : vector<64x128xf32> to vector<64x128xbf16>
    %c0_11 = arith.constant 0 : index
    %c0_12 = arith.constant 0 : index
    %20 = vector.load %arg5[%c0_11, %c0_12] : memref<128x512xbf16, #tpu.memory_space<vmem>>, vector<128x512xbf16>
    %cst_13 = arith.constant dense<0.000000e+00> : vector<64x512xf32>
    %21 = tpu.matmul %19, %20, %cst_13 {dimension_numbers = #tpu.dot_dimension_numbers<[1], [0], [0], [1], [0, 0, 1, 1], [], []>} : vector<64x128xbf16>, vector<128x512xbf16>, vector<64x512xf32> -> vector<64x512xf32>
    %22 = arith.mulf %21, %6 : vector<64x512xf32>
    %23 = tpu.iota {dimensions = array<i32: 0>} : vector<64x1xi32>
    %c16_i32 = arith.constant 16 : i32
    %c0_i32 = arith.constant 0 : i32
    %24 = arith.cmpi eq, %c16_i32, %c0_i32 : i32
    %c1_i32 = arith.constant 1 : i32
    %25 = arith.select %24, %c1_i32, %c16_i32 : i32
    %26 = vector.broadcast %25 : i32 to vector<64x1xi32>
    %27 = arith.remsi %23, %26 : vector<64x1xi32>
    %c0_i32_14 = arith.constant 0 : i32
    %28 = vector.broadcast %c0_i32_14 : i32 to vector<64x1xi32>
    %29 = arith.cmpi ne, %27, %28 : vector<64x1xi32>
    %c0_i32_15 = arith.constant 0 : i32
    %30 = vector.broadcast %c0_i32_15 : i32 to vector<64x1xi32>
    %31 = arith.cmpi slt, %27, %30 : vector<64x1xi32>
    %c0_i32_16 = arith.constant 0 : i32
    %32 = arith.cmpi slt, %25, %c0_i32_16 : i32
    %33 = vector.broadcast %32 : i1 to vector<64x1xi1>
    %34 = vector.broadcast %33 : vector<64x1xi1> to vector<64x1xi1>
    %35 = arith.xori %31, %34 : vector<64x1xi1>
    %36 = arith.andi %35, %29 : vector<64x1xi1>
    %37 = vector.broadcast %25 : i32 to vector<64x1xi32>
    %38 = arith.addi %27, %37 : vector<64x1xi32>
    %39 = arith.select %36, %38, %27 : vector<64x1xi1>, vector<64x1xi32>
    %c0_i32_17 = arith.constant 0 : i32
    %40 = vector.broadcast %c0_i32_17 : i32 to vector<64x1xi32>
    %41 = arith.cmpi eq, %39, %40 : vector<64x1xi32>
    %c16_i32_18 = arith.constant 16 : i32
    %c0_i32_19 = arith.constant 0 : i32
    %42 = arith.cmpi eq, %c16_i32_18, %c0_i32_19 : i32
    %c1_i32_20 = arith.constant 1 : i32
    %43 = arith.select %42, %c1_i32_20, %c16_i32_18 : i32
    %44 = vector.broadcast %43 : i32 to vector<64x1xi32>
    %45 = arith.remsi %23, %44 : vector<64x1xi32>
    %c0_i32_21 = arith.constant 0 : i32
    %46 = vector.broadcast %c0_i32_21 : i32 to vector<64x1xi32>
    %47 = arith.cmpi ne, %45, %46 : vector<64x1xi32>
    %c0_i32_22 = arith.constant 0 : i32
    %48 = vector.broadcast %c0_i32_22 : i32 to vector<64x1xi32>
    %49 = arith.cmpi slt, %45, %48 : vector<64x1xi32>
    %c0_i32_23 = arith.constant 0 : i32
    %50 = arith.cmpi slt, %43, %c0_i32_23 : i32
    %51 = vector.broadcast %50 : i1 to vector<64x1xi1>
    %52 = vector.broadcast %51 : vector<64x1xi1> to vector<64x1xi1>
    %53 = arith.xori %49, %52 : vector<64x1xi1>
    %54 = arith.andi %53, %47 : vector<64x1xi1>
    %55 = vector.broadcast %43 : i32 to vector<64x1xi32>
    %56 = arith.addi %45, %55 : vector<64x1xi32>
    %57 = arith.select %54, %56, %45 : vector<64x1xi1>, vector<64x1xi32>
    %c15_i32 = arith.constant 15 : i32
    %58 = vector.broadcast %c15_i32 : i32 to vector<64x1xi32>
    %59 = arith.cmpi eq, %57, %58 : vector<64x1xi32>
    %60 = vector.shape_cast %22 : vector<64x512xf32> to vector<4x16x512xf32>
    %61 = arith.mulf %60, %60 : vector<4x16x512xf32>
    %cst_24 = arith.constant dense<0.000000e+00> : vector<4x512xf32>
    %62 = vector.multi_reduction <add>, %61, %cst_24 [1] : vector<4x16x512xf32> to vector<4x512xf32>
    %63 = vector.shape_cast %62 : vector<4x512xf32> to vector<4x1x512xf32>
    %64 = math.sqrt %63 : vector<4x1x512xf32>
    %cst_25 = arith.constant 9.99999993E-9 : f32
    %65 = vector.broadcast %cst_25 : f32 to vector<4x1x512xf32>
    %66 = arith.maximumf %64, %65 : vector<4x1x512xf32>
    %cst_26 = arith.constant 0.999998986 : f32
    %67 = vector.broadcast %cst_26 : f32 to vector<4x1x512xf32>
    %68 = arith.minimumf %66, %67 : vector<4x1x512xf32>
    %cst_27 = arith.constant 1.000000e+00 : f32
    %69 = vector.broadcast %cst_27 : f32 to vector<4x1x512xf32>
    %70 = arith.addf %69, %68 : vector<4x1x512xf32>
    %cst_28 = arith.constant 1.000000e+00 : f32
    %71 = vector.broadcast %cst_28 : f32 to vector<4x1x512xf32>
    %72 = arith.subf %71, %68 : vector<4x1x512xf32>
    %73 = arith.divf %70, %72 : vector<4x1x512xf32>
    %74 = math.log %73 : vector<4x1x512xf32>
    %75 = tpu.reciprocal %66 {approx = true} : vector<4x1x512xf32> -> vector<4x1x512xf32>
    %76 = arith.mulf %74, %75 : vector<4x1x512xf32>
    %77 = vector.broadcast %76 : vector<4x1x512xf32> to vector<4x16x512xf32>
    %78 = arith.mulf %60, %77 : vector<4x16x512xf32>
    %79 = vector.shape_cast %78 : vector<4x16x512xf32> to vector<64x512xf32>
    %c1_i32_29 = arith.constant 1 : i32
    %80 = tpu.dynamic_rotate %79 by %c1_i32_29 dim 0 : vector<64x512xf32>, i32 -> vector<64x512xf32>
    %cst_30 = arith.constant 0.000000e+00 : f32
    %81 = vector.shape_cast %41 : vector<64x1xi1> to vector<64x1xi1>
    %82 = vector.broadcast %81 : vector<64x1xi1> to vector<64x512xi1>
    %83 = vector.broadcast %cst_30 : f32 to vector<64x512xf32>
    %84 = arith.select %82, %83, %80 : vector<64x512xi1>, vector<64x512xf32>
    %c63_i32 = arith.constant 63 : i32
    %85 = tpu.dynamic_rotate %79 by %c63_i32 dim 0 : vector<64x512xf32>, i32 -> vector<64x512xf32>
    %cst_31 = arith.constant 0.000000e+00 : f32
    %86 = vector.shape_cast %59 : vector<64x1xi1> to vector<64x1xi1>
    %87 = vector.broadcast %86 : vector<64x1xi1> to vector<64x512xi1>
    %88 = vector.broadcast %cst_31 : f32 to vector<64x512xf32>
    %89 = arith.select %87, %88, %85 : vector<64x512xi1>, vector<64x512xf32>
    %90 = arith.truncf %79 : vector<64x512xf32> to vector<64x512xbf16>
    %c1 = arith.constant 1 : index
    %c0_32 = arith.constant 0 : index
    %c0_33 = arith.constant 0 : index
    %91 = vector.load %arg6[%c1, %c0_32, %c0_33] : memref<6x512x512xbf16, #tpu.memory_space<vmem>>, vector<1x512x512xbf16>
    %92 = vector.shape_cast %91 : vector<1x512x512xbf16> to vector<512x512xbf16>
    %cst_34 = arith.constant dense<0.000000e+00> : vector<64x512xf32>
    %93 = tpu.matmul %90, %92, %cst_34 {dimension_numbers = #tpu.dot_dimension_numbers<[1], [0], [0], [1], [0, 0, 1, 1], [], []>} : vector<64x512xbf16>, vector<512x512xbf16>, vector<64x512xf32> -> vector<64x512xf32>
    %94 = arith.truncf %84 : vector<64x512xf32> to vector<64x512xbf16>
    %c0_35 = arith.constant 0 : index
    %c0_36 = arith.constant 0 : index
    %c0_37 = arith.constant 0 : index
    %95 = vector.load %arg6[%c0_35, %c0_36, %c0_37] : memref<6x512x512xbf16, #tpu.memory_space<vmem>>, vector<1x512x512xbf16>
    %96 = vector.shape_cast %95 : vector<1x512x512xbf16> to vector<512x512xbf16>
    %cst_38 = arith.constant dense<0.000000e+00> : vector<64x512xf32>
    %97 = tpu.matmul %94, %96, %cst_38 {dimension_numbers = #tpu.dot_dimension_numbers<[1], [0], [0], [1], [0, 0, 1, 1], [], []>} : vector<64x512xbf16>, vector<512x512xbf16>, vector<64x512xf32> -> vector<64x512xf32>
    %98 = arith.addf %93, %97 : vector<64x512xf32>
    %99 = arith.truncf %89 : vector<64x512xf32> to vector<64x512xbf16>
    %c2 = arith.constant 2 : index
    %c0_39 = arith.constant 0 : index
    %c0_40 = arith.constant 0 : index
    %100 = vector.load %arg6[%c2, %c0_39, %c0_40] : memref<6x512x512xbf16, #tpu.memory_space<vmem>>, vector<1x512x512xbf16>
    %101 = vector.shape_cast %100 : vector<1x512x512xbf16> to vector<512x512xbf16>
    %cst_41 = arith.constant dense<0.000000e+00> : vector<64x512xf32>
    %102 = tpu.matmul %99, %101, %cst_41 {dimension_numbers = #tpu.dot_dimension_numbers<[1], [0], [0], [1], [0, 0, 1, 1], [], []>} : vector<64x512xbf16>, vector<512x512xbf16>, vector<64x512xf32> -> vector<64x512xf32>
    %103 = arith.addf %98, %102 : vector<64x512xf32>
    %104 = vector.shape_cast %103 : vector<64x512xf32> to vector<4x16x512xf32>
    %105 = arith.mulf %104, %104 : vector<4x16x512xf32>
    %cst_42 = arith.constant dense<0.000000e+00> : vector<4x512xf32>
    %106 = vector.multi_reduction <add>, %105, %cst_42 [1] : vector<4x16x512xf32> to vector<4x512xf32>
    %107 = vector.shape_cast %106 : vector<4x512xf32> to vector<4x1x512xf32>
    %108 = math.sqrt %107 : vector<4x1x512xf32>
    %cst_43 = arith.constant 9.99999993E-9 : f32
    %109 = vector.broadcast %cst_43 : f32 to vector<4x1x512xf32>
    %110 = arith.maximumf %108, %109 : vector<4x1x512xf32>
    %111 = math.tanh %110 : vector<4x1x512xf32>
    %112 = tpu.reciprocal %110 {approx = true} : vector<4x1x512xf32> -> vector<4x1x512xf32>
    %113 = arith.mulf %111, %112 : vector<4x1x512xf32>
    %114 = vector.broadcast %113 : vector<4x1x512xf32> to vector<4x16x512xf32>
    %115 = arith.mulf %104, %114 : vector<4x16x512xf32>
    %116 = vector.shape_cast %115 : vector<4x16x512xf32> to vector<64x512xf32>
    %cst_44 = arith.constant 0.000000e+00 : f32
    %117 = vector.broadcast %cst_44 : f32 to vector<64x512xf32>
    %118 = arith.maximumf %116, %117 : vector<64x512xf32>
    %119 = vector.shape_cast %118 : vector<64x512xf32> to vector<4x16x512xf32>
    %120 = arith.mulf %119, %119 : vector<4x16x512xf32>
    %cst_45 = arith.constant dense<0.000000e+00> : vector<4x512xf32>
    %121 = vector.multi_reduction <add>, %120, %cst_45 [1] : vector<4x16x512xf32> to vector<4x512xf32>
    %122 = vector.shape_cast %121 : vector<4x512xf32> to vector<4x1x512xf32>
    %123 = math.sqrt %122 : vector<4x1x512xf32>
    %cst_46 = arith.constant 9.99999993E-9 : f32
    %124 = vector.broadcast %cst_46 : f32 to vector<4x1x512xf32>
    %125 = arith.maximumf %123, %124 : vector<4x1x512xf32>
    %cst_47 = arith.constant 0.999998986 : f32
    %126 = vector.broadcast %cst_47 : f32 to vector<4x1x512xf32>
    %127 = arith.minimumf %125, %126 : vector<4x1x512xf32>
    %cst_48 = arith.constant 1.000000e+00 : f32
    %128 = vector.broadcast %cst_48 : f32 to vector<4x1x512xf32>
    %129 = arith.addf %128, %127 : vector<4x1x512xf32>
    %cst_49 = arith.constant 1.000000e+00 : f32
    %130 = vector.broadcast %cst_49 : f32 to vector<4x1x512xf32>
    %131 = arith.subf %130, %127 : vector<4x1x512xf32>
    %132 = arith.divf %129, %131 : vector<4x1x512xf32>
    %133 = math.log %132 : vector<4x1x512xf32>
    %134 = tpu.reciprocal %125 {approx = true} : vector<4x1x512xf32> -> vector<4x1x512xf32>
    %135 = arith.mulf %133, %134 : vector<4x1x512xf32>
    %136 = vector.broadcast %135 : vector<4x1x512xf32> to vector<4x16x512xf32>
    %137 = arith.mulf %119, %136 : vector<4x16x512xf32>
    %138 = vector.shape_cast %137 : vector<4x16x512xf32> to vector<64x512xf32>
    %c1_i32_50 = arith.constant 1 : i32
    %139 = tpu.dynamic_rotate %138 by %c1_i32_50 dim 0 : vector<64x512xf32>, i32 -> vector<64x512xf32>
    %cst_51 = arith.constant 0.000000e+00 : f32
    %140 = vector.shape_cast %41 : vector<64x1xi1> to vector<64x1xi1>
    %141 = vector.broadcast %140 : vector<64x1xi1> to vector<64x512xi1>
    %142 = vector.broadcast %cst_51 : f32 to vector<64x512xf32>
    %143 = arith.select %141, %142, %139 : vector<64x512xi1>, vector<64x512xf32>
    %c63_i32_52 = arith.constant 63 : i32
    %144 = tpu.dynamic_rotate %138 by %c63_i32_52 dim 0 : vector<64x512xf32>, i32 -> vector<64x512xf32>
    %cst_53 = arith.constant 0.000000e+00 : f32
    %145 = vector.shape_cast %59 : vector<64x1xi1> to vector<64x1xi1>
    %146 = vector.broadcast %145 : vector<64x1xi1> to vector<64x512xi1>
    %147 = vector.broadcast %cst_53 : f32 to vector<64x512xf32>
    %148 = arith.select %146, %147, %144 : vector<64x512xi1>, vector<64x512xf32>
    %149 = arith.truncf %138 : vector<64x512xf32> to vector<64x512xbf16>
    %c4 = arith.constant 4 : index
    %c0_54 = arith.constant 0 : index
    %c0_55 = arith.constant 0 : index
    %150 = vector.load %arg6[%c4, %c0_54, %c0_55] : memref<6x512x512xbf16, #tpu.memory_space<vmem>>, vector<1x512x512xbf16>
    %151 = vector.shape_cast %150 : vector<1x512x512xbf16> to vector<512x512xbf16>
    %cst_56 = arith.constant dense<0.000000e+00> : vector<64x512xf32>
    %152 = tpu.matmul %149, %151, %cst_56 {dimension_numbers = #tpu.dot_dimension_numbers<[1], [0], [0], [1], [0, 0, 1, 1], [], []>} : vector<64x512xbf16>, vector<512x512xbf16>, vector<64x512xf32> -> vector<64x512xf32>
    %153 = arith.truncf %143 : vector<64x512xf32> to vector<64x512xbf16>
    %c3 = arith.constant 3 : index
    %c0_57 = arith.constant 0 : index
    %c0_58 = arith.constant 0 : index
    %154 = vector.load %arg6[%c3, %c0_57, %c0_58] : memref<6x512x512xbf16, #tpu.memory_space<vmem>>, vector<1x512x512xbf16>
    %155 = vector.shape_cast %154 : vector<1x512x512xbf16> to vector<512x512xbf16>
    %cst_59 = arith.constant dense<0.000000e+00> : vector<64x512xf32>
    %156 = tpu.matmul %153, %155, %cst_59 {dimension_numbers = #tpu.dot_dimension_numbers<[1], [0], [0], [1], [0, 0, 1, 1], [], []>} : vector<64x512xbf16>, vector<512x512xbf16>, vector<64x512xf32> -> vector<64x512xf32>
    %157 = arith.addf %152, %156 : vector<64x512xf32>
    %158 = arith.truncf %148 : vector<64x512xf32> to vector<64x512xbf16>
    %c5 = arith.constant 5 : index
    %c0_60 = arith.constant 0 : index
    %c0_61 = arith.constant 0 : index
    %159 = vector.load %arg6[%c5, %c0_60, %c0_61] : memref<6x512x512xbf16, #tpu.memory_space<vmem>>, vector<1x512x512xbf16>
    %160 = vector.shape_cast %159 : vector<1x512x512xbf16> to vector<512x512xbf16>
    %cst_62 = arith.constant dense<0.000000e+00> : vector<64x512xf32>
    %161 = tpu.matmul %158, %160, %cst_62 {dimension_numbers = #tpu.dot_dimension_numbers<[1], [0], [0], [1], [0, 0, 1, 1], [], []>} : vector<64x512xbf16>, vector<512x512xbf16>, vector<64x512xf32> -> vector<64x512xf32>
    %162 = arith.addf %157, %161 : vector<64x512xf32>
    %163 = vector.shape_cast %162 : vector<64x512xf32> to vector<4x16x512xf32>
    %164 = arith.mulf %163, %163 : vector<4x16x512xf32>
    %cst_63 = arith.constant dense<0.000000e+00> : vector<4x512xf32>
    %165 = vector.multi_reduction <add>, %164, %cst_63 [1] : vector<4x16x512xf32> to vector<4x512xf32>
    %166 = vector.shape_cast %165 : vector<4x512xf32> to vector<4x1x512xf32>
    %167 = math.sqrt %166 : vector<4x1x512xf32>
    %cst_64 = arith.constant 9.99999993E-9 : f32
    %168 = vector.broadcast %cst_64 : f32 to vector<4x1x512xf32>
    %169 = arith.maximumf %167, %168 : vector<4x1x512xf32>
    %170 = math.tanh %169 : vector<4x1x512xf32>
    %171 = tpu.reciprocal %169 {approx = true} : vector<4x1x512xf32> -> vector<4x1x512xf32>
    %172 = arith.mulf %170, %171 : vector<4x1x512xf32>
    %173 = vector.broadcast %172 : vector<4x1x512xf32> to vector<4x16x512xf32>
    %174 = arith.mulf %163, %173 : vector<4x16x512xf32>
    %175 = vector.shape_cast %174 : vector<4x16x512xf32> to vector<64x512xf32>
    %cst_65 = arith.constant 0.000000e+00 : f32
    %176 = vector.broadcast %cst_65 : f32 to vector<64x512xf32>
    %177 = arith.maximumf %175, %176 : vector<64x512xf32>
    %178 = arith.mulf %177, %177 : vector<64x512xf32>
    %179 = arith.truncf %178 : vector<64x512xf32> to vector<64x512xbf16>
    %c0_66 = arith.constant 0 : index
    %c0_67 = arith.constant 0 : index
    %180 = vector.load %arg4[%c0_66, %c0_67] : memref<512x128xbf16, #tpu.memory_space<vmem>>, vector<512x128xbf16>
    %cst_68 = arith.constant dense<0.000000e+00> : vector<64x128xf32>
    %181 = tpu.matmul %179, %180, %cst_68 {dimension_numbers = #tpu.dot_dimension_numbers<[1], [0], [0], [1], [0, 0, 1, 1], [], []>} : vector<64x512xbf16>, vector<512x128xbf16>, vector<64x128xf32> -> vector<64x128xf32>
    %cst_69 = arith.constant 0.000000e+00 : f32
    %182 = vector.broadcast %cst_69 : f32 to vector<64x128xf32>
    %183 = arith.maximumf %181, %182 : vector<64x128xf32>
    %184 = math.sqrt %183 : vector<64x128xf32>
    %cst_70 = arith.constant 9.99999993E-9 : f32
    %185 = vector.broadcast %cst_70 : f32 to vector<64x128xf32>
    %186 = arith.maximumf %184, %185 : vector<64x128xf32>
    %cst_71 = arith.constant 0.999998986 : f32
    %187 = vector.broadcast %cst_71 : f32 to vector<64x128xf32>
    %188 = arith.minimumf %186, %187 : vector<64x128xf32>
    %cst_72 = arith.constant 1.000000e+00 : f32
    %189 = vector.broadcast %cst_72 : f32 to vector<64x128xf32>
    %190 = arith.addf %189, %188 : vector<64x128xf32>
    %cst_73 = arith.constant 1.000000e+00 : f32
    %191 = vector.broadcast %cst_73 : f32 to vector<64x128xf32>
    %192 = arith.subf %191, %188 : vector<64x128xf32>
    %193 = arith.divf %190, %192 : vector<64x128xf32>
    %194 = math.log %193 : vector<64x128xf32>
    %195 = tpu.reciprocal %186 {approx = true} : vector<64x128xf32> -> vector<64x128xf32>
    %196 = arith.mulf %194, %195 : vector<64x128xf32>
    %197 = arith.truncf %196 : vector<64x128xf32> to vector<64x128xbf16>
    %c0_74 = arith.constant 0 : index
    %c0_75 = arith.constant 0 : index
    %198 = vector.load %arg5[%c0_74, %c0_75] : memref<128x512xbf16, #tpu.memory_space<vmem>>, vector<128x512xbf16>
    %cst_76 = arith.constant dense<0.000000e+00> : vector<64x512xf32>
    %199 = tpu.matmul %197, %198, %cst_76 {dimension_numbers = #tpu.dot_dimension_numbers<[1], [0], [0], [1], [0, 0, 1, 1], [], []>} : vector<64x128xbf16>, vector<128x512xbf16>, vector<64x512xf32> -> vector<64x512xf32>
    %200 = arith.mulf %199, %177 : vector<64x512xf32>
    %201 = arith.truncf %200 : vector<64x512xf32> to vector<64x512xbf16>
    %c0_77 = arith.constant 0 : index
    %c0_78 = arith.constant 0 : index
    %202 = vector.load %arg7[%c0_77, %c0_78] : memref<512x256xbf16, #tpu.memory_space<vmem>>, vector<512x256xbf16>
    %cst_79 = arith.constant dense<0.000000e+00> : vector<64x256xf32>
    %203 = tpu.matmul %201, %202, %cst_79 {dimension_numbers = #tpu.dot_dimension_numbers<[1], [0], [0], [1], [0, 0, 1, 1], [], []>} : vector<64x512xbf16>, vector<512x256xbf16>, vector<64x256xf32> -> vector<64x256xf32>
    %c0_80 = arith.constant 0 : index
    %c0_81 = arith.constant 0 : index
    %204 = vector.load %arg8[%c0_80, %c0_81] : memref<1x256xf32, #tpu.memory_space<vmem>>, vector<1x256xf32>
    %205 = vector.broadcast %204 : vector<1x256xf32> to vector<64x256xf32>
    %206 = arith.addf %203, %205 : vector<64x256xf32>
    %207 = vector.shape_cast %206 : vector<64x256xf32> to vector<4x16x256xf32>
    %c0_82 = arith.constant 0 : index
    %c0_83 = arith.constant 0 : index
    %c0_84 = arith.constant 0 : index
    %208 = vector.load %arg9[%c0_82, %c0_83, %c0_84] : memref<4x16x256xf32, #tpu.memory_space<vmem>>, vector<4x16x256xf32>
    tpu.vector_store %arg9[%c0_82, %c0_83, %c0_84], %207 {strides = array<i32>} : memref<4x16x256xf32, #tpu.memory_space<vmem>>, vector<4x16x256xf32>,
    return
  }
  func.func @transform_0(%arg0: i32) -> (i32, i32, i32) {
    %c0_i32 = arith.constant 0 : i32
    %c0_i32_0 = arith.constant 0 : i32
    %c0_i32_1 = arith.constant 0 : i32
    return %arg0, %c0_i32, %c0_i32_0 : i32, i32, i32
  }
  func.func @transform_1(%arg0: i32) -> (i32, i32) {
    %c0_i32 = arith.constant 0 : i32
    %c0_i32_0 = arith.constant 0 : i32
    %c0_i32_1 = arith.constant 0 : i32
    return %c0_i32, %c0_i32_0 : i32, i32
  }
  func.func @transform_2(%arg0: i32) -> (i32, i32) {
    %c0_i32 = arith.constant 0 : i32
    %c0_i32_0 = arith.constant 0 : i32
    %c0_i32_1 = arith.constant 0 : i32
    return %c0_i32, %c0_i32_0 : i32, i32
  }
  func.func @transform_3(%arg0: i32) -> (i32, i32) {
    %c0_i32 = arith.constant 0 : i32
    %c0_i32_0 = arith.constant 0 : i32
    %c0_i32_1 = arith.constant 0 : i32
    return %c0_i32, %c0_i32_0 : i32, i32
  }
  func.func @transform_4(%arg0: i32) -> (i32, i32) {
    %c0_i32 = arith.constant 0 : i32
    %c0_i32_0 = arith.constant 0 : i32
    %c0_i32_1 = arith.constant 0 : i32
    return %c0_i32, %c0_i32_0 : i32, i32
  }
  func.func @transform_5(%arg0: i32) -> (i32, i32, i32) {
    %c0_i32 = arith.constant 0 : i32
    %c0_i32_0 = arith.constant 0 : i32
    %c0_i32_1 = arith.constant 0 : i32
    %c0_i32_2 = arith.constant 0 : i32
    return %c0_i32, %c0_i32_0, %c0_i32_1 : i32, i32, i32
  }
  func.func @transform_6(%arg0: i32) -> (i32, i32) {
    %c0_i32 = arith.constant 0 : i32
    %c0_i32_0 = arith.constant 0 : i32
    %c0_i32_1 = arith.constant 0 : i32
    return %c0_i32, %c0_i32_0 : i32, i32
  }
  func.func @transform_7(%arg0: i32) -> (i32, i32) {
    %c0_i32 = arith.constant 0 : i32
    %c0_i32_0 = arith.constant 0 : i32
    %c0_i32_1 = arith.constant 0 : i32
    return %c0_i32, %c0_i32_0 : i32, i32
  }
  func.func @transform_8(%arg0: i32) -> (i32, i32, i32) {
    %c0_i32 = arith.constant 0 : i32
    %c0_i32_0 = arith.constant 0 : i32
    %c0_i32_1 = arith.constant 0 : i32
    return %arg0, %c0_i32, %c0_i32_0 : i32, i32, i32
  }
}

</mosaic_0001>

<llo_original>
// kernel: tile.13
$region0: #{tile.13}
  #allocation0 [shape = 's32[1]{0}', space=sflag, size = 0x4, scoped, tag = 'scoped memory for tile.13']
  %s0 = inlined_call_operand.vmem [shape: f32[32], index: 0, kind: input, shape index: {}]
  %s1 = inlined_call_operand.vmem [shape: f32[16,32], index: 1, kind: output, shape index: {}]
  // Predicated region
  $region2: #{tile.13} parent=0 // pred_check
    _
  $region3: #{tile.13} parent=0 // pred_check_branch
    %3 = sbr.rel (0) target = $region5
  $region4: #{tile.13} parent=0 // pred_region
    _
  $region5: #{tile.13} parent=0 // pred_fallthru
    _
  %v4 = vld [vmem:[%s0] ss:$0 sm:$0xff]
  %5 = vst [vmem:[%s1] sm:$0xff] %v4
  %s6 = scalar_lea.vmem %s1, 8
  %7 = vst [vmem:[%s6] sm:$0xff] %v4

// kernel: tile.14
$region0: #{tile.14}
  %s0 = inlined_call_operand.vmem [shape: f32[16,32], index: 0, kind: input, shape index: {}]
  %s1 = inlined_call_operand.vmem [shape: f32[1,512], index: 1, kind: output, shape index: {}]
  $region1: #{tile.14} parent=0
    #allocation0 [shape = 'u8[16384]{0}', space=vmem, size = 0x4000, scoped, tag = 'scoped mem for output reshape']
    %v2 = vld [vmem:[%s0] ss:$4 sm:$0xf]
    %vm3 = vcmask 261120
    %4 = vst.msk [vmem:[#allocation0] ss:$8 sm:$0xf] %vm3, %v2
    %s5 = scalar_lea.vmem %s0, 3
    %v6 = vld [vmem:[%s5] ss:$4 sm:$0xf]
    %7 = vrot.lane.b32.xlu0 %v6, 96
    %v8 = vpop.permute.xlu0 %7
    %vm9 = vcmask 1048320
    %10 = vst.msk [vmem:[#allocation0] ss:$8 sm:$0xf] %vm9, %v8
    %s11 = scalar_lea.vmem %s0, 2
    %v12 = vld [vmem:[%s11] ss:$4 sm:$0xf]
    %13 = vrot.lane.b32.xlu0 %v12, 64
    %v14 = vpop.permute.xlu0 %13
    %vm15 = vcmask 785920
    %16 = vst.msk [vmem:[#allocation0] ss:$8 sm:$0xf] %vm15, %v14
    %s17 = scalar_lea.vmem %s0, 1
    %v18 = vld [vmem:[%s17] ss:$4 sm:$0xf]
    %19 = vrot.lane.b32.xlu0 %v18, 32
    %v20 = vpop.permute.xlu0 %19
    %vm21 = vcmask 523520
    %22 = vst.msk [vmem:[#allocation0] ss:$8 sm:$0xf] %vm21, %v20
    %s24 = sshllo.u32 0, 1
    %v26 = vld [vmem:[#allocation0] sm:%s24]
    %s27 = sshllo.u32 0, 1
    %28 = vst [vmem:[%s1] sm:%s27] %v26
    %s29 = scalar_lea.vmem [#allocation0], 8
    %v30 = vld [vmem:[%s29] sm:%s24]
    %s31 = sshllo.u32 0, 1
    %s32 = scalar_lea.vmem %s1, 1
    %33 = vst [vmem:[%s32] sm:%s31] %v30
    %s34 = scalar_lea.vmem [#allocation0], 16
    %v35 = vld [vmem:[%s34] sm:%s24]
    %s36 = sshllo.u32 0, 1
    %s37 = smul.addr 1, 2
    %s38 = scalar_lea.vmem %s1, %s37
    %39 = vst [vmem:[%s38] sm:%s36] %v35
    %s40 = scalar_lea.vmem [#allocation0], 24
    %v41 = vld [vmem:[%s40] sm:%s24]
    %s42 = sshllo.u32 0, 1
    %s43 = smul.addr 1, 3
    %s44 = scalar_lea.vmem %s1, %s43
    %45 = vst [vmem:[%s44] sm:%s42] %v41

// kernel: tile.18
$region0: #{tile.18}
  #allocation0 [shape = 's32[1]{0}', space=sflag, size = 0x4, scoped, tag = 'scoped memory for tile.18']
  %s0 = inlined_call_operand.vmem [shape: f32[16], index: 0, kind: input, shape index: {}]
  %s1 = inlined_call_operand.vmem [shape: f32[16,16], index: 1, kind: output, shape index: {}]
  // Predicated region
  $region2: #{tile.18} parent=0 // pred_check
    _
  $region3: #{tile.18} parent=0 // pred_check_branch
    %3 = sbr.rel (0) target = $region5
  $region4: #{tile.18} parent=0 // pred_region
    _
  $region5: #{tile.18} parent=0 // pred_fallthru
    _
  %v4 = vld [vmem:[%s0] ss:$0 sm:$0xff]
  %5 = vst [vmem:[%s1] sm:$0xff] %v4
  %s6 = scalar_lea.vmem %s1, 8
  %7 = vst [vmem:[%s6] sm:$0xff] %v4

// kernel: tile.19
$region0: #{tile.19}
  %s0 = inlined_call_operand.vmem [shape: f32[16,16], index: 0, kind: input, shape index: {}]
  %s1 = inlined_call_operand.vmem [shape: f32[1,256], index: 1, kind: output, shape index: {}]
  $region1: #{tile.19} parent=0
    #allocation0 [shape = 'u8[8192]{0}', space=vmem, size = 0x2000, scoped, tag = 'scoped mem for output reshape']
    %s2 = smov 3
    %v3 = vld [vmem:[%s0] ss:$8 sm:%s2]
    %vm4 = vcmask 130048
    %5 = vst.msk [vmem:[#allocation0] ss:$8 sm:$0x3] %vm4, %v3
    %s6 = scalar_lea.vmem %s0, 7
    %s7 = smov 3
    %v8 = vld [vmem:[%s6] ss:$8 sm:%s7]
    %9 = vrot.lane.b32.xlu0 %v8, 112
    %v10 = vpop.permute.xlu0 %9
    %vm11 = vcmask 1048448
    %12 = vst.msk [vmem:[#allocation0] ss:$8 sm:$0x3] %vm11, %v10
    %s13 = scalar_lea.vmem %s0, 6
    %s14 = smov 3
    %v15 = vld [vmem:[%s13] ss:$8 sm:%s14]
    %16 = vrot.lane.b32.xlu0 %v15, 96
    %v17 = vpop.permute.xlu0 %16
    %vm18 = vcmask 917248
    %19 = vst.msk [vmem:[#allocation0] ss:$8 sm:$0x3] %vm18, %v17
    %s20 = scalar_lea.vmem %s0, 5
    %s21 = smov 3
    %v22 = vld [vmem:[%s20] ss:$8 sm:%s21]
    %23 = vrot.lane.b32.xlu0 %v22, 80
    %v24 = vpop.permute.xlu0 %23
    %vm25 = vcmask 786048
    %26 = vst.msk [vmem:[#allocation0] ss:$8 sm:$0x3] %vm25, %v24
    %s27 = scalar_lea.vmem %s0, 4
    %s28 = smov 3
    %v29 = vld [vmem:[%s27] ss:$8 sm:%s28]
    %30 = vrot.lane.b32.xlu0 %v29, 64
    %v31 = vpop.permute.xlu0 %30
    %vm32 = vcmask 654848
    %33 = vst.msk [vmem:[#allocation0] ss:$8 sm:$0x3] %vm32, %v31
    %s34 = scalar_lea.vmem %s0, 3
    %s35 = smov 3
    %v36 = vld [vmem:[%s34] ss:$8 sm:%s35]
    %37 = vrot.lane.b32.xlu0 %v36, 48
    %v38 = vpop.permute.xlu0 %37
    %vm39 = vcmask 523648
    %40 = vst.msk [vmem:[#allocation0] ss:$8 sm:$0x3] %vm39, %v38
    %s41 = scalar_lea.vmem %s0, 2
    %s42 = smov 3
    %v43 = vld [vmem:[%s41] ss:$8 sm:%s42]
    %44 = vrot.lane.b32.xlu0 %v43, 32
    %v45 = vpop.permute.xlu0 %44
    %vm46 = vcmask 392448
    %47 = vst.msk [vmem:[#allocation0] ss:$8 sm:$0x3] %vm46, %v45
    %s48 = scalar_lea.vmem %s0, 1
    %s49 = smov 3
    %v50 = vld [vmem:[%s48] ss:$8 sm:%s49]
    %51 = vrot.lane.b32.xlu0 %v50, 16
    %v52 = vpop.permute.xlu0 %51
    %vm53 = vcmask 261248
    %54 = vst.msk [vmem:[#allocation0] ss:$8 sm:$0x3] %vm53, %v52
    %s56 = sshllo.u32 0, 1
    %v58 = vld [vmem:[#allocation0] sm:%s56]
    %s59 = sshllo.u32 0, 1
    %60 = vst [vmem:[%s1] sm:%s59] %v58
    %s61 = scalar_lea.vmem [#allocation0], 8
    %v62 = vld [vmem:[%s61] sm:%s56]
    %s63 = sshllo.u32 0, 1
    %s64 = scalar_lea.vmem %s1, 1
    %65 = vst [vmem:[%s64] sm:%s63] %v62

// kernel: hyperbolic_cnn_encoder.1
$region0: #{hyperbolic_cnn_encoder.1}
  #allocation0 [shape = 'u32[]', space=smem, size = 0x4, offset = 0x4, fixed_abs, tag = 'smem constant byte address 0x4 - core index']
  #allocation1 [shape = 'u32[144,128]{1,0:T(1,128)}', space=vmem, size = 0x12000, scoped, tag = 'internal scratch']
  %s0 = inlined_call_operand.vmem [shape: bf16[8,16,128], index: 0, kind: input, shape index: {}]
  %s1 = inlined_call_operand.vmem [shape: bf16[128,512], index: 1, kind: input, shape index: {}]
  %s2 = inlined_call_operand.vmem [shape: f32[1,512], index: 2, kind: input, shape index: {}]
  %s3 = inlined_call_operand.vmem [shape: bf16[512,128], index: 3, kind: input, shape index: {}]
  %s4 = inlined_call_operand.vmem [shape: bf16[128,512], index: 4, kind: input, shape index: {}]
  %s5 = inlined_call_operand.vmem [shape: bf16[6,512,512], index: 5, kind: input, shape index: {}]
  %s6 = inlined_call_operand.vmem [shape: bf16[512,256], index: 6, kind: input, shape index: {}]
  %s7 = inlined_call_operand.vmem [shape: f32[1,256], index: 7, kind: input, shape index: {}]
  %s8 = inlined_call_operand.vmem [shape: f32[8,16,256], index: 8, kind: output, shape index: {}]
  %s9 = sld [smem:[#allocation0]]
  $region65: #{hyperbolic_cnn_encoder.1} parent=0
    _
  %s11 = ssub.s32 1, %s9
  %s12 = scalar_select 0, %s11, %s9
  loop: start=0, step=1, limit=4
  $region2: #{hyperbolic_cnn_encoder.1} parent=0 // loop_pre_header
    _
  $region3: #{hyperbolic_cnn_encoder.1} parent=0 // loop_header
    %s14 = sphi 0, %s18
    %p15 = scmp.ge.s32.totalorder %s14, 4
    %s24 = sphi 0, %s26
    %s27 = sphi 0, %s24
    %s28 = sphi 0, %s27
    %s44 = sphi 0, %s28
    %s48 = sphi 0, %s48
    %s50 = sphi 0, %s48
    %s51 = sphi 0, %s50
    %s65 = sphi 0, %s51
    %s69 = sphi 0, %s69
    %s71 = sphi 0, %s69
    %s72 = sphi 0, %s71
    %s86 = sphi 0, %s72
    %s90 = sphi 0, %s90
    %s92 = sphi 0, %s90
    %s93 = sphi 0, %s92
    %s107 = sphi 0, %s93
    %s111 = sphi 0, %s111
    %s113 = sphi 0, %s111
    %s114 = sphi 0, %s113
    %s128 = sphi 0, %s114
    %s132 = sphi 0, %s132
    %s134 = sphi 0, %s132
    %s135 = sphi 0, %s134
    %s149 = sphi 0, %s135
    %s153 = sphi 0, %s153
    %s155 = sphi 0, %s153
    %s156 = sphi 0, %s155
    %s170 = sphi 0, %s156
    %s174 = sphi 0, %s174
    %s176 = sphi 0, %s174
    %s177 = sphi 0, %s176
    %s191 = sphi 0, %s177
    %s197 = sphi 0, %s199
    %s200 = sphi 0, %s197
    %s201 = sphi 0, %s200
    %s217 = sphi 0, %s201
  $region4: #{hyperbolic_cnn_encoder.1} parent=0 // loop_header_branch
    %17 = sbr.rel (%p15) target = $region8
  $region5: #{hyperbolic_cnn_encoder.1} parent=0 // loop_body
    %s19 = ssub.s32 %s14, 1
    %s20 = ssub.s32 %s14, 2
    %s21 = sadd.s32 %s14, 1
    %s22 = ssub.s32 %s14, %s21
    %p23 = scmp.eq.s32.totalorder %s22, 0
    %s25 = sadd.s32 %s24, 1
    %s26 = scalar_select %p23, %s24, %s25
    %p29 = pneg %p23
    %p30 = scmp.eq.s32.totalorder %s14, 1
    %p31 = por %p29, %p30
    %p32 = scmp.ne.s32.totalorder %s24, %s27
    %p33 = scmp.eq.s32.totalorder %s14, 0
    %p34 = por %p32, %p33
    %p35 = scmp.ne.s32.totalorder %s24, %s27
    %p36 = scmp.eq.s32.totalorder %s19, 1
    %p37 = por %p35, %p36
    %p38 = scmp.ne.s32.totalorder %s27, %s28
    %p39 = scmp.eq.s32.totalorder %s19, 0
    %p40 = por %p38, %p39
    %p41 = scmp.ne.s32.totalorder %s27, %s28
    %p42 = scmp.eq.s32.totalorder %s20, 1
    %p43 = por %p41, %p42
    %p45 = scmp.ne.s32.totalorder %s28, %s44
    %p46 = scmp.eq.s32.totalorder %s20, 0
    %p47 = por %p45, %p46
    %s49 = sadd.s32 %s48, 1
    %p52 = scmp.eq.s32.totalorder %s14, 1
    %p53 = scmp.ne.s32.totalorder %s48, %s50
    %p54 = scmp.eq.s32.totalorder %s14, 0
    %p55 = por %p53, %p54
    %p56 = scmp.ne.s32.totalorder %s48, %s50
    %p57 = scmp.eq.s32.totalorder %s19, 1
    %p58 = por %p56, %p57
    %p59 = scmp.ne.s32.totalorder %s50, %s51
    %p60 = scmp.eq.s32.totalorder %s19, 0
    %p61 = por %p59, %p60
    %p62 = scmp.ne.s32.totalorder %s50, %s51
    %p63 = scmp.eq.s32.totalorder %s20, 1
    %p64 = por %p62, %p63
    %p66 = scmp.ne.s32.totalorder %s51, %s65
    %p67 = scmp.eq.s32.totalorder %s20, 0
    %p68 = por %p66, %p67
    %s70 = sadd.s32 %s69, 1
    %p73 = scmp.eq.s32.totalorder %s14, 1
    %p74 = scmp.ne.s32.totalorder %s69, %s71
    %p75 = scmp.eq.s32.totalorder %s14, 0
    %p76 = por %p74, %p75
    %p77 = scmp.ne.s32.totalorder %s69, %s71
    %p78 = scmp.eq.s32.totalorder %s19, 1
    %p79 = por %p77, %p78
    %p80 = scmp.ne.s32.totalorder %s71, %s72
    %p81 = scmp.eq.s32.totalorder %s19, 0
    %p82 = por %p80, %p81
    %p83 = scmp.ne.s32.totalorder %s71, %s72
    %p84 = scmp.eq.s32.totalorder %s20, 1
    %p85 = por %p83, %p84
    %p87 = scmp.ne.s32.totalorder %s72, %s86
    %p88 = scmp.eq.s32.totalorder %s20, 0
    %p89 = por %p87, %p88
    %s91 = sadd.s32 %s90, 1
    %p94 = scmp.eq.s32.totalorder %s14, 1
    %p95 = scmp.ne.s32.totalorder %s90, %s92
    %p96 = scmp.eq.s32.totalorder %s14, 0
    %p97 = por %p95, %p96
    %p98 = scmp.ne.s32.totalorder %s90, %s92
    %p99 = scmp.eq.s32.totalorder %s19, 1
    %p100 = por %p98, %p99
    %p101 = scmp.ne.s32.totalorder %s92, %s93
    %p102 = scmp.eq.s32.totalorder %s19, 0
    %p103 = por %p101, %p102
    %p104 = scmp.ne.s32.totalorder %s92, %s93
    %p105 = scmp.eq.s32.totalorder %s20, 1
    %p106 = por %p104, %p105
    %p108 = scmp.ne.s32.totalorder %s93, %s107
    %p109 = scmp.eq.s32.totalorder %s20, 0
    %p110 = por %p108, %p109
    %s112 = sadd.s32 %s111, 1
    %p115 = scmp.eq.s32.totalorder %s14, 1
    %p116 = scmp.ne.s32.totalorder %s111, %s113
    %p117 = scmp.eq.s32.totalorder %s14, 0
    %p118 = por %p116, %p117
    %p119 = scmp.ne.s32.totalorder %s111, %s113
    %p120 = scmp.eq.s32.totalorder %s19, 1
    %p121 = por %p119, %p120
    %p122 = scmp.ne.s32.totalorder %s113, %s114
    %p123 = scmp.eq.s32.totalorder %s19, 0
    %p124 = por %p122, %p123
    %p125 = scmp.ne.s32.totalorder %s113, %s114
    %p126 = scmp.eq.s32.totalorder %s20, 1
    %p127 = por %p125, %p126
    %p129 = scmp.ne.s32.totalorder %s114, %s128
    %p130 = scmp.eq.s32.totalorder %s20, 0
    %p131 = por %p129, %p130
    %s133 = sadd.s32 %s132, 1
    %p136 = scmp.eq.s32.totalorder %s14, 1
    %p137 = scmp.ne.s32.totalorder %s132, %s134
    %p138 = scmp.eq.s32.totalorder %s14, 0
    %p139 = por %p137, %p138
    %p140 = scmp.ne.s32.totalorder %s132, %s134
    %p141 = scmp.eq.s32.totalorder %s19, 1
    %p142 = por %p140, %p141
    %p143 = scmp.ne.s32.totalorder %s134, %s135
    %p144 = scmp.eq.s32.totalorder %s19, 0
    %p145 = por %p143, %p144
    %p146 = scmp.ne.s32.totalorder %s134, %s135
    %p147 = scmp.eq.s32.totalorder %s20, 1
    %p148 = por %p146, %p147
    %p150 = scmp.ne.s32.totalorder %s135, %s149
    %p151 = scmp.eq.s32.totalorder %s20, 0
    %p152 = por %p150, %p151
    %s154 = sadd.s32 %s153, 1
    %p157 = scmp.eq.s32.totalorder %s14, 1
    %p158 = scmp.ne.s32.totalorder %s153, %s155
    %p159 = scmp.eq.s32.totalorder %s14, 0
    %p160 = por %p158, %p159
    %p161 = scmp.ne.s32.totalorder %s153, %s155
    %p162 = scmp.eq.s32.totalorder %s19, 1
    %p163 = por %p161, %p162
    %p164 = scmp.ne.s32.totalorder %s155, %s156
    %p165 = scmp.eq.s32.totalorder %s19, 0
    %p166 = por %p164, %p165
    %p167 = scmp.ne.s32.totalorder %s155, %s156
    %p168 = scmp.eq.s32.totalorder %s20, 1
    %p169 = por %p167, %p168
    %p171 = scmp.ne.s32.totalorder %s156, %s170
    %p172 = scmp.eq.s32.totalorder %s20, 0
    %p173 = por %p171, %p172
    %s175 = sadd.s32 %s174, 1
    %p178 = scmp.eq.s32.totalorder %s14, 1
    %p179 = scmp.ne.s32.totalorder %s174, %s176
    %p180 = scmp.eq.s32.totalorder %s14, 0
    %p181 = por %p179, %p180
    %p182 = scmp.ne.s32.totalorder %s174, %s176
    %p183 = scmp.eq.s32.totalorder %s19, 1
    %p184 = por %p182, %p183
    %p185 = scmp.ne.s32.totalorder %s176, %s177
    %p186 = scmp.eq.s32.totalorder %s19, 0
    %p187 = por %p185, %p186
    %p188 = scmp.ne.s32.totalorder %s176, %s177
    %p189 = scmp.eq.s32.totalorder %s20, 1
    %p190 = por %p188, %p189
    %p192 = scmp.ne.s32.totalorder %s177, %s191
    %p193 = scmp.eq.s32.totalorder %s20, 0
    %p194 = por %p192, %p193
    %s195 = ssub.s32 %s14, %s21
    %p196 = scmp.eq.s32.totalorder %s195, 0
    %s198 = sadd.s32 %s197, 1
    %s199 = scalar_select %p196, %s197, %s198
    %p202 = pneg %p196
    %p203 = scmp.eq.s32.totalorder %s14, 1
    %p204 = por %p202, %p203
    %p205 = scmp.ne.s32.totalorder %s197, %s200
    %p206 = scmp.eq.s32.totalorder %s14, 0
    %p207 = por %p205, %p206
    %p208 = scmp.ne.s32.totalorder %s197, %s200
    %p209 = scmp.eq.s32.totalorder %s19, 1
    %p210 = por %p208, %p209
    %p211 = scmp.ne.s32.totalorder %s200, %s201
    %p212 = scmp.eq.s32.totalorder %s19, 0
    %p213 = por %p211, %p212
    %p214 = scmp.ne.s32.totalorder %s200, %s201
    %p215 = scmp.eq.s32.totalorder %s20, 1
    %p216 = por %p214, %p215
    %p218 = scmp.ne.s32.totalorder %s201, %s217
    %p219 = scmp.eq.s32.totalorder %s20, 0
    %p220 = por %p218, %p219
    %p221 = scmp.le.s32.totalorder 1, %s14
    %p222 = scmp.lt.s32.totalorder %s14, 3
    %p223 = pnand %p221, %p222
    %p224 = pneg %p223
    // Predicated region
    $region9: #{hyperbolic_cnn_encoder.1} parent=5 // pred_check
      _
    $region10: #{hyperbolic_cnn_encoder.1} parent=5 // pred_check_branch
      %226 = sbr.rel (%p223) target = $region12
    $region11: #{hyperbolic_cnn_encoder.1} parent=5 // pred_region
      %s227 = ssub.s32 %s14, 1
      // Predicated region
      $region13: #{hyperbolic_cnn_encoder.1} parent=11 // pred_check
        %p228 = pneg %p61
      $region14: #{hyperbolic_cnn_encoder.1} parent=11 // pred_check_branch
        %230 = sbr.rel (%p228) target = $region16
      $region15: #{hyperbolic_cnn_encoder.1} parent=11 // pred_region
        _
      $region16: #{hyperbolic_cnn_encoder.1} parent=11 // pred_fallthru
        _
      // Predicated region
      $region17: #{hyperbolic_cnn_encoder.1} parent=11 // pred_check
        %p231 = pneg %p82
      $region18: #{hyperbolic_cnn_encoder.1} parent=11 // pred_check_branch
        %233 = sbr.rel (%p231) target = $region20
      $region19: #{hyperbolic_cnn_encoder.1} parent=11 // pred_region
        _
      $region20: #{hyperbolic_cnn_encoder.1} parent=11 // pred_fallthru
        _
      // Predicated region
      $region21: #{hyperbolic_cnn_encoder.1} parent=11 // pred_check
        %p234 = pneg %p103
      $region22: #{hyperbolic_cnn_encoder.1} parent=11 // pred_check_branch
        %236 = sbr.rel (%p234) target = $region24
      $region23: #{hyperbolic_cnn_encoder.1} parent=11 // pred_region
        _
      $region24: #{hyperbolic_cnn_encoder.1} parent=11 // pred_fallthru
        _
      // Predicated region
      $region25: #{hyperbolic_cnn_encoder.1} parent=11 // pred_check
        %p237 = pneg %p124
      $region26: #{hyperbolic_cnn_encoder.1} parent=11 // pred_check_branch
        %239 = sbr.rel (%p237) target = $region28
      $region27: #{hyperbolic_cnn_encoder.1} parent=11 // pred_region
        _
      $region28: #{hyperbolic_cnn_encoder.1} parent=11 // pred_fallthru
        _
      // Predicated region
      $region29: #{hyperbolic_cnn_encoder.1} parent=11 // pred_check
        %p240 = pneg %p145
      $region30: #{hyperbolic_cnn_encoder.1} parent=11 // pred_check_branch
        %242 = sbr.rel (%p240) target = $region32
      $region31: #{hyperbolic_cnn_encoder.1} parent=11 // pred_region
        _
      $region32: #{hyperbolic_cnn_encoder.1} parent=11 // pred_fallthru
        _
      // Predicated region
      $region33: #{hyperbolic_cnn_encoder.1} parent=11 // pred_check
        %p243 = pneg %p166
      $region34: #{hyperbolic_cnn_encoder.1} parent=11 // pred_check_branch
        %245 = sbr.rel (%p243) target = $region36
      $region35: #{hyperbolic_cnn_encoder.1} parent=11 // pred_region
        _
      $region36: #{hyperbolic_cnn_encoder.1} parent=11 // pred_fallthru
        _
      // Predicated region
      $region37: #{hyperbolic_cnn_encoder.1} parent=11 // pred_check
        %p246 = pneg %p187
      $region38: #{hyperbolic_cnn_encoder.1} parent=11 // pred_check_branch
        %248 = sbr.rel (%p246) target = $region40
      $region39: #{hyperbolic_cnn_encoder.1} parent=11 // pred_region
        _
      $region40: #{hyperbolic_cnn_encoder.1} parent=11 // pred_fallthru
        _
    $region12: #{hyperbolic_cnn_encoder.1} parent=5 // pred_fallthru
      _
    %p249 = scmp.lt.s32.totalorder %s14, 2
    // Predicated region
    $region41: #{hyperbolic_cnn_encoder.1} parent=5 // pred_check
      %p250 = pneg %p249
    $region42: #{hyperbolic_cnn_encoder.1} parent=5 // pred_check_branch
      %252 = sbr.rel (%p250) target = $region44
    $region43: #{hyperbolic_cnn_encoder.1} parent=5 // pred_region
      // Predicated region
      $region45: #{hyperbolic_cnn_encoder.1} parent=43 // pred_check
        %p253 = pneg %p34
      $region46: #{hyperbolic_cnn_encoder.1} parent=43 // pred_check_branch
        %255 = sbr.rel (%p253) target = $region48
      $region47: #{hyperbolic_cnn_encoder.1} parent=43 // pred_region
        %s256 = smul.u32 4, %s14
        %p257 = scmp.lt.s32.totalorder %s256, 7
        %s258 = scalar_select %p257, %s256, 7
        %s259 = smul.addr %s258, 2
        %s260 = smul.addr %s259, 4
        %s261 = scalar_lea.vmem %s0, %s260
        %s262 = smul.u32 4, %s14
      $region48: #{hyperbolic_cnn_encoder.1} parent=43 // pred_fallthru
        _
    $region44: #{hyperbolic_cnn_encoder.1} parent=5 // pred_fallthru
      _
    %p263 = scmp.le.s32.totalorder 1, %s14
    %p264 = scmp.lt.s32.totalorder %s14, 3
    %p265 = pnand %p263, %p264
    %p266 = pneg %p265
    // Predicated region
    $region49: #{hyperbolic_cnn_encoder.1} parent=5 // pred_check
      _
    $region50: #{hyperbolic_cnn_encoder.1} parent=5 // pred_check_branch
      %268 = sbr.rel (%p265) target = $region52
    $region51: #{hyperbolic_cnn_encoder.1} parent=5 // pred_region
      %s269 = ssub.s32 %s14, 1
      %s270 = smul.u32 4, %s19
      %p271 = scmp.lt.s32.totalorder %s270, 7
      %s272 = scalar_select %p271, %s270, 7
      %s273 = smul.addr %s272, 2
      %s274 = smul.addr %s273, 4
      %s275 = scalar_lea.vmem %s0, %s274
      %p276 = pneg %p40
      %p277 = pneg %p37
      %p278 = pneg %p61
      %p279 = pneg %p58
      %p280 = pneg %p82
      %p281 = pneg %p79
      %p282 = pneg %p103
      %p283 = pneg %p100
      %p284 = pneg %p124
      %p285 = pneg %p121
      %p286 = pneg %p145
      %p287 = pneg %p142
      %p288 = pneg %p166
      %p289 = pneg %p163
      %p290 = pneg %p187
      %p291 = pneg %p184
      %p292 = pneg %p213
      %p293 = pneg %p210
      %s294 = smul.u32 4, %s19
      %p295 = scmp.lt.s32.totalorder %s294, 7
      %s296 = scalar_select %p295, %s294, 7
      %s297 = smul.addr %s296, 4
      %s298 = smul.addr %s297, 8
      %s299 = scalar_lea.vmem %s8, %s298
      %s300 = smul.u32 4, %s19
      %p301 = scmp.lt.s32.totalorder %s300, 7
      %s302 = scalar_select %p301, %s300, 7
      %s303 = smul.addr %s302, 2
      %s304 = smul.addr %s303, 4
      %s305 = scalar_lea.vmem %s0, %s304
      %s306 = smul.u32 4, %s19
      %s307 = smul.u32 4, %s19
      %p308 = scmp.lt.s32.totalorder %s307, 7
      %s309 = scalar_select %p308, %s307, 7
      %s310 = smul.addr %s309, 4
      %s311 = smul.addr %s310, 8
      %s312 = scalar_lea.vmem %s8, %s311
      %s313 = smul.u32 4, %s19
      %v315 = vld [vmem:[%s305] sm:$0xf]
      %v316 = vld [vmem:[%s305 + $0x4] sm:$0xf]
      %v317 = vld [vmem:[%s305 + $0x8] sm:$0xf]
      %v318 = vld [vmem:[%s305 + $0xc] sm:$0xf]
      %v319 = vld [vmem:[%s305 + $0x10] sm:$0xf]
      %v320 = vld [vmem:[%s305 + $0x14] sm:$0xf]
      %v321 = vld [vmem:[%s305 + $0x18] sm:$0xf]
      %v322 = vld [vmem:[%s305 + $0x1c] sm:$0xf]
      %v323 = vld [vmem:[%s1] sm:$0xff]
      %v324 = vld [vmem:[%s1 + $0x8] sm:$0xff]
      %v325 = vld [vmem:[%s1 + $0x10] sm:$0xff]
      %v326 = vld [vmem:[%s1 + $0x18] sm:$0xff]
      %v327 = vld [vmem:[%s1 + $0x20] sm:$0xff]
      %v328 = vld [vmem:[%s1 + $0x28] sm:$0xff]
      %v329 = vld [vmem:[%s1 + $0x30] sm:$0xff]
      %v330 = vld [vmem:[%s1 + $0x38] sm:$0xff]
      %v331 = vld [vmem:[%s1 + $0x40] sm:$0xff]
      %v332 = vld [vmem:[%s1 + $0x48] sm:$0xff]
      %v333 = vld [vmem:[%s1 + $0x50] sm:$0xff]
      %v334 = vld [vmem:[%s1 + $0x58] sm:$0xff]
      %v335 = vld [vmem:[%s1 + $0x60] sm:$0xff]
      %v336 = vld [vmem:[%s1 + $0x68] sm:$0xff]
      %v337 = vld [vmem:[%s1 + $0x70] sm:$0xff]
      %v338 = vld [vmem:[%s1 + $0x78] sm:$0xff]
      %v339 = vld [vmem:[%s1 + $0x80] sm:$0xff]
      %v340 = vld [vmem:[%s1 + $0x88] sm:$0xff]
      %v341 = vld [vmem:[%s1 + $0x90] sm:$0xff]
      %v342 = vld [vmem:[%s1 + $0x98] sm:$0xff]
      %v343 = vld [vmem:[%s1 + $0xa0] sm:$0xff]
      %v344 = vld [vmem:[%s1 + $0xa8] sm:$0xff]
      %v345 = vld [vmem:[%s1 + $0xb0] sm:$0xff]
      %v346 = vld [vmem:[%s1 + $0xb8] sm:$0xff]
      %v347 = vld [vmem:[%s1 + $0xc0] sm:$0xff]
      %v348 = vld [vmem:[%s1 + $0xc8] sm:$0xff]
      %v349 = vld [vmem:[%s1 + $0xd0] sm:$0xff]
      %v350 = vld [vmem:[%s1 + $0xd8] sm:$0xff]
      %v351 = vld [vmem:[%s1 + $0xe0] sm:$0xff]
      %v352 = vld [vmem:[%s1 + $0xe8] sm:$0xff]
      %v353 = vld [vmem:[%s1 + $0xf0] sm:$0xff]
      %v354 = vld [vmem:[%s1 + $0xf8] sm:$0xff]
      %v355 = vld [vmem:[%s2] sm:$0xf]
      %v357 = vlaneseq
      %v358 = vshrl.u32 %v357, 7
      %v359 = vsub.s32 0, %v358
      %v360 = vrot.slane %v355, %v359
      %v361 = vlaneseq
      %v362 = vshrl.u32 %v361, 7
      %v363 = vsub.s32 1, %v362
      %v364 = vrot.slane %v355, %v363
      %v365 = vlaneseq
      %v366 = vshrl.u32 %v365, 7
      %v367 = vsub.s32 2, %v366
      %v368 = vrot.slane %v355, %v367
      %v369 = vlaneseq
      %v370 = vshrl.u32 %v369, 7
      %v371 = vsub.s32 3, %v370
      %v372 = vrot.slane %v355, %v371
      %v385 = vunpack.c.l.b16 %v315
      %v386 = vunpack.c.l.b16 %v316
      %v387 = vunpack.c.l.b16 %v317
      %v388 = vunpack.c.l.b16 %v318
      %v389 = vunpack.c.l.b16 %v319
      %v390 = vunpack.c.l.b16 %v320
      %v391 = vunpack.c.l.b16 %v321
      %v392 = vunpack.c.l.b16 %v322
      %v393 = vpack.c.b16 %v386, %v385
      %v394 = vpack.c.b16 %v388, %v387
      %v395 = vpack.c.b16 %v390, %v389
      %v396 = vpack.c.b16 %v392, %v391
      %v433 = vunpack.c.l.b16 %v323
      %v434 = vunpack.c.h.b16 %v323
      %v435 = vunpack.c.l.b16 %v324
      %v436 = vunpack.c.h.b16 %v324
      %v437 = vunpack.c.l.b16 %v325
      %v438 = vunpack.c.h.b16 %v325
      %v439 = vunpack.c.l.b16 %v326
      %v440 = vunpack.c.h.b16 %v326
      %v441 = vunpack.c.l.b16 %v327
      %v442 = vunpack.c.h.b16 %v327
      %v443 = vunpack.c.l.b16 %v328
      %v444 = vunpack.c.h.b16 %v328
      %v445 = vunpack.c.l.b16 %v329
      %v446 = vunpack.c.h.b16 %v329
      %v447 = vunpack.c.l.b16 %v330
      %v448 = vunpack.c.h.b16 %v330
      %v449 = vunpack.c.l.b16 %v331
      %v450 = vunpack.c.h.b16 %v331
      %v451 = vunpack.c.l.b16 %v332
      %v452 = vunpack.c.h.b16 %v332
      %v453 = vunpack.c.l.b16 %v333
      %v454 = vunpack.c.h.b16 %v333
      %v455 = vunpack.c.l.b16 %v334
      %v456 = vunpack.c.h.b16 %v334
      %v457 = vunpack.c.l.b16 %v335
      %v458 = vunpack.c.h.b16 %v335
      %v459 = vunpack.c.l.b16 %v336
      %v460 = vunpack.c.h.b16 %v336
      %v461 = vunpack.c.l.b16 %v337
      %v462 = vunpack.c.h.b16 %v337
      %v463 = vunpack.c.l.b16 %v338
      %v464 = vunpack.c.h.b16 %v338
      %v465 = vunpack.c.l.b16 %v339
      %v466 = vunpack.c.h.b16 %v339
      %v467 = vunpack.c.l.b16 %v340
      %v468 = vunpack.c.h.b16 %v340
      %v469 = vunpack.c.l.b16 %v341
      %v470 = vunpack.c.h.b16 %v341
      %v471 = vunpack.c.l.b16 %v342
      %v472 = vunpack.c.h.b16 %v342
      %v473 = vunpack.c.l.b16 %v343
      %v474 = vunpack.c.h.b16 %v343
      %v475 = vunpack.c.l.b16 %v344
      %v476 = vunpack.c.h.b16 %v344
      %v477 = vunpack.c.l.b16 %v345
      %v478 = vunpack.c.h.b16 %v345
      %v479 = vunpack.c.l.b16 %v346
      %v480 = vunpack.c.h.b16 %v346
      %v481 = vunpack.c.l.b16 %v347
      %v482 = vunpack.c.h.b16 %v347
      %v483 = vunpack.c.l.b16 %v348
      %v484 = vunpack.c.h.b16 %v348
      %v485 = vunpack.c.l.b16 %v349
      %v486 = vunpack.c.h.b16 %v349
      %v487 = vunpack.c.l.b16 %v350
      %v488 = vunpack.c.h.b16 %v350
      %v489 = vunpack.c.l.b16 %v351
      %v490 = vunpack.c.h.b16 %v351
      %v491 = vunpack.c.l.b16 %v352
      %v492 = vunpack.c.h.b16 %v352
      %v493 = vunpack.c.l.b16 %v353
      %v494 = vunpack.c.h.b16 %v353
      %v495 = vunpack.c.l.b16 %v354
      %v496 = vunpack.c.h.b16 %v354
      %v497 = vpack.c.b16 %v437, %v433
      %v498 = vpack.c.b16 %v438, %v434
      %v499 = vpack.c.b16 %v439, %v435
      %v500 = vpack.c.b16 %v440, %v436
      %v501 = vpack.c.b16 %v445, %v441
      %v502 = vpack.c.b16 %v446, %v442
      %v503 = vpack.c.b16 %v447, %v443
      %v504 = vpack.c.b16 %v448, %v444
      %v505 = vpack.c.b16 %v453, %v449
      %v506 = vpack.c.b16 %v454, %v450
      %v507 = vpack.c.b16 %v455, %v451
      %v508 = vpack.c.b16 %v456, %v452
      %v509 = vpack.c.b16 %v461, %v457
      %v510 = vpack.c.b16 %v462, %v458
      %v511 = vpack.c.b16 %v463, %v459
      %v512 = vpack.c.b16 %v464, %v460
      %v513 = vpack.c.b16 %v469, %v465
      %v514 = vpack.c.b16 %v470, %v466
      %v515 = vpack.c.b16 %v471, %v467
      %v516 = vpack.c.b16 %v472, %v468
      %v517 = vpack.c.b16 %v477, %v473
      %v518 = vpack.c.b16 %v478, %v474
      %v519 = vpack.c.b16 %v479, %v475
      %v520 = vpack.c.b16 %v480, %v476
      %v521 = vpack.c.b16 %v485, %v481
      %v522 = vpack.c.b16 %v486, %v482
      %v523 = vpack.c.b16 %v487, %v483
      %v524 = vpack.c.b16 %v488, %v484
      %v525 = vpack.c.b16 %v493, %v489
      %v526 = vpack.c.b16 %v494, %v490
      %v527 = vpack.c.b16 %v495, %v491
      %v528 = vpack.c.b16 %v496, %v492
      %561 = vmatprep.subr.bf16.mxu0 %v498
      %562 = vmatpush1.bf16.msra.mxu0 %v497
      %563 = vmatprep.subr.bf16.mxu0 %v502
      %564 = vmatpush1.bf16.msra.mxu0 %v501
      %565 = vmatprep.subr.bf16.mxu0 %v506
      %566 = vmatpush1.bf16.msra.mxu0 %v505
      %567 = vmatprep.subr.bf16.mxu0 %v510
      %568 = vmatpush1.bf16.msra.mxu0 %v509
      %569 = vmatprep.subr.bf16.mxu0 %v514
      %570 = vmatpush1.bf16.msra.mxu0 %v513
      %571 = vmatprep.subr.bf16.mxu0 %v518
      %572 = vmatpush1.bf16.msra.mxu0 %v517
      %573 = vmatprep.subr.bf16.mxu0 %v522
      %574 = vmatpush1.bf16.msra.mxu0 %v521
      %575 = vmatprep.subr.bf16.mxu0 %v526
      %576 = vmatpush1.bf16.msra.mxu0 %v525
      %577 = vmatprep.subr.bf16.mxu0 0
      %578 = vmatpush1.bf16.msra.mxu0 0
      %579 = vmatprep.subr.bf16.mxu0 0
      %580 = vmatpush1.bf16.msra.mxu0 0
      %581 = vmatprep.subr.bf16.mxu0 0
      %582 = vmatpush1.bf16.msra.mxu0 0
      %583 = vmatprep.subr.bf16.mxu0 0
      %584 = vmatpush1.bf16.msra.mxu0 0
      %585 = vmatprep.subr.bf16.mxu0 0
      %586 = vmatpush1.bf16.msra.mxu0 0
      %587 = vmatprep.subr.bf16.mxu0 0
      %588 = vmatpush1.bf16.msra.mxu0 0
      %589 = vmatprep.subr.bf16.mxu0 0
      %590 = vmatpush1.bf16.msra.mxu0 0
      %591 = vmatprep.subr.bf16.mxu0 0
      %592 = vmatpush1.bf16.msra.mxu0 0
      %593 = vmatprep.mubr.bf16.mxu0 0
      %594 = vmatmul.mubr.bf16.gmra.mrb[0].mxu0 %v393
      %v595 = vpop.f32.mrb[0].mxu0
      %v596 = vadd.f32 %v360, %v595
      %v597 = vpop.f32.mrb[0].mxu0
      %v598 = vadd.f32 %v364, %v597
      %v599 = vpop.f32.mrb[0].mxu0
      %v600 = vadd.f32 %v360, %v599
      %v601 = vpop.f32.mrb[0].mxu0
      %v602 = vadd.f32 %v364, %v601
      %603 = vmatprep.mubr.bf16.mxu0 0
      %604 = vmatmul.mubr.bf16.gmra.mrb[0].mxu0 %v394
      %v605 = vpop.f32.mrb[0].mxu0
      %v606 = vadd.f32 %v360, %v605
      %v607 = vpop.f32.mrb[0].mxu0
      %v608 = vadd.f32 %v364, %v607
      %v609 = vpop.f32.mrb[0].mxu0
      %v610 = vadd.f32 %v360, %v609
      %v611 = vpop.f32.mrb[0].mxu0
      %v612 = vadd.f32 %v364, %v611
      %613 = vmatprep.mubr.bf16.mxu0 0
      %614 = vmatmul.mubr.bf16.gmra.mrb[0].mxu0 %v395
      %v615 = vpop.f32.mrb[0].mxu0
      %v616 = vadd.f32 %v360, %v615
      %v617 = vpop.f32.mrb[0].mxu0
      %v618 = vadd.f32 %v364, %v617
      %v619 = vpop.f32.mrb[0].mxu0
      %v620 = vadd.f32 %v360, %v619
      %v621 = vpop.f32.mrb[0].mxu0
      %v622 = vadd.f32 %v364, %v621
      %623 = vmatprep.mubr.bf16.mxu0 0
      %624 = vmatmul.mubr.bf16.gmra.mrb[0].mxu0 %v396
      %v625 = vpop.f32.mrb[0].mxu0
      %v626 = vadd.f32 %v360, %v625
      %v627 = vpop.f32.mrb[0].mxu0
      %v628 = vadd.f32 %v364, %v627
      %v629 = vpop.f32.mrb[0].mxu0
      %v630 = vadd.f32 %v360, %v629
      %v631 = vpop.f32.mrb[0].mxu0
      %v632 = vadd.f32 %v364, %v631
      %633 = vdwg.mxu0
      %634 = vmatprep.subr.bf16.mxu0 %v500
      %635 = vmatpush1.bf16.msra.mxu0 %v499
      %636 = vmatprep.subr.bf16.mxu0 %v504
      %637 = vmatpush1.bf16.msra.mxu0 %v503
      %638 = vmatprep.subr.bf16.mxu0 %v508
      %639 = vmatpush1.bf16.msra.mxu0 %v507
      %640 = vmatprep.subr.bf16.mxu0 %v512
      %641 = vmatpush1.bf16.msra.mxu0 %v511
      %642 = vmatprep.subr.bf16.mxu0 %v516
      %643 = vmatpush1.bf16.msra.mxu0 %v515
      %644 = vmatprep.subr.bf16.mxu0 %v520
      %645 = vmatpush1.bf16.msra.mxu0 %v519
      %646 = vmatprep.subr.bf16.mxu0 %v524
      %647 = vmatpush1.bf16.msra.mxu0 %v523
      %648 = vmatprep.subr.bf16.mxu0 %v528
      %649 = vmatpush1.bf16.msra.mxu0 %v527
      %650 = vmatprep.subr.bf16.mxu0 0
      %651 = vmatpush1.bf16.msra.mxu0 0
      %652 = vmatprep.subr.bf16.mxu0 0
      %653 = vmatpush1.bf16.msra.mxu0 0
      %654 = vmatprep.subr.bf16.mxu0 0
      %655 = vmatpush1.bf16.msra.mxu0 0
      %656 = vmatprep.subr.bf16.mxu0 0
      %657 = vmatpush1.bf16.msra.mxu0 0
      %658 = vmatprep.subr.bf16.mxu0 0
      %659 = vmatpush1.bf16.msra.mxu0 0
      %660 = vmatprep.subr.bf16.mxu0 0
      %661 = vmatpush1.bf16.msra.mxu0 0
      %662 = vmatprep.subr.bf16.mxu0 0
      %663 = vmatpush1.bf16.msra.mxu0 0
      %664 = vmatprep.subr.bf16.mxu0 0
      %665 = vmatpush1.bf16.msra.mxu0 0
      %666 = vmatprep.mubr.bf16.mxu0 0
      %667 = vmatmul.mubr.bf16.gmra.mrb[0].mxu0 %v393
      %v668 = vpop.f32.mrb[0].mxu0
      %v669 = vadd.f32 %v368, %v668
      %v670 = vpop.f32.mrb[0].mxu0
      %v671 = vadd.f32 %v372, %v670
      %v672 = vpop.f32.mrb[0].mxu0
      %v673 = vadd.f32 %v368, %v672
      %v674 = vpop.f32.mrb[0].mxu0
      %v675 = vadd.f32 %v372, %v674
      %676 = vmatprep.mubr.bf16.mxu0 0
      %677 = vmatmul.mubr.bf16.gmra.mrb[0].mxu0 %v394
      %v678 = vpop.f32.mrb[0].mxu0
      %v679 = vadd.f32 %v368, %v678
      %v680 = vpop.f32.mrb[0].mxu0
      %v681 = vadd.f32 %v372, %v680
      %v682 = vpop.f32.mrb[0].mxu0
      %v683 = vadd.f32 %v368, %v682
      %v684 = vpop.f32.mrb[0].mxu0
      %v685 = vadd.f32 %v372, %v684
      %686 = vmatprep.mubr.bf16.mxu0 0
      %687 = vmatmul.mubr.bf16.gmra.mrb[0].mxu0 %v395
      %v688 = vpop.f32.mrb[0].mxu0
      %v689 = vadd.f32 %v368, %v688
      %v690 = vpop.f32.mrb[0].mxu0
      %v691 = vadd.f32 %v372, %v690
      %v692 = vpop.f32.mrb[0].mxu0
      %v693 = vadd.f32 %v368, %v692
      %v694 = vpop.f32.mrb[0].mxu0
      %v695 = vadd.f32 %v372, %v694
      %696 = vmatprep.mubr.bf16.mxu0 0
      %697 = vmatmul.mubr.bf16.gmra.mrb[0].mxu0 %v396
      %v698 = vpop.f32.mrb[0].mxu0
      %v699 = vadd.f32 %v368, %v698
      %v700 = vpop.f32.mrb[0].mxu0
      %v701 = vadd.f32 %v372, %v700
      %v702 = vpop.f32.mrb[0].mxu0
      %v703 = vadd.f32 %v368, %v702
      %v704 = vpop.f32.mrb[0].mxu0
      %v705 = vadd.f32 %v372, %v704
      %706 = vdwg.mxu0
      %v707 = vmul.f32 %v596, %v596
      %v708 = vmul.f32 %v598, %v598
      %v709 = vmul.f32 %v669, %v669
      %v710 = vmul.f32 %v671, %v671
      %v711 = vmul.f32 %v600, %v600
      %v712 = vmul.f32 %v602, %v602
      %v713 = vmul.f32 %v673, %v673
      %v714 = vmul.f32 %v675, %v675
      %v715 = vmul.f32 %v606, %v606
      %v716 = vmul.f32 %v608, %v608
      %v717 = vmul.f32 %v679, %v679
      %v718 = vmul.f32 %v681, %v681
      %v719 = vmul.f32 %v610, %v610
      %v720 = vmul.f32 %v612, %v612
      %v721 = vmul.f32 %v683, %v683
      %v722 = vmul.f32 %v685, %v685
      %v723 = vmul.f32 %v616, %v616
      %v724 = vmul.f32 %v618, %v618
      %v725 = vmul.f32 %v689, %v689
      %v726 = vmul.f32 %v691, %v691
      %v727 = vmul.f32 %v620, %v620
      %v728 = vmul.f32 %v622, %v622
      %v729 = vmul.f32 %v693, %v693
      %v730 = vmul.f32 %v695, %v695
      %v731 = vmul.f32 %v626, %v626
      %v732 = vmul.f32 %v628, %v628
      %v733 = vmul.f32 %v699, %v699
      %v734 = vmul.f32 %v701, %v701
      %v735 = vmul.f32 %v630, %v630
      %v736 = vmul.f32 %v632, %v632
      %v737 = vmul.f32 %v703, %v703
      %v738 = vmul.f32 %v705, %v705
      %v739 = vpack.c.bf16 %v711, %v707
      %v740 = vpack.c.bf16 %v712, %v708
      %v741 = vpack.c.bf16 %v713, %v709
      %v742 = vpack.c.bf16 %v714, %v710
      %v743 = vpack.c.bf16 %v719, %v715
      %v744 = vpack.c.bf16 %v720, %v716
      %v745 = vpack.c.bf16 %v721, %v717
      %v746 = vpack.c.bf16 %v722, %v718
      %v747 = vpack.c.bf16 %v727, %v723
      %v748 = vpack.c.bf16 %v728, %v724
      %v749 = vpack.c.bf16 %v729, %v725
      %v750 = vpack.c.bf16 %v730, %v726
      %v751 = vpack.c.bf16 %v735, %v731
      %v752 = vpack.c.bf16 %v736, %v732
      %v753 = vpack.c.bf16 %v737, %v733
      %v754 = vpack.c.bf16 %v738, %v734
      %v755 = vld [vmem:[%s3] sm:$0xf]
      %v756 = vld [vmem:[%s3 + $0x4] sm:$0xf]
      %v757 = vld [vmem:[%s3 + $0x8] sm:$0xf]
      %v758 = vld [vmem:[%s3 + $0xc] sm:$0xf]
      %v759 = vld [vmem:[%s3 + $0x10] sm:$0xf]
      %v760 = vld [vmem:[%s3 + $0x14] sm:$0xf]
      %v761 = vld [vmem:[%s3 + $0x18] sm:$0xf]
      %v762 = vld [vmem:[%s3 + $0x1c] sm:$0xf]
      %v763 = vld [vmem:[%s3 + $0x20] sm:$0xf]
      %v764 = vld [vmem:[%s3 + $0x24] sm:$0xf]
      %v765 = vld [vmem:[%s3 + $0x28] sm:$0xf]
      %v766 = vld [vmem:[%s3 + $0x2c] sm:$0xf]
      %v767 = vld [vmem:[%s3 + $0x30] sm:$0xf]
      %v768 = vld [vmem:[%s3 + $0x34] sm:$0xf]
      %v769 = vld [vmem:[%s3 + $0x38] sm:$0xf]
      %v770 = vld [vmem:[%s3 + $0x3c] sm:$0xf]
      %v771 = vld [vmem:[%s3 + $0x40] sm:$0xf]
      %v772 = vld [vmem:[%s3 + $0x44] sm:$0xf]
      %v773 = vld [vmem:[%s3 + $0x48] sm:$0xf]
      %v774 = vld [vmem:[%s3 + $0x4c] sm:$0xf]
      %v775 = vld [vmem:[%s3 + $0x50] sm:$0xf]
      %v776 = vld [vmem:[%s3 + $0x54] sm:$0xf]
      %v777 = vld [vmem:[%s3 + $0x58] sm:$0xf]
      %v778 = vld [vmem:[%s3 + $0x5c] sm:$0xf]
      %v779 = vld [vmem:[%s3 + $0x60] sm:$0xf]
      %v780 = vld [vmem:[%s3 + $0x64] sm:$0xf]
      %v781 = vld [vmem:[%s3 + $0x68] sm:$0xf]
      %v782 = vld [vmem:[%s3 + $0x6c] sm:$0xf]
      %v783 = vld [vmem:[%s3 + $0x70] sm:$0xf]
      %v784 = vld [vmem:[%s3 + $0x74] sm:$0xf]
      %v785 = vld [vmem:[%s3 + $0x78] sm:$0xf]
      %v786 = vld [vmem:[%s3 + $0x7c] sm:$0xf]
      %v787 = vld [vmem:[%s3 + $0x80] sm:$0xf]
      %v788 = vld [vmem:[%s3 + $0x84] sm:$0xf]
      %v789 = vld [vmem:[%s3 + $0x88] sm:$0xf]
      %v790 = vld [vmem:[%s3 + $0x8c] sm:$0xf]
      %v791 = vld [vmem:[%s3 + $0x90] sm:$0xf]
      %v792 = vld [vmem:[%s3 + $0x94] sm:$0xf]
      %v793 = vld [vmem:[%s3 + $0x98] sm:$0xf]
      %v794 = vld [vmem:[%s3 + $0x9c] sm:$0xf]
      %v795 = vld [vmem:[%s3 + $0xa0] sm:$0xf]
      %v796 = vld [vmem:[%s3 + $0xa4] sm:$0xf]
      %v797 = vld [vmem:[%s3 + $0xa8] sm:$0xf]
      %v798 = vld [vmem:[%s3 + $0xac] sm:$0xf]
      %v799 = vld [vmem:[%s3 + $0xb0] sm:$0xf]
      %v800 = vld [vmem:[%s3 + $0xb4] sm:$0xf]
      %v801 = vld [vmem:[%s3 + $0xb8] sm:$0xf]
      %v802 = vld [vmem:[%s3 + $0xbc] sm:$0xf]
      %v803 = vld [vmem:[%s3 + $0xc0] sm:$0xf]
      %v804 = vld [vmem:[%s3 + $0xc4] sm:$0xf]
      %v805 = vld [vmem:[%s3 + $0xc8] sm:$0xf]
      %v806 = vld [vmem:[%s3 + $0xcc] sm:$0xf]
      %v807 = vld [vmem:[%s3 + $0xd0] sm:$0xf]
      %v808 = vld [vmem:[%s3 + $0xd4] sm:$0xf]
      %v809 = vld [vmem:[%s3 + $0xd8] sm:$0xf]
      %v810 = vld [vmem:[%s3 + $0xdc] sm:$0xf]
      %v811 = vld [vmem:[%s3 + $0xe0] sm:$0xf]
      %v812 = vld [vmem:[%s3 + $0xe4] sm:$0xf]
      %v813 = vld [vmem:[%s3 + $0xe8] sm:$0xf]
      %v814 = vld [vmem:[%s3 + $0xec] sm:$0xf]
      %v815 = vld [vmem:[%s3 + $0xf0] sm:$0xf]
      %v816 = vld [vmem:[%s3 + $0xf4] sm:$0xf]
      %v817 = vld [vmem:[%s3 + $0xf8] sm:$0xf]
      %v818 = vld [vmem:[%s3 + $0xfc] sm:$0xf]
      %v883 = vunpack.c.l.b16 %v755
      %v884 = vunpack.c.l.b16 %v756
      %v885 = vunpack.c.l.b16 %v757
      %v886 = vunpack.c.l.b16 %v758
      %v887 = vunpack.c.l.b16 %v759
      %v888 = vunpack.c.l.b16 %v760
      %v889 = vunpack.c.l.b16 %v761
      %v890 = vunpack.c.l.b16 %v762
      %v891 = vunpack.c.l.b16 %v763
      %v892 = vunpack.c.l.b16 %v764
      %v893 = vunpack.c.l.b16 %v765
      %v894 = vunpack.c.l.b16 %v766
      %v895 = vunpack.c.l.b16 %v767
      %v896 = vunpack.c.l.b16 %v768
      %v897 = vunpack.c.l.b16 %v769
      %v898 = vunpack.c.l.b16 %v770
      %v899 = vunpack.c.l.b16 %v771
      %v900 = vunpack.c.l.b16 %v772
      %v901 = vunpack.c.l.b16 %v773
      %v902 = vunpack.c.l.b16 %v774
      %v903 = vunpack.c.l.b16 %v775
      %v904 = vunpack.c.l.b16 %v776
      %v905 = vunpack.c.l.b16 %v777
      %v906 = vunpack.c.l.b16 %v778
      %v907 = vunpack.c.l.b16 %v779
      %v908 = vunpack.c.l.b16 %v780
      %v909 = vunpack.c.l.b16 %v781
      %v910 = vunpack.c.l.b16 %v782
      %v911 = vunpack.c.l.b16 %v783
      %v912 = vunpack.c.l.b16 %v784
      %v913 = vunpack.c.l.b16 %v785
      %v914 = vunpack.c.l.b16 %v786
      %v915 = vunpack.c.l.b16 %v787
      %v916 = vunpack.c.l.b16 %v788
      %v917 = vunpack.c.l.b16 %v789
      %v918 = vunpack.c.l.b16 %v790
      %v919 = vunpack.c.l.b16 %v791
      %v920 = vunpack.c.l.b16 %v792
      %v921 = vunpack.c.l.b16 %v793
      %v922 = vunpack.c.l.b16 %v794
      %v923 = vunpack.c.l.b16 %v795
      %v924 = vunpack.c.l.b16 %v796
      %v925 = vunpack.c.l.b16 %v797
      %v926 = vunpack.c.l.b16 %v798
      %v927 = vunpack.c.l.b16 %v799
      %v928 = vunpack.c.l.b16 %v800
      %v929 = vunpack.c.l.b16 %v801
      %v930 = vunpack.c.l.b16 %v802
      %v931 = vunpack.c.l.b16 %v803
      %v932 = vunpack.c.l.b16 %v804
      %v933 = vunpack.c.l.b16 %v805
      %v934 = vunpack.c.l.b16 %v806
      %v935 = vunpack.c.l.b16 %v807
      %v936 = vunpack.c.l.b16 %v808
      %v937 = vunpack.c.l.b16 %v809
      %v938 = vunpack.c.l.b16 %v810
      %v939 = vunpack.c.l.b16 %v811
      %v940 = vunpack.c.l.b16 %v812
      %v941 = vunpack.c.l.b16 %v813
      %v942 = vunpack.c.l.b16 %v814
      %v943 = vunpack.c.l.b16 %v815
      %v944 = vunpack.c.l.b16 %v816
      %v945 = vunpack.c.l.b16 %v817
      %v946 = vunpack.c.l.b16 %v818
      %v947 = vpack.c.b16 %v884, %v883
      %v948 = vpack.c.b16 %v886, %v885
      %v949 = vpack.c.b16 %v888, %v887
      %v950 = vpack.c.b16 %v890, %v889
      %v951 = vpack.c.b16 %v892, %v891
      %v952 = vpack.c.b16 %v894, %v893
      %v953 = vpack.c.b16 %v896, %v895
      %v954 = vpack.c.b16 %v898, %v897
      %v955 = vpack.c.b16 %v900, %v899
      %v956 = vpack.c.b16 %v902, %v901
      %v957 = vpack.c.b16 %v904, %v903
      %v958 = vpack.c.b16 %v906, %v905
      %v959 = vpack.c.b16 %v908, %v907
      %v960 = vpack.c.b16 %v910, %v909
      %v961 = vpack.c.b16 %v912, %v911
      %v962 = vpack.c.b16 %v914, %v913
      %v963 = vpack.c.b16 %v916, %v915
      %v964 = vpack.c.b16 %v918, %v917
      %v965 = vpack.c.b16 %v920, %v919
      %v966 = vpack.c.b16 %v922, %v921
      %v967 = vpack.c.b16 %v924, %v923
      %v968 = vpack.c.b16 %v926, %v925
      %v969 = vpack.c.b16 %v928, %v927
      %v970 = vpack.c.b16 %v930, %v929
      %v971 = vpack.c.b16 %v932, %v931
      %v972 = vpack.c.b16 %v934, %v933
      %v973 = vpack.c.b16 %v936, %v935
      %v974 = vpack.c.b16 %v938, %v937
      %v975 = vpack.c.b16 %v940, %v939
      %v976 = vpack.c.b16 %v942, %v941
      %v977 = vpack.c.b16 %v944, %v943
      %v978 = vpack.c.b16 %v946, %v945
      %1011 = vmatprep.subr.bf16.mxu0 0
      %1012 = vmatpush1.bf16.msra.mxu0 %v947
      %1013 = vmatprep.subr.bf16.mxu0 0
      %1014 = vmatpush1.bf16.msra.mxu0 %v948
      %1015 = vmatprep.subr.bf16.mxu0 0
      %1016 = vmatpush1.bf16.msra.mxu0 %v949
      %1017 = vmatprep.subr.bf16.mxu0 0
      %1018 = vmatpush1.bf16.msra.mxu0 %v950
      %1019 = vmatprep.subr.bf16.mxu0 0
      %1020 = vmatpush1.bf16.msra.mxu0 %v951
      %1021 = vmatprep.subr.bf16.mxu0 0
      %1022 = vmatpush1.bf16.msra.mxu0 %v952
      %1023 = vmatprep.subr.bf16.mxu0 0
      %1024 = vmatpush1.bf16.msra.mxu0 %v953
      %1025 = vmatprep.subr.bf16.mxu0 0
      %1026 = vmatpush1.bf16.msra.mxu0 %v954
      %1027 = vmatprep.subr.bf16.mxu0 0
      %1028 = vmatpush1.bf16.msra.mxu0 %v955
      %1029 = vmatprep.subr.bf16.mxu0 0
      %1030 = vmatpush1.bf16.msra.mxu0 %v956
      %1031 = vmatprep.subr.bf16.mxu0 0
      %1032 = vmatpush1.bf16.msra.mxu0 %v957
      %1033 = vmatprep.subr.bf16.mxu0 0
      %1034 = vmatpush1.bf16.msra.mxu0 %v958
      %1035 = vmatprep.subr.bf16.mxu0 0
      %1036 = vmatpush1.bf16.msra.mxu0 %v959
      %1037 = vmatprep.subr.bf16.mxu0 0
      %1038 = vmatpush1.bf16.msra.mxu0 %v960
      %1039 = vmatprep.subr.bf16.mxu0 0
      %1040 = vmatpush1.bf16.msra.mxu0 %v961
      %1041 = vmatprep.subr.bf16.mxu0 0
      %1042 = vmatpush1.bf16.msra.mxu0 %v962
      %1043 = vmatprep.mubr.bf16.mxu0 %v740
      %1044 = vmatmul.mubr.bf16.gmra.mrb[0].mxu0 %v739
      %v1045 = vpop.f32.mrb[0].mxu0
      %v1046 = vadd.f32 0.0, %v1045
      %v1047 = vpop.f32.mrb[0].mxu0
      %v1048 = vpop.f32.mrb[0].mxu0
      %v1049 = vadd.f32 0.0, %v1048
      %v1050 = vpop.f32.mrb[0].mxu0
      %1051 = vmatprep.mubr.bf16.mxu0 %v744
      %1052 = vmatmul.mubr.bf16.gmra.mrb[0].mxu0 %v743
      %v1053 = vpop.f32.mrb[0].mxu0
      %v1054 = vadd.f32 0.0, %v1053
      %v1055 = vpop.f32.mrb[0].mxu0
      %v1056 = vpop.f32.mrb[0].mxu0
      %v1057 = vadd.f32 0.0, %v1056
      %v1058 = vpop.f32.mrb[0].mxu0
      %1059 = vmatprep.mubr.bf16.mxu0 %v748
      %1060 = vmatmul.mubr.bf16.gmra.mrb[0].mxu0 %v747
      %v1061 = vpop.f32.mrb[0].mxu0
      %v1062 = vadd.f32 0.0, %v1061
      %v1063 = vpop.f32.mrb[0].mxu0
      %v1064 = vpop.f32.mrb[0].mxu0
      %v1065 = vadd.f32 0.0, %v1064
      %v1066 = vpop.f32.mrb[0].mxu0
      %1067 = vmatprep.mubr.bf16.mxu0 %v752
      %1068 = vmatmul.mubr.bf16.gmra.mrb[0].mxu0 %v751
      %v1069 = vpop.f32.mrb[0].mxu0
      %v1070 = vadd.f32 0.0, %v1069
      %v1071 = vpop.f32.mrb[0].mxu0
      %v1072 = vpop.f32.mrb[0].mxu0
      %v1073 = vadd.f32 0.0, %v1072
      %v1074 = vpop.f32.mrb[0].mxu0
      %1075 = vdwg.mxu0
      %1076 = vmatprep.subr.bf16.mxu0 0
      %1077 = vmatpush1.bf16.msra.mxu0 %v963
      %1078 = vmatprep.subr.bf16.mxu0 0
      %1079 = vmatpush1.bf16.msra.mxu0 %v964
      %1080 = vmatprep.subr.bf16.mxu0 0
      %1081 = vmatpush1.bf16.msra.mxu0 %v965
      %1082 = vmatprep.subr.bf16.mxu0 0
      %1083 = vmatpush1.bf16.msra.mxu0 %v966
      %1084 = vmatprep.subr.bf16.mxu0 0
      %1085 = vmatpush1.bf16.msra.mxu0 %v967
      %1086 = vmatprep.subr.bf16.mxu0 0
      %1087 = vmatpush1.bf16.msra.mxu0 %v968
      %1088 = vmatprep.subr.bf16.mxu0 0
      %1089 = vmatpush1.bf16.msra.mxu0 %v969
      %1090 = vmatprep.subr.bf16.mxu0 0
      %1091 = vmatpush1.bf16.msra.mxu0 %v970
      %1092 = vmatprep.subr.bf16.mxu0 0
      %1093 = vmatpush1.bf16.msra.mxu0 %v971
      %1094 = vmatprep.subr.bf16.mxu0 0
      %1095 = vmatpush1.bf16.msra.mxu0 %v972
      %1096 = vmatprep.subr.bf16.mxu0 0
      %1097 = vmatpush1.bf16.msra.mxu0 %v973
      %1098 = vmatprep.subr.bf16.mxu0 0
      %1099 = vmatpush1.bf16.msra.mxu0 %v974
      %1100 = vmatprep.subr.bf16.mxu0 0
      %1101 = vmatpush1.bf16.msra.mxu0 %v975
      %1102 = vmatprep.subr.bf16.mxu0 0
      %1103 = vmatpush1.bf16.msra.mxu0 %v976
      %1104 = vmatprep.subr.bf16.mxu0 0
      %1105 = vmatpush1.bf16.msra.mxu0 %v977
      %1106 = vmatprep.subr.bf16.mxu0 0
      %1107 = vmatpush1.bf16.msra.mxu0 %v978
      %1108 = vmatprep.mubr.bf16.mxu0 %v742
      %1109 = vmatmul.mubr.bf16.gmra.mrb[0].mxu0 %v741
      %v1110 = vpop.f32.mrb[0].mxu0
      %v1111 = vadd.f32 %v1046, %v1110
      %v1112 = vpop.f32.mrb[0].mxu0
      %v1113 = vpop.f32.mrb[0].mxu0
      %v1114 = vadd.f32 %v1049, %v1113
      %v1115 = vpop.f32.mrb[0].mxu0
      %1116 = vmatprep.mubr.bf16.mxu0 %v746
      %1117 = vmatmul.mubr.bf16.gmra.mrb[0].mxu0 %v745
      %v1118 = vpop.f32.mrb[0].mxu0
      %v1119 = vadd.f32 %v1054, %v1118
      %v1120 = vpop.f32.mrb[0].mxu0
      %v1121 = vpop.f32.mrb[0].mxu0
      %v1122 = vadd.f32 %v1057, %v1121
      %v1123 = vpop.f32.mrb[0].mxu0
      %1124 = vmatprep.mubr.bf16.mxu0 %v750
      %1125 = vmatmul.mubr.bf16.gmra.mrb[0].mxu0 %v749
      %v1126 = vpop.f32.mrb[0].mxu0
      %v1127 = vadd.f32 %v1062, %v1126
      %v1128 = vpop.f32.mrb[0].mxu0
      %v1129 = vpop.f32.mrb[0].mxu0
      %v1130 = vadd.f32 %v1065, %v1129
      %v1131 = vpop.f32.mrb[0].mxu0
      %1132 = vmatprep.mubr.bf16.mxu0 %v754
      %1133 = vmatmul.mubr.bf16.gmra.mrb[0].mxu0 %v753
      %v1134 = vpop.f32.mrb[0].mxu0
      %v1135 = vadd.f32 %v1070, %v1134
      %v1136 = vpop.f32.mrb[0].mxu0
      %v1137 = vpop.f32.mrb[0].mxu0
      %v1138 = vadd.f32 %v1073, %v1137
      %v1139 = vpop.f32.mrb[0].mxu0
      %1140 = vdwg.mxu0
      %v1141 = vmax.f32 %v1111, 0.0
      %v1142 = vmax.f32 %v1114, 0.0
      %v1143 = vmax.f32 %v1119, 0.0
      %v1144 = vmax.f32 %v1122, 0.0
      %v1145 = vmax.f32 %v1127, 0.0
      %v1146 = vmax.f32 %v1130, 0.0
      %v1147 = vmax.f32 %v1135, 0.0
      %v1148 = vmax.f32 %v1138, 0.0
      %v1149 = vrsqrt.pop %v1141
      %v1150 = vmul.f32 %v1141, %v1149
      %vm1151 = vcmp.eq.f32.partialorder %v1141, inf
      %v1152 = vsel %vm1151, %v1141, %v1150
      %vm1153 = vcmp.eq.f32.partialorder %v1141, 0.0
      %v1154 = vand.u32 %v1141, 2147483648
      %v1155 = vsel %vm1153, %v1154, %v1152
      %v1156 = vrsqrt.pop %v1142
      %v1157 = vmul.f32 %v1142, %v1156
      %vm1158 = vcmp.eq.f32.partialorder %v1142, inf
      %v1159 = vsel %vm1158, %v1142, %v1157
      %vm1160 = vcmp.eq.f32.partialorder %v1142, 0.0
      %v1161 = vand.u32 %v1142, 2147483648
      %v1162 = vsel %vm1160, %v1161, %v1159
      %v1163 = vrsqrt.pop %v1143
      %v1164 = vmul.f32 %v1143, %v1163
      %vm1165 = vcmp.eq.f32.partialorder %v1143, inf
      %v1166 = vsel %vm1165, %v1143, %v1164
      %vm1167 = vcmp.eq.f32.partialorder %v1143, 0.0
      %v1168 = vand.u32 %v1143, 2147483648
      %v1169 = vsel %vm1167, %v1168, %v1166
      %v1170 = vrsqrt.pop %v1144
      %v1171 = vmul.f32 %v1144, %v1170
      %vm1172 = vcmp.eq.f32.partialorder %v1144, inf
      %v1173 = vsel %vm1172, %v1144, %v1171
      %vm1174 = vcmp.eq.f32.partialorder %v1144, 0.0
      %v1175 = vand.u32 %v1144, 2147483648
      %v1176 = vsel %vm1174, %v1175, %v1173
      %v1177 = vrsqrt.pop %v1145
      %v1178 = vmul.f32 %v1145, %v1177
      %vm1179 = vcmp.eq.f32.partialorder %v1145, inf
      %v1180 = vsel %vm1179, %v1145, %v1178
      %vm1181 = vcmp.eq.f32.partialorder %v1145, 0.0
      %v1182 = vand.u32 %v1145, 2147483648
      %v1183 = vsel %vm1181, %v1182, %v1180
      %v1184 = vrsqrt.pop %v1146
      %v1185 = vmul.f32 %v1146, %v1184
      %vm1186 = vcmp.eq.f32.partialorder %v1146, inf
      %v1187 = vsel %vm1186, %v1146, %v1185
      %vm1188 = vcmp.eq.f32.partialorder %v1146, 0.0
      %v1189 = vand.u32 %v1146, 2147483648
      %v1190 = vsel %vm1188, %v1189, %v1187
      %v1191 = vrsqrt.pop %v1147
      %v1192 = vmul.f32 %v1147, %v1191
      %vm1193 = vcmp.eq.f32.partialorder %v1147, inf
      %v1194 = vsel %vm1193, %v1147, %v1192
      %vm1195 = vcmp.eq.f32.partialorder %v1147, 0.0
      %v1196 = vand.u32 %v1147, 2147483648
      %v1197 = vsel %vm1195, %v1196, %v1194
      %v1198 = vrsqrt.pop %v1148
      %v1199 = vmul.f32 %v1148, %v1198
      %vm1200 = vcmp.eq.f32.partialorder %v1148, inf
      %v1201 = vsel %vm1200, %v1148, %v1199
      %vm1202 = vcmp.eq.f32.partialorder %v1148, 0.0
      %v1203 = vand.u32 %v1148, 2147483648
      %v1204 = vsel %vm1202, %v1203, %v1201
      %v1205 = vmax.f32 %v1155, 1e-08
      %v1206 = vmax.f32 %v1162, 1e-08
      %v1207 = vmax.f32 %v1169, 1e-08
      %v1208 = vmax.f32 %v1176, 1e-08
      %v1209 = vmax.f32 %v1183, 1e-08
      %v1210 = vmax.f32 %v1190, 1e-08
      %v1211 = vmax.f32 %v1197, 1e-08
      %v1212 = vmax.f32 %v1204, 1e-08
      %v1213 = vtanh.pop %v1205
      %v1214 = vtanh.pop %v1206
      %v1215 = vtanh.pop %v1207
      %v1216 = vtanh.pop %v1208
      %v1217 = vtanh.pop %v1209
      %v1218 = vtanh.pop %v1210
      %v1219 = vtanh.pop %v1211
      %v1220 = vtanh.pop %v1212
      %v1221 = vrcp.pop %v1205
      %v1222 = vrcp.pop %v1206
      %v1223 = vrcp.pop %v1207
      %v1224 = vrcp.pop %v1208
      %v1225 = vrcp.pop %v1209
      %v1226 = vrcp.pop %v1210
      %v1227 = vrcp.pop %v1211
      %v1228 = vrcp.pop %v1212
      %v1229 = vmul.f32 %v1213, %v1221
      %v1230 = vmul.f32 %v1214, %v1222
      %v1231 = vmul.f32 %v1215, %v1223
      %v1232 = vmul.f32 %v1216, %v1224
      %v1233 = vmul.f32 %v1217, %v1225
      %v1234 = vmul.f32 %v1218, %v1226
      %v1235 = vmul.f32 %v1219, %v1227
      %v1236 = vmul.f32 %v1220, %v1228
      %v1237 = vpack.c.bf16 %v1230, %v1229
      %v1238 = vpack.c.bf16 %v1232, %v1231
      %v1239 = vpack.c.bf16 %v1234, %v1233
      %v1240 = vpack.c.bf16 %v1236, %v1235
      %v1241 = vld [vmem:[%s4] sm:$0xff]
      %v1242 = vld [vmem:[%s4 + $0x8] sm:$0xff]
      %v1243 = vld [vmem:[%s4 + $0x10] sm:$0xff]
      %v1244 = vld [vmem:[%s4 + $0x18] sm:$0xff]
      %v1245 = vld [vmem:[%s4 + $0x20] sm:$0xff]
      %v1246 = vld [vmem:[%s4 + $0x28] sm:$0xff]
      %v1247 = vld [vmem:[%s4 + $0x30] sm:$0xff]
      %v1248 = vld [vmem:[%s4 + $0x38] sm:$0xff]
      %v1249 = vld [vmem:[%s4 + $0x40] sm:$0xff]
      %v1250 = vld [vmem:[%s4 + $0x48] sm:$0xff]
      %v1251 = vld [vmem:[%s4 + $0x50] sm:$0xff]
      %v1252 = vld [vmem:[%s4 + $0x58] sm:$0xff]
      %v1253 = vld [vmem:[%s4 + $0x60] sm:$0xff]
      %v1254 = vld [vmem:[%s4 + $0x68] sm:$0xff]
      %v1255 = vld [vmem:[%s4 + $0x70] sm:$0xff]
      %v1256 = vld [vmem:[%s4 + $0x78] sm:$0xff]
      %v1257 = vld [vmem:[%s4 + $0x80] sm:$0xff]
      %v1258 = vld [vmem:[%s4 + $0x88] sm:$0xff]
      %v1259 = vld [vmem:[%s4 + $0x90] sm:$0xff]
      %v1260 = vld [vmem:[%s4 + $0x98] sm:$0xff]
      %v1261 = vld [vmem:[%s4 + $0xa0] sm:$0xff]
      %v1262 = vld [vmem:[%s4 + $0xa8] sm:$0xff]
      %v1263 = vld [vmem:[%s4 + $0xb0] sm:$0xff]
      %v1264 = vld [vmem:[%s4 + $0xb8] sm:$0xff]
      %v1265 = vld [vmem:[%s4 + $0xc0] sm:$0xff]
      %v1266 = vld [vmem:[%s4 + $0xc8] sm:$0xff]
      %v1267 = vld [vmem:[%s4 + $0xd0] sm:$0xff]
      %v1268 = vld [vmem:[%s4 + $0xd8] sm:$0xff]
      %v1269 = vld [vmem:[%s4 + $0xe0] sm:$0xff]
      %v1270 = vld [vmem:[%s4 + $0xe8] sm:$0xff]
      %v1271 = vld [vmem:[%s4 + $0xf0] sm:$0xff]
      %v1272 = vld [vmem:[%s4 + $0xf8] sm:$0xff]
      %v1305 = vunpack.c.l.b16 %v1241
      %v1306 = vunpack.c.h.b16 %v1241
      %v1307 = vunpack.c.l.b16 %v1242
      %v1308 = vunpack.c.h.b16 %v1242
      %v1309 = vunpack.c.l.b16 %v1243
      %v1310 = vunpack.c.h.b16 %v1243
      %v1311 = vunpack.c.l.b16 %v1244
      %v1312 = vunpack.c.h.b16 %v1244
      %v1313 = vunpack.c.l.b16 %v1245
      %v1314 = vunpack.c.h.b16 %v1245
      %v1315 = vunpack.c.l.b16 %v1246
      %v1316 = vunpack.c.h.b16 %v1246
      %v1317 = vunpack.c.l.b16 %v1247
      %v1318 = vunpack.c.h.b16 %v1247
      %v1319 = vunpack.c.l.b16 %v1248
      %v1320 = vunpack.c.h.b16 %v1248
      %v1321 = vunpack.c.l.b16 %v1249
      %v1322 = vunpack.c.h.b16 %v1249
      %v1323 = vunpack.c.l.b16 %v1250
      %v1324 = vunpack.c.h.b16 %v1250
      %v1325 = vunpack.c.l.b16 %v1251
      %v1326 = vunpack.c.h.b16 %v1251
      %v1327 = vunpack.c.l.b16 %v1252
      %v1328 = vunpack.c.h.b16 %v1252
      %v1329 = vunpack.c.l.b16 %v1253
      %v1330 = vunpack.c.h.b16 %v1253
      %v1331 = vunpack.c.l.b16 %v1254
      %v1332 = vunpack.c.h.b16 %v1254
      %v1333 = vunpack.c.l.b16 %v1255
      %v1334 = vunpack.c.h.b16 %v1255
      %v1335 = vunpack.c.l.b16 %v1256
      %v1336 = vunpack.c.h.b16 %v1256
      %v1337 = vunpack.c.l.b16 %v1257
      %v1338 = vunpack.c.h.b16 %v1257
      %v1339 = vunpack.c.l.b16 %v1258
      %v1340 = vunpack.c.h.b16 %v1258
      %v1341 = vunpack.c.l.b16 %v1259
      %v1342 = vunpack.c.h.b16 %v1259
      %v1343 = vunpack.c.l.b16 %v1260
      %v1344 = vunpack.c.h.b16 %v1260
      %v1345 = vunpack.c.l.b16 %v1261
      %v1346 = vunpack.c.h.b16 %v1261
      %v1347 = vunpack.c.l.b16 %v1262
      %v1348 = vunpack.c.h.b16 %v1262
      %v1349 = vunpack.c.l.b16 %v1263
      %v1350 = vunpack.c.h.b16 %v1263
      %v1351 = vunpack.c.l.b16 %v1264
      %v1352 = vunpack.c.h.b16 %v1264
      %v1353 = vunpack.c.l.b16 %v1265
      %v1354 = vunpack.c.h.b16 %v1265
      %v1355 = vunpack.c.l.b16 %v1266
      %v1356 = vunpack.c.h.b16 %v1266
      %v1357 = vunpack.c.l.b16 %v1267
      %v1358 = vunpack.c.h.b16 %v1267
      %v1359 = vunpack.c.l.b16 %v1268
      %v1360 = vunpack.c.h.b16 %v1268
      %v1361 = vunpack.c.l.b16 %v1269
      %v1362 = vunpack.c.h.b16 %v1269
      %v1363 = vunpack.c.l.b16 %v1270
      %v1364 = vunpack.c.h.b16 %v1270
      %v1365 = vunpack.c.l.b16 %v1271
      %v1366 = vunpack.c.h.b16 %v1271
      %v1367 = vunpack.c.l.b16 %v1272
      %v1368 = vunpack.c.h.b16 %v1272
      %v1369 = vpack.c.b16 %v1309, %v1305
      %v1370 = vpack.c.b16 %v1310, %v1306
      %v1371 = vpack.c.b16 %v1311, %v1307
      %v1372 = vpack.c.b16 %v1312, %v1308
      %v1373 = vpack.c.b16 %v1317, %v1313
      %v1374 = vpack.c.b16 %v1318, %v1314
      %v1375 = vpack.c.b16 %v1319, %v1315
      %v1376 = vpack.c.b16 %v1320, %v1316
      %v1377 = vpack.c.b16 %v1325, %v1321
      %v1378 = vpack.c.b16 %v1326, %v1322
      %v1379 = vpack.c.b16 %v1327, %v1323
      %v1380 = vpack.c.b16 %v1328, %v1324
      %v1381 = vpack.c.b16 %v1333, %v1329
      %v1382 = vpack.c.b16 %v1334, %v1330
      %v1383 = vpack.c.b16 %v1335, %v1331
      %v1384 = vpack.c.b16 %v1336, %v1332
      %v1385 = vpack.c.b16 %v1341, %v1337
      %v1386 = vpack.c.b16 %v1342, %v1338
      %v1387 = vpack.c.b16 %v1343, %v1339
      %v1388 = vpack.c.b16 %v1344, %v1340
      %v1389 = vpack.c.b16 %v1349, %v1345
      %v1390 = vpack.c.b16 %v1350, %v1346
      %v1391 = vpack.c.b16 %v1351, %v1347
      %v1392 = vpack.c.b16 %v1352, %v1348
      %v1393 = vpack.c.b16 %v1357, %v1353
      %v1394 = vpack.c.b16 %v1358, %v1354
      %v1395 = vpack.c.b16 %v1359, %v1355
      %v1396 = vpack.c.b16 %v1360, %v1356
      %v1397 = vpack.c.b16 %v1365, %v1361
      %v1398 = vpack.c.b16 %v1366, %v1362
      %v1399 = vpack.c.b16 %v1367, %v1363
      %v1400 = vpack.c.b16 %v1368, %v1364
      %1433 = vmatprep.subr.bf16.mxu0 %v1370
      %1434 = vmatpush1.bf16.msra.mxu0 %v1369
      %1435 = vmatprep.subr.bf16.mxu0 %v1374
      %1436 = vmatpush1.bf16.msra.mxu0 %v1373
      %1437 = vmatprep.subr.bf16.mxu0 %v1378
      %1438 = vmatpush1.bf16.msra.mxu0 %v1377
      %1439 = vmatprep.subr.bf16.mxu0 %v1382
      %1440 = vmatpush1.bf16.msra.mxu0 %v1381
      %1441 = vmatprep.subr.bf16.mxu0 %v1386
      %1442 = vmatpush1.bf16.msra.mxu0 %v1385
      %1443 = vmatprep.subr.bf16.mxu0 %v1390
      %1444 = vmatpush1.bf16.msra.mxu0 %v1389
      %1445 = vmatprep.subr.bf16.mxu0 %v1394
      %1446 = vmatpush1.bf16.msra.mxu0 %v1393
      %1447 = vmatprep.subr.bf16.mxu0 %v1398
      %1448 = vmatpush1.bf16.msra.mxu0 %v1397
      %1449 = vmatprep.subr.bf16.mxu0 0
      %1450 = vmatpush1.bf16.msra.mxu0 0
      %1451 = vmatprep.subr.bf16.mxu0 0
      %1452 = vmatpush1.bf16.msra.mxu0 0
      %1453 = vmatprep.subr.bf16.mxu0 0
      %1454 = vmatpush1.bf16.msra.mxu0 0
      %1455 = vmatprep.subr.bf16.mxu0 0
      %1456 = vmatpush1.bf16.msra.mxu0 0
      %1457 = vmatprep.subr.bf16.mxu0 0
      %1458 = vmatpush1.bf16.msra.mxu0 0
      %1459 = vmatprep.subr.bf16.mxu0 0
      %1460 = vmatpush1.bf16.msra.mxu0 0
      %1461 = vmatprep.subr.bf16.mxu0 0
      %1462 = vmatpush1.bf16.msra.mxu0 0
      %1463 = vmatprep.subr.bf16.mxu0 0
      %1464 = vmatpush1.bf16.msra.mxu0 0
      %1465 = vmatprep.mubr.bf16.mxu0 0
      %1466 = vmatmul.mubr.bf16.gmra.mrb[0].mxu0 %v1237
      %v1467 = vpop.f32.mrb[0].mxu0
      %v1468 = vadd.f32 0.0, %v1467
      %v1469 = vpop.f32.mrb[0].mxu0
      %v1470 = vadd.f32 0.0, %v1469
      %v1471 = vpop.f32.mrb[0].mxu0
      %v1472 = vadd.f32 0.0, %v1471
      %v1473 = vpop.f32.mrb[0].mxu0
      %v1474 = vadd.f32 0.0, %v1473
      %1475 = vmatprep.mubr.bf16.mxu0 0
      %1476 = vmatmul.mubr.bf16.gmra.mrb[0].mxu0 %v1238
      %v1477 = vpop.f32.mrb[0].mxu0
      %v1478 = vadd.f32 0.0, %v1477
      %v1479 = vpop.f32.mrb[0].mxu0
      %v1480 = vadd.f32 0.0, %v1479
      %v1481 = vpop.f32.mrb[0].mxu0
      %v1482 = vadd.f32 0.0, %v1481
      %v1483 = vpop.f32.mrb[0].mxu0
      %v1484 = vadd.f32 0.0, %v1483
      %1485 = vmatprep.mubr.bf16.mxu0 0
      %1486 = vmatmul.mubr.bf16.gmra.mrb[0].mxu0 %v1239
      %v1487 = vpop.f32.mrb[0].mxu0
      %v1488 = vadd.f32 0.0, %v1487
      %v1489 = vpop.f32.mrb[0].mxu0
      %v1490 = vadd.f32 0.0, %v1489
      %v1491 = vpop.f32.mrb[0].mxu0
      %v1492 = vadd.f32 0.0, %v1491
      %v1493 = vpop.f32.mrb[0].mxu0
      %v1494 = vadd.f32 0.0, %v1493
      %1495 = vmatprep.mubr.bf16.mxu0 0
      %1496 = vmatmul.mubr.bf16.gmra.mrb[0].mxu0 %v1240
      %v1497 = vpop.f32.mrb[0].mxu0
      %v1498 = vadd.f32 0.0, %v1497
      %v1499 = vpop.f32.mrb[0].mxu0
      %v1500 = vadd.f32 0.0, %v1499
      %v1501 = vpop.f32.mrb[0].mxu0
      %v1502 = vadd.f32 0.0, %v1501
      %v1503 = vpop.f32.mrb[0].mxu0
      %v1504 = vadd.f32 0.0, %v1503
      %1505 = vdwg.mxu0
      %1506 = vmatprep.subr.bf16.mxu0 %v1372
      %1507 = vmatpush1.bf16.msra.mxu0 %v1371
      %1508 = vmatprep.subr.bf16.mxu0 %v1376
      %1509 = vmatpush1.bf16.msra.mxu0 %v1375
      %1510 = vmatprep.subr.bf16.mxu0 %v1380
      %1511 = vmatpush1.bf16.msra.mxu0 %v1379
      %1512 = vmatprep.subr.bf16.mxu0 %v1384
      %1513 = vmatpush1.bf16.msra.mxu0 %v1383
      %1514 = vmatprep.subr.bf16.mxu0 %v1388
      %1515 = vmatpush1.bf16.msra.mxu0 %v1387
      %1516 = vmatprep.subr.bf16.mxu0 %v1392
      %1517 = vmatpush1.bf16.msra.mxu0 %v1391
      %1518 = vmatprep.subr.bf16.mxu0 %v1396
      %1519 = vmatpush1.bf16.msra.mxu0 %v1395
      %1520 = vmatprep.subr.bf16.mxu0 %v1400
      %1521 = vmatpush1.bf16.msra.mxu0 %v1399
      %1522 = vmatprep.subr.bf16.mxu0 0
      %1523 = vmatpush1.bf16.msra.mxu0 0
      %1524 = vmatprep.subr.bf16.mxu0 0
      %1525 = vmatpush1.bf16.msra.mxu0 0
      %1526 = vmatprep.subr.bf16.mxu0 0
      %1527 = vmatpush1.bf16.msra.mxu0 0
      %1528 = vmatprep.subr.bf16.mxu0 0
      %1529 = vmatpush1.bf16.msra.mxu0 0
      %1530 = vmatprep.subr.bf16.mxu0 0
      %1531 = vmatpush1.bf16.msra.mxu0 0
      %1532 = vmatprep.subr.bf16.mxu0 0
      %1533 = vmatpush1.bf16.msra.mxu0 0
      %1534 = vmatprep.subr.bf16.mxu0 0
      %1535 = vmatpush1.bf16.msra.mxu0 0
      %1536 = vmatprep.subr.bf16.mxu0 0
      %1537 = vmatpush1.bf16.msra.mxu0 0
      %1538 = vmatprep.mubr.bf16.mxu0 0
      %1539 = vmatmul.mubr.bf16.gmra.mrb[0].mxu0 %v1237
      %v1540 = vpop.f32.mrb[0].mxu0
      %v1541 = vadd.f32 0.0, %v1540
      %v1542 = vpop.f32.mrb[0].mxu0
      %v1543 = vadd.f32 0.0, %v1542
      %v1544 = vpop.f32.mrb[0].mxu0
      %v1545 = vadd.f32 0.0, %v1544
      %v1546 = vpop.f32.mrb[0].mxu0
      %v1547 = vadd.f32 0.0, %v1546
      %1548 = vmatprep.mubr.bf16.mxu0 0
      %1549 = vmatmul.mubr.bf16.gmra.mrb[0].mxu0 %v1238
      %v1550 = vpop.f32.mrb[0].mxu0
      %v1551 = vadd.f32 0.0, %v1550
      %v1552 = vpop.f32.mrb[0].mxu0
      %v1553 = vadd.f32 0.0, %v1552
      %v1554 = vpop.f32.mrb[0].mxu0
      %v1555 = vadd.f32 0.0, %v1554
      %v1556 = vpop.f32.mrb[0].mxu0
      %v1557 = vadd.f32 0.0, %v1556
      %1558 = vmatprep.mubr.bf16.mxu0 0
      %1559 = vmatmul.mubr.bf16.gmra.mrb[0].mxu0 %v1239
      %v1560 = vpop.f32.mrb[0].mxu0
      %v1561 = vadd.f32 0.0, %v1560
      %v1562 = vpop.f32.mrb[0].mxu0
      %v1563 = vadd.f32 0.0, %v1562
      %v1564 = vpop.f32.mrb[0].mxu0
      %v1565 = vadd.f32 0.0, %v1564
      %v1566 = vpop.f32.mrb[0].mxu0
      %v1567 = vadd.f32 0.0, %v1566
      %1568 = vmatprep.mubr.bf16.mxu0 0
      %1569 = vmatmul.mubr.bf16.gmra.mrb[0].mxu0 %v1240
      %v1570 = vpop.f32.mrb[0].mxu0
      %v1571 = vadd.f32 0.0, %v1570
      %v1572 = vpop.f32.mrb[0].mxu0
      %v1573 = vadd.f32 0.0, %v1572
      %v1574 = vpop.f32.mrb[0].mxu0
      %v1575 = vadd.f32 0.0, %v1574
      %v1576 = vpop.f32.mrb[0].mxu0
      %v1577 = vadd.f32 0.0, %v1576
      %1578 = vdwg.mxu0
      %v1579 = vmul.f32 %v1468, %v596
      %v1580 = vmul.f32 %v1470, %v598
      %v1581 = vmul.f32 %v1541, %v669
      %v1582 = vmul.f32 %v1543, %v671
      %v1583 = vmul.f32 %v1472, %v600
      %v1584 = vmul.f32 %v1474, %v602
      %v1585 = vmul.f32 %v1545, %v673
      %v1586 = vmul.f32 %v1547, %v675
      %v1587 = vmul.f32 %v1478, %v606
      %v1588 = vmul.f32 %v1480, %v608
      %v1589 = vmul.f32 %v1551, %v679
      %v1590 = vmul.f32 %v1553, %v681
      %v1591 = vmul.f32 %v1482, %v610
      %v1592 = vmul.f32 %v1484, %v612
      %v1593 = vmul.f32 %v1555, %v683
      %v1594 = vmul.f32 %v1557, %v685
      %v1595 = vmul.f32 %v1488, %v616
      %v1596 = vmul.f32 %v1490, %v618
      %v1597 = vmul.f32 %v1561, %v689
      %v1598 = vmul.f32 %v1563, %v691
      %v1599 = vmul.f32 %v1492, %v620
      %v1600 = vmul.f32 %v1494, %v622
      %v1601 = vmul.f32 %v1565, %v693
      %v1602 = vmul.f32 %v1567, %v695
      %v1603 = vmul.f32 %v1498, %v626
      %v1604 = vmul.f32 %v1500, %v628
      %v1605 = vmul.f32 %v1571, %v699
      %v1606 = vmul.f32 %v1573, %v701
      %v1607 = vmul.f32 %v1502, %v630
      %v1608 = vmul.f32 %v1504, %v632
      %v1609 = vmul.f32 %v1575, %v703
      %v1610 = vmul.f32 %v1577, %v705
      %v1611 = vlaneseq
      %v1612 = vshrl.u32 %v1611, 7
      %v1613 = vadd.s32 %v1612, 8
      %v1614 = vadd.s32 %v1612, 16
      %v1615 = vadd.s32 %v1612, 24
      %v1616 = vadd.s32 %v1612, 32
      %v1617 = vadd.s32 %v1612, 40
      %v1618 = vadd.s32 %v1612, 48
      %v1619 = vadd.s32 %v1612, 56
      %vm1620 = vcmp.lt.s32.totalorder %v1612, 0
      %v1621 = vsub.s32 0, %v1612
      %v1622 = vsel %vm1620, %v1621, %v1612
      %v1623 = vshrl.u32 %v1622, 4
      %v1624 = vand.u32 %v1622, 15
      %v1625 = vsub.s32 0, %v1624
      %v1626 = vsel %vm1620, %v1625, %v1624
      %vm1627 = vcmp.lt.s32.totalorder %v1613, 0
      %v1628 = vsub.s32 0, %v1613
      %v1629 = vsel %vm1627, %v1628, %v1613
      %v1630 = vshrl.u32 %v1629, 4
      %v1631 = vand.u32 %v1629, 15
      %v1632 = vsub.s32 0, %v1631
      %v1633 = vsel %vm1627, %v1632, %v1631
      %vm1634 = vcmp.lt.s32.totalorder %v1614, 0
      %v1635 = vsub.s32 0, %v1614
      %v1636 = vsel %vm1634, %v1635, %v1614
      %v1637 = vshrl.u32 %v1636, 4
      %v1638 = vand.u32 %v1636, 15
      %v1639 = vsub.s32 0, %v1638
      %v1640 = vsel %vm1634, %v1639, %v1638
      %vm1641 = vcmp.lt.s32.totalorder %v1615, 0
      %v1642 = vsub.s32 0, %v1615
      %v1643 = vsel %vm1641, %v1642, %v1615
      %v1644 = vshrl.u32 %v1643, 4
      %v1645 = vand.u32 %v1643, 15
      %v1646 = vsub.s32 0, %v1645
      %v1647 = vsel %vm1641, %v1646, %v1645
      %vm1648 = vcmp.lt.s32.totalorder %v1616, 0
      %v1649 = vsub.s32 0, %v1616
      %v1650 = vsel %vm1648, %v1649, %v1616
      %v1651 = vshrl.u32 %v1650, 4
      %v1652 = vand.u32 %v1650, 15
      %v1653 = vsub.s32 0, %v1652
      %v1654 = vsel %vm1648, %v1653, %v1652
      %vm1655 = vcmp.lt.s32.totalorder %v1617, 0
      %v1656 = vsub.s32 0, %v1617
      %v1657 = vsel %vm1655, %v1656, %v1617
      %v1658 = vshrl.u32 %v1657, 4
      %v1659 = vand.u32 %v1657, 15
      %v1660 = vsub.s32 0, %v1659
      %v1661 = vsel %vm1655, %v1660, %v1659
      %vm1662 = vcmp.lt.s32.totalorder %v1618, 0
      %v1663 = vsub.s32 0, %v1618
      %v1664 = vsel %vm1662, %v1663, %v1618
      %v1665 = vshrl.u32 %v1664, 4
      %v1666 = vand.u32 %v1664, 15
      %v1667 = vsub.s32 0, %v1666
      %v1668 = vsel %vm1662, %v1667, %v1666
      %vm1669 = vcmp.lt.s32.totalorder %v1619, 0
      %v1670 = vsub.s32 0, %v1619
      %v1671 = vsel %vm1669, %v1670, %v1619
      %v1672 = vshrl.u32 %v1671, 4
      %v1673 = vand.u32 %v1671, 15
      %v1674 = vsub.s32 0, %v1673
      %v1675 = vsel %vm1669, %v1674, %v1673
      %vm1676 = vcmp.ne.s32.totalorder %v1626, 0
      %vm1677 = vcmp.ne.s32.totalorder %v1633, 0
      %vm1678 = vcmp.ne.s32.totalorder %v1640, 0
      %vm1679 = vcmp.ne.s32.totalorder %v1647, 0
      %vm1680 = vcmp.ne.s32.totalorder %v1654, 0
      %vm1681 = vcmp.ne.s32.totalorder %v1661, 0
      %vm1682 = vcmp.ne.s32.totalorder %v1668, 0
      %vm1683 = vcmp.ne.s32.totalorder %v1675, 0
      %vm1684 = vcmp.lt.s32.totalorder %v1626, 0
      %vm1685 = vcmp.lt.s32.totalorder %v1633, 0
      %vm1686 = vcmp.lt.s32.totalorder %v1640, 0
      %vm1687 = vcmp.lt.s32.totalorder %v1647, 0
      %vm1688 = vcmp.lt.s32.totalorder %v1654, 0
      %vm1689 = vcmp.lt.s32.totalorder %v1661, 0
      %vm1690 = vcmp.lt.s32.totalorder %v1668, 0
      %vm1691 = vcmp.lt.s32.totalorder %v1675, 0
      %vm1692 = vmand %vm1684, %vm1676
      %vm1693 = vmand %vm1685, %vm1677
      %vm1694 = vmand %vm1686, %vm1678
      %vm1695 = vmand %vm1687, %vm1679
      %vm1696 = vmand %vm1688, %vm1680
      %vm1697 = vmand %vm1689, %vm1681
      %vm1698 = vmand %vm1690, %vm1682
      %vm1699 = vmand %vm1691, %vm1683
      %v1700 = vadd.s32 %v1626, 16
      %v1701 = vadd.s32 %v1633, 16
      %v1702 = vadd.s32 %v1640, 16
      %v1703 = vadd.s32 %v1647, 16
      %v1704 = vadd.s32 %v1654, 16
      %v1705 = vadd.s32 %v1661, 16
      %v1706 = vadd.s32 %v1668, 16
      %v1707 = vadd.s32 %v1675, 16
      %v1708 = vsel %vm1692, %v1700, %v1626
      %v1709 = vsel %vm1693, %v1701, %v1633
      %v1710 = vsel %vm1694, %v1702, %v1640
      %v1711 = vsel %vm1695, %v1703, %v1647
      %v1712 = vsel %vm1696, %v1704, %v1654
      %v1713 = vsel %vm1697, %v1705, %v1661
      %v1714 = vsel %vm1698, %v1706, %v1668
      %v1715 = vsel %vm1699, %v1707, %v1675
      %vm1716 = vcmp.eq.s32.totalorder %v1708, 0
      %vm1717 = vcmp.eq.s32.totalorder %v1709, 0
      %vm1718 = vcmp.eq.s32.totalorder %v1710, 0
      %vm1719 = vcmp.eq.s32.totalorder %v1711, 0
      %vm1720 = vcmp.eq.s32.totalorder %v1712, 0
      %vm1721 = vcmp.eq.s32.totalorder %v1713, 0
      %vm1722 = vcmp.eq.s32.totalorder %v1714, 0
      %vm1723 = vcmp.eq.s32.totalorder %v1715, 0
      %vm1724 = vcmp.eq.s32.totalorder %v1708, 15
      %vm1725 = vcmp.eq.s32.totalorder %v1709, 15
      %vm1726 = vcmp.eq.s32.totalorder %v1710, 15
      %vm1727 = vcmp.eq.s32.totalorder %v1711, 15
      %vm1728 = vcmp.eq.s32.totalorder %v1712, 15
      %vm1729 = vcmp.eq.s32.totalorder %v1713, 15
      %vm1730 = vcmp.eq.s32.totalorder %v1714, 15
      %vm1731 = vcmp.eq.s32.totalorder %v1715, 15
      %v1732 = vmul.f32 %v1579, %v1579
      %v1733 = vmul.f32 %v1580, %v1580
      %v1734 = vmul.f32 %v1581, %v1581
      %v1735 = vmul.f32 %v1582, %v1582
      %v1736 = vmul.f32 %v1583, %v1583
      %v1737 = vmul.f32 %v1584, %v1584
      %v1738 = vmul.f32 %v1585, %v1585
      %v1739 = vmul.f32 %v1586, %v1586
      %v1740 = vmul.f32 %v1587, %v1587
      %v1741 = vmul.f32 %v1588, %v1588
      %v1742 = vmul.f32 %v1589, %v1589
      %v1743 = vmul.f32 %v1590, %v1590
      %v1744 = vmul.f32 %v1591, %v1591
      %v1745 = vmul.f32 %v1592, %v1592
      %v1746 = vmul.f32 %v1593, %v1593
      %v1747 = vmul.f32 %v1594, %v1594
      %v1748 = vmul.f32 %v1595, %v1595
      %v1749 = vmul.f32 %v1596, %v1596
      %v1750 = vmul.f32 %v1597, %v1597
      %v1751 = vmul.f32 %v1598, %v1598
      %v1752 = vmul.f32 %v1599, %v1599
      %v1753 = vmul.f32 %v1600, %v1600
      %v1754 = vmul.f32 %v1601, %v1601
      %v1755 = vmul.f32 %v1602, %v1602
      %v1756 = vmul.f32 %v1603, %v1603
      %v1757 = vmul.f32 %v1604, %v1604
      %v1758 = vmul.f32 %v1605, %v1605
      %v1759 = vmul.f32 %v1606, %v1606
      %v1760 = vmul.f32 %v1607, %v1607
      %v1761 = vmul.f32 %v1608, %v1608
      %v1762 = vmul.f32 %v1609, %v1609
      %v1763 = vmul.f32 %v1610, %v1610
      %v1764 = vadd.f32 %v1732, %v1736
      %v1765 = vrot.slane %v1764, 4
      %v1766 = vadd.f32 %v1764, %v1765
      %v1767 = vrot.slane %v1766, 2
      %v1768 = vadd.f32 %v1766, %v1767
      %v1769 = vrot.slane %v1768, 1
      %v1770 = vadd.f32 %v1768, %v1769
      %v1771 = vadd.f32 %v1733, %v1737
      %v1772 = vrot.slane %v1771, 4
      %v1773 = vadd.f32 %v1771, %v1772
      %v1774 = vrot.slane %v1773, 2
      %v1775 = vadd.f32 %v1773, %v1774
      %v1776 = vrot.slane %v1775, 1
      %v1777 = vadd.f32 %v1775, %v1776
      %v1778 = vadd.f32 %v1734, %v1738
      %v1779 = vrot.slane %v1778, 4
      %v1780 = vadd.f32 %v1778, %v1779
      %v1781 = vrot.slane %v1780, 2
      %v1782 = vadd.f32 %v1780, %v1781
      %v1783 = vrot.slane %v1782, 1
      %v1784 = vadd.f32 %v1782, %v1783
      %v1785 = vadd.f32 %v1735, %v1739
      %v1786 = vrot.slane %v1785, 4
      %v1787 = vadd.f32 %v1785, %v1786
      %v1788 = vrot.slane %v1787, 2
      %v1789 = vadd.f32 %v1787, %v1788
      %v1790 = vrot.slane %v1789, 1
      %v1791 = vadd.f32 %v1789, %v1790
      %v1792 = vadd.f32 %v1740, %v1744
      %v1793 = vrot.slane %v1792, 4
      %v1794 = vadd.f32 %v1792, %v1793
      %v1795 = vrot.slane %v1794, 2
      %v1796 = vadd.f32 %v1794, %v1795
      %v1797 = vrot.slane %v1796, 1
      %v1798 = vadd.f32 %v1796, %v1797
      %v1799 = vadd.f32 %v1741, %v1745
      %v1800 = vrot.slane %v1799, 4
      %v1801 = vadd.f32 %v1799, %v1800
      %v1802 = vrot.slane %v1801, 2
      %v1803 = vadd.f32 %v1801, %v1802
      %v1804 = vrot.slane %v1803, 1
      %v1805 = vadd.f32 %v1803, %v1804
      %v1806 = vadd.f32 %v1742, %v1746
      %v1807 = vrot.slane %v1806, 4
      %v1808 = vadd.f32 %v1806, %v1807
      %v1809 = vrot.slane %v1808, 2
      %v1810 = vadd.f32 %v1808, %v1809
      %v1811 = vrot.slane %v1810, 1
      %v1812 = vadd.f32 %v1810, %v1811
      %v1813 = vadd.f32 %v1743, %v1747
      %v1814 = vrot.slane %v1813, 4
      %v1815 = vadd.f32 %v1813, %v1814
      %v1816 = vrot.slane %v1815, 2
      %v1817 = vadd.f32 %v1815, %v1816
      %v1818 = vrot.slane %v1817, 1
      %v1819 = vadd.f32 %v1817, %v1818
      %v1820 = vadd.f32 %v1748, %v1752
      %v1821 = vrot.slane %v1820, 4
      %v1822 = vadd.f32 %v1820, %v1821
      %v1823 = vrot.slane %v1822, 2
      %v1824 = vadd.f32 %v1822, %v1823
      %v1825 = vrot.slane %v1824, 1
      %v1826 = vadd.f32 %v1824, %v1825
      %v1827 = vadd.f32 %v1749, %v1753
      %v1828 = vrot.slane %v1827, 4
      %v1829 = vadd.f32 %v1827, %v1828
      %v1830 = vrot.slane %v1829, 2
      %v1831 = vadd.f32 %v1829, %v1830
      %v1832 = vrot.slane %v1831, 1
      %v1833 = vadd.f32 %v1831, %v1832
      %v1834 = vadd.f32 %v1750, %v1754
      %v1835 = vrot.slane %v1834, 4
      %v1836 = vadd.f32 %v1834, %v1835
      %v1837 = vrot.slane %v1836, 2
      %v1838 = vadd.f32 %v1836, %v1837
      %v1839 = vrot.slane %v1838, 1
      %v1840 = vadd.f32 %v1838, %v1839
      %v1841 = vadd.f32 %v1751, %v1755
      %v1842 = vrot.slane %v1841, 4
      %v1843 = vadd.f32 %v1841, %v1842
      %v1844 = vrot.slane %v1843, 2
      %v1845 = vadd.f32 %v1843, %v1844
      %v1846 = vrot.slane %v1845, 1
      %v1847 = vadd.f32 %v1845, %v1846
      %v1848 = vadd.f32 %v1756, %v1760
      %v1849 = vrot.slane %v1848, 4
      %v1850 = vadd.f32 %v1848, %v1849
      %v1851 = vrot.slane %v1850, 2
      %v1852 = vadd.f32 %v1850, %v1851
      %v1853 = vrot.slane %v1852, 1
      %v1854 = vadd.f32 %v1852, %v1853
      %v1855 = vadd.f32 %v1757, %v1761
      %v1856 = vrot.slane %v1855, 4
      %v1857 = vadd.f32 %v1855, %v1856
      %v1858 = vrot.slane %v1857, 2
      %v1859 = vadd.f32 %v1857, %v1858
      %v1860 = vrot.slane %v1859, 1
      %v1861 = vadd.f32 %v1859, %v1860
      %v1862 = vadd.f32 %v1758, %v1762
      %v1863 = vrot.slane %v1862, 4
      %v1864 = vadd.f32 %v1862, %v1863
      %v1865 = vrot.slane %v1864, 2
      %v1866 = vadd.f32 %v1864, %v1865
      %v1867 = vrot.slane %v1866, 1
      %v1868 = vadd.f32 %v1866, %v1867
      %v1869 = vadd.f32 %v1759, %v1763
      %v1870 = vrot.slane %v1869, 4
      %v1871 = vadd.f32 %v1869, %v1870
      %v1872 = vrot.slane %v1871, 2
      %v1873 = vadd.f32 %v1871, %v1872
      %v1874 = vrot.slane %v1873, 1
      %v1875 = vadd.f32 %v1873, %v1874
      %v1876 = vrsqrt.pop %v1770
      %v1877 = vmul.f32 %v1770, %v1876
      %vm1878 = vcmp.eq.f32.partialorder %v1770, inf
      %v1879 = vsel %vm1878, %v1770, %v1877
      %vm1880 = vcmp.eq.f32.partialorder %v1770, 0.0
      %v1881 = vand.u32 %v1770, 2147483648
      %v1882 = vsel %vm1880, %v1881, %v1879
      %v1883 = vrsqrt.pop %v1777
      %v1884 = vmul.f32 %v1777, %v1883
      %vm1885 = vcmp.eq.f32.partialorder %v1777, inf
      %v1886 = vsel %vm1885, %v1777, %v1884
      %vm1887 = vcmp.eq.f32.partialorder %v1777, 0.0
      %v1888 = vand.u32 %v1777, 2147483648
      %v1889 = vsel %vm1887, %v1888, %v1886
      %v1890 = vrsqrt.pop %v1784
      %v1891 = vmul.f32 %v1784, %v1890
      %vm1892 = vcmp.eq.f32.partialorder %v1784, inf
      %v1893 = vsel %vm1892, %v1784, %v1891
      %vm1894 = vcmp.eq.f32.partialorder %v1784, 0.0
      %v1895 = vand.u32 %v1784, 2147483648
      %v1896 = vsel %vm1894, %v1895, %v1893
      %v1897 = vrsqrt.pop %v1791
      %v1898 = vmul.f32 %v1791, %v1897
      %vm1899 = vcmp.eq.f32.partialorder %v1791, inf
      %v1900 = vsel %vm1899, %v1791, %v1898
      %vm1901 = vcmp.eq.f32.partialorder %v1791, 0.0
      %v1902 = vand.u32 %v1791, 2147483648
      %v1903 = vsel %vm1901, %v1902, %v1900
      %v1904 = vrsqrt.pop %v1798
      %v1905 = vmul.f32 %v1798, %v1904
      %vm1906 = vcmp.eq.f32.partialorder %v1798, inf
      %v1907 = vsel %vm1906, %v1798, %v1905
      %vm1908 = vcmp.eq.f32.partialorder %v1798, 0.0
      %v1909 = vand.u32 %v1798, 2147483648
      %v1910 = vsel %vm1908, %v1909, %v1907
      %v1911 = vrsqrt.pop %v1805
      %v1912 = vmul.f32 %v1805, %v1911
      %vm1913 = vcmp.eq.f32.partialorder %v1805, inf
      %v1914 = vsel %vm1913, %v1805, %v1912
      %vm1915 = vcmp.eq.f32.partialorder %v1805, 0.0
      %v1916 = vand.u32 %v1805, 2147483648
      %v1917 = vsel %vm1915, %v1916, %v1914
      %v1918 = vrsqrt.pop %v1812
      %v1919 = vmul.f32 %v1812, %v1918
      %vm1920 = vcmp.eq.f32.partialorder %v1812, inf
      %v1921 = vsel %vm1920, %v1812, %v1919
      %vm1922 = vcmp.eq.f32.partialorder %v1812, 0.0
      %v1923 = vand.u32 %v1812, 2147483648
      %v1924 = vsel %vm1922, %v1923, %v1921
      %v1925 = vrsqrt.pop %v1819
      %v1926 = vmul.f32 %v1819, %v1925
      %vm1927 = vcmp.eq.f32.partialorder %v1819, inf
      %v1928 = vsel %vm1927, %v1819, %v1926
      %vm1929 = vcmp.eq.f32.partialorder %v1819, 0.0
      %v1930 = vand.u32 %v1819, 2147483648
      %v1931 = vsel %vm1929, %v1930, %v1928
      %v1932 = vrsqrt.pop %v1826
      %v1933 = vmul.f32 %v1826, %v1932
      %vm1934 = vcmp.eq.f32.partialorder %v1826, inf
      %v1935 = vsel %vm1934, %v1826, %v1933
      %vm1936 = vcmp.eq.f32.partialorder %v1826, 0.0
      %v1937 = vand.u32 %v1826, 2147483648
      %v1938 = vsel %vm1936, %v1937, %v1935
      %v1939 = vrsqrt.pop %v1833
      %v1940 = vmul.f32 %v1833, %v1939
      %vm1941 = vcmp.eq.f32.partialorder %v1833, inf
      %v1942 = vsel %vm1941, %v1833, %v1940
      %vm1943 = vcmp.eq.f32.partialorder %v1833, 0.0
      %v1944 = vand.u32 %v1833, 2147483648
      %v1945 = vsel %vm1943, %v1944, %v1942
      %v1946 = vrsqrt.pop %v1840
      %v1947 = vmul.f32 %v1840, %v1946
      %vm1948 = vcmp.eq.f32.partialorder %v1840, inf
      %v1949 = vsel %vm1948, %v1840, %v1947
      %vm1950 = vcmp.eq.f32.partialorder %v1840, 0.0
      %v1951 = vand.u32 %v1840, 2147483648
      %v1952 = vsel %vm1950, %v1951, %v1949
      %v1953 = vrsqrt.pop %v1847
      %v1954 = vmul.f32 %v1847, %v1953
      %vm1955 = vcmp.eq.f32.partialorder %v1847, inf
      %v1956 = vsel %vm1955, %v1847, %v1954
      %vm1957 = vcmp.eq.f32.partialorder %v1847, 0.0
      %v1958 = vand.u32 %v1847, 2147483648
      %v1959 = vsel %vm1957, %v1958, %v1956
      %v1960 = vrsqrt.pop %v1854
      %v1961 = vmul.f32 %v1854, %v1960
      %vm1962 = vcmp.eq.f32.partialorder %v1854, inf
      %v1963 = vsel %vm1962, %v1854, %v1961
      %vm1964 = vcmp.eq.f32.partialorder %v1854, 0.0
      %v1965 = vand.u32 %v1854, 2147483648
      %v1966 = vsel %vm1964, %v1965, %v1963
      %v1967 = vrsqrt.pop %v1861
      %v1968 = vmul.f32 %v1861, %v1967
      %vm1969 = vcmp.eq.f32.partialorder %v1861, inf
      %v1970 = vsel %vm1969, %v1861, %v1968
      %vm1971 = vcmp.eq.f32.partialorder %v1861, 0.0
      %v1972 = vand.u32 %v1861, 2147483648
      %v1973 = vsel %vm1971, %v1972, %v1970
      %v1974 = vrsqrt.pop %v1868
      %v1975 = vmul.f32 %v1868, %v1974
      %vm1976 = vcmp.eq.f32.partialorder %v1868, inf
      %v1977 = vsel %vm1976, %v1868, %v1975
      %vm1978 = vcmp.eq.f32.partialorder %v1868, 0.0
      %v1979 = vand.u32 %v1868, 2147483648
      %v1980 = vsel %vm1978, %v1979, %v1977
      %v1981 = vrsqrt.pop %v1875
      %v1982 = vmul.f32 %v1875, %v1981
      %vm1983 = vcmp.eq.f32.partialorder %v1875, inf
      %v1984 = vsel %vm1983, %v1875, %v1982
      %vm1985 = vcmp.eq.f32.partialorder %v1875, 0.0
      %v1986 = vand.u32 %v1875, 2147483648
      %v1987 = vsel %vm1985, %v1986, %v1984
      %v1988 = vmax.f32 %v1882, 1e-08
      %v1989 = vmax.f32 %v1889, 1e-08
      %v1990 = vmax.f32 %v1896, 1e-08
      %v1991 = vmax.f32 %v1903, 1e-08
      %v1992 = vmax.f32 %v1910, 1e-08
      %v1993 = vmax.f32 %v1917, 1e-08
      %v1994 = vmax.f32 %v1924, 1e-08
      %v1995 = vmax.f32 %v1931, 1e-08
      %v1996 = vmax.f32 %v1938, 1e-08
      %v1997 = vmax.f32 %v1945, 1e-08
      %v1998 = vmax.f32 %v1952, 1e-08
      %v1999 = vmax.f32 %v1959, 1e-08
      %v2000 = vmax.f32 %v1966, 1e-08
      %v2001 = vmax.f32 %v1973, 1e-08
      %v2002 = vmax.f32 %v1980, 1e-08
      %v2003 = vmax.f32 %v1987, 1e-08
      %v2004 = vmin.f32 %v1988, 0.999999
      %v2005 = vmin.f32 %v1989, 0.999999
      %v2006 = vmin.f32 %v1990, 0.999999
      %v2007 = vmin.f32 %v1991, 0.999999
      %v2008 = vmin.f32 %v1992, 0.999999
      %v2009 = vmin.f32 %v1993, 0.999999
      %v2010 = vmin.f32 %v1994, 0.999999
      %v2011 = vmin.f32 %v1995, 0.999999
      %v2012 = vmin.f32 %v1996, 0.999999
      %v2013 = vmin.f32 %v1997, 0.999999
      %v2014 = vmin.f32 %v1998, 0.999999
      %v2015 = vmin.f32 %v1999, 0.999999
      %v2016 = vmin.f32 %v2000, 0.999999
      %v2017 = vmin.f32 %v2001, 0.999999
      %v2018 = vmin.f32 %v2002, 0.999999
      %v2019 = vmin.f32 %v2003, 0.999999
      %v2020 = vadd.f32 %v2004, 1.0
      %v2021 = vadd.f32 %v2005, 1.0
      %v2022 = vadd.f32 %v2006, 1.0
      %v2023 = vadd.f32 %v2007, 1.0
      %v2024 = vadd.f32 %v2008, 1.0
      %v2025 = vadd.f32 %v2009, 1.0
      %v2026 = vadd.f32 %v2010, 1.0
      %v2027 = vadd.f32 %v2011, 1.0
      %v2028 = vadd.f32 %v2012, 1.0
      %v2029 = vadd.f32 %v2013, 1.0
      %v2030 = vadd.f32 %v2014, 1.0
      %v2031 = vadd.f32 %v2015, 1.0
      %v2032 = vadd.f32 %v2016, 1.0
      %v2033 = vadd.f32 %v2017, 1.0
      %v2034 = vadd.f32 %v2018, 1.0
      %v2035 = vadd.f32 %v2019, 1.0
      %v2036 = vsub.f32 1.0, %v2004
      %v2037 = vsub.f32 1.0, %v2005
      %v2038 = vsub.f32 1.0, %v2006
      %v2039 = vsub.f32 1.0, %v2007
      %v2040 = vsub.f32 1.0, %v2008
      %v2041 = vsub.f32 1.0, %v2009
      %v2042 = vsub.f32 1.0, %v2010
      %v2043 = vsub.f32 1.0, %v2011
      %v2044 = vsub.f32 1.0, %v2012
      %v2045 = vsub.f32 1.0, %v2013
      %v2046 = vsub.f32 1.0, %v2014
      %v2047 = vsub.f32 1.0, %v2015
      %v2048 = vsub.f32 1.0, %v2016
      %v2049 = vsub.f32 1.0, %v2017
      %v2050 = vsub.f32 1.0, %v2018
      %v2051 = vsub.f32 1.0, %v2019
      %v2052 = vrcp.pop %v2036
      %v2053 = vmul.f32 %v2020, %v2052
      %v2054 = vrcp.pop %v2037
      %v2055 = vmul.f32 %v2021, %v2054
      %v2056 = vrcp.pop %v2038
      %v2057 = vmul.f32 %v2022, %v2056
      %v2058 = vrcp.pop %v2039
      %v2059 = vmul.f32 %v2023, %v2058
      %v2060 = vrcp.pop %v2040
      %v2061 = vmul.f32 %v2024, %v2060
      %v2062 = vrcp.pop %v2041
      %v2063 = vmul.f32 %v2025, %v2062
      %v2064 = vrcp.pop %v2042
      %v2065 = vmul.f32 %v2026, %v2064
      %v2066 = vrcp.pop %v2043
      %v2067 = vmul.f32 %v2027, %v2066
      %v2068 = vrcp.pop %v2044
      %v2069 = vmul.f32 %v2028, %v2068
      %v2070 = vrcp.pop %v2045
      %v2071 = vmul.f32 %v2029, %v2070
      %v2072 = vrcp.pop %v2046
      %v2073 = vmul.f32 %v2030, %v2072
      %v2074 = vrcp.pop %v2047
      %v2075 = vmul.f32 %v2031, %v2074
      %v2076 = vrcp.pop %v2048
      %v2077 = vmul.f32 %v2032, %v2076
      %v2078 = vrcp.pop %v2049
      %v2079 = vmul.f32 %v2033, %v2078
      %v2080 = vrcp.pop %v2050
      %v2081 = vmul.f32 %v2034, %v2080
      %v2082 = vrcp.pop %v2051
      %v2083 = vmul.f32 %v2035, %v2082
      %v2084 = vlog2.pop %v2053
      %v2085 = vmul.f32 %v2084, 0.6931472
      %v2086 = vlog2.pop %v2055
      %v2087 = vmul.f32 %v2086, 0.6931472
      %v2088 = vlog2.pop %v2057
      %v2089 = vmul.f32 %v2088, 0.6931472
      %v2090 = vlog2.pop %v2059
      %v2091 = vmul.f32 %v2090, 0.6931472
      %v2092 = vlog2.pop %v2061
      %v2093 = vmul.f32 %v2092, 0.6931472
      %v2094 = vlog2.pop %v2063
      %v2095 = vmul.f32 %v2094, 0.6931472
      %v2096 = vlog2.pop %v2065
      %v2097 = vmul.f32 %v2096, 0.6931472
      %v2098 = vlog2.pop %v2067
      %v2099 = vmul.f32 %v2098, 0.6931472
      %v2100 = vlog2.pop %v2069
      %v2101 = vmul.f32 %v2100, 0.6931472
      %v2102 = vlog2.pop %v2071
      %v2103 = vmul.f32 %v2102, 0.6931472
      %v2104 = vlog2.pop %v2073
      %v2105 = vmul.f32 %v2104, 0.6931472
      %v2106 = vlog2.pop %v2075
      %v2107 = vmul.f32 %v2106, 0.6931472
      %v2108 = vlog2.pop %v2077
      %v2109 = vmul.f32 %v2108, 0.6931472
      %v2110 = vlog2.pop %v2079
      %v2111 = vmul.f32 %v2110, 0.6931472
      %v2112 = vlog2.pop %v2081
      %v2113 = vmul.f32 %v2112, 0.6931472
      %v2114 = vlog2.pop %v2083
      %v2115 = vmul.f32 %v2114, 0.6931472
      %v2116 = vrcp.pop %v1988
      %v2117 = vrcp.pop %v1989
      %v2118 = vrcp.pop %v1990
      %v2119 = vrcp.pop %v1991
      %v2120 = vrcp.pop %v1992
      %v2121 = vrcp.pop %v1993
      %v2122 = vrcp.pop %v1994
      %v2123 = vrcp.pop %v1995
      %v2124 = vrcp.pop %v1996
      %v2125 = vrcp.pop %v1997
      %v2126 = vrcp.pop %v1998
      %v2127 = vrcp.pop %v1999
      %v2128 = vrcp.pop %v2000
      %v2129 = vrcp.pop %v2001
      %v2130 = vrcp.pop %v2002
      %v2131 = vrcp.pop %v2003
      %v2132 = vmul.f32 %v2085, %v2116
      %v2133 = vmul.f32 %v2087, %v2117
      %v2134 = vmul.f32 %v2089, %v2118
      %v2135 = vmul.f32 %v2091, %v2119
      %v2136 = vmul.f32 %v2093, %v2120
      %v2137 = vmul.f32 %v2095, %v2121
      %v2138 = vmul.f32 %v2097, %v2122
      %v2139 = vmul.f32 %v2099, %v2123
      %v2140 = vmul.f32 %v2101, %v2124
      %v2141 = vmul.f32 %v2103, %v2125
      %v2142 = vmul.f32 %v2105, %v2126
      %v2143 = vmul.f32 %v2107, %v2127
      %v2144 = vmul.f32 %v2109, %v2128
      %v2145 = vmul.f32 %v2111, %v2129
      %v2146 = vmul.f32 %v2113, %v2130
      %v2147 = vmul.f32 %v2115, %v2131
      %v2148 = vmul.f32 %v1579, %v2132
      %v2149 = vmul.f32 %v1580, %v2133
      %v2150 = vmul.f32 %v1581, %v2134
      %v2151 = vmul.f32 %v1582, %v2135
      %v2152 = vmul.f32 %v1583, %v2132
      %v2153 = vmul.f32 %v1584, %v2133
      %v2154 = vmul.f32 %v1585, %v2134
      %v2155 = vmul.f32 %v1586, %v2135
      %v2156 = vmul.f32 %v1587, %v2136
      %v2157 = vmul.f32 %v1588, %v2137
      %v2158 = vmul.f32 %v1589, %v2138
      %v2159 = vmul.f32 %v1590, %v2139
      %v2160 = vmul.f32 %v1591, %v2136
      %v2161 = vmul.f32 %v1592, %v2137
      %v2162 = vmul.f32 %v1593, %v2138
      %v2163 = vmul.f32 %v1594, %v2139
      %v2164 = vmul.f32 %v1595, %v2140
      %v2165 = vmul.f32 %v1596, %v2141
      %v2166 = vmul.f32 %v1597, %v2142
      %v2167 = vmul.f32 %v1598, %v2143
      %v2168 = vmul.f32 %v1599, %v2140
      %v2169 = vmul.f32 %v1600, %v2141
      %v2170 = vmul.f32 %v1601, %v2142
      %v2171 = vmul.f32 %v1602, %v2143
      %v2172 = vmul.f32 %v1603, %v2144
      %v2173 = vmul.f32 %v1604, %v2145
      %v2174 = vmul.f32 %v1605, %v2146
      %v2175 = vmul.f32 %v1606, %v2147
      %v2176 = vmul.f32 %v1607, %v2144
      %v2177 = vmul.f32 %v1608, %v2145
      %v2178 = vmul.f32 %v1609, %v2146
      %v2179 = vmul.f32 %v1610, %v2147
      %v2180 = vrot.slane %v2148, 7
      %v2181 = vrot.slane %v2149, 7
      %v2182 = vrot.slane %v2150, 7
      %v2183 = vrot.slane %v2151, 7
      %v2184 = vrot.slane %v2152, 7
      %v2185 = vrot.slane %v2153, 7
      %v2186 = vrot.slane %v2154, 7
      %v2187 = vrot.slane %v2155, 7
      %v2188 = vrot.slane %v2156, 7
      %v2189 = vrot.slane %v2157, 7
      %v2190 = vrot.slane %v2158, 7
      %v2191 = vrot.slane %v2159, 7
      %v2192 = vrot.slane %v2160, 7
      %v2193 = vrot.slane %v2161, 7
      %v2194 = vrot.slane %v2162, 7
      %v2195 = vrot.slane %v2163, 7
      %v2196 = vrot.slane %v2164, 7
      %v2197 = vrot.slane %v2165, 7
      %v2198 = vrot.slane %v2166, 7
      %v2199 = vrot.slane %v2167, 7
      %v2200 = vrot.slane %v2168, 7
      %v2201 = vrot.slane %v2169, 7
      %v2202 = vrot.slane %v2170, 7
      %v2203 = vrot.slane %v2171, 7
      %v2204 = vrot.slane %v2172, 7
      %v2205 = vrot.slane %v2173, 7
      %v2206 = vrot.slane %v2174, 7
      %v2207 = vrot.slane %v2175, 7
      %v2208 = vrot.slane %v2176, 7
      %v2209 = vrot.slane %v2177, 7
      %v2210 = vrot.slane %v2178, 7
      %v2211 = vrot.slane %v2179, 7
      %vm2212 = vcmp.lt.s32.totalorder %v1612, 1
      %v2213 = vsel %vm2212, %v2204, %v2208
      %v2214 = vsel %vm2212, %v2205, %v2209
      %v2215 = vsel %vm2212, %v2206, %v2210
      %v2216 = vsel %vm2212, %v2207, %v2211
      %v2217 = vsel %vm2212, %v2200, %v2204
      %v2218 = vsel %vm2212, %v2201, %v2205
      %v2219 = vsel %vm2212, %v2202, %v2206
      %v2220 = vsel %vm2212, %v2203, %v2207
      %v2221 = vsel %vm2212, %v2196, %v2200
      %v2222 = vsel %vm2212, %v2197, %v2201
      %v2223 = vsel %vm2212, %v2198, %v2202
      %v2224 = vsel %vm2212, %v2199, %v2203
      %v2225 = vsel %vm2212, %v2192, %v2196
      %v2226 = vsel %vm2212, %v2193, %v2197
      %v2227 = vsel %vm2212, %v2194, %v2198
      %v2228 = vsel %vm2212, %v2195, %v2199
      %v2229 = vsel %vm2212, %v2188, %v2192
      %v2230 = vsel %vm2212, %v2189, %v2193
      %v2231 = vsel %vm2212, %v2190, %v2194
      %v2232 = vsel %vm2212, %v2191, %v2195
      %v2233 = vsel %vm2212, %v2184, %v2188
      %v2234 = vsel %vm2212, %v2185, %v2189
      %v2235 = vsel %vm2212, %v2186, %v2190
      %v2236 = vsel %vm2212, %v2187, %v2191
      %v2237 = vsel %vm2212, %v2180, %v2184
      %v2238 = vsel %vm2212, %v2181, %v2185
      %v2239 = vsel %vm2212, %v2182, %v2186
      %v2240 = vsel %vm2212, %v2183, %v2187
      %v2241 = vsel %vm2212, %v2208, %v2180
      %v2242 = vsel %vm2212, %v2209, %v2181
      %v2243 = vsel %vm2212, %v2210, %v2182
      %v2244 = vsel %vm2212, %v2211, %v2183
      %v2245 = vsel %vm1716, 1, 0
      %v2246 = vsel %vm1717, 1, 0
      %v2247 = vsel %vm1718, 1, 0
      %v2248 = vsel %vm1719, 1, 0
      %v2249 = vsel %vm1720, 1, 0
      %v2250 = vsel %vm1721, 1, 0
      %v2251 = vsel %vm1722, 1, 0
      %v2252 = vsel %vm1723, 1, 0
      %vm2253 = vcmp.eq.s32.totalorder %v2245, 1
      %vm2254 = vcmp.eq.s32.totalorder %v2246, 1
      %vm2255 = vcmp.eq.s32.totalorder %v2247, 1
      %vm2256 = vcmp.eq.s32.totalorder %v2248, 1
      %vm2257 = vcmp.eq.s32.totalorder %v2249, 1
      %vm2258 = vcmp.eq.s32.totalorder %v2250, 1
      %vm2259 = vcmp.eq.s32.totalorder %v2251, 1
      %vm2260 = vcmp.eq.s32.totalorder %v2252, 1
      %v2261 = vsel %vm2253, 0.0, %v2241
      %v2262 = vsel %vm2253, 0.0, %v2242
      %v2263 = vsel %vm2253, 0.0, %v2243
      %v2264 = vsel %vm2253, 0.0, %v2244
      %v2265 = vsel %vm2254, 0.0, %v2237
      %v2266 = vsel %vm2254, 0.0, %v2238
      %v2267 = vsel %vm2254, 0.0, %v2239
      %v2268 = vsel %vm2254, 0.0, %v2240
      %v2269 = vsel %vm2255, 0.0, %v2233
      %v2270 = vsel %vm2255, 0.0, %v2234
      %v2271 = vsel %vm2255, 0.0, %v2235
      %v2272 = vsel %vm2255, 0.0, %v2236
      %v2273 = vsel %vm2256, 0.0, %v2229
      %v2274 = vsel %vm2256, 0.0, %v2230
      %v2275 = vsel %vm2256, 0.0, %v2231
      %v2276 = vsel %vm2256, 0.0, %v2232
      %v2277 = vsel %vm2257, 0.0, %v2225
      %v2278 = vsel %vm2257, 0.0, %v2226
      %v2279 = vsel %vm2257, 0.0, %v2227
      %v2280 = vsel %vm2257, 0.0, %v2228
      %v2281 = vsel %vm2258, 0.0, %v2221
      %v2282 = vsel %vm2258, 0.0, %v2222
      %v2283 = vsel %vm2258, 0.0, %v2223
      %v2284 = vsel %vm2258, 0.0, %v2224
      %v2285 = vsel %vm2259, 0.0, %v2217
      %v2286 = vsel %vm2259, 0.0, %v2218
      %v2287 = vsel %vm2259, 0.0, %v2219
      %v2288 = vsel %vm2259, 0.0, %v2220
      %v2289 = vsel %vm2260, 0.0, %v2213
      %v2290 = vsel %vm2260, 0.0, %v2214
      %v2291 = vsel %vm2260, 0.0, %v2215
      %v2292 = vsel %vm2260, 0.0, %v2216
      %v2293 = vrot.slane %v2148, 1
      %v2294 = vrot.slane %v2149, 1
      %v2295 = vrot.slane %v2150, 1
      %v2296 = vrot.slane %v2151, 1
      %v2297 = vrot.slane %v2152, 1
      %v2298 = vrot.slane %v2153, 1
      %v2299 = vrot.slane %v2154, 1
      %v2300 = vrot.slane %v2155, 1
      %v2301 = vrot.slane %v2156, 1
      %v2302 = vrot.slane %v2157, 1
      %v2303 = vrot.slane %v2158, 1
      %v2304 = vrot.slane %v2159, 1
      %v2305 = vrot.slane %v2160, 1
      %v2306 = vrot.slane %v2161, 1
      %v2307 = vrot.slane %v2162, 1
      %v2308 = vrot.slane %v2163, 1
      %v2309 = vrot.slane %v2164, 1
      %v2310 = vrot.slane %v2165, 1
      %v2311 = vrot.slane %v2166, 1
      %v2312 = vrot.slane %v2167, 1
      %v2313 = vrot.slane %v2168, 1
      %v2314 = vrot.slane %v2169, 1
      %v2315 = vrot.slane %v2170, 1
      %v2316 = vrot.slane %v2171, 1
      %v2317 = vrot.slane %v2172, 1
      %v2318 = vrot.slane %v2173, 1
      %v2319 = vrot.slane %v2174, 1
      %v2320 = vrot.slane %v2175, 1
      %v2321 = vrot.slane %v2176, 1
      %v2322 = vrot.slane %v2177, 1
      %v2323 = vrot.slane %v2178, 1
      %v2324 = vrot.slane %v2179, 1
      %vm2325 = vcmp.lt.s32.totalorder %v1612, 7
      %v2326 = vsel %vm2325, %v2317, %v2321
      %v2327 = vsel %vm2325, %v2318, %v2322
      %v2328 = vsel %vm2325, %v2319, %v2323
      %v2329 = vsel %vm2325, %v2320, %v2324
      %v2330 = vsel %vm2325, %v2313, %v2317
      %v2331 = vsel %vm2325, %v2314, %v2318
      %v2332 = vsel %vm2325, %v2315, %v2319
      %v2333 = vsel %vm2325, %v2316, %v2320
      %v2334 = vsel %vm2325, %v2309, %v2313
      %v2335 = vsel %vm2325, %v2310, %v2314
      %v2336 = vsel %vm2325, %v2311, %v2315
      %v2337 = vsel %vm2325, %v2312, %v2316
      %v2338 = vsel %vm2325, %v2305, %v2309
      %v2339 = vsel %vm2325, %v2306, %v2310
      %v2340 = vsel %vm2325, %v2307, %v2311
      %v2341 = vsel %vm2325, %v2308, %v2312
      %v2342 = vsel %vm2325, %v2301, %v2305
      %v2343 = vsel %vm2325, %v2302, %v2306
      %v2344 = vsel %vm2325, %v2303, %v2307
      %v2345 = vsel %vm2325, %v2304, %v2308
      %v2346 = vsel %vm2325, %v2297, %v2301
      %v2347 = vsel %vm2325, %v2298, %v2302
      %v2348 = vsel %vm2325, %v2299, %v2303
      %v2349 = vsel %vm2325, %v2300, %v2304
      %v2350 = vsel %vm2325, %v2293, %v2297
      %v2351 = vsel %vm2325, %v2294, %v2298
      %v2352 = vsel %vm2325, %v2295, %v2299
      %v2353 = vsel %vm2325, %v2296, %v2300
      %v2354 = vsel %vm2325, %v2321, %v2293
      %v2355 = vsel %vm2325, %v2322, %v2294
      %v2356 = vsel %vm2325, %v2323, %v2295
      %v2357 = vsel %vm2325, %v2324, %v2296
      %v2358 = vsel %vm1724, 1, 0
      %v2359 = vsel %vm1725, 1, 0
      %v2360 = vsel %vm1726, 1, 0
      %v2361 = vsel %vm1727, 1, 0
      %v2362 = vsel %vm1728, 1, 0
      %v2363 = vsel %vm1729, 1, 0
      %v2364 = vsel %vm1730, 1, 0
      %v2365 = vsel %vm1731, 1, 0
      %vm2366 = vcmp.eq.s32.totalorder %v2358, 1
      %vm2367 = vcmp.eq.s32.totalorder %v2359, 1
      %vm2368 = vcmp.eq.s32.totalorder %v2360, 1
      %vm2369 = vcmp.eq.s32.totalorder %v2361, 1
      %vm2370 = vcmp.eq.s32.totalorder %v2362, 1
      %vm2371 = vcmp.eq.s32.totalorder %v2363, 1
      %vm2372 = vcmp.eq.s32.totalorder %v2364, 1
      %vm2373 = vcmp.eq.s32.totalorder %v2365, 1
      %v2374 = vsel %vm2366, 0.0, %v2350
      %v2375 = vsel %vm2366, 0.0, %v2351
      %v2376 = vsel %vm2366, 0.0, %v2352
      %v2377 = vsel %vm2366, 0.0, %v2353
      %v2378 = vsel %vm2367, 0.0, %v2346
      %v2379 = vsel %vm2367, 0.0, %v2347
      %v2380 = vsel %vm2367, 0.0, %v2348
      %v2381 = vsel %vm2367, 0.0, %v2349
      %v2382 = vsel %vm2368, 0.0, %v2342
      %v2383 = vsel %vm2368, 0.0, %v2343
      %v2384 = vsel %vm2368, 0.0, %v2344
      %v2385 = vsel %vm2368, 0.0, %v2345
      %v2386 = vsel %vm2369, 0.0, %v2338
      %v2387 = vsel %vm2369, 0.0, %v2339
      %v2388 = vsel %vm2369, 0.0, %v2340
      %v2389 = vsel %vm2369, 0.0, %v2341
      %v2390 = vsel %vm2370, 0.0, %v2334
      %v2391 = vsel %vm2370, 0.0, %v2335
      %v2392 = vsel %vm2370, 0.0, %v2336
      %v2393 = vsel %vm2370, 0.0, %v2337
      %v2394 = vsel %vm2371, 0.0, %v2330
      %v2395 = vsel %vm2371, 0.0, %v2331
      %v2396 = vsel %vm2371, 0.0, %v2332
      %v2397 = vsel %vm2371, 0.0, %v2333
      %v2398 = vsel %vm2372, 0.0, %v2326
      %v2399 = vsel %vm2372, 0.0, %v2327
      %v2400 = vsel %vm2372, 0.0, %v2328
      %v2401 = vsel %vm2372, 0.0, %v2329
      %v2402 = vsel %vm2373, 0.0, %v2354
      %v2403 = vsel %vm2373, 0.0, %v2355
      %v2404 = vsel %vm2373, 0.0, %v2356
      %v2405 = vsel %vm2373, 0.0, %v2357
      %v2406 = vpack.c.bf16 %v2152, %v2148
      %v2407 = vpack.c.bf16 %v2153, %v2149
      %v2408 = vpack.c.bf16 %v2154, %v2150
      %v2409 = vpack.c.bf16 %v2155, %v2151
      %v2410 = vpack.c.bf16 %v2160, %v2156
      %v2411 = vpack.c.bf16 %v2161, %v2157
      %v2412 = vpack.c.bf16 %v2162, %v2158
      %v2413 = vpack.c.bf16 %v2163, %v2159
      %v2414 = vpack.c.bf16 %v2168, %v2164
      %v2415 = vpack.c.bf16 %v2169, %v2165
      %v2416 = vpack.c.bf16 %v2170, %v2166
      %v2417 = vpack.c.bf16 %v2171, %v2167
      %v2418 = vpack.c.bf16 %v2176, %v2172
      %v2419 = vpack.c.bf16 %v2177, %v2173
      %v2420 = vpack.c.bf16 %v2178, %v2174
      %v2421 = vpack.c.bf16 %v2179, %v2175
      %s2422 = scalar_lea.vmem %s5, 1024
      %v2423 = vld [vmem:[%s2422] sm:$0xff]
      %v2424 = vld [vmem:[%s2422 + $0x8] sm:$0xff]
      %v2425 = vld [vmem:[%s2422 + $0x10] sm:$0xff]
      %v2426 = vld [vmem:[%s2422 + $0x18] sm:$0xff]
      %v2427 = vld [vmem:[%s2422 + $0x20] sm:$0xff]
      %v2428 = vld [vmem:[%s2422 + $0x28] sm:$0xff]
      %v2429 = vld [vmem:[%s2422 + $0x30] sm:$0xff]
      %v2430 = vld [vmem:[%s2422 + $0x38] sm:$0xff]
      %v2431 = vld [vmem:[%s2422 + $0x40] sm:$0xff]
      %v2432 = vld [vmem:[%s2422 + $0x48] sm:$0xff]
      %v2433 = vld [vmem:[%s2422 + $0x50] sm:$0xff]
      %v2434 = vld [vmem:[%s2422 + $0x58] sm:$0xff]
      %v2435 = vld [vmem:[%s2422 + $0x60] sm:$0xff]
      %v2436 = vld [vmem:[%s2422 + $0x68] sm:$0xff]
      %v2437 = vld [vmem:[%s2422 + $0x70] sm:$0xff]
      %v2438 = vld [vmem:[%s2422 + $0x78] sm:$0xff]
      %v2439 = vld [vmem:[%s2422 + $0x80] sm:$0xff]
      %v2440 = vld [vmem:[%s2422 + $0x88] sm:$0xff]
      %v2441 = vld [vmem:[%s2422 + $0x90] sm:$0xff]
      %v2442 = vld [vmem:[%s2422 + $0x98] sm:$0xff]
      %v2443 = vld [vmem:[%s2422 + $0xa0] sm:$0xff]
      %v2444 = vld [vmem:[%s2422 + $0xa8] sm:$0xff]
      %v2445 = vld [vmem:[%s2422 + $0xb0] sm:$0xff]
      %v2446 = vld [vmem:[%s2422 + $0xb8] sm:$0xff]
      %v2447 = vld [vmem:[%s2422 + $0xc0] sm:$0xff]
      %v2448 = vld [vmem:[%s2422 + $0xc8] sm:$0xff]
      %v2449 = vld [vmem:[%s2422 + $0xd0] sm:$0xff]
      %v2450 = vld [vmem:[%s2422 + $0xd8] sm:$0xff]
      %v2451 = vld [vmem:[%s2422 + $0xe0] sm:$0xff]
      %v2452 = vld [vmem:[%s2422 + $0xe8] sm:$0xff]
      %v2453 = vld [vmem:[%s2422 + $0xf0] sm:$0xff]
      %v2454 = vld [vmem:[%s2422 + $0xf8] sm:$0xff]
      %v2455 = vld [vmem:[%s2422 + $0x100] sm:$0xff]
      %v2456 = vld [vmem:[%s2422 + $0x108] sm:$0xff]
      %v2457 = vld [vmem:[%s2422 + $0x110] sm:$0xff]
      %v2458 = vld [vmem:[%s2422 + $0x118] sm:$0xff]
      %v2459 = vld [vmem:[%s2422 + $0x120] sm:$0xff]
      %v2460 = vld [vmem:[%s2422 + $0x128] sm:$0xff]
      %v2461 = vld [vmem:[%s2422 + $0x130] sm:$0xff]
      %v2462 = vld [vmem:[%s2422 + $0x138] sm:$0xff]
      %v2463 = vld [vmem:[%s2422 + $0x140] sm:$0xff]
      %v2464 = vld [vmem:[%s2422 + $0x148] sm:$0xff]
      %v2465 = vld [vmem:[%s2422 + $0x150] sm:$0xff]
      %v2466 = vld [vmem:[%s2422 + $0x158] sm:$0xff]
      %v2467 = vld [vmem:[%s2422 + $0x160] sm:$0xff]
      %v2468 = vld [vmem:[%s2422 + $0x168] sm:$0xff]
      %v2469 = vld [vmem:[%s2422 + $0x170] sm:$0xff]
      %v2470 = vld [vmem:[%s2422 + $0x178] sm:$0xff]
      %v2471 = vld [vmem:[%s2422 + $0x180] sm:$0xff]
      %v2472 = vld [vmem:[%s2422 + $0x188] sm:$0xff]
      %v2473 = vld [vmem:[%s2422 + $0x190] sm:$0xff]
      %v2474 = vld [vmem:[%s2422 + $0x198] sm:$0xff]
      %v2475 = vld [vmem:[%s2422 + $0x1a0] sm:$0xff]
      %v2476 = vld [vmem:[%s2422 + $0x1a8] sm:$0xff]
      %v2477 = vld [vmem:[%s2422 + $0x1b0] sm:$0xff]
      %v2478 = vld [vmem:[%s2422 + $0x1b8] sm:$0xff]
      %v2479 = vld [vmem:[%s2422 + $0x1c0] sm:$0xff]
      %v2480 = vld [vmem:[%s2422 + $0x1c8] sm:$0xff]
      %v2481 = vld [vmem:[%s2422 + $0x1d0] sm:$0xff]
      %v2482 = vld [vmem:[%s2422 + $0x1d8] sm:$0xff]
      %v2483 = vld [vmem:[%s2422 + $0x1e0] sm:$0xff]
      %v2484 = vld [vmem:[%s2422 + $0x1e8] sm:$0xff]
      %v2485 = vld [vmem:[%s2422 + $0x1f0] sm:$0xff]
      %v2486 = vld [vmem:[%s2422 + $0x1f8] sm:$0xff]
      %v2487 = vld [vmem:[%s2422 + $0x200] sm:$0xff]
      %v2488 = vld [vmem:[%s2422 + $0x208] sm:$0xff]
      %v2489 = vld [vmem:[%s2422 + $0x210] sm:$0xff]
      %v2490 = vld [vmem:[%s2422 + $0x218] sm:$0xff]
      %v2491 = vld [vmem:[%s2422 + $0x220] sm:$0xff]
      %v2492 = vld [vmem:[%s2422 + $0x228] sm:$0xff]
      %v2493 = vld [vmem:[%s2422 + $0x230] sm:$0xff]
      %v2494 = vld [vmem:[%s2422 + $0x238] sm:$0xff]
      %v2495 = vld [vmem:[%s2422 + $0x240] sm:$0xff]
      %v2496 = vld [vmem:[%s2422 + $0x248] sm:$0xff]
      %v2497 = vld [vmem:[%s2422 + $0x250] sm:$0xff]
      %v2498 = vld [vmem:[%s2422 + $0x258] sm:$0xff]
      %v2499 = vld [vmem:[%s2422 + $0x260] sm:$0xff]
      %v2500 = vld [vmem:[%s2422 + $0x268] sm:$0xff]
      %v2501 = vld [vmem:[%s2422 + $0x270] sm:$0xff]
      %v2502 = vld [vmem:[%s2422 + $0x278] sm:$0xff]
      %v2503 = vld [vmem:[%s2422 + $0x280] sm:$0xff]
      %v2504 = vld [vmem:[%s2422 + $0x288] sm:$0xff]
      %v2505 = vld [vmem:[%s2422 + $0x290] sm:$0xff]
      %v2506 = vld [vmem:[%s2422 + $0x298] sm:$0xff]
      %v2507 = vld [vmem:[%s2422 + $0x2a0] sm:$0xff]
      %v2508 = vld [vmem:[%s2422 + $0x2a8] sm:$0xff]
      %v2509 = vld [vmem:[%s2422 + $0x2b0] sm:$0xff]
      %v2510 = vld [vmem:[%s2422 + $0x2b8] sm:$0xff]
      %v2511 = vld [vmem:[%s2422 + $0x2c0] sm:$0xff]
      %v2512 = vld [vmem:[%s2422 + $0x2c8] sm:$0xff]
      %v2513 = vld [vmem:[%s2422 + $0x2d0] sm:$0xff]
      %v2514 = vld [vmem:[%s2422 + $0x2d8] sm:$0xff]
      %v2515 = vld [vmem:[%s2422 + $0x2e0] sm:$0xff]
      %v2516 = vld [vmem:[%s2422 + $0x2e8] sm:$0xff]
      %v2517 = vld [vmem:[%s2422 + $0x2f0] sm:$0xff]
      %v2518 = vld [vmem:[%s2422 + $0x2f8] sm:$0xff]
      %v2519 = vld [vmem:[%s2422 + $0x300] sm:$0xff]
      %v2520 = vld [vmem:[%s2422 + $0x308] sm:$0xff]
      %v2521 = vld [vmem:[%s2422 + $0x310] sm:$0xff]
      %v2522 = vld [vmem:[%s2422 + $0x318] sm:$0xff]
      %v2523 = vld [vmem:[%s2422 + $0x320] sm:$0xff]
      %v2524 = vld [vmem:[%s2422 + $0x328] sm:$0xff]
      %v2525 = vld [vmem:[%s2422 + $0x330] sm:$0xff]
      %v2526 = vld [vmem:[%s2422 + $0x338] sm:$0xff]
      %v2527 = vld [vmem:[%s2422 + $0x340] sm:$0xff]
      %v2528 = vld [vmem:[%s2422 + $0x348] sm:$0xff]
      %v2529 = vld [vmem:[%s2422 + $0x350] sm:$0xff]
      %v2530 = vld [vmem:[%s2422 + $0x358] sm:$0xff]
      %v2531 = vld [vmem:[%s2422 + $0x360] sm:$0xff]
      %v2532 = vld [vmem:[%s2422 + $0x368] sm:$0xff]
      %v2533 = vld [vmem:[%s2422 + $0x370] sm:$0xff]
      %v2534 = vld [vmem:[%s2422 + $0x378] sm:$0xff]
      %v2535 = vld [vmem:[%s2422 + $0x380] sm:$0xff]
      %v2536 = vld [vmem:[%s2422 + $0x388] sm:$0xff]
      %v2537 = vld [vmem:[%s2422 + $0x390] sm:$0xff]
      %v2538 = vld [vmem:[%s2422 + $0x398] sm:$0xff]
      %v2539 = vld [vmem:[%s2422 + $0x3a0] sm:$0xff]
      %v2540 = vld [vmem:[%s2422 + $0x3a8] sm:$0xff]
      %v2541 = vld [vmem:[%s2422 + $0x3b0] sm:$0xff]
      %v2542 = vld [vmem:[%s2422 + $0x3b8] sm:$0xff]
      %v2543 = vld [vmem:[%s2422 + $0x3c0] sm:$0xff]
      %v2544 = vld [vmem:[%s2422 + $0x3c8] sm:$0xff]
      %v2545 = vld [vmem:[%s2422 + $0x3d0] sm:$0xff]
      %v2546 = vld [vmem:[%s2422 + $0x3d8] sm:$0xff]
      %v2547 = vld [vmem:[%s2422 + $0x3e0] sm:$0xff]
      %v2548 = vld [vmem:[%s2422 + $0x3e8] sm:$0xff]
      %v2549 = vld [vmem:[%s2422 + $0x3f0] sm:$0xff]
      %v2550 = vld [vmem:[%s2422 + $0x3f8] sm:$0xff]
      %v2551 = vpack.c.bf16 %v2265, %v2261
      %v2552 = vpack.c.bf16 %v2266, %v2262
      %v2553 = vpack.c.bf16 %v2267, %v2263
      %v2554 = vpack.c.bf16 %v2268, %v2264
      %v2555 = vpack.c.bf16 %v2273, %v2269
      %v2556 = vpack.c.bf16 %v2274, %v2270
      %v2557 = vpack.c.bf16 %v2275, %v2271
      %v2558 = vpack.c.bf16 %v2276, %v2272
      %v2559 = vpack.c.bf16 %v2281, %v2277
      %v2560 = vpack.c.bf16 %v2282, %v2278
      %v2561 = vpack.c.bf16 %v2283, %v2279
      %v2562 = vpack.c.bf16 %v2284, %v2280
      %v2563 = vpack.c.bf16 %v2289, %v2285
      %v2564 = vpack.c.bf16 %v2290, %v2286
      %v2565 = vpack.c.bf16 %v2291, %v2287
      %v2566 = vpack.c.bf16 %v2292, %v2288
      %v2567 = vld [vmem:[%s5] sm:$0xff]
      %v2568 = vld [vmem:[%s5 + $0x8] sm:$0xff]
      %v2569 = vld [vmem:[%s5 + $0x10] sm:$0xff]
      %v2570 = vld [vmem:[%s5 + $0x18] sm:$0xff]
      %v2571 = vld [vmem:[%s5 + $0x20] sm:$0xff]
      %v2572 = vld [vmem:[%s5 + $0x28] sm:$0xff]
      %v2573 = vld [vmem:[%s5 + $0x30] sm:$0xff]
      %v2574 = vld [vmem:[%s5 + $0x38] sm:$0xff]
      %v2575 = vld [vmem:[%s5 + $0x40] sm:$0xff]
      %v2576 = vld [vmem:[%s5 + $0x48] sm:$0xff]
      %v2577 = vld [vmem:[%s5 + $0x50] sm:$0xff]
      %v2578 = vld [vmem:[%s5 + $0x58] sm:$0xff]
      %v2579 = vld [vmem:[%s5 + $0x60] sm:$0xff]
      %v2580 = vld [vmem:[%s5 + $0x68] sm:$0xff]
      %v2581 = vld [vmem:[%s5 + $0x70] sm:$0xff]
      %v2582 = vld [vmem:[%s5 + $0x78] sm:$0xff]
      %v2583 = vld [vmem:[%s5 + $0x80] sm:$0xff]
      %v2584 = vld [vmem:[%s5 + $0x88] sm:$0xff]
      %v2585 = vld [vmem:[%s5 + $0x90] sm:$0xff]
      %v2586 = vld [vmem:[%s5 + $0x98] sm:$0xff]
      %v2587 = vld [vmem:[%s5 + $0xa0] sm:$0xff]
      %v2588 = vld [vmem:[%s5 + $0xa8] sm:$0xff]
      %v2589 = vld [vmem:[%s5 + $0xb0] sm:$0xff]
      %v2590 = vld [vmem:[%s5 + $0xb8] sm:$0xff]
      %v2591 = vld [vmem:[%s5 + $0xc0] sm:$0xff]
      %v2592 = vld [vmem:[%s5 + $0xc8] sm:$0xff]
      %v2593 = vld [vmem:[%s5 + $0xd0] sm:$0xff]
      %v2594 = vld [vmem:[%s5 + $0xd8] sm:$0xff]
      %v2595 = vld [vmem:[%s5 + $0xe0] sm:$0xff]
      %v2596 = vld [vmem:[%s5 + $0xe8] sm:$0xff]
      %v2597 = vld [vmem:[%s5 + $0xf0] sm:$0xff]
      %v2598 = vld [vmem:[%s5 + $0xf8] sm:$0xff]
      %v2599 = vld [vmem:[%s5 + $0x100] sm:$0xff]
      %v2600 = vld [vmem:[%s5 + $0x108] sm:$0xff]
      %v2601 = vld [vmem:[%s5 + $0x110] sm:$0xff]
      %v2602 = vld [vmem:[%s5 + $0x118] sm:$0xff]
      %v2603 = vld [vmem:[%s5 + $0x120] sm:$0xff]
      %v2604 = vld [vmem:[%s5 + $0x128] sm:$0xff]
      %v2605 = vld [vmem:[%s5 + $0x130] sm:$0xff]
      %v2606 = vld [vmem:[%s5 + $0x138] sm:$0xff]
      %v2607 = vld [vmem:[%s5 + $0x140] sm:$0xff]
      %v2608 = vld [vmem:[%s5 + $0x148] sm:$0xff]
      %v2609 = vld [vmem:[%s5 + $0x150] sm:$0xff]
      %v2610 = vld [vmem:[%s5 + $0x158] sm:$0xff]
      %v2611 = vld [vmem:[%s5 + $0x160] sm:$0xff]
      %v2612 = vld [vmem:[%s5 + $0x168] sm:$0xff]
      %v2613 = vld [vmem:[%s5 + $0x170] sm:$0xff]
      %v2614 = vld [vmem:[%s5 + $0x178] sm:$0xff]
      %v2615 = vld [vmem:[%s5 + $0x180] sm:$0xff]
      %v2616 = vld [vmem:[%s5 + $0x188] sm:$0xff]
      %v2617 = vld [vmem:[%s5 + $0x190] sm:$0xff]
      %v2618 = vld [vmem:[%s5 + $0x198] sm:$0xff]
      %v2619 = vld [vmem:[%s5 + $0x1a0] sm:$0xff]
      %v2620 = vld [vmem:[%s5 + $0x1a8] sm:$0xff]
      %v2621 = vld [vmem:[%s5 + $0x1b0] sm:$0xff]
      %v2622 = vld [vmem:[%s5 + $0x1b8] sm:$0xff]
      %v2623 = vld [vmem:[%s5 + $0x1c0] sm:$0xff]
      %v2624 = vld [vmem:[%s5 + $0x1c8] sm:$0xff]
      %v2625 = vld [vmem:[%s5 + $0x1d0] sm:$0xff]
      %v2626 = vld [vmem:[%s5 + $0x1d8] sm:$0xff]
      %v2627 = vld [vmem:[%s5 + $0x1e0] sm:$0xff]
      %v2628 = vld [vmem:[%s5 + $0x1e8] sm:$0xff]
      %v2629 = vld [vmem:[%s5 + $0x1f0] sm:$0xff]
      %v2630 = vld [vmem:[%s5 + $0x1f8] sm:$0xff]
      %v2631 = vld [vmem:[%s5 + $0x200] sm:$0xff]
      %v2632 = vld [vmem:[%s5 + $0x208] sm:$0xff]
      %v2633 = vld [vmem:[%s5 + $0x210] sm:$0xff]
      %v2634 = vld [vmem:[%s5 + $0x218] sm:$0xff]
      %v2635 = vld [vmem:[%s5 + $0x220] sm:$0xff]
      %v2636 = vld [vmem:[%s5 + $0x228] sm:$0xff]
      %v2637 = vld [vmem:[%s5 + $0x230] sm:$0xff]
      %v2638 = vld [vmem:[%s5 + $0x238] sm:$0xff]
      %v2639 = vld [vmem:[%s5 + $0x240] sm:$0xff]
      %v2640 = vld [vmem:[%s5 + $0x248] sm:$0xff]
      %v2641 = vld [vmem:[%s5 + $0x250] sm:$0xff]
      %v2642 = vld [vmem:[%s5 + $0x258] sm:$0xff]
      %v2643 = vld [vmem:[%s5 + $0x260] sm:$0xff]
      %v2644 = vld [vmem:[%s5 + $0x268] sm:$0xff]
      %v2645 = vld [vmem:[%s5 + $0x270] sm:$0xff]
      %v2646 = vld [vmem:[%s5 + $0x278] sm:$0xff]
      %v2647 = vld [vmem:[%s5 + $0x280] sm:$0xff]
      %v2648 = vld [vmem:[%s5 + $0x288] sm:$0xff]
      %v2649 = vld [vmem:[%s5 + $0x290] sm:$0xff]
      %v2650 = vld [vmem:[%s5 + $0x298] sm:$0xff]
      %v2651 = vld [vmem:[%s5 + $0x2a0] sm:$0xff]
      %v2652 = vld [vmem:[%s5 + $0x2a8] sm:$0xff]
      %v2653 = vld [vmem:[%s5 + $0x2b0] sm:$0xff]
      %v2654 = vld [vmem:[%s5 + $0x2b8] sm:$0xff]
      %v2655 = vld [vmem:[%s5 + $0x2c0] sm:$0xff]
      %v2656 = vld [vmem:[%s5 + $0x2c8] sm:$0xff]
      %v2657 = vld [vmem:[%s5 + $0x2d0] sm:$0xff]
      %v2658 = vld [vmem:[%s5 + $0x2d8] sm:$0xff]
      %v2659 = vld [vmem:[%s5 + $0x2e0] sm:$0xff]
      %v2660 = vld [vmem:[%s5 + $0x2e8] sm:$0xff]
      %v2661 = vld [vmem:[%s5 + $0x2f0] sm:$0xff]
      %v2662 = vld [vmem:[%s5 + $0x2f8] sm:$0xff]
      %v2663 = vld [vmem:[%s5 + $0x300] sm:$0xff]
      %v2664 = vld [vmem:[%s5 + $0x308] sm:$0xff]
      %v2665 = vld [vmem:[%s5 + $0x310] sm:$0xff]
      %v2666 = vld [vmem:[%s5 + $0x318] sm:$0xff]
      %v2667 = vld [vmem:[%s5 + $0x320] sm:$0xff]
      %v2668 = vld [vmem:[%s5 + $0x328] sm:$0xff]
      %v2669 = vld [vmem:[%s5 + $0x330] sm:$0xff]
      %v2670 = vld [vmem:[%s5 + $0x338] sm:$0xff]
      %v2671 = vld [vmem:[%s5 + $0x340] sm:$0xff]
      %v2672 = vld [vmem:[%s5 + $0x348] sm:$0xff]
      %v2673 = vld [vmem:[%s5 + $0x350] sm:$0xff]
      %v2674 = vld [vmem:[%s5 + $0x358] sm:$0xff]
      %v2675 = vld [vmem:[%s5 + $0x360] sm:$0xff]
      %v2676 = vld [vmem:[%s5 + $0x368] sm:$0xff]
      %v2677 = vld [vmem:[%s5 + $0x370] sm:$0xff]
      %v2678 = vld [vmem:[%s5 + $0x378] sm:$0xff]
      %v2679 = vld [vmem:[%s5 + $0x380] sm:$0xff]
      %v2680 = vld [vmem:[%s5 + $0x388] sm:$0xff]
      %v2681 = vld [vmem:[%s5 + $0x390] sm:$0xff]
      %v2682 = vld [vmem:[%s5 + $0x398] sm:$0xff]
      %v2683 = vld [vmem:[%s5 + $0x3a0] sm:$0xff]
      %v2684 = vld [vmem:[%s5 + $0x3a8] sm:$0xff]
      %v2685 = vld [vmem:[%s5 + $0x3b0] sm:$0xff]
      %v2686 = vld [vmem:[%s5 + $0x3b8] sm:$0xff]
      %v2687 = vld [vmem:[%s5 + $0x3c0] sm:$0xff]
      %v2688 = vld [vmem:[%s5 + $0x3c8] sm:$0xff]
      %v2689 = vld [vmem:[%s5 + $0x3d0] sm:$0xff]
      %v2690 = vld [vmem:[%s5 + $0x3d8] sm:$0xff]
      %v2691 = vld [vmem:[%s5 + $0x3e0] sm:$0xff]
      %v2692 = vld [vmem:[%s5 + $0x3e8] sm:$0xff]
      %v2693 = vld [vmem:[%s5 + $0x3f0] sm:$0xff]
      %v2694 = vld [vmem:[%s5 + $0x3f8] sm:$0xff]
      %v2823 = vunpack.c.l.b16 %v2567
      %v2824 = vunpack.c.h.b16 %v2567
      %v2825 = vunpack.c.l.b16 %v2568
      %v2826 = vunpack.c.h.b16 %v2568
      %v2827 = vunpack.c.l.b16 %v2569
      %v2828 = vunpack.c.h.b16 %v2569
      %v2829 = vunpack.c.l.b16 %v2570
      %v2830 = vunpack.c.h.b16 %v2570
      %v2831 = vunpack.c.l.b16 %v2571
      %v2832 = vunpack.c.h.b16 %v2571
      %v2833 = vunpack.c.l.b16 %v2572
      %v2834 = vunpack.c.h.b16 %v2572
      %v2835 = vunpack.c.l.b16 %v2573
      %v2836 = vunpack.c.h.b16 %v2573
      %v2837 = vunpack.c.l.b16 %v2574
      %v2838 = vunpack.c.h.b16 %v2574
      %v2839 = vunpack.c.l.b16 %v2575
      %v2840 = vunpack.c.h.b16 %v2575
      %v2841 = vunpack.c.l.b16 %v2576
      %v2842 = vunpack.c.h.b16 %v2576
      %v2843 = vunpack.c.l.b16 %v2577
      %v2844 = vunpack.c.h.b16 %v2577
      %v2845 = vunpack.c.l.b16 %v2578
      %v2846 = vunpack.c.h.b16 %v2578
      %v2847 = vunpack.c.l.b16 %v2579
      %v2848 = vunpack.c.h.b16 %v2579
      %v2849 = vunpack.c.l.b16 %v2580
      %v2850 = vunpack.c.h.b16 %v2580
      %v2851 = vunpack.c.l.b16 %v2581
      %v2852 = vunpack.c.h.b16 %v2581
      %v2853 = vunpack.c.l.b16 %v2582
      %v2854 = vunpack.c.h.b16 %v2582
      %v2855 = vunpack.c.l.b16 %v2583
      %v2856 = vunpack.c.h.b16 %v2583
      %v2857 = vunpack.c.l.b16 %v2584
      %v2858 = vunpack.c.h.b16 %v2584
      %v2859 = vunpack.c.l.b16 %v2585
      %v2860 = vunpack.c.h.b16 %v2585
      %v2861 = vunpack.c.l.b16 %v2586
      %v2862 = vunpack.c.h.b16 %v2586
      %v2863 = vunpack.c.l.b16 %v2587
      %v2864 = vunpack.c.h.b16 %v2587
      %v2865 = vunpack.c.l.b16 %v2588
      %v2866 = vunpack.c.h.b16 %v2588
      %v2867 = vunpack.c.l.b16 %v2589
      %v2868 = vunpack.c.h.b16 %v2589
      %v2869 = vunpack.c.l.b16 %v2590
      %v2870 = vunpack.c.h.b16 %v2590
      %v2871 = vunpack.c.l.b16 %v2591
      %v2872 = vunpack.c.h.b16 %v2591
      %v2873 = vunpack.c.l.b16 %v2592
      %v2874 = vunpack.c.h.b16 %v2592
      %v2875 = vunpack.c.l.b16 %v2593
      %v2876 = vunpack.c.h.b16 %v2593
      %v2877 = vunpack.c.l.b16 %v2594
      %v2878 = vunpack.c.h.b16 %v2594
      %v2879 = vunpack.c.l.b16 %v2595
      %v2880 = vunpack.c.h.b16 %v2595
      %v2881 = vunpack.c.l.b16 %v2596
      %v2882 = vunpack.c.h.b16 %v2596
      %v2883 = vunpack.c.l.b16 %v2597
      %v2884 = vunpack.c.h.b16 %v2597
      %v2885 = vunpack.c.l.b16 %v2598
      %v2886 = vunpack.c.h.b16 %v2598
      %v2887 = vunpack.c.l.b16 %v2599
      %v2888 = vunpack.c.h.b16 %v2599
      %v2889 = vunpack.c.l.b16 %v2600
      %v2890 = vunpack.c.h.b16 %v2600
      %v2891 = vunpack.c.l.b16 %v2601
      %v2892 = vunpack.c.h.b16 %v2601
      %v2893 = vunpack.c.l.b16 %v2602
      %v2894 = vunpack.c.h.b16 %v2602
      %v2895 = vunpack.c.l.b16 %v2603
      %v2896 = vunpack.c.h.b16 %v2603
      %v2897 = vunpack.c.l.b16 %v2604
      %v2898 = vunpack.c.h.b16 %v2604
      %v2899 = vunpack.c.l.b16 %v2605
      %v2900 = vunpack.c.h.b16 %v2605
      %v2901 = vunpack.c.l.b16 %v2606
      %v2902 = vunpack.c.h.b16 %v2606
      %v2903 = vunpack.c.l.b16 %v2607
      %v2904 = vunpack.c.h.b16 %v2607
      %v2905 = vunpack.c.l.b16 %v2608
      %v2906 = vunpack.c.h.b16 %v2608
      %v2907 = vunpack.c.l.b16 %v2609
      %v2908 = vunpack.c.h.b16 %v2609
      %v2909 = vunpack.c.l.b16 %v2610
      %v2910 = vunpack.c.h.b16 %v2610
      %v2911 = vunpack.c.l.b16 %v2611
      %v2912 = vunpack.c.h.b16 %v2611
      %v2913 = vunpack.c.l.b16 %v2612
      %v2914 = vunpack.c.h.b16 %v2612
      %v2915 = vunpack.c.l.b16 %v2613
      %v2916 = vunpack.c.h.b16 %v2613
      %v2917 = vunpack.c.l.b16 %v2614
      %v2918 = vunpack.c.h.b16 %v2614
      %v2919 = vunpack.c.l.b16 %v2615
      %v2920 = vunpack.c.h.b16 %v2615
      %v2921 = vunpack.c.l.b16 %v2616
      %v2922 = vunpack.c.h.b16 %v2616
      %v2923 = vunpack.c.l.b16 %v2617
      %v2924 = vunpack.c.h.b16 %v2617
      %v2925 = vunpack.c.l.b16 %v2618
      %v2926 = vunpack.c.h.b16 %v2618
      %v2927 = vunpack.c.l.b16 %v2619
      %v2928 = vunpack.c.h.b16 %v2619
      %v2929 = vunpack.c.l.b16 %v2620
      %v2930 = vunpack.c.h.b16 %v2620
      %v2931 = vunpack.c.l.b16 %v2621
      %v2932 = vunpack.c.h.b16 %v2621
      %v2933 = vunpack.c.l.b16 %v2622
      %v2934 = vunpack.c.h.b16 %v2622
      %v2935 = vunpack.c.l.b16 %v2623
      %v2936 = vunpack.c.h.b16 %v2623
      %v2937 = vunpack.c.l.b16 %v2624
      %v2938 = vunpack.c.h.b16 %v2624
      %v2939 = vunpack.c.l.b16 %v2625
      %v2940 = vunpack.c.h.b16 %v2625
      %v2941 = vunpack.c.l.b16 %v2626
      %v2942 = vunpack.c.h.b16 %v2626
      %v2943 = vunpack.c.l.b16 %v2627
      %v2944 = vunpack.c.h.b16 %v2627
      %v2945 = vunpack.c.l.b16 %v2628
      %v2946 = vunpack.c.h.b16 %v2628
      %v2947 = vunpack.c.l.b16 %v2629
      %v2948 = vunpack.c.h.b16 %v2629
      %v2949 = vunpack.c.l.b16 %v2630
      %v2950 = vunpack.c.h.b16 %v2630
      %v2951 = vunpack.c.l.b16 %v2631
      %v2952 = vunpack.c.h.b16 %v2631
      %v2953 = vunpack.c.l.b16 %v2632
      %v2954 = vunpack.c.h.b16 %v2632
      %v2955 = vunpack.c.l.b16 %v2633
      %v2956 = vunpack.c.h.b16 %v2633
      %v2957 = vunpack.c.l.b16 %v2634
      %v2958 = vunpack.c.h.b16 %v2634
      %v2959 = vunpack.c.l.b16 %v2635
      %v2960 = vunpack.c.h.b16 %v2635
      %v2961 = vunpack.c.l.b16 %v2636
      %v2962 = vunpack.c.h.b16 %v2636
      %v2963 = vunpack.c.l.b16 %v2637
      %v2964 = vunpack.c.h.b16 %v2637
      %v2965 = vunpack.c.l.b16 %v2638
      %v2966 = vunpack.c.h.b16 %v2638
      %v2967 = vunpack.c.l.b16 %v2639
      %v2968 = vunpack.c.h.b16 %v2639
      %v2969 = vunpack.c.l.b16 %v2640
      %v2970 = vunpack.c.h.b16 %v2640
      %v2971 = vunpack.c.l.b16 %v2641
      %v2972 = vunpack.c.h.b16 %v2641
      %v2973 = vunpack.c.l.b16 %v2642
      %v2974 = vunpack.c.h.b16 %v2642
      %v2975 = vunpack.c.l.b16 %v2643
      %v2976 = vunpack.c.h.b16 %v2643
      %v2977 = vunpack.c.l.b16 %v2644
      %v2978 = vunpack.c.h.b16 %v2644
      %v2979 = vunpack.c.l.b16 %v2645
      %v2980 = vunpack.c.h.b16 %v2645
      %v2981 = vunpack.c.l.b16 %v2646
      %v2982 = vunpack.c.h.b16 %v2646
      %v2983 = vunpack.c.l.b16 %v2647
      %v2984 = vunpack.c.h.b16 %v2647
      %v2985 = vunpack.c.l.b16 %v2648
      %v2986 = vunpack.c.h.b16 %v2648
      %v2987 = vunpack.c.l.b16 %v2649
      %v2988 = vunpack.c.h.b16 %v2649
      %v2989 = vunpack.c.l.b16 %v2650
      %v2990 = vunpack.c.h.b16 %v2650
      %v2991 = vunpack.c.l.b16 %v2651
      %v2992 = vunpack.c.h.b16 %v2651
      %v2993 = vunpack.c.l.b16 %v2652
      %v2994 = vunpack.c.h.b16 %v2652
      %v2995 = vunpack.c.l.b16 %v2653
      %v2996 = vunpack.c.h.b16 %v2653
      %v2997 = vunpack.c.l.b16 %v2654
      %v2998 = vunpack.c.h.b16 %v2654
      %v2999 = vunpack.c.l.b16 %v2655
      %v3000 = vunpack.c.h.b16 %v2655
      %v3001 = vunpack.c.l.b16 %v2656
      %v3002 = vunpack.c.h.b16 %v2656
      %v3003 = vunpack.c.l.b16 %v2657
      %v3004 = vunpack.c.h.b16 %v2657
      %v3005 = vunpack.c.l.b16 %v2658
      %v3006 = vunpack.c.h.b16 %v2658
      %v3007 = vunpack.c.l.b16 %v2659
      %v3008 = vunpack.c.h.b16 %v2659
      %v3009 = vunpack.c.l.b16 %v2660
      %v3010 = vunpack.c.h.b16 %v2660
      %v3011 = vunpack.c.l.b16 %v2661
      %v3012 = vunpack.c.h.b16 %v2661
      %v3013 = vunpack.c.l.b16 %v2662
      %v3014 = vunpack.c.h.b16 %v2662
      %v3015 = vunpack.c.l.b16 %v2663
      %v3016 = vunpack.c.h.b16 %v2663
      %v3017 = vunpack.c.l.b16 %v2664
      %v3018 = vunpack.c.h.b16 %v2664
      %v3019 = vunpack.c.l.b16 %v2665
      %v3020 = vunpack.c.h.b16 %v2665
      %v3021 = vunpack.c.l.b16 %v2666
      %v3022 = vunpack.c.h.b16 %v2666
      %v3023 = vunpack.c.l.b16 %v2667
      %v3024 = vunpack.c.h.b16 %v2667
      %v3025 = vunpack.c.l.b16 %v2668
      %v3026 = vunpack.c.h.b16 %v2668
      %v3027 = vunpack.c.l.b16 %v2669
      %v3028 = vunpack.c.h.b16 %v2669
      %v3029 = vunpack.c.l.b16 %v2670
      %v3030 = vunpack.c.h.b16 %v2670
      %v3031 = vunpack.c.l.b16 %v2671
      %v3032 = vunpack.c.h.b16 %v2671
      %v3033 = vunpack.c.l.b16 %v2672
      %v3034 = vunpack.c.h.b16 %v2672
      %v3035 = vunpack.c.l.b16 %v2673
      %v3036 = vunpack.c.h.b16 %v2673
      %v3037 = vunpack.c.l.b16 %v2674
      %v3038 = vunpack.c.h.b16 %v2674
      %v3039 = vunpack.c.l.b16 %v2675
      %v3040 = vunpack.c.h.b16 %v2675
      %v3041 = vunpack.c.l.b16 %v2676
      %v3042 = vunpack.c.h.b16 %v2676
      %v3043 = vunpack.c.l.b16 %v2677
      %v3044 = vunpack.c.h.b16 %v2677
      %v3045 = vunpack.c.l.b16 %v2678
      %v3046 = vunpack.c.h.b16 %v2678
      %v3047 = vunpack.c.l.b16 %v2679
      %v3048 = vunpack.c.h.b16 %v2679
      %v3049 = vunpack.c.l.b16 %v2680
      %v3050 = vunpack.c.h.b16 %v2680
      %v3051 = vunpack.c.l.b16 %v2681
      %v3052 = vunpack.c.h.b16 %v2681
      %v3053 = vunpack.c.l.b16 %v2682
      %v3054 = vunpack.c.h.b16 %v2682
      %v3055 = vunpack.c.l.b16 %v2683
      %v3056 = vunpack.c.h.b16 %v2683
      %v3057 = vunpack.c.l.b16 %v2684
      %v3058 = vunpack.c.h.b16 %v2684
      %v3059 = vunpack.c.l.b16 %v2685
      %v3060 = vunpack.c.h.b16 %v2685
      %v3061 = vunpack.c.l.b16 %v2686
      %v3062 = vunpack.c.h.b16 %v2686
      %v3063 = vunpack.c.l.b16 %v2687
      %v3064 = vunpack.c.h.b16 %v2687
      %v3065 = vunpack.c.l.b16 %v2688
      %v3066 = vunpack.c.h.b16 %v2688
      %v3067 = vunpack.c.l.b16 %v2689
      %v3068 = vunpack.c.h.b16 %v2689
      %v3069 = vunpack.c.l.b16 %v2690
      %v3070 = vunpack.c.h.b16 %v2690
      %v3071 = vunpack.c.l.b16 %v2691
      %v3072 = vunpack.c.h.b16 %v2691
      %v3073 = vunpack.c.l.b16 %v2692
      %v3074 = vunpack.c.h.b16 %v2692
      %v3075 = vunpack.c.l.b16 %v2693
      %v3076 = vunpack.c.h.b16 %v2693
      %v3077 = vunpack.c.l.b16 %v2694
      %v3078 = vunpack.c.h.b16 %v2694
      %v3079 = vpack.c.b16 %v2827, %v2823
      %v3080 = vpack.c.b16 %v2828, %v2824
      %v3081 = vpack.c.b16 %v2829, %v2825
      %v3082 = vpack.c.b16 %v2830, %v2826
      %v3083 = vpack.c.b16 %v2835, %v2831
      %v3084 = vpack.c.b16 %v2836, %v2832
      %v3085 = vpack.c.b16 %v2837, %v2833
      %v3086 = vpack.c.b16 %v2838, %v2834
      %v3087 = vpack.c.b16 %v2843, %v2839
      %v3088 = vpack.c.b16 %v2844, %v2840
      %v3089 = vpack.c.b16 %v2845, %v2841
      %v3090 = vpack.c.b16 %v2846, %v2842
      %v3091 = vpack.c.b16 %v2851, %v2847
      %v3092 = vpack.c.b16 %v2852, %v2848
      %v3093 = vpack.c.b16 %v2853, %v2849
      %v3094 = vpack.c.b16 %v2854, %v2850
      %v3095 = vpack.c.b16 %v2859, %v2855
      %v3096 = vpack.c.b16 %v2860, %v2856
      %v3097 = vpack.c.b16 %v2861, %v2857
      %v3098 = vpack.c.b16 %v2862, %v2858
      %v3099 = vpack.c.b16 %v2867, %v2863
      %v3100 = vpack.c.b16 %v2868, %v2864
      %v3101 = vpack.c.b16 %v2869, %v2865
      %v3102 = vpack.c.b16 %v2870, %v2866
      %v3103 = vpack.c.b16 %v2875, %v2871
      %v3104 = vpack.c.b16 %v2876, %v2872
      %v3105 = vpack.c.b16 %v2877, %v2873
      %v3106 = vpack.c.b16 %v2878, %v2874
      %v3107 = vpack.c.b16 %v2883, %v2879
      %v3108 = vpack.c.b16 %v2884, %v2880
      %v3109 = vpack.c.b16 %v2885, %v2881
      %v3110 = vpack.c.b16 %v2886, %v2882
      %v3111 = vpack.c.b16 %v2891, %v2887
      %v3112 = vpack.c.b16 %v2892, %v2888
      %v3113 = vpack.c.b16 %v2893, %v2889
      %v3114 = vpack.c.b16 %v2894, %v2890
      %v3115 = vpack.c.b16 %v2899, %v2895
      %v3116 = vpack.c.b16 %v2900, %v2896
      %v3117 = vpack.c.b16 %v2901, %v2897
      %v3118 = vpack.c.b16 %v2902, %v2898
      %v3119 = vpack.c.b16 %v2907, %v2903
      %v3120 = vpack.c.b16 %v2908, %v2904
      %v3121 = vpack.c.b16 %v2909, %v2905
      %v3122 = vpack.c.b16 %v2910, %v2906
      %v3123 = vpack.c.b16 %v2915, %v2911
      %v3124 = vpack.c.b16 %v2916, %v2912
      %v3125 = vpack.c.b16 %v2917, %v2913
      %v3126 = vpack.c.b16 %v2918, %v2914
      %v3127 = vpack.c.b16 %v2923, %v2919
      %v3128 = vpack.c.b16 %v2924, %v2920
      %v3129 = vpack.c.b16 %v2925, %v2921
      %v3130 = vpack.c.b16 %v2926, %v2922
      %v3131 = vpack.c.b16 %v2931, %v2927
      %v3132 = vpack.c.b16 %v2932, %v2928
      %v3133 = vpack.c.b16 %v2933, %v2929
      %v3134 = vpack.c.b16 %v2934, %v2930
      %v3135 = vpack.c.b16 %v2939, %v2935
      %v3136 = vpack.c.b16 %v2940, %v2936
      %v3137 = vpack.c.b16 %v2941, %v2937
      %v3138 = vpack.c.b16 %v2942, %v2938
      %v3139 = vpack.c.b16 %v2947, %v2943
      %v3140 = vpack.c.b16 %v2948, %v2944
      %v3141 = vpack.c.b16 %v2949, %v2945
      %v3142 = vpack.c.b16 %v2950, %v2946
      %v3143 = vpack.c.b16 %v2955, %v2951
      %v3144 = vpack.c.b16 %v2956, %v2952
      %v3145 = vpack.c.b16 %v2957, %v2953
      %v3146 = vpack.c.b16 %v2958, %v2954
      %v3147 = vpack.c.b16 %v2963, %v2959
      %v3148 = vpack.c.b16 %v2964, %v2960
      %v3149 = vpack.c.b16 %v2965, %v2961
      %v3150 = vpack.c.b16 %v2966, %v2962
      %v3151 = vpack.c.b16 %v2971, %v2967
      %v3152 = vpack.c.b16 %v2972, %v2968
      %v3153 = vpack.c.b16 %v2973, %v2969
      %v3154 = vpack.c.b16 %v2974, %v2970
      %v3155 = vpack.c.b16 %v2979, %v2975
      %v3156 = vpack.c.b16 %v2980, %v2976
      %v3157 = vpack.c.b16 %v2981, %v2977
      %v3158 = vpack.c.b16 %v2982, %v2978
      %v3159 = vpack.c.b16 %v2987, %v2983
      %v3160 = vpack.c.b16 %v2988, %v2984
      %v3161 = vpack.c.b16 %v2989, %v2985
      %v3162 = vpack.c.b16 %v2990, %v2986
      %v3163 = vpack.c.b16 %v2995, %v2991
      %v3164 = vpack.c.b16 %v2996, %v2992
      %v3165 = vpack.c.b16 %v2997, %v2993
      %v3166 = vpack.c.b16 %v2998, %v2994
      %v3167 = vpack.c.b16 %v3003, %v2999
      %v3168 = vpack.c.b16 %v3004, %v3000
      %v3169 = vpack.c.b16 %v3005, %v3001
      %v3170 = vpack.c.b16 %v3006, %v3002
      %v3171 = vpack.c.b16 %v3011, %v3007
      %v3172 = vpack.c.b16 %v3012, %v3008
      %v3173 = vpack.c.b16 %v3013, %v3009
      %v3174 = vpack.c.b16 %v3014, %v3010
      %v3175 = vpack.c.b16 %v3019, %v3015
      %v3176 = vpack.c.b16 %v3020, %v3016
      %v3177 = vpack.c.b16 %v3021, %v3017
      %v3178 = vpack.c.b16 %v3022, %v3018
      %v3179 = vpack.c.b16 %v3027, %v3023
      %v3180 = vpack.c.b16 %v3028, %v3024
      %v3181 = vpack.c.b16 %v3029, %v3025
      %v3182 = vpack.c.b16 %v3030, %v3026
      %v3183 = vpack.c.b16 %v3035, %v3031
      %v3184 = vpack.c.b16 %v3036, %v3032
      %v3185 = vpack.c.b16 %v3037, %v3033
      %v3186 = vpack.c.b16 %v3038, %v3034
      %v3187 = vpack.c.b16 %v3043, %v3039
      %v3188 = vpack.c.b16 %v3044, %v3040
      %v3189 = vpack.c.b16 %v3045, %v3041
      %v3190 = vpack.c.b16 %v3046, %v3042
      %v3191 = vpack.c.b16 %v3051, %v3047
      %v3192 = vpack.c.b16 %v3052, %v3048
      %v3193 = vpack.c.b16 %v3053, %v3049
      %v3194 = vpack.c.b16 %v3054, %v3050
      %v3195 = vpack.c.b16 %v3059, %v3055
      %v3196 = vpack.c.b16 %v3060, %v3056
      %v3197 = vpack.c.b16 %v3061, %v3057
      %v3198 = vpack.c.b16 %v3062, %v3058
      %v3199 = vpack.c.b16 %v3067, %v3063
      %v3200 = vpack.c.b16 %v3068, %v3064
      %v3201 = vpack.c.b16 %v3069, %v3065
      %v3202 = vpack.c.b16 %v3070, %v3066
      %v3203 = vpack.c.b16 %v3075, %v3071
      %v3204 = vpack.c.b16 %v3076, %v3072
      %v3205 = vpack.c.b16 %v3077, %v3073
      %v3206 = vpack.c.b16 %v3078, %v3074
      %3335 = vmatprep.subr.bf16.mxu0 %v3080
      %3336 = vmatpush1.bf16.msra.mxu0 %v3079
      %3337 = vmatprep.subr.bf16.mxu0 %v3084
      %3338 = vmatpush1.bf16.msra.mxu0 %v3083
      %3339 = vmatprep.subr.bf16.mxu0 %v3088
      %3340 = vmatpush1.bf16.msra.mxu0 %v3087
      %3341 = vmatprep.subr.bf16.mxu0 %v3092
      %3342 = vmatpush1.bf16.msra.mxu0 %v3091
      %3343 = vmatprep.subr.bf16.mxu0 %v3096
      %3344 = vmatpush1.bf16.msra.mxu0 %v3095
      %3345 = vmatprep.subr.bf16.mxu0 %v3100
      %3346 = vmatpush1.bf16.msra.mxu0 %v3099
      %3347 = vmatprep.subr.bf16.mxu0 %v3104
      %3348 = vmatpush1.bf16.msra.mxu0 %v3103
      %3349 = vmatprep.subr.bf16.mxu0 %v3108
      %3350 = vmatpush1.bf16.msra.mxu0 %v3107
      %3351 = vmatprep.subr.bf16.mxu0 %v3112
      %3352 = vmatpush1.bf16.msra.mxu0 %v3111
      %3353 = vmatprep.subr.bf16.mxu0 %v3116
      %3354 = vmatpush1.bf16.msra.mxu0 %v3115
      %3355 = vmatprep.subr.bf16.mxu0 %v3120
      %3356 = vmatpush1.bf16.msra.mxu0 %v3119
      %3357 = vmatprep.subr.bf16.mxu0 %v3124
      %3358 = vmatpush1.bf16.msra.mxu0 %v3123
      %3359 = vmatprep.subr.bf16.mxu0 %v3128
      %3360 = vmatpush1.bf16.msra.mxu0 %v3127
      %3361 = vmatprep.subr.bf16.mxu0 %v3132
      %3362 = vmatpush1.bf16.msra.mxu0 %v3131
      %3363 = vmatprep.subr.bf16.mxu0 %v3136
      %3364 = vmatpush1.bf16.msra.mxu0 %v3135
      %3365 = vmatprep.subr.bf16.mxu0 %v3140
      %3366 = vmatpush1.bf16.msra.mxu0 %v3139
      %3367 = vmatprep.mubr.bf16.mxu0 %v2552
      %3368 = vmatmul.mubr.bf16.gmra.mrb[0].mxu0 %v2551
      %v3369 = vpop.f32.mrb[0].mxu0
      %v3370 = vadd.f32 0.0, %v3369
      %v3371 = vpop.f32.mrb[0].mxu0
      %v3372 = vadd.f32 0.0, %v3371
      %v3373 = vpop.f32.mrb[0].mxu0
      %v3374 = vadd.f32 0.0, %v3373
      %v3375 = vpop.f32.mrb[0].mxu0
      %v3376 = vadd.f32 0.0, %v3375
      %3377 = vmatprep.mubr.bf16.mxu0 %v2556
      %3378 = vmatmul.mubr.bf16.gmra.mrb[0].mxu0 %v2555
      %v3379 = vpop.f32.mrb[0].mxu0
      %v3380 = vadd.f32 0.0, %v3379
      %v3381 = vpop.f32.mrb[0].mxu0
      %v3382 = vadd.f32 0.0, %v3381
      %v3383 = vpop.f32.mrb[0].mxu0
      %v3384 = vadd.f32 0.0, %v3383
      %v3385 = vpop.f32.mrb[0].mxu0
      %v3386 = vadd.f32 0.0, %v3385
      %3387 = vmatprep.mubr.bf16.mxu0 %v2560
      %3388 = vmatmul.mubr.bf16.gmra.mrb[0].mxu0 %v2559
      %v3389 = vpop.f32.mrb[0].mxu0
      %v3390 = vadd.f32 0.0, %v3389
      %v3391 = vpop.f32.mrb[0].mxu0
      %v3392 = vadd.f32 0.0, %v3391
      %v3393 = vpop.f32.mrb[0].mxu0
      %v3394 = vadd.f32 0.0, %v3393
      %v3395 = vpop.f32.mrb[0].mxu0
      %v3396 = vadd.f32 0.0, %v3395
      %3397 = vmatprep.mubr.bf16.mxu0 %v2564
      %3398 = vmatmul.mubr.bf16.gmra.mrb[0].mxu0 %v2563
      %v3399 = vpop.f32.mrb[0].mxu0
      %v3400 = vadd.f32 0.0, %v3399
      %v3401 = vpop.f32.mrb[0].mxu0
      %v3402 = vadd.f32 0.0, %v3401
      %v3403 = vpop.f32.mrb[0].mxu0
      %v3404 = vadd.f32 0.0, %v3403
      %v3405 = vpop.f32.mrb[0].mxu0
      %v3406 = vadd.f32 0.0, %v3405
      %3407 = vdwg.mxu0
      %3408 = vmatprep.subr.bf16.mxu0 %v3144
      %3409 = vmatpush1.bf16.msra.mxu0 %v3143
      %3410 = vmatprep.subr.bf16.mxu0 %v3148
      %3411 = vmatpush1.bf16.msra.mxu0 %v3147
      %3412 = vmatprep.subr.bf16.mxu0 %v3152
      %3413 = vmatpush1.bf16.msra.mxu0 %v3151
      %3414 = vmatprep.subr.bf16.mxu0 %v3156
      %3415 = vmatpush1.bf16.msra.mxu0 %v3155
      %3416 = vmatprep.subr.bf16.mxu0 %v3160
      %3417 = vmatpush1.bf16.msra.mxu0 %v3159
      %3418 = vmatprep.subr.bf16.mxu0 %v3164
      %3419 = vmatpush1.bf16.msra.mxu0 %v3163
      %3420 = vmatprep.subr.bf16.mxu0 %v3168
      %3421 = vmatpush1.bf16.msra.mxu0 %v3167
      %3422 = vmatprep.subr.bf16.mxu0 %v3172
      %3423 = vmatpush1.bf16.msra.mxu0 %v3171
      %3424 = vmatprep.subr.bf16.mxu0 %v3176
      %3425 = vmatpush1.bf16.msra.mxu0 %v3175
      %3426 = vmatprep.subr.bf16.mxu0 %v3180
      %3427 = vmatpush1.bf16.msra.mxu0 %v3179
      %3428 = vmatprep.subr.bf16.mxu0 %v3184
      %3429 = vmatpush1.bf16.msra.mxu0 %v3183
      %3430 = vmatprep.subr.bf16.mxu0 %v3188
      %3431 = vmatpush1.bf16.msra.mxu0 %v3187
      %3432 = vmatprep.subr.bf16.mxu0 %v3192
      %3433 = vmatpush1.bf16.msra.mxu0 %v3191
      %3434 = vmatprep.subr.bf16.mxu0 %v3196
      %3435 = vmatpush1.bf16.msra.mxu0 %v3195
      %3436 = vmatprep.subr.bf16.mxu0 %v3200
      %3437 = vmatpush1.bf16.msra.mxu0 %v3199
      %3438 = vmatprep.subr.bf16.mxu0 %v3204
      %3439 = vmatpush1.bf16.msra.mxu0 %v3203
      %3440 = vmatprep.mubr.bf16.mxu0 %v2554
      %3441 = vmatmul.mubr.bf16.gmra.mrb[0].mxu0 %v2553
      %v3442 = vpop.f32.mrb[0].mxu0
      %v3443 = vadd.f32 %v3370, %v3442
      %v3444 = vpop.f32.mrb[0].mxu0
      %v3445 = vadd.f32 %v3372, %v3444
      %v3446 = vpop.f32.mrb[0].mxu0
      %v3447 = vadd.f32 %v3374, %v3446
      %v3448 = vpop.f32.mrb[0].mxu0
      %v3449 = vadd.f32 %v3376, %v3448
      %3450 = vmatprep.mubr.bf16.mxu0 %v2558
      %3451 = vmatmul.mubr.bf16.gmra.mrb[0].mxu0 %v2557
      %v3452 = vpop.f32.mrb[0].mxu0
      %v3453 = vadd.f32 %v3380, %v3452
      %v3454 = vpop.f32.mrb[0].mxu0
      %v3455 = vadd.f32 %v3382, %v3454
      %v3456 = vpop.f32.mrb[0].mxu0
      %v3457 = vadd.f32 %v3384, %v3456
      %v3458 = vpop.f32.mrb[0].mxu0
      %v3459 = vadd.f32 %v3386, %v3458
      %3460 = vmatprep.mubr.bf16.mxu0 %v2562
      %3461 = vmatmul.mubr.bf16.gmra.mrb[0].mxu0 %v2561
      %v3462 = vpop.f32.mrb[0].mxu0
      %v3463 = vadd.f32 %v3390, %v3462
      %v3464 = vpop.f32.mrb[0].mxu0
      %v3465 = vadd.f32 %v3392, %v3464
      %v3466 = vpop.f32.mrb[0].mxu0
      %v3467 = vadd.f32 %v3394, %v3466
      %v3468 = vpop.f32.mrb[0].mxu0
      %v3469 = vadd.f32 %v3396, %v3468
      %3470 = vmatprep.mubr.bf16.mxu0 %v2566
      %3471 = vmatmul.mubr.bf16.gmra.mrb[0].mxu0 %v2565
      %v3472 = vpop.f32.mrb[0].mxu0
      %v3473 = vadd.f32 %v3400, %v3472
      %v3474 = vpop.f32.mrb[0].mxu0
      %v3475 = vadd.f32 %v3402, %v3474
      %v3476 = vpop.f32.mrb[0].mxu0
      %v3477 = vadd.f32 %v3404, %v3476
      %v3478 = vpop.f32.mrb[0].mxu0
      %v3479 = vadd.f32 %v3406, %v3478
      %3480 = vdwg.mxu0
      %3481 = vmatprep.subr.bf16.mxu0 %v3082
      %3482 = vmatpush1.bf16.msra.mxu0 %v3081
      %3483 = vmatprep.subr.bf16.mxu0 %v3086
      %3484 = vmatpush1.bf16.msra.mxu0 %v3085
      %3485 = vmatprep.subr.bf16.mxu0 %v3090
      %3486 = vmatpush1.bf16.msra.mxu0 %v3089
      %3487 = vmatprep.subr.bf16.mxu0 %v3094
      %3488 = vmatpush1.bf16.msra.mxu0 %v3093
      %3489 = vmatprep.subr.bf16.mxu0 %v3098
      %3490 = vmatpush1.bf16.msra.mxu0 %v3097
      %3491 = vmatprep.subr.bf16.mxu0 %v3102
      %3492 = vmatpush1.bf16.msra.mxu0 %v3101
      %3493 = vmatprep.subr.bf16.mxu0 %v3106
      %3494 = vmatpush1.bf16.msra.mxu0 %v3105
      %3495 = vmatprep.subr.bf16.mxu0 %v3110
      %3496 = vmatpush1.bf16.msra.mxu0 %v3109
      %3497 = vmatprep.subr.bf16.mxu0 %v3114
      %3498 = vmatpush1.bf16.msra.mxu0 %v3113
      %3499 = vmatprep.subr.bf16.mxu0 %v3118
      %3500 = vmatpush1.bf16.msra.mxu0 %v3117
      %3501 = vmatprep.subr.bf16.mxu0 %v3122
      %3502 = vmatpush1.bf16.msra.mxu0 %v3121
      %3503 = vmatprep.subr.bf16.mxu0 %v3126
      %3504 = vmatpush1.bf16.msra.mxu0 %v3125
      %3505 = vmatprep.subr.bf16.mxu0 %v3130
      %3506 = vmatpush1.bf16.msra.mxu0 %v3129
      %3507 = vmatprep.subr.bf16.mxu0 %v3134
      %3508 = vmatpush1.bf16.msra.mxu0 %v3133
      %3509 = vmatprep.subr.bf16.mxu0 %v3138
      %3510 = vmatpush1.bf16.msra.mxu0 %v3137
      %3511 = vmatprep.subr.bf16.mxu0 %v3142
      %3512 = vmatpush1.bf16.msra.mxu0 %v3141
      %3513 = vmatprep.mubr.bf16.mxu0 %v2552
      %3514 = vmatmul.mubr.bf16.gmra.mrb[0].mxu0 %v2551
      %v3515 = vpop.f32.mrb[0].mxu0
      %v3516 = vadd.f32 0.0, %v3515
      %v3517 = vpop.f32.mrb[0].mxu0
      %v3518 = vadd.f32 0.0, %v3517
      %v3519 = vpop.f32.mrb[0].mxu0
      %v3520 = vadd.f32 0.0, %v3519
      %v3521 = vpop.f32.mrb[0].mxu0
      %v3522 = vadd.f32 0.0, %v3521
      %3523 = vmatprep.mubr.bf16.mxu0 %v2556
      %3524 = vmatmul.mubr.bf16.gmra.mrb[0].mxu0 %v2555
      %v3525 = vpop.f32.mrb[0].mxu0
      %v3526 = vadd.f32 0.0, %v3525
      %v3527 = vpop.f32.mrb[0].mxu0
      %v3528 = vadd.f32 0.0, %v3527
      %v3529 = vpop.f32.mrb[0].mxu0
      %v3530 = vadd.f32 0.0, %v3529
      %v3531 = vpop.f32.mrb[0].mxu0
      %v3532 = vadd.f32 0.0, %v3531
      %3533 = vmatprep.mubr.bf16.mxu0 %v2560
      %3534 = vmatmul.mubr.bf16.gmra.mrb[0].mxu0 %v2559
      %v3535 = vpop.f32.mrb[0].mxu0
      %v3536 = vadd.f32 0.0, %v3535
      %v3537 = vpop.f32.mrb[0].mxu0
      %v3538 = vadd.f32 0.0, %v3537
      %v3539 = vpop.f32.mrb[0].mxu0
      %v3540 = vadd.f32 0.0, %v3539
      %v3541 = vpop.f32.mrb[0].mxu0
      %v3542 = vadd.f32 0.0, %v3541
      %3543 = vmatprep.mubr.bf16.mxu0 %v2564
      %3544 = vmatmul.mubr.bf16.gmra.mrb[0].mxu0 %v2563
      %v3545 = vpop.f32.mrb[0].mxu0
      %v3546 = vadd.f32 0.0, %v3545
      %v3547 = vpop.f32.mrb[0].mxu0
      %v3548 = vadd.f32 0.0, %v3547
      %v3549 = vpop.f32.mrb[0].mxu0
      %v3550 = vadd.f32 0.0, %v3549
      %v3551 = vpop.f32.mrb[0].mxu0
      %v3552 = vadd.f32 0.0, %v3551
      %3553 = vdwg.mxu0
      %3554 = vmatprep.subr.bf16.mxu0 %v3146
      %3555 = vmatpush1.bf16.msra.mxu0 %v3145
      %3556 = vmatprep.subr.bf16.mxu0 %v3150
      %3557 = vmatpush1.bf16.msra.mxu0 %v3149
      %3558 = vmatprep.subr.bf16.mxu0 %v3154
      %3559 = vmatpush1.bf16.msra.mxu0 %v3153
      %3560 = vmatprep.subr.bf16.mxu0 %v3158
      %3561 = vmatpush1.bf16.msra.mxu0 %v3157
      %3562 = vmatprep.subr.bf16.mxu0 %v3162
      %3563 = vmatpush1.bf16.msra.mxu0 %v3161
      %3564 = vmatprep.subr.bf16.mxu0 %v3166
      %3565 = vmatpush1.bf16.msra.mxu0 %v3165
      %3566 = vmatprep.subr.bf16.mxu0 %v3170
      %3567 = vmatpush1.bf16.msra.mxu0 %v3169
      %3568 = vmatprep.subr.bf16.mxu0 %v3174
      %3569 = vmatpush1.bf16.msra.mxu0 %v3173
      %3570 = vmatprep.subr.bf16.mxu0 %v3178
      %3571 = vmatpush1.bf16.msra.mxu0 %v3177
      %3572 = vmatprep.subr.bf16.mxu0 %v3182
      %3573 = vmatpush1.bf16.msra.mxu0 %v3181
      %3574 = vmatprep.subr.bf16.mxu0 %v3186
      %3575 = vmatpush1.bf16.msra.mxu0 %v3185
      %3576 = vmatprep.subr.bf16.mxu0 %v3190
      %3577 = vmatpush1.bf16.msra.mxu0 %v3189
      %3578 = vmatprep.subr.bf16.mxu0 %v3194
      %3579 = vmatpush1.bf16.msra.mxu0 %v3193
      %3580 = vmatprep.subr.bf16.mxu0 %v3198
      %3581 = vmatpush1.bf16.msra.mxu0 %v3197
      %3582 = vmatprep.subr.bf16.mxu0 %v3202
      %3583 = vmatpush1.bf16.msra.mxu0 %v3201
      %3584 = vmatprep.subr.bf16.mxu0 %v3206
      %3585 = vmatpush1.bf16.msra.mxu0 %v3205
      %3586 = vmatprep.mubr.bf16.mxu0 %v2554
      %3587 = vmatmul.mubr.bf16.gmra.mrb[0].mxu0 %v2553
      %v3588 = vpop.f32.mrb[0].mxu0
      %v3589 = vadd.f32 %v3516, %v3588
      %v3590 = vpop.f32.mrb[0].mxu0
      %v3591 = vadd.f32 %v3518, %v3590
      %v3592 = vpop.f32.mrb[0].mxu0
      %v3593 = vadd.f32 %v3520, %v3592
      %v3594 = vpop.f32.mrb[0].mxu0
      %v3595 = vadd.f32 %v3522, %v3594
      %3596 = vmatprep.mubr.bf16.mxu0 %v2558
      %3597 = vmatmul.mubr.bf16.gmra.mrb[0].mxu0 %v2557
      %v3598 = vpop.f32.mrb[0].mxu0
      %v3599 = vadd.f32 %v3526, %v3598
      %v3600 = vpop.f32.mrb[0].mxu0
      %v3601 = vadd.f32 %v3528, %v3600
      %v3602 = vpop.f32.mrb[0].mxu0
      %v3603 = vadd.f32 %v3530, %v3602
      %v3604 = vpop.f32.mrb[0].mxu0
      %v3605 = vadd.f32 %v3532, %v3604
      %3606 = vmatprep.mubr.bf16.mxu0 %v2562
      %3607 = vmatmul.mubr.bf16.gmra.mrb[0].mxu0 %v2561
      %v3608 = vpop.f32.mrb[0].mxu0
      %v3609 = vadd.f32 %v3536, %v3608
      %v3610 = vpop.f32.mrb[0].mxu0
      %v3611 = vadd.f32 %v3538, %v3610
      %v3612 = vpop.f32.mrb[0].mxu0
      %v3613 = vadd.f32 %v3540, %v3612
      %v3614 = vpop.f32.mrb[0].mxu0
      %v3615 = vadd.f32 %v3542, %v3614
      %3616 = vmatprep.mubr.bf16.mxu0 %v2566
      %3617 = vmatmul.mubr.bf16.gmra.mrb[0].mxu0 %v2565
      %v3618 = vpop.f32.mrb[0].mxu0
      %v3619 = vadd.f32 %v3546, %v3618
      %v3620 = vpop.f32.mrb[0].mxu0
      %v3621 = vadd.f32 %v3548, %v3620
      %v3622 = vpop.f32.mrb[0].mxu0
      %v3623 = vadd.f32 %v3550, %v3622
      %v3624 = vpop.f32.mrb[0].mxu0
      %v3625 = vadd.f32 %v3552, %v3624
      %3626 = vdwg.mxu0
      %v3755 = vunpack.c.l.b16 %v2423
      %v3756 = vunpack.c.h.b16 %v2423
      %v3757 = vunpack.c.l.b16 %v2424
      %v3758 = vunpack.c.h.b16 %v2424
      %v3759 = vunpack.c.l.b16 %v2425
      %v3760 = vunpack.c.h.b16 %v2425
      %v3761 = vunpack.c.l.b16 %v2426
      %v3762 = vunpack.c.h.b16 %v2426
      %v3763 = vunpack.c.l.b16 %v2427
      %v3764 = vunpack.c.h.b16 %v2427
      %v3765 = vunpack.c.l.b16 %v2428
      %v3766 = vunpack.c.h.b16 %v2428
      %v3767 = vunpack.c.l.b16 %v2429
      %v3768 = vunpack.c.h.b16 %v2429
      %v3769 = vunpack.c.l.b16 %v2430
      %v3770 = vunpack.c.h.b16 %v2430
      %v3771 = vunpack.c.l.b16 %v2431
      %v3772 = vunpack.c.h.b16 %v2431
      %v3773 = vunpack.c.l.b16 %v2432
      %v3774 = vunpack.c.h.b16 %v2432
      %v3775 = vunpack.c.l.b16 %v2433
      %v3776 = vunpack.c.h.b16 %v2433
      %v3777 = vunpack.c.l.b16 %v2434
      %v3778 = vunpack.c.h.b16 %v2434
      %v3779 = vunpack.c.l.b16 %v2435
      %v3780 = vunpack.c.h.b16 %v2435
      %v3781 = vunpack.c.l.b16 %v2436
      %v3782 = vunpack.c.h.b16 %v2436
      %v3783 = vunpack.c.l.b16 %v2437
      %v3784 = vunpack.c.h.b16 %v2437
      %v3785 = vunpack.c.l.b16 %v2438
      %v3786 = vunpack.c.h.b16 %v2438
      %v3787 = vunpack.c.l.b16 %v2439
      %v3788 = vunpack.c.h.b16 %v2439
      %v3789 = vunpack.c.l.b16 %v2440
      %v3790 = vunpack.c.h.b16 %v2440
      %v3791 = vunpack.c.l.b16 %v2441
      %v3792 = vunpack.c.h.b16 %v2441
      %v3793 = vunpack.c.l.b16 %v2442
      %v3794 = vunpack.c.h.b16 %v2442
      %v3795 = vunpack.c.l.b16 %v2443
      %v3796 = vunpack.c.h.b16 %v2443
      %v3797 = vunpack.c.l.b16 %v2444
      %v3798 = vunpack.c.h.b16 %v2444
      %v3799 = vunpack.c.l.b16 %v2445
      %v3800 = vunpack.c.h.b16 %v2445
      %v3801 = vunpack.c.l.b16 %v2446
      %v3802 = vunpack.c.h.b16 %v2446
      %v3803 = vunpack.c.l.b16 %v2447
      %v3804 = vunpack.c.h.b16 %v2447
      %v3805 = vunpack.c.l.b16 %v2448
      %v3806 = vunpack.c.h.b16 %v2448
      %v3807 = vunpack.c.l.b16 %v2449
      %v3808 = vunpack.c.h.b16 %v2449
      %v3809 = vunpack.c.l.b16 %v2450
      %v3810 = vunpack.c.h.b16 %v2450
      %v3811 = vunpack.c.l.b16 %v2451
      %v3812 = vunpack.c.h.b16 %v2451
      %v3813 = vunpack.c.l.b16 %v2452
      %v3814 = vunpack.c.h.b16 %v2452
      %v3815 = vunpack.c.l.b16 %v2453
      %v3816 = vunpack.c.h.b16 %v2453
      %v3817 = vunpack.c.l.b16 %v2454
      %v3818 = vunpack.c.h.b16 %v2454
      %v3819 = vunpack.c.l.b16 %v2455
      %v3820 = vunpack.c.h.b16 %v2455
      %v3821 = vunpack.c.l.b16 %v2456
      %v3822 = vunpack.c.h.b16 %v2456
      %v3823 = vunpack.c.l.b16 %v2457
      %v3824 = vunpack.c.h.b16 %v2457
      %v3825 = vunpack.c.l.b16 %v2458
      %v3826 = vunpack.c.h.b16 %v2458
      %v3827 = vunpack.c.l.b16 %v2459
      %v3828 = vunpack.c.h.b16 %v2459
      %v3829 = vunpack.c.l.b16 %v2460
      %v3830 = vunpack.c.h.b16 %v2460
      %v3831 = vunpack.c.l.b16 %v2461
      %v3832 = vunpack.c.h.b16 %v2461
      %v3833 = vunpack.c.l.b16 %v2462
      %v3834 = vunpack.c.h.b16 %v2462
      %v3835 = vunpack.c.l.b16 %v2463
      %v3836 = vunpack.c.h.b16 %v2463
      %v3837 = vunpack.c.l.b16 %v2464
      %v3838 = vunpack.c.h.b16 %v2464
      %v3839 = vunpack.c.l.b16 %v2465
      %v3840 = vunpack.c.h.b16 %v2465
      %v3841 = vunpack.c.l.b16 %v2466
      %v3842 = vunpack.c.h.b16 %v2466
      %v3843 = vunpack.c.l.b16 %v2467
      %v3844 = vunpack.c.h.b16 %v2467
      %v3845 = vunpack.c.l.b16 %v2468
      %v3846 = vunpack.c.h.b16 %v2468
      %v3847 = vunpack.c.l.b16 %v2469
      %v3848 = vunpack.c.h.b16 %v2469
      %v3849 = vunpack.c.l.b16 %v2470
      %v3850 = vunpack.c.h.b16 %v2470
      %v3851 = vunpack.c.l.b16 %v2471
      %v3852 = vunpack.c.h.b16 %v2471
      %v3853 = vunpack.c.l.b16 %v2472
      %v3854 = vunpack.c.h.b16 %v2472
      %v3855 = vunpack.c.l.b16 %v2473
      %v3856 = vunpack.c.h.b16 %v2473
      %v3857 = vunpack.c.l.b16 %v2474
      %v3858 = vunpack.c.h.b16 %v2474
      %v3859 = vunpack.c.l.b16 %v2475
      %v3860 = vunpack.c.h.b16 %v2475
      %v3861 = vunpack.c.l.b16 %v2476
      %v3862 = vunpack.c.h.b16 %v2476
      %v3863 = vunpack.c.l.b16 %v2477
      %v3864 = vunpack.c.h.b16 %v2477
      %v3865 = vunpack.c.l.b16 %v2478
      %v3866 = vunpack.c.h.b16 %v2478
      %v3867 = vunpack.c.l.b16 %v2479
      %v3868 = vunpack.c.h.b16 %v2479
      %v3869 = vunpack.c.l.b16 %v2480
      %v3870 = vunpack.c.h.b16 %v2480
      %v3871 = vunpack.c.l.b16 %v2481
      %v3872 = vunpack.c.h.b16 %v2481
      %v3873 = vunpack.c.l.b16 %v2482
      %v3874 = vunpack.c.h.b16 %v2482
      %v3875 = vunpack.c.l.b16 %v2483
      %v3876 = vunpack.c.h.b16 %v2483
      %v3877 = vunpack.c.l.b16 %v2484
      %v3878 = vunpack.c.h.b16 %v2484
      %v3879 = vunpack.c.l.b16 %v2485
      %v3880 = vunpack.c.h.b16 %v2485
      %v3881 = vunpack.c.l.b16 %v2486
      %v3882 = vunpack.c.h.b16 %v2486
      %v3883 = vunpack.c.l.b16 %v2487
      %v3884 = vunpack.c.h.b16 %v2487
      %v3885 = vunpack.c.l.b16 %v2488
      %v3886 = vunpack.c.h.b16 %v2488
      %v3887 = vunpack.c.l.b16 %v2489
      %v3888 = vunpack.c.h.b16 %v2489
      %v3889 = vunpack.c.l.b16 %v2490
      %v3890 = vunpack.c.h.b16 %v2490
      %v3891 = vunpack.c.l.b16 %v2491
      %v3892 = vunpack.c.h.b16 %v2491
      %v3893 = vunpack.c.l.b16 %v2492
      %v3894 = vunpack.c.h.b16 %v2492
      %v3895 = vunpack.c.l.b16 %v2493
      %v3896 = vunpack.c.h.b16 %v2493
      %v3897 = vunpack.c.l.b16 %v2494
      %v3898 = vunpack.c.h.b16 %v2494
      %v3899 = vunpack.c.l.b16 %v2495
      %v3900 = vunpack.c.h.b16 %v2495
      %v3901 = vunpack.c.l.b16 %v2496
      %v3902 = vunpack.c.h.b16 %v2496
      %v3903 = vunpack.c.l.b16 %v2497
      %v3904 = vunpack.c.h.b16 %v2497
      %v3905 = vunpack.c.l.b16 %v2498
      %v3906 = vunpack.c.h.b16 %v2498
      %v3907 = vunpack.c.l.b16 %v2499
      %v3908 = vunpack.c.h.b16 %v2499
      %v3909 = vunpack.c.l.b16 %v2500
      %v3910 = vunpack.c.h.b16 %v2500
      %v3911 = vunpack.c.l.b16 %v2501
      %v3912 = vunpack.c.h.b16 %v2501
      %v3913 = vunpack.c.l.b16 %v2502
      %v3914 = vunpack.c.h.b16 %v2502
      %v3915 = vunpack.c.l.b16 %v2503
      %v3916 = vunpack.c.h.b16 %v2503
      %v3917 = vunpack.c.l.b16 %v2504
      %v3918 = vunpack.c.h.b16 %v2504
      %v3919 = vunpack.c.l.b16 %v2505
      %v3920 = vunpack.c.h.b16 %v2505
      %v3921 = vunpack.c.l.b16 %v2506
      %v3922 = vunpack.c.h.b16 %v2506
      %v3923 = vunpack.c.l.b16 %v2507
      %v3924 = vunpack.c.h.b16 %v2507
      %v3925 = vunpack.c.l.b16 %v2508
      %v3926 = vunpack.c.h.b16 %v2508
      %v3927 = vunpack.c.l.b16 %v2509
      %v3928 = vunpack.c.h.b16 %v2509
      %v3929 = vunpack.c.l.b16 %v2510
      %v3930 = vunpack.c.h.b16 %v2510
      %v3931 = vunpack.c.l.b16 %v2511
      %v3932 = vunpack.c.h.b16 %v2511
      %v3933 = vunpack.c.l.b16 %v2512
      %v3934 = vunpack.c.h.b16 %v2512
      %v3935 = vunpack.c.l.b16 %v2513
      %v3936 = vunpack.c.h.b16 %v2513
      %v3937 = vunpack.c.l.b16 %v2514
      %v3938 = vunpack.c.h.b16 %v2514
      %v3939 = vunpack.c.l.b16 %v2515
      %v3940 = vunpack.c.h.b16 %v2515
      %v3941 = vunpack.c.l.b16 %v2516
      %v3942 = vunpack.c.h.b16 %v2516
      %v3943 = vunpack.c.l.b16 %v2517
      %v3944 = vunpack.c.h.b16 %v2517
      %v3945 = vunpack.c.l.b16 %v2518
      %v3946 = vunpack.c.h.b16 %v2518
      %v3947 = vunpack.c.l.b16 %v2519
      %v3948 = vunpack.c.h.b16 %v2519
      %v3949 = vunpack.c.l.b16 %v2520
      %v3950 = vunpack.c.h.b16 %v2520
      %v3951 = vunpack.c.l.b16 %v2521
      %v3952 = vunpack.c.h.b16 %v2521
      %v3953 = vunpack.c.l.b16 %v2522
      %v3954 = vunpack.c.h.b16 %v2522
      %v3955 = vunpack.c.l.b16 %v2523
      %v3956 = vunpack.c.h.b16 %v2523
      %v3957 = vunpack.c.l.b16 %v2524
      %v3958 = vunpack.c.h.b16 %v2524
      %v3959 = vunpack.c.l.b16 %v2525
      %v3960 = vunpack.c.h.b16 %v2525
      %v3961 = vunpack.c.l.b16 %v2526
      %v3962 = vunpack.c.h.b16 %v2526
      %v3963 = vunpack.c.l.b16 %v2527
      %v3964 = vunpack.c.h.b16 %v2527
      %v3965 = vunpack.c.l.b16 %v2528
      %v3966 = vunpack.c.h.b16 %v2528
      %v3967 = vunpack.c.l.b16 %v2529
      %v3968 = vunpack.c.h.b16 %v2529
      %v3969 = vunpack.c.l.b16 %v2530
      %v3970 = vunpack.c.h.b16 %v2530
      %v3971 = vunpack.c.l.b16 %v2531
      %v3972 = vunpack.c.h.b16 %v2531
      %v3973 = vunpack.c.l.b16 %v2532
      %v3974 = vunpack.c.h.b16 %v2532
      %v3975 = vunpack.c.l.b16 %v2533
      %v3976 = vunpack.c.h.b16 %v2533
      %v3977 = vunpack.c.l.b16 %v2534
      %v3978 = vunpack.c.h.b16 %v2534
      %v3979 = vunpack.c.l.b16 %v2535
      %v3980 = vunpack.c.h.b16 %v2535
      %v3981 = vunpack.c.l.b16 %v2536
      %v3982 = vunpack.c.h.b16 %v2536
      %v3983 = vunpack.c.l.b16 %v2537
      %v3984 = vunpack.c.h.b16 %v2537
      %v3985 = vunpack.c.l.b16 %v2538
      %v3986 = vunpack.c.h.b16 %v2538
      %v3987 = vunpack.c.l.b16 %v2539
      %v3988 = vunpack.c.h.b16 %v2539
      %v3989 = vunpack.c.l.b16 %v2540
      %v3990 = vunpack.c.h.b16 %v2540
      %v3991 = vunpack.c.l.b16 %v2541
      %v3992 = vunpack.c.h.b16 %v2541
      %v3993 = vunpack.c.l.b16 %v2542
      %v3994 = vunpack.c.h.b16 %v2542
      %v3995 = vunpack.c.l.b16 %v2543
      %v3996 = vunpack.c.h.b16 %v2543
      %v3997 = vunpack.c.l.b16 %v2544
      %v3998 = vunpack.c.h.b16 %v2544
      %v3999 = vunpack.c.l.b16 %v2545
      %v4000 = vunpack.c.h.b16 %v2545
      %v4001 = vunpack.c.l.b16 %v2546
      %v4002 = vunpack.c.h.b16 %v2546
      %v4003 = vunpack.c.l.b16 %v2547
      %v4004 = vunpack.c.h.b16 %v2547
      %v4005 = vunpack.c.l.b16 %v2548
      %v4006 = vunpack.c.h.b16 %v2548
      %v4007 = vunpack.c.l.b16 %v2549
      %v4008 = vunpack.c.h.b16 %v2549
      %v4009 = vunpack.c.l.b16 %v2550
      %v4010 = vunpack.c.h.b16 %v2550
      %v4011 = vpack.c.b16 %v3759, %v3755
      %v4012 = vpack.c.b16 %v3760, %v3756
      %v4013 = vpack.c.b16 %v3761, %v3757
      %v4014 = vpack.c.b16 %v3762, %v3758
      %v4015 = vpack.c.b16 %v3767, %v3763
      %v4016 = vpack.c.b16 %v3768, %v3764
      %v4017 = vpack.c.b16 %v3769, %v3765
      %v4018 = vpack.c.b16 %v3770, %v3766
      %v4019 = vpack.c.b16 %v3775, %v3771
      %v4020 = vpack.c.b16 %v3776, %v3772
      %v4021 = vpack.c.b16 %v3777, %v3773
      %v4022 = vpack.c.b16 %v3778, %v3774
      %v4023 = vpack.c.b16 %v3783, %v3779
      %v4024 = vpack.c.b16 %v3784, %v3780
      %v4025 = vpack.c.b16 %v3785, %v3781
      %v4026 = vpack.c.b16 %v3786, %v3782
      %v4027 = vpack.c.b16 %v3791, %v3787
      %v4028 = vpack.c.b16 %v3792, %v3788
      %v4029 = vpack.c.b16 %v3793, %v3789
      %v4030 = vpack.c.b16 %v3794, %v3790
      %v4031 = vpack.c.b16 %v3799, %v3795
      %v4032 = vpack.c.b16 %v3800, %v3796
      %v4033 = vpack.c.b16 %v3801, %v3797
      %v4034 = vpack.c.b16 %v3802, %v3798
      %v4035 = vpack.c.b16 %v3807, %v3803
      %v4036 = vpack.c.b16 %v3808, %v3804
      %v4037 = vpack.c.b16 %v3809, %v3805
      %v4038 = vpack.c.b16 %v3810, %v3806
      %v4039 = vpack.c.b16 %v3815, %v3811
      %v4040 = vpack.c.b16 %v3816, %v3812
      %v4041 = vpack.c.b16 %v3817, %v3813
      %v4042 = vpack.c.b16 %v3818, %v3814
      %v4043 = vpack.c.b16 %v3823, %v3819
      %v4044 = vpack.c.b16 %v3824, %v3820
      %v4045 = vpack.c.b16 %v3825, %v3821
      %v4046 = vpack.c.b16 %v3826, %v3822
      %v4047 = vpack.c.b16 %v3831, %v3827
      %v4048 = vpack.c.b16 %v3832, %v3828
      %v4049 = vpack.c.b16 %v3833, %v3829
      %v4050 = vpack.c.b16 %v3834, %v3830
      %v4051 = vpack.c.b16 %v3839, %v3835
      %v4052 = vpack.c.b16 %v3840, %v3836
      %v4053 = vpack.c.b16 %v3841, %v3837
      %v4054 = vpack.c.b16 %v3842, %v3838
      %v4055 = vpack.c.b16 %v3847, %v3843
      %v4056 = vpack.c.b16 %v3848, %v3844
      %v4057 = vpack.c.b16 %v3849, %v3845
      %v4058 = vpack.c.b16 %v3850, %v3846
      %v4059 = vpack.c.b16 %v3855, %v3851
      %v4060 = vpack.c.b16 %v3856, %v3852
      %v4061 = vpack.c.b16 %v3857, %v3853
      %v4062 = vpack.c.b16 %v3858, %v3854
      %v4063 = vpack.c.b16 %v3863, %v3859
      %v4064 = vpack.c.b16 %v3864, %v3860
      %v4065 = vpack.c.b16 %v3865, %v3861
      %v4066 = vpack.c.b16 %v3866, %v3862
      %v4067 = vpack.c.b16 %v3871, %v3867
      %v4068 = vpack.c.b16 %v3872, %v3868
      %v4069 = vpack.c.b16 %v3873, %v3869
      %v4070 = vpack.c.b16 %v3874, %v3870
      %v4071 = vpack.c.b16 %v3879, %v3875
      %v4072 = vpack.c.b16 %v3880, %v3876
      %v4073 = vpack.c.b16 %v3881, %v3877
      %v4074 = vpack.c.b16 %v3882, %v3878
      %v4075 = vpack.c.b16 %v3887, %v3883
      %v4076 = vpack.c.b16 %v3888, %v3884
      %v4077 = vpack.c.b16 %v3889, %v3885
      %v4078 = vpack.c.b16 %v3890, %v3886
      %v4079 = vpack.c.b16 %v3895, %v3891
      %v4080 = vpack.c.b16 %v3896, %v3892
      %v4081 = vpack.c.b16 %v3897, %v3893
      %v4082 = vpack.c.b16 %v3898, %v3894
      %v4083 = vpack.c.b16 %v3903, %v3899
      %v4084 = vpack.c.b16 %v3904, %v3900
      %v4085 = vpack.c.b16 %v3905, %v3901
      %v4086 = vpack.c.b16 %v3906, %v3902
      %v4087 = vpack.c.b16 %v3911, %v3907
      %v4088 = vpack.c.b16 %v3912, %v3908
      %v4089 = vpack.c.b16 %v3913, %v3909
      %v4090 = vpack.c.b16 %v3914, %v3910
      %v4091 = vpack.c.b16 %v3919, %v3915
      %v4092 = vpack.c.b16 %v3920, %v3916
      %v4093 = vpack.c.b16 %v3921, %v3917
      %v4094 = vpack.c.b16 %v3922, %v3918
      %v4095 = vpack.c.b16 %v3927, %v3923
      %v4096 = vpack.c.b16 %v3928, %v3924
      %v4097 = vpack.c.b16 %v3929, %v3925
      %v4098 = vpack.c.b16 %v3930, %v3926
      %v4099 = vpack.c.b16 %v3935, %v3931
      %v4100 = vpack.c.b16 %v3936, %v3932
      %v4101 = vpack.c.b16 %v3937, %v3933
      %v4102 = vpack.c.b16 %v3938, %v3934
      %v4103 = vpack.c.b16 %v3943, %v3939
      %v4104 = vpack.c.b16 %v3944, %v3940
      %v4105 = vpack.c.b16 %v3945, %v3941
      %v4106 = vpack.c.b16 %v3946, %v3942
      %v4107 = vpack.c.b16 %v3951, %v3947
      %v4108 = vpack.c.b16 %v3952, %v3948
      %v4109 = vpack.c.b16 %v3953, %v3949
      %v4110 = vpack.c.b16 %v3954, %v3950
      %v4111 = vpack.c.b16 %v3959, %v3955
      %v4112 = vpack.c.b16 %v3960, %v3956
      %v4113 = vpack.c.b16 %v3961, %v3957
      %v4114 = vpack.c.b16 %v3962, %v3958
      %v4115 = vpack.c.b16 %v3967, %v3963
      %v4116 = vpack.c.b16 %v3968, %v3964
      %v4117 = vpack.c.b16 %v3969, %v3965
      %v4118 = vpack.c.b16 %v3970, %v3966
      %v4119 = vpack.c.b16 %v3975, %v3971
      %v4120 = vpack.c.b16 %v3976, %v3972
      %v4121 = vpack.c.b16 %v3977, %v3973
      %v4122 = vpack.c.b16 %v3978, %v3974
      %v4123 = vpack.c.b16 %v3983, %v3979
      %v4124 = vpack.c.b16 %v3984, %v3980
      %v4125 = vpack.c.b16 %v3985, %v3981
      %v4126 = vpack.c.b16 %v3986, %v3982
      %v4127 = vpack.c.b16 %v3991, %v3987
      %v4128 = vpack.c.b16 %v3992, %v3988
      %v4129 = vpack.c.b16 %v3993, %v3989
      %v4130 = vpack.c.b16 %v3994, %v3990
      %v4131 = vpack.c.b16 %v3999, %v3995
      %v4132 = vpack.c.b16 %v4000, %v3996
      %v4133 = vpack.c.b16 %v4001, %v3997
      %v4134 = vpack.c.b16 %v4002, %v3998
      %v4135 = vpack.c.b16 %v4007, %v4003
      %v4136 = vpack.c.b16 %v4008, %v4004
      %v4137 = vpack.c.b16 %v4009, %v4005
      %v4138 = vpack.c.b16 %v4010, %v4006
      %4267 = vmatprep.subr.bf16.mxu0 %v4012
      %4268 = vmatpush1.bf16.msra.mxu0 %v4011
      %4269 = vmatprep.subr.bf16.mxu0 %v4016
      %4270 = vmatpush1.bf16.msra.mxu0 %v4015
      %4271 = vmatprep.subr.bf16.mxu0 %v4020
      %4272 = vmatpush1.bf16.msra.mxu0 %v4019
      %4273 = vmatprep.subr.bf16.mxu0 %v4024
      %4274 = vmatpush1.bf16.msra.mxu0 %v4023
      %4275 = vmatprep.subr.bf16.mxu0 %v4028
      %4276 = vmatpush1.bf16.msra.mxu0 %v4027
      %4277 = vmatprep.subr.bf16.mxu0 %v4032
      %4278 = vmatpush1.bf16.msra.mxu0 %v4031
      %4279 = vmatprep.subr.bf16.mxu0 %v4036
      %4280 = vmatpush1.bf16.msra.mxu0 %v4035
      %4281 = vmatprep.subr.bf16.mxu0 %v4040
      %4282 = vmatpush1.bf16.msra.mxu0 %v4039
      %4283 = vmatprep.subr.bf16.mxu0 %v4044
      %4284 = vmatpush1.bf16.msra.mxu0 %v4043
      %4285 = vmatprep.subr.bf16.mxu0 %v4048
      %4286 = vmatpush1.bf16.msra.mxu0 %v4047
      %4287 = vmatprep.subr.bf16.mxu0 %v4052
      %4288 = vmatpush1.bf16.msra.mxu0 %v4051
      %4289 = vmatprep.subr.bf16.mxu0 %v4056
      %4290 = vmatpush1.bf16.msra.mxu0 %v4055
      %4291 = vmatprep.subr.bf16.mxu0 %v4060
      %4292 = vmatpush1.bf16.msra.mxu0 %v4059
      %4293 = vmatprep.subr.bf16.mxu0 %v4064
      %4294 = vmatpush1.bf16.msra.mxu0 %v4063
      %4295 = vmatprep.subr.bf16.mxu0 %v4068
      %4296 = vmatpush1.bf16.msra.mxu0 %v4067
      %4297 = vmatprep.subr.bf16.mxu0 %v4072
      %4298 = vmatpush1.bf16.msra.mxu0 %v4071
      %4299 = vmatprep.mubr.bf16.mxu0 %v2407
      %4300 = vmatmul.mubr.bf16.gmra.mrb[0].mxu0 %v2406
      %v4301 = vpop.f32.mrb[0].mxu0
      %v4302 = vadd.f32 %v3443, %v4301
      %v4303 = vpop.f32.mrb[0].mxu0
      %v4304 = vadd.f32 %v3445, %v4303
      %v4305 = vpop.f32.mrb[0].mxu0
      %v4306 = vadd.f32 %v3447, %v4305
      %v4307 = vpop.f32.mrb[0].mxu0
      %v4308 = vadd.f32 %v3449, %v4307
      %4309 = vmatprep.mubr.bf16.mxu0 %v2411
      %4310 = vmatmul.mubr.bf16.gmra.mrb[0].mxu0 %v2410
      %v4311 = vpop.f32.mrb[0].mxu0
      %v4312 = vadd.f32 %v3453, %v4311
      %v4313 = vpop.f32.mrb[0].mxu0
      %v4314 = vadd.f32 %v3455, %v4313
      %v4315 = vpop.f32.mrb[0].mxu0
      %v4316 = vadd.f32 %v3457, %v4315
      %v4317 = vpop.f32.mrb[0].mxu0
      %v4318 = vadd.f32 %v3459, %v4317
      %4319 = vmatprep.mubr.bf16.mxu0 %v2415
      %4320 = vmatmul.mubr.bf16.gmra.mrb[0].mxu0 %v2414
      %v4321 = vpop.f32.mrb[0].mxu0
      %v4322 = vadd.f32 %v3463, %v4321
      %v4323 = vpop.f32.mrb[0].mxu0
      %v4324 = vadd.f32 %v3465, %v4323
      %v4325 = vpop.f32.mrb[0].mxu0
      %v4326 = vadd.f32 %v3467, %v4325
      %v4327 = vpop.f32.mrb[0].mxu0
      %v4328 = vadd.f32 %v3469, %v4327
      %4329 = vmatprep.mubr.bf16.mxu0 %v2419
      %4330 = vmatmul.mubr.bf16.gmra.mrb[0].mxu0 %v2418
      %v4331 = vpop.f32.mrb[0].mxu0
      %v4332 = vadd.f32 %v3473, %v4331
      %v4333 = vpop.f32.mrb[0].mxu0
      %v4334 = vadd.f32 %v3475, %v4333
      %v4335 = vpop.f32.mrb[0].mxu0
      %v4336 = vadd.f32 %v3477, %v4335
      %v4337 = vpop.f32.mrb[0].mxu0
      %v4338 = vadd.f32 %v3479, %v4337
      %4339 = vdwg.mxu0
      %4340 = vmatprep.subr.bf16.mxu0 %v4076
      %4341 = vmatpush1.bf16.msra.mxu0 %v4075
      %4342 = vmatprep.subr.bf16.mxu0 %v4080
      %4343 = vmatpush1.bf16.msra.mxu0 %v4079
      %4344 = vmatprep.subr.bf16.mxu0 %v4084
      %4345 = vmatpush1.bf16.msra.mxu0 %v4083
      %4346 = vmatprep.subr.bf16.mxu0 %v4088
      %4347 = vmatpush1.bf16.msra.mxu0 %v4087
      %4348 = vmatprep.subr.bf16.mxu0 %v4092
      %4349 = vmatpush1.bf16.msra.mxu0 %v4091
      %4350 = vmatprep.subr.bf16.mxu0 %v4096
      %4351 = vmatpush1.bf16.msra.mxu0 %v4095
      %4352 = vmatprep.subr.bf16.mxu0 %v4100
      %4353 = vmatpush1.bf16.msra.mxu0 %v4099
      %4354 = vmatprep.subr.bf16.mxu0 %v4104
      %4355 = vmatpush1.bf16.msra.mxu0 %v4103
      %4356 = vmatprep.subr.bf16.mxu0 %v4108
      %4357 = vmatpush1.bf16.msra.mxu0 %v4107
      %4358 = vmatprep.subr.bf16.mxu0 %v4112
      %4359 = vmatpush1.bf16.msra.mxu0 %v4111
      %4360 = vmatprep.subr.bf16.mxu0 %v4116
      %4361 = vmatpush1.bf16.msra.mxu0 %v4115
      %4362 = vmatprep.subr.bf16.mxu0 %v4120
      %4363 = vmatpush1.bf16.msra.mxu0 %v4119
      %4364 = vmatprep.subr.bf16.mxu0 %v4124
      %4365 = vmatpush1.bf16.msra.mxu0 %v4123
      %4366 = vmatprep.subr.bf16.mxu0 %v4128
      %4367 = vmatpush1.bf16.msra.mxu0 %v4127
      %4368 = vmatprep.subr.bf16.mxu0 %v4132
      %4369 = vmatpush1.bf16.msra.mxu0 %v4131
      %4370 = vmatprep.subr.bf16.mxu0 %v4136
      %4371 = vmatpush1.bf16.msra.mxu0 %v4135
      %4372 = vmatprep.mubr.bf16.mxu0 %v2409
      %4373 = vmatmul.mubr.bf16.gmra.mrb[0].mxu0 %v2408
      %v4374 = vpop.f32.mrb[0].mxu0
      %v4375 = vadd.f32 %v4302, %v4374
      %v4376 = vpop.f32.mrb[0].mxu0
      %v4377 = vadd.f32 %v4304, %v4376
      %v4378 = vpop.f32.mrb[0].mxu0
      %v4379 = vadd.f32 %v4306, %v4378
      %v4380 = vpop.f32.mrb[0].mxu0
      %v4381 = vadd.f32 %v4308, %v4380
      %4382 = vmatprep.mubr.bf16.mxu0 %v2413
      %4383 = vmatmul.mubr.bf16.gmra.mrb[0].mxu0 %v2412
      %v4384 = vpop.f32.mrb[0].mxu0
      %v4385 = vadd.f32 %v4312, %v4384
      %v4386 = vpop.f32.mrb[0].mxu0
      %v4387 = vadd.f32 %v4314, %v4386
      %v4388 = vpop.f32.mrb[0].mxu0
      %v4389 = vadd.f32 %v4316, %v4388
      %v4390 = vpop.f32.mrb[0].mxu0
      %v4391 = vadd.f32 %v4318, %v4390
      %4392 = vmatprep.mubr.bf16.mxu0 %v2417
      %4393 = vmatmul.mubr.bf16.gmra.mrb[0].mxu0 %v2416
      %v4394 = vpop.f32.mrb[0].mxu0
      %v4395 = vadd.f32 %v4322, %v4394
      %v4396 = vpop.f32.mrb[0].mxu0
      %v4397 = vadd.f32 %v4324, %v4396
      %v4398 = vpop.f32.mrb[0].mxu0
      %v4399 = vadd.f32 %v4326, %v4398
      %v4400 = vpop.f32.mrb[0].mxu0
      %v4401 = vadd.f32 %v4328, %v4400
      %4402 = vmatprep.mubr.bf16.mxu0 %v2421
      %4403 = vmatmul.mubr.bf16.gmra.mrb[0].mxu0 %v2420
      %v4404 = vpop.f32.mrb[0].mxu0
      %v4405 = vadd.f32 %v4332, %v4404
      %v4406 = vpop.f32.mrb[0].mxu0
      %v4407 = vadd.f32 %v4334, %v4406
      %v4408 = vpop.f32.mrb[0].mxu0
      %v4409 = vadd.f32 %v4336, %v4408
      %v4410 = vpop.f32.mrb[0].mxu0
      %v4411 = vadd.f32 %v4338, %v4410
      %4412 = vdwg.mxu0
      %4413 = vmatprep.subr.bf16.mxu0 %v4014
      %4414 = vmatpush1.bf16.msra.mxu0 %v4013
      %4415 = vmatprep.subr.bf16.mxu0 %v4018
      %4416 = vmatpush1.bf16.msra.mxu0 %v4017
      %4417 = vmatprep.subr.bf16.mxu0 %v4022
      %4418 = vmatpush1.bf16.msra.mxu0 %v4021
      %4419 = vmatprep.subr.bf16.mxu0 %v4026
      %4420 = vmatpush1.bf16.msra.mxu0 %v4025
      %4421 = vmatprep.subr.bf16.mxu0 %v4030
      %4422 = vmatpush1.bf16.msra.mxu0 %v4029
      %4423 = vmatprep.subr.bf16.mxu0 %v4034
      %4424 = vmatpush1.bf16.msra.mxu0 %v4033
      %4425 = vmatprep.subr.bf16.mxu0 %v4038
      %4426 = vmatpush1.bf16.msra.mxu0 %v4037
      %4427 = vmatprep.subr.bf16.mxu0 %v4042
      %4428 = vmatpush1.bf16.msra.mxu0 %v4041
      %4429 = vmatprep.subr.bf16.mxu0 %v4046
      %4430 = vmatpush1.bf16.msra.mxu0 %v4045
      %4431 = vmatprep.subr.bf16.mxu0 %v4050
      %4432 = vmatpush1.bf16.msra.mxu0 %v4049
      %4433 = vmatprep.subr.bf16.mxu0 %v4054
      %4434 = vmatpush1.bf16.msra.mxu0 %v4053
      %4435 = vmatprep.subr.bf16.mxu0 %v4058
      %4436 = vmatpush1.bf16.msra.mxu0 %v4057
      %4437 = vmatprep.subr.bf16.mxu0 %v4062
      %4438 = vmatpush1.bf16.msra.mxu0 %v4061
      %4439 = vmatprep.subr.bf16.mxu0 %v4066
      %4440 = vmatpush1.bf16.msra.mxu0 %v4065
      %4441 = vmatprep.subr.bf16.mxu0 %v4070
      %4442 = vmatpush1.bf16.msra.mxu0 %v4069
      %4443 = vmatprep.subr.bf16.mxu0 %v4074
      %4444 = vmatpush1.bf16.msra.mxu0 %v4073
      %4445 = vmatprep.mubr.bf16.mxu0 %v2407
      %4446 = vmatmul.mubr.bf16.gmra.mrb[0].mxu0 %v2406
      %v4447 = vpop.f32.mrb[0].mxu0
      %v4448 = vadd.f32 %v3589, %v4447
      %v4449 = vpop.f32.mrb[0].mxu0
      %v4450 = vadd.f32 %v3591, %v4449
      %v4451 = vpop.f32.mrb[0].mxu0
      %v4452 = vadd.f32 %v3593, %v4451
      %v4453 = vpop.f32.mrb[0].mxu0
      %v4454 = vadd.f32 %v3595, %v4453
      %4455 = vmatprep.mubr.bf16.mxu0 %v2411
      %4456 = vmatmul.mubr.bf16.gmra.mrb[0].mxu0 %v2410
      %v4457 = vpop.f32.mrb[0].mxu0
      %v4458 = vadd.f32 %v3599, %v4457
      %v4459 = vpop.f32.mrb[0].mxu0
      %v4460 = vadd.f32 %v3601, %v4459
      %v4461 = vpop.f32.mrb[0].mxu0
      %v4462 = vadd.f32 %v3603, %v4461
      %v4463 = vpop.f32.mrb[0].mxu0
      %v4464 = vadd.f32 %v3605, %v4463
      %4465 = vmatprep.mubr.bf16.mxu0 %v2415
      %4466 = vmatmul.mubr.bf16.gmra.mrb[0].mxu0 %v2414
      %v4467 = vpop.f32.mrb[0].mxu0
      %v4468 = vadd.f32 %v3609, %v4467
      %v4469 = vpop.f32.mrb[0].mxu0
      %v4470 = vadd.f32 %v3611, %v4469
      %v4471 = vpop.f32.mrb[0].mxu0
      %v4472 = vadd.f32 %v3613, %v4471
      %v4473 = vpop.f32.mrb[0].mxu0
      %v4474 = vadd.f32 %v3615, %v4473
      %4475 = vmatprep.mubr.bf16.mxu0 %v2419
      %4476 = vmatmul.mubr.bf16.gmra.mrb[0].mxu0 %v2418
      %v4477 = vpop.f32.mrb[0].mxu0
      %v4478 = vadd.f32 %v3619, %v4477
      %v4479 = vpop.f32.mrb[0].mxu0
      %v4480 = vadd.f32 %v3621, %v4479
      %v4481 = vpop.f32.mrb[0].mxu0
      %v4482 = vadd.f32 %v3623, %v4481
      %v4483 = vpop.f32.mrb[0].mxu0
      %v4484 = vadd.f32 %v3625, %v4483
      %4485 = vdwg.mxu0
      %4486 = vmatprep.subr.bf16.mxu0 %v4078
      %4487 = vmatpush1.bf16.msra.mxu0 %v4077
      %4488 = vmatprep.subr.bf16.mxu0 %v4082
      %4489 = vmatpush1.bf16.msra.mxu0 %v4081
      %4490 = vmatprep.subr.bf16.mxu0 %v4086
      %4491 = vmatpush1.bf16.msra.mxu0 %v4085
      %4492 = vmatprep.subr.bf16.mxu0 %v4090
      %4493 = vmatpush1.bf16.msra.mxu0 %v4089
      %4494 = vmatprep.subr.bf16.mxu0 %v4094
      %4495 = vmatpush1.bf16.msra.mxu0 %v4093
      %4496 = vmatprep.subr.bf16.mxu0 %v4098
      %4497 = vmatpush1.bf16.msra.mxu0 %v4097
      %4498 = vmatprep.subr.bf16.mxu0 %v4102
      %4499 = vmatpush1.bf16.msra.mxu0 %v4101
      %4500 = vmatprep.subr.bf16.mxu0 %v4106
      %4501 = vmatpush1.bf16.msra.mxu0 %v4105
      %4502 = vmatprep.subr.bf16.mxu0 %v4110
      %4503 = vmatpush1.bf16.msra.mxu0 %v4109
      %4504 = vmatprep.subr.bf16.mxu0 %v4114
      %4505 = vmatpush1.bf16.msra.mxu0 %v4113
      %4506 = vmatprep.subr.bf16.mxu0 %v4118
      %4507 = vmatpush1.bf16.msra.mxu0 %v4117
      %4508 = vmatprep.subr.bf16.mxu0 %v4122
      %4509 = vmatpush1.bf16.msra.mxu0 %v4121
      %4510 = vmatprep.subr.bf16.mxu0 %v4126
      %4511 = vmatpush1.bf16.msra.mxu0 %v4125
      %4512 = vmatprep.subr.bf16.mxu0 %v4130
      %4513 = vmatpush1.bf16.msra.mxu0 %v4129
      %4514 = vmatprep.subr.bf16.mxu0 %v4134
      %4515 = vmatpush1.bf16.msra.mxu0 %v4133
      %4516 = vmatprep.subr.bf16.mxu0 %v4138
      %4517 = vmatpush1.bf16.msra.mxu0 %v4137
      %4518 = vmatprep.mubr.bf16.mxu0 %v2409
      %4519 = vmatmul.mubr.bf16.gmra.mrb[0].mxu0 %v2408
      %v4520 = vpop.f32.mrb[0].mxu0
      %v4521 = vadd.f32 %v4448, %v4520
      %v4522 = vpop.f32.mrb[0].mxu0
      %v4523 = vadd.f32 %v4450, %v4522
      %v4524 = vpop.f32.mrb[0].mxu0
      %v4525 = vadd.f32 %v4452, %v4524
      %v4526 = vpop.f32.mrb[0].mxu0
      %v4527 = vadd.f32 %v4454, %v4526
      %4528 = vmatprep.mubr.bf16.mxu0 %v2413
      %4529 = vmatmul.mubr.bf16.gmra.mrb[0].mxu0 %v2412
      %v4530 = vpop.f32.mrb[0].mxu0
      %v4531 = vadd.f32 %v4458, %v4530
      %v4532 = vpop.f32.mrb[0].mxu0
      %v4533 = vadd.f32 %v4460, %v4532
      %v4534 = vpop.f32.mrb[0].mxu0
      %v4535 = vadd.f32 %v4462, %v4534
      %v4536 = vpop.f32.mrb[0].mxu0
      %v4537 = vadd.f32 %v4464, %v4536
      %4538 = vmatprep.mubr.bf16.mxu0 %v2417
      %4539 = vmatmul.mubr.bf16.gmra.mrb[0].mxu0 %v2416
      %v4540 = vpop.f32.mrb[0].mxu0
      %v4541 = vadd.f32 %v4468, %v4540
      %v4542 = vpop.f32.mrb[0].mxu0
      %v4543 = vadd.f32 %v4470, %v4542
      %v4544 = vpop.f32.mrb[0].mxu0
      %v4545 = vadd.f32 %v4472, %v4544
      %v4546 = vpop.f32.mrb[0].mxu0
      %v4547 = vadd.f32 %v4474, %v4546
      %4548 = vmatprep.mubr.bf16.mxu0 %v2421
      %4549 = vmatmul.mubr.bf16.gmra.mrb[0].mxu0 %v2420
      %v4550 = vpop.f32.mrb[0].mxu0
      %v4551 = vadd.f32 %v4478, %v4550
      %v4552 = vpop.f32.mrb[0].mxu0
      %v4553 = vadd.f32 %v4480, %v4552
      %v4554 = vpop.f32.mrb[0].mxu0
      %v4555 = vadd.f32 %v4482, %v4554
      %v4556 = vpop.f32.mrb[0].mxu0
      %v4557 = vadd.f32 %v4484, %v4556
      %4558 = vdwg.mxu0
      %v4559 = vpack.c.bf16 %v2378, %v2374
      %v4560 = vpack.c.bf16 %v2379, %v2375
      %v4561 = vpack.c.bf16 %v2380, %v2376
      %v4562 = vpack.c.bf16 %v2381, %v2377
      %v4563 = vpack.c.bf16 %v2386, %v2382
      %v4564 = vpack.c.bf16 %v2387, %v2383
      %v4565 = vpack.c.bf16 %v2388, %v2384
      %v4566 = vpack.c.bf16 %v2389, %v2385
      %v4567 = vpack.c.bf16 %v2394, %v2390
      %v4568 = vpack.c.bf16 %v2395, %v2391
      %v4569 = vpack.c.bf16 %v2396, %v2392
      %v4570 = vpack.c.bf16 %v2397, %v2393
      %v4571 = vpack.c.bf16 %v2402, %v2398
      %v4572 = vpack.c.bf16 %v2403, %v2399
      %v4573 = vpack.c.bf16 %v2404, %v2400
      %v4574 = vpack.c.bf16 %v2405, %v2401
      %s4575 = scalar_lea.vmem %s5, 2048
      %v4576 = vld [vmem:[%s4575] sm:$0xff]
      %v4577 = vld [vmem:[%s4575 + $0x8] sm:$0xff]
      %v4578 = vld [vmem:[%s4575 + $0x10] sm:$0xff]
      %v4579 = vld [vmem:[%s4575 + $0x18] sm:$0xff]
      %v4580 = vld [vmem:[%s4575 + $0x20] sm:$0xff]
      %v4581 = vld [vmem:[%s4575 + $0x28] sm:$0xff]
      %v4582 = vld [vmem:[%s4575 + $0x30] sm:$0xff]
      %v4583 = vld [vmem:[%s4575 + $0x38] sm:$0xff]
      %v4584 = vld [vmem:[%s4575 + $0x40] sm:$0xff]
      %v4585 = vld [vmem:[%s4575 + $0x48] sm:$0xff]
      %v4586 = vld [vmem:[%s4575 + $0x50] sm:$0xff]
      %v4587 = vld [vmem:[%s4575 + $0x58] sm:$0xff]
      %v4588 = vld [vmem:[%s4575 + $0x60] sm:$0xff]
      %v4589 = vld [vmem:[%s4575 + $0x68] sm:$0xff]
      %v4590 = vld [vmem:[%s4575 + $0x70] sm:$0xff]
      %v4591 = vld [vmem:[%s4575 + $0x78] sm:$0xff]
      %v4592 = vld [vmem:[%s4575 + $0x80] sm:$0xff]
      %v4593 = vld [vmem:[%s4575 + $0x88] sm:$0xff]
      %v4594 = vld [vmem:[%s4575 + $0x90] sm:$0xff]
      %v4595 = vld [vmem:[%s4575 + $0x98] sm:$0xff]
      %v4596 = vld [vmem:[%s4575 + $0xa0] sm:$0xff]
      %v4597 = vld [vmem:[%s4575 + $0xa8] sm:$0xff]
      %v4598 = vld [vmem:[%s4575 + $0xb0] sm:$0xff]
      %v4599 = vld [vmem:[%s4575 + $0xb8] sm:$0xff]
      %v4600 = vld [vmem:[%s4575 + $0xc0] sm:$0xff]
      %v4601 = vld [vmem:[%s4575 + $0xc8] sm:$0xff]
      %v4602 = vld [vmem:[%s4575 + $0xd0] sm:$0xff]
      %v4603 = vld [vmem:[%s4575 + $0xd8] sm:$0xff]
      %v4604 = vld [vmem:[%s4575 + $0xe0] sm:$0xff]
      %v4605 = vld [vmem:[%s4575 + $0xe8] sm:$0xff]
      %v4606 = vld [vmem:[%s4575 + $0xf0] sm:$0xff]
      %v4607 = vld [vmem:[%s4575 + $0xf8] sm:$0xff]
      %v4608 = vld [vmem:[%s4575 + $0x100] sm:$0xff]
      %v4609 = vld [vmem:[%s4575 + $0x108] sm:$0xff]
      %v4610 = vld [vmem:[%s4575 + $0x110] sm:$0xff]
      %v4611 = vld [vmem:[%s4575 + $0x118] sm:$0xff]
      %v4612 = vld [vmem:[%s4575 + $0x120] sm:$0xff]
      %v4613 = vld [vmem:[%s4575 + $0x128] sm:$0xff]
      %v4614 = vld [vmem:[%s4575 + $0x130] sm:$0xff]
      %v4615 = vld [vmem:[%s4575 + $0x138] sm:$0xff]
      %v4616 = vld [vmem:[%s4575 + $0x140] sm:$0xff]
      %v4617 = vld [vmem:[%s4575 + $0x148] sm:$0xff]
      %v4618 = vld [vmem:[%s4575 + $0x150] sm:$0xff]
      %v4619 = vld [vmem:[%s4575 + $0x158] sm:$0xff]
      %v4620 = vld [vmem:[%s4575 + $0x160] sm:$0xff]
      %v4621 = vld [vmem:[%s4575 + $0x168] sm:$0xff]
      %v4622 = vld [vmem:[%s4575 + $0x170] sm:$0xff]
      %v4623 = vld [vmem:[%s4575 + $0x178] sm:$0xff]
      %v4624 = vld [vmem:[%s4575 + $0x180] sm:$0xff]
      %v4625 = vld [vmem:[%s4575 + $0x188] sm:$0xff]
      %v4626 = vld [vmem:[%s4575 + $0x190] sm:$0xff]
      %v4627 = vld [vmem:[%s4575 + $0x198] sm:$0xff]
      %v4628 = vld [vmem:[%s4575 + $0x1a0] sm:$0xff]
      %v4629 = vld [vmem:[%s4575 + $0x1a8] sm:$0xff]
      %v4630 = vld [vmem:[%s4575 + $0x1b0] sm:$0xff]
      %v4631 = vld [vmem:[%s4575 + $0x1b8] sm:$0xff]
      %v4632 = vld [vmem:[%s4575 + $0x1c0] sm:$0xff]
      %v4633 = vld [vmem:[%s4575 + $0x1c8] sm:$0xff]
      %v4634 = vld [vmem:[%s4575 + $0x1d0] sm:$0xff]
      %v4635 = vld [vmem:[%s4575 + $0x1d8] sm:$0xff]
      %v4636 = vld [vmem:[%s4575 + $0x1e0] sm:$0xff]
      %v4637 = vld [vmem:[%s4575 + $0x1e8] sm:$0xff]
      %v4638 = vld [vmem:[%s4575 + $0x1f0] sm:$0xff]
      %v4639 = vld [vmem:[%s4575 + $0x1f8] sm:$0xff]
      %v4640 = vld [vmem:[%s4575 + $0x200] sm:$0xff]
      %v4641 = vld [vmem:[%s4575 + $0x208] sm:$0xff]
      %v4642 = vld [vmem:[%s4575 + $0x210] sm:$0xff]
      %v4643 = vld [vmem:[%s4575 + $0x218] sm:$0xff]
      %v4644 = vld [vmem:[%s4575 + $0x220] sm:$0xff]
      %v4645 = vld [vmem:[%s4575 + $0x228] sm:$0xff]
      %v4646 = vld [vmem:[%s4575 + $0x230] sm:$0xff]
      %v4647 = vld [vmem:[%s4575 + $0x238] sm:$0xff]
      %v4648 = vld [vmem:[%s4575 + $0x240] sm:$0xff]
      %v4649 = vld [vmem:[%s4575 + $0x248] sm:$0xff]
      %v4650 = vld [vmem:[%s4575 + $0x250] sm:$0xff]
      %v4651 = vld [vmem:[%s4575 + $0x258] sm:$0xff]
      %v4652 = vld [vmem:[%s4575 + $0x260] sm:$0xff]
      %v4653 = vld [vmem:[%s4575 + $0x268] sm:$0xff]
      %v4654 = vld [vmem:[%s4575 + $0x270] sm:$0xff]
      %v4655 = vld [vmem:[%s4575 + $0x278] sm:$0xff]
      %v4656 = vld [vmem:[%s4575 + $0x280] sm:$0xff]
      %v4657 = vld [vmem:[%s4575 + $0x288] sm:$0xff]
      %v4658 = vld [vmem:[%s4575 + $0x290] sm:$0xff]
      %v4659 = vld [vmem:[%s4575 + $0x298] sm:$0xff]
      %v4660 = vld [vmem:[%s4575 + $0x2a0] sm:$0xff]
      %v4661 = vld [vmem:[%s4575 + $0x2a8] sm:$0xff]
      %v4662 = vld [vmem:[%s4575 + $0x2b0] sm:$0xff]
      %v4663 = vld [vmem:[%s4575 + $0x2b8] sm:$0xff]
      %v4664 = vld [vmem:[%s4575 + $0x2c0] sm:$0xff]
      %v4665 = vld [vmem:[%s4575 + $0x2c8] sm:$0xff]
      %v4666 = vld [vmem:[%s4575 + $0x2d0] sm:$0xff]
      %v4667 = vld [vmem:[%s4575 + $0x2d8] sm:$0xff]
      %v4668 = vld [vmem:[%s4575 + $0x2e0] sm:$0xff]
      %v4669 = vld [vmem:[%s4575 + $0x2e8] sm:$0xff]
      %v4670 = vld [vmem:[%s4575 + $0x2f0] sm:$0xff]
      %v4671 = vld [vmem:[%s4575 + $0x2f8] sm:$0xff]
      %v4672 = vld [vmem:[%s4575 + $0x300] sm:$0xff]
      %v4673 = vld [vmem:[%s4575 + $0x308] sm:$0xff]
      %v4674 = vld [vmem:[%s4575 + $0x310] sm:$0xff]
      %v4675 = vld [vmem:[%s4575 + $0x318] sm:$0xff]
      %v4676 = vld [vmem:[%s4575 + $0x320] sm:$0xff]
      %v4677 = vld [vmem:[%s4575 + $0x328] sm:$0xff]
      %v4678 = vld [vmem:[%s4575 + $0x330] sm:$0xff]
      %v4679 = vld [vmem:[%s4575 + $0x338] sm:$0xff]
      %v4680 = vld [vmem:[%s4575 + $0x340] sm:$0xff]
      %v4681 = vld [vmem:[%s4575 + $0x348] sm:$0xff]
      %v4682 = vld [vmem:[%s4575 + $0x350] sm:$0xff]
      %v4683 = vld [vmem:[%s4575 + $0x358] sm:$0xff]
      %v4684 = vld [vmem:[%s4575 + $0x360] sm:$0xff]
      %v4685 = vld [vmem:[%s4575 + $0x368] sm:$0xff]
      %v4686 = vld [vmem:[%s4575 + $0x370] sm:$0xff]
      %v4687 = vld [vmem:[%s4575 + $0x378] sm:$0xff]
      %v4688 = vld [vmem:[%s4575 + $0x380] sm:$0xff]
      %v4689 = vld [vmem:[%s4575 + $0x388] sm:$0xff]
      %v4690 = vld [vmem:[%s4575 + $0x390] sm:$0xff]
      %v4691 = vld [vmem:[%s4575 + $0x398] sm:$0xff]
      %v4692 = vld [vmem:[%s4575 + $0x3a0] sm:$0xff]
      %v4693 = vld [vmem:[%s4575 + $0x3a8] sm:$0xff]
      %v4694 = vld [vmem:[%s4575 + $0x3b0] sm:$0xff]
      %v4695 = vld [vmem:[%s4575 + $0x3b8] sm:$0xff]
      %v4696 = vld [vmem:[%s4575 + $0x3c0] sm:$0xff]
      %v4697 = vld [vmem:[%s4575 + $0x3c8] sm:$0xff]
      %v4698 = vld [vmem:[%s4575 + $0x3d0] sm:$0xff]
      %v4699 = vld [vmem:[%s4575 + $0x3d8] sm:$0xff]
      %v4700 = vld [vmem:[%s4575 + $0x3e0] sm:$0xff]
      %v4701 = vld [vmem:[%s4575 + $0x3e8] sm:$0xff]
      %v4702 = vld [vmem:[%s4575 + $0x3f0] sm:$0xff]
      %v4703 = vld [vmem:[%s4575 + $0x3f8] sm:$0xff]
      %v4832 = vunpack.c.l.b16 %v4576
      %v4833 = vunpack.c.h.b16 %v4576
      %v4834 = vunpack.c.l.b16 %v4577
      %v4835 = vunpack.c.h.b16 %v4577
      %v4836 = vunpack.c.l.b16 %v4578
      %v4837 = vunpack.c.h.b16 %v4578
      %v4838 = vunpack.c.l.b16 %v4579
      %v4839 = vunpack.c.h.b16 %v4579
      %v4840 = vunpack.c.l.b16 %v4580
      %v4841 = vunpack.c.h.b16 %v4580
      %v4842 = vunpack.c.l.b16 %v4581
      %v4843 = vunpack.c.h.b16 %v4581
      %v4844 = vunpack.c.l.b16 %v4582
      %v4845 = vunpack.c.h.b16 %v4582
      %v4846 = vunpack.c.l.b16 %v4583
      %v4847 = vunpack.c.h.b16 %v4583
      %v4848 = vunpack.c.l.b16 %v4584
      %v4849 = vunpack.c.h.b16 %v4584
      %v4850 = vunpack.c.l.b16 %v4585
      %v4851 = vunpack.c.h.b16 %v4585
      %v4852 = vunpack.c.l.b16 %v4586
      %v4853 = vunpack.c.h.b16 %v4586
      %v4854 = vunpack.c.l.b16 %v4587
      %v4855 = vunpack.c.h.b16 %v4587
      %v4856 = vunpack.c.l.b16 %v4588
      %v4857 = vunpack.c.h.b16 %v4588
      %v4858 = vunpack.c.l.b16 %v4589
      %v4859 = vunpack.c.h.b16 %v4589
      %v4860 = vunpack.c.l.b16 %v4590
      %v4861 = vunpack.c.h.b16 %v4590
      %v4862 = vunpack.c.l.b16 %v4591
      %v4863 = vunpack.c.h.b16 %v4591
      %v4864 = vunpack.c.l.b16 %v4592
      %v4865 = vunpack.c.h.b16 %v4592
      %v4866 = vunpack.c.l.b16 %v4593
      %v4867 = vunpack.c.h.b16 %v4593
      %v4868 = vunpack.c.l.b16 %v4594
      %v4869 = vunpack.c.h.b16 %v4594
      %v4870 = vunpack.c.l.b16 %v4595
      %v4871 = vunpack.c.h.b16 %v4595
      %v4872 = vunpack.c.l.b16 %v4596
      %v4873 = vunpack.c.h.b16 %v4596
      %v4874 = vunpack.c.l.b16 %v4597
      %v4875 = vunpack.c.h.b16 %v4597
      %v4876 = vunpack.c.l.b16 %v4598
      %v4877 = vunpack.c.h.b16 %v4598
      %v4878 = vunpack.c.l.b16 %v4599
      %v4879 = vunpack.c.h.b16 %v4599
      %v4880 = vunpack.c.l.b16 %v4600
      %v4881 = vunpack.c.h.b16 %v4600
      %v4882 = vunpack.c.l.b16 %v4601
      %v4883 = vunpack.c.h.b16 %v4601
      %v4884 = vunpack.c.l.b16 %v4602
      %v4885 = vunpack.c.h.b16 %v4602
      %v4886 = vunpack.c.l.b16 %v4603
      %v4887 = vunpack.c.h.b16 %v4603
      %v4888 = vunpack.c.l.b16 %v4604
      %v4889 = vunpack.c.h.b16 %v4604
      %v4890 = vunpack.c.l.b16 %v4605
      %v4891 = vunpack.c.h.b16 %v4605
      %v4892 = vunpack.c.l.b16 %v4606
      %v4893 = vunpack.c.h.b16 %v4606
      %v4894 = vunpack.c.l.b16 %v4607
      %v4895 = vunpack.c.h.b16 %v4607
      %v4896 = vunpack.c.l.b16 %v4608
      %v4897 = vunpack.c.h.b16 %v4608
      %v4898 = vunpack.c.l.b16 %v4609
      %v4899 = vunpack.c.h.b16 %v4609
      %v4900 = vunpack.c.l.b16 %v4610
      %v4901 = vunpack.c.h.b16 %v4610
      %v4902 = vunpack.c.l.b16 %v4611
      %v4903 = vunpack.c.h.b16 %v4611
      %v4904 = vunpack.c.l.b16 %v4612
      %v4905 = vunpack.c.h.b16 %v4612
      %v4906 = vunpack.c.l.b16 %v4613
      %v4907 = vunpack.c.h.b16 %v4613
      %v4908 = vunpack.c.l.b16 %v4614
      %v4909 = vunpack.c.h.b16 %v4614
      %v4910 = vunpack.c.l.b16 %v4615
      %v4911 = vunpack.c.h.b16 %v4615
      %v4912 = vunpack.c.l.b16 %v4616
      %v4913 = vunpack.c.h.b16 %v4616
      %v4914 = vunpack.c.l.b16 %v4617
      %v4915 = vunpack.c.h.b16 %v4617
      %v4916 = vunpack.c.l.b16 %v4618
      %v4917 = vunpack.c.h.b16 %v4618
      %v4918 = vunpack.c.l.b16 %v4619
      %v4919 = vunpack.c.h.b16 %v4619
      %v4920 = vunpack.c.l.b16 %v4620
      %v4921 = vunpack.c.h.b16 %v4620
      %v4922 = vunpack.c.l.b16 %v4621
      %v4923 = vunpack.c.h.b16 %v4621
      %v4924 = vunpack.c.l.b16 %v4622
      %v4925 = vunpack.c.h.b16 %v4622
      %v4926 = vunpack.c.l.b16 %v4623
      %v4927 = vunpack.c.h.b16 %v4623
      %v4928 = vunpack.c.l.b16 %v4624
      %v4929 = vunpack.c.h.b16 %v4624
      %v4930 = vunpack.c.l.b16 %v4625
      %v4931 = vunpack.c.h.b16 %v4625
      %v4932 = vunpack.c.l.b16 %v4626
      %v4933 = vunpack.c.h.b16 %v4626
      %v4934 = vunpack.c.l.b16 %v4627
      %v4935 = vunpack.c.h.b16 %v4627
      %v4936 = vunpack.c.l.b16 %v4628
      %v4937 = vunpack.c.h.b16 %v4628
      %v4938 = vunpack.c.l.b16 %v4629
      %v4939 = vunpack.c.h.b16 %v4629
      %v4940 = vunpack.c.l.b16 %v4630
      %v4941 = vunpack.c.h.b16 %v4630
      %v4942 = vunpack.c.l.b16 %v4631
      %v4943 = vunpack.c.h.b16 %v4631
      %v4944 = vunpack.c.l.b16 %v4632
      %v4945 = vunpack.c.h.b16 %v4632
      %v4946 = vunpack.c.l.b16 %v4633
      %v4947 = vunpack.c.h.b16 %v4633
      %v4948 = vunpack.c.l.b16 %v4634
      %v4949 = vunpack.c.h.b16 %v4634
      %v4950 = vunpack.c.l.b16 %v4635
      %v4951 = vunpack.c.h.b16 %v4635
      %v4952 = vunpack.c.l.b16 %v4636
      %v4953 = vunpack.c.h.b16 %v4636
      %v4954 = vunpack.c.l.b16 %v4637
      %v4955 = vunpack.c.h.b16 %v4637
      %v4956 = vunpack.c.l.b16 %v4638
      %v4957 = vunpack.c.h.b16 %v4638
      %v4958 = vunpack.c.l.b16 %v4639
      %v4959 = vunpack.c.h.b16 %v4639
      %v4960 = vunpack.c.l.b16 %v4640
      %v4961 = vunpack.c.h.b16 %v4640
      %v4962 = vunpack.c.l.b16 %v4641
      %v4963 = vunpack.c.h.b16 %v4641
      %v4964 = vunpack.c.l.b16 %v4642
      %v4965 = vunpack.c.h.b16 %v4642
      %v4966 = vunpack.c.l.b16 %v4643
      %v4967 = vunpack.c.h.b16 %v4643
      %v4968 = vunpack.c.l.b16 %v4644
      %v4969 = vunpack.c.h.b16 %v4644
      %v4970 = vunpack.c.l.b16 %v4645
      %v4971 = vunpack.c.h.b16 %v4645
      %v4972 = vunpack.c.l.b16 %v4646
      %v4973 = vunpack.c.h.b16 %v4646
      %v4974 = vunpack.c.l.b16 %v4647
      %v4975 = vunpack.c.h.b16 %v4647
      %v4976 = vunpack.c.l.b16 %v4648
      %v4977 = vunpack.c.h.b16 %v4648
      %v4978 = vunpack.c.l.b16 %v4649
      %v4979 = vunpack.c.h.b16 %v4649
      %v4980 = vunpack.c.l.b16 %v4650
      %v4981 = vunpack.c.h.b16 %v4650
      %v4982 = vunpack.c.l.b16 %v4651
      %v4983 = vunpack.c.h.b16 %v4651
      %v4984 = vunpack.c.l.b16 %v4652
      %v4985 = vunpack.c.h.b16 %v4652
      %v4986 = vunpack.c.l.b16 %v4653
      %v4987 = vunpack.c.h.b16 %v4653
      %v4988 = vunpack.c.l.b16 %v4654
      %v4989 = vunpack.c.h.b16 %v4654
      %v4990 = vunpack.c.l.b16 %v4655
      %v4991 = vunpack.c.h.b16 %v4655
      %v4992 = vunpack.c.l.b16 %v4656
      %v4993 = vunpack.c.h.b16 %v4656
      %v4994 = vunpack.c.l.b16 %v4657
      %v4995 = vunpack.c.h.b16 %v4657
      %v4996 = vunpack.c.l.b16 %v4658
      %v4997 = vunpack.c.h.b16 %v4658
      %v4998 = vunpack.c.l.b16 %v4659
      %v4999 = vunpack.c.h.b16 %v4659
      %v5000 = vunpack.c.l.b16 %v4660
      %v5001 = vunpack.c.h.b16 %v4660
      %v5002 = vunpack.c.l.b16 %v4661
      %v5003 = vunpack.c.h.b16 %v4661
      %v5004 = vunpack.c.l.b16 %v4662
      %v5005 = vunpack.c.h.b16 %v4662
      %v5006 = vunpack.c.l.b16 %v4663
      %v5007 = vunpack.c.h.b16 %v4663
      %v5008 = vunpack.c.l.b16 %v4664
      %v5009 = vunpack.c.h.b16 %v4664
      %v5010 = vunpack.c.l.b16 %v4665
      %v5011 = vunpack.c.h.b16 %v4665
      %v5012 = vunpack.c.l.b16 %v4666
      %v5013 = vunpack.c.h.b16 %v4666
      %v5014 = vunpack.c.l.b16 %v4667
      %v5015 = vunpack.c.h.b16 %v4667
      %v5016 = vunpack.c.l.b16 %v4668
      %v5017 = vunpack.c.h.b16 %v4668
      %v5018 = vunpack.c.l.b16 %v4669
      %v5019 = vunpack.c.h.b16 %v4669
      %v5020 = vunpack.c.l.b16 %v4670
      %v5021 = vunpack.c.h.b16 %v4670
      %v5022 = vunpack.c.l.b16 %v4671
      %v5023 = vunpack.c.h.b16 %v4671
      %v5024 = vunpack.c.l.b16 %v4672
      %v5025 = vunpack.c.h.b16 %v4672
      %v5026 = vunpack.c.l.b16 %v4673
      %v5027 = vunpack.c.h.b16 %v4673
      %v5028 = vunpack.c.l.b16 %v4674
      %v5029 = vunpack.c.h.b16 %v4674
      %v5030 = vunpack.c.l.b16 %v4675
      %v5031 = vunpack.c.h.b16 %v4675
      %v5032 = vunpack.c.l.b16 %v4676
      %v5033 = vunpack.c.h.b16 %v4676
      %v5034 = vunpack.c.l.b16 %v4677
      %v5035 = vunpack.c.h.b16 %v4677
      %v5036 = vunpack.c.l.b16 %v4678
      %v5037 = vunpack.c.h.b16 %v4678
      %v5038 = vunpack.c.l.b16 %v4679
      %v5039 = vunpack.c.h.b16 %v4679
      %v5040 = vunpack.c.l.b16 %v4680
      %v5041 = vunpack.c.h.b16 %v4680
      %v5042 = vunpack.c.l.b16 %v4681
      %v5043 = vunpack.c.h.b16 %v4681
      %v5044 = vunpack.c.l.b16 %v4682
      %v5045 = vunpack.c.h.b16 %v4682
      %v5046 = vunpack.c.l.b16 %v4683
      %v5047 = vunpack.c.h.b16 %v4683
      %v5048 = vunpack.c.l.b16 %v4684
      %v5049 = vunpack.c.h.b16 %v4684
      %v5050 = vunpack.c.l.b16 %v4685
      %v5051 = vunpack.c.h.b16 %v4685
      %v5052 = vunpack.c.l.b16 %v4686
      %v5053 = vunpack.c.h.b16 %v4686
      %v5054 = vunpack.c.l.b16 %v4687
      %v5055 = vunpack.c.h.b16 %v4687
      %v5056 = vunpack.c.l.b16 %v4688
      %v5057 = vunpack.c.h.b16 %v4688
      %v5058 = vunpack.c.l.b16 %v4689
      %v5059 = vunpack.c.h.b16 %v4689
      %v5060 = vunpack.c.l.b16 %v4690
      %v5061 = vunpack.c.h.b16 %v4690
      %v5062 = vunpack.c.l.b16 %v4691
      %v5063 = vunpack.c.h.b16 %v4691
      %v5064 = vunpack.c.l.b16 %v4692
      %v5065 = vunpack.c.h.b16 %v4692
      %v5066 = vunpack.c.l.b16 %v4693
      %v5067 = vunpack.c.h.b16 %v4693
      %v5068 = vunpack.c.l.b16 %v4694
      %v5069 = vunpack.c.h.b16 %v4694
      %v5070 = vunpack.c.l.b16 %v4695
      %v5071 = vunpack.c.h.b16 %v4695
      %v5072 = vunpack.c.l.b16 %v4696
      %v5073 = vunpack.c.h.b16 %v4696
      %v5074 = vunpack.c.l.b16 %v4697
      %v5075 = vunpack.c.h.b16 %v4697
      %v5076 = vunpack.c.l.b16 %v4698
      %v5077 = vunpack.c.h.b16 %v4698
      %v5078 = vunpack.c.l.b16 %v4699
      %v5079 = vunpack.c.h.b16 %v4699
      %v5080 = vunpack.c.l.b16 %v4700
      %v5081 = vunpack.c.h.b16 %v4700
      %v5082 = vunpack.c.l.b16 %v4701
      %v5083 = vunpack.c.h.b16 %v4701
      %v5084 = vunpack.c.l.b16 %v4702
      %v5085 = vunpack.c.h.b16 %v4702
      %v5086 = vunpack.c.l.b16 %v4703
      %v5087 = vunpack.c.h.b16 %v4703
      %v5088 = vpack.c.b16 %v4836, %v4832
      %v5089 = vpack.c.b16 %v4837, %v4833
      %v5090 = vpack.c.b16 %v4838, %v4834
      %v5091 = vpack.c.b16 %v4839, %v4835
      %v5092 = vpack.c.b16 %v4844, %v4840
      %v5093 = vpack.c.b16 %v4845, %v4841
      %v5094 = vpack.c.b16 %v4846, %v4842
      %v5095 = vpack.c.b16 %v4847, %v4843
      %v5096 = vpack.c.b16 %v4852, %v4848
      %v5097 = vpack.c.b16 %v4853, %v4849
      %v5098 = vpack.c.b16 %v4854, %v4850
      %v5099 = vpack.c.b16 %v4855, %v4851
      %v5100 = vpack.c.b16 %v4860, %v4856
      %v5101 = vpack.c.b16 %v4861, %v4857
      %v5102 = vpack.c.b16 %v4862, %v4858
      %v5103 = vpack.c.b16 %v4863, %v4859
      %v5104 = vpack.c.b16 %v4868, %v4864
      %v5105 = vpack.c.b16 %v4869, %v4865
      %v5106 = vpack.c.b16 %v4870, %v4866
      %v5107 = vpack.c.b16 %v4871, %v4867
      %v5108 = vpack.c.b16 %v4876, %v4872
      %v5109 = vpack.c.b16 %v4877, %v4873
      %v5110 = vpack.c.b16 %v4878, %v4874
      %v5111 = vpack.c.b16 %v4879, %v4875
      %v5112 = vpack.c.b16 %v4884, %v4880
      %v5113 = vpack.c.b16 %v4885, %v4881
      %v5114 = vpack.c.b16 %v4886, %v4882
      %v5115 = vpack.c.b16 %v4887, %v4883
      %v5116 = vpack.c.b16 %v4892, %v4888
      %v5117 = vpack.c.b16 %v4893, %v4889
      %v5118 = vpack.c.b16 %v4894, %v4890
      %v5119 = vpack.c.b16 %v4895, %v4891
      %v5120 = vpack.c.b16 %v4900, %v4896
      %v5121 = vpack.c.b16 %v4901, %v4897
      %v5122 = vpack.c.b16 %v4902, %v4898
      %v5123 = vpack.c.b16 %v4903, %v4899
      %v5124 = vpack.c.b16 %v4908, %v4904
      %v5125 = vpack.c.b16 %v4909, %v4905
      %v5126 = vpack.c.b16 %v4910, %v4906
      %v5127 = vpack.c.b16 %v4911, %v4907
      %v5128 = vpack.c.b16 %v4916, %v4912
      %v5129 = vpack.c.b16 %v4917, %v4913
      %v5130 = vpack.c.b16 %v4918, %v4914
      %v5131 = vpack.c.b16 %v4919, %v4915
      %v5132 = vpack.c.b16 %v4924, %v4920
      %v5133 = vpack.c.b16 %v4925, %v4921
      %v5134 = vpack.c.b16 %v4926, %v4922
      %v5135 = vpack.c.b16 %v4927, %v4923
      %v5136 = vpack.c.b16 %v4932, %v4928
      %v5137 = vpack.c.b16 %v4933, %v4929
      %v5138 = vpack.c.b16 %v4934, %v4930
      %v5139 = vpack.c.b16 %v4935, %v4931
      %v5140 = vpack.c.b16 %v4940, %v4936
      %v5141 = vpack.c.b16 %v4941, %v4937
      %v5142 = vpack.c.b16 %v4942, %v4938
      %v5143 = vpack.c.b16 %v4943, %v4939
      %v5144 = vpack.c.b16 %v4948, %v4944
      %v5145 = vpack.c.b16 %v4949, %v4945
      %v5146 = vpack.c.b16 %v4950, %v4946
      %v5147 = vpack.c.b16 %v4951, %v4947
      %v5148 = vpack.c.b16 %v4956, %v4952
      %v5149 = vpack.c.b16 %v4957, %v4953
      %v5150 = vpack.c.b16 %v4958, %v4954
      %v5151 = vpack.c.b16 %v4959, %v4955
      %v5152 = vpack.c.b16 %v4964, %v4960
      %v5153 = vpack.c.b16 %v4965, %v4961
      %v5154 = vpack.c.b16 %v4966, %v4962
      %v5155 = vpack.c.b16 %v4967, %v4963
      %v5156 = vpack.c.b16 %v4972, %v4968
      %v5157 = vpack.c.b16 %v4973, %v4969
      %v5158 = vpack.c.b16 %v4974, %v4970
      %v5159 = vpack.c.b16 %v4975, %v4971
      %v5160 = vpack.c.b16 %v4980, %v4976
      %v5161 = vpack.c.b16 %v4981, %v4977
      %v5162 = vpack.c.b16 %v4982, %v4978
      %v5163 = vpack.c.b16 %v4983, %v4979
      %v5164 = vpack.c.b16 %v4988, %v4984
      %v5165 = vpack.c.b16 %v4989, %v4985
      %v5166 = vpack.c.b16 %v4990, %v4986
      %v5167 = vpack.c.b16 %v4991, %v4987
      %v5168 = vpack.c.b16 %v4996, %v4992
      %v5169 = vpack.c.b16 %v4997, %v4993
      %v5170 = vpack.c.b16 %v4998, %v4994
      %v5171 = vpack.c.b16 %v4999, %v4995
      %v5172 = vpack.c.b16 %v5004, %v5000
      %v5173 = vpack.c.b16 %v5005, %v5001
      %v5174 = vpack.c.b16 %v5006, %v5002
      %v5175 = vpack.c.b16 %v5007, %v5003
      %v5176 = vpack.c.b16 %v5012, %v5008
      %v5177 = vpack.c.b16 %v5013, %v5009
      %v5178 = vpack.c.b16 %v5014, %v5010
      %v5179 = vpack.c.b16 %v5015, %v5011
      %v5180 = vpack.c.b16 %v5020, %v5016
      %v5181 = vpack.c.b16 %v5021, %v5017
      %v5182 = vpack.c.b16 %v5022, %v5018
      %v5183 = vpack.c.b16 %v5023, %v5019
      %v5184 = vpack.c.b16 %v5028, %v5024
      %v5185 = vpack.c.b16 %v5029, %v5025
      %v5186 = vpack.c.b16 %v5030, %v5026
      %v5187 = vpack.c.b16 %v5031, %v5027
      %v5188 = vpack.c.b16 %v5036, %v5032
      %v5189 = vpack.c.b16 %v5037, %v5033
      %v5190 = vpack.c.b16 %v5038, %v5034
      %v5191 = vpack.c.b16 %v5039, %v5035
      %v5192 = vpack.c.b16 %v5044, %v5040
      %v5193 = vpack.c.b16 %v5045, %v5041
      %v5194 = vpack.c.b16 %v5046, %v5042
      %v5195 = vpack.c.b16 %v5047, %v5043
      %v5196 = vpack.c.b16 %v5052, %v5048
      %v5197 = vpack.c.b16 %v5053, %v5049
      %v5198 = vpack.c.b16 %v5054, %v5050
      %v5199 = vpack.c.b16 %v5055, %v5051
      %v5200 = vpack.c.b16 %v5060, %v5056
      %v5201 = vpack.c.b16 %v5061, %v5057
      %v5202 = vpack.c.b16 %v5062, %v5058
      %v5203 = vpack.c.b16 %v5063, %v5059
      %v5204 = vpack.c.b16 %v5068, %v5064
      %v5205 = vpack.c.b16 %v5069, %v5065
      %v5206 = vpack.c.b16 %v5070, %v5066
      %v5207 = vpack.c.b16 %v5071, %v5067
      %v5208 = vpack.c.b16 %v5076, %v5072
      %v5209 = vpack.c.b16 %v5077, %v5073
      %v5210 = vpack.c.b16 %v5078, %v5074
      %v5211 = vpack.c.b16 %v5079, %v5075
      %v5212 = vpack.c.b16 %v5084, %v5080
      %v5213 = vpack.c.b16 %v5085, %v5081
      %v5214 = vpack.c.b16 %v5086, %v5082
      %v5215 = vpack.c.b16 %v5087, %v5083
      %5344 = vmatprep.subr.bf16.mxu0 %v5089
      %5345 = vmatpush1.bf16.msra.mxu0 %v5088
      %5346 = vmatprep.subr.bf16.mxu0 %v5093
      %5347 = vmatpush1.bf16.msra.mxu0 %v5092
      %5348 = vmatprep.subr.bf16.mxu0 %v5097
      %5349 = vmatpush1.bf16.msra.mxu0 %v5096
      %5350 = vmatprep.subr.bf16.mxu0 %v5101
      %5351 = vmatpush1.bf16.msra.mxu0 %v5100
      %5352 = vmatprep.subr.bf16.mxu0 %v5105
      %5353 = vmatpush1.bf16.msra.mxu0 %v5104
      %5354 = vmatprep.subr.bf16.mxu0 %v5109
      %5355 = vmatpush1.bf16.msra.mxu0 %v5108
      %5356 = vmatprep.subr.bf16.mxu0 %v5113
      %5357 = vmatpush1.bf16.msra.mxu0 %v5112
      %5358 = vmatprep.subr.bf16.mxu0 %v5117
      %5359 = vmatpush1.bf16.msra.mxu0 %v5116
      %5360 = vmatprep.subr.bf16.mxu0 %v5121
      %5361 = vmatpush1.bf16.msra.mxu0 %v5120
      %5362 = vmatprep.subr.bf16.mxu0 %v5125
      %5363 = vmatpush1.bf16.msra.mxu0 %v5124
      %5364 = vmatprep.subr.bf16.mxu0 %v5129
      %5365 = vmatpush1.bf16.msra.mxu0 %v5128
      %5366 = vmatprep.subr.bf16.mxu0 %v5133
      %5367 = vmatpush1.bf16.msra.mxu0 %v5132
      %5368 = vmatprep.subr.bf16.mxu0 %v5137
      %5369 = vmatpush1.bf16.msra.mxu0 %v5136
      %5370 = vmatprep.subr.bf16.mxu0 %v5141
      %5371 = vmatpush1.bf16.msra.mxu0 %v5140
      %5372 = vmatprep.subr.bf16.mxu0 %v5145
      %5373 = vmatpush1.bf16.msra.mxu0 %v5144
      %5374 = vmatprep.subr.bf16.mxu0 %v5149
      %5375 = vmatpush1.bf16.msra.mxu0 %v5148
      %5376 = vmatprep.mubr.bf16.mxu0 %v4560
      %5377 = vmatmul.mubr.bf16.gmra.mrb[0].mxu0 %v4559
      %v5378 = vpop.f32.mrb[0].mxu0
      %v5379 = vadd.f32 0.0, %v5378
      %v5380 = vpop.f32.mrb[0].mxu0
      %v5381 = vadd.f32 0.0, %v5380
      %v5382 = vpop.f32.mrb[0].mxu0
      %v5383 = vadd.f32 0.0, %v5382
      %v5384 = vpop.f32.mrb[0].mxu0
      %v5385 = vadd.f32 0.0, %v5384
      %5386 = vmatprep.mubr.bf16.mxu0 %v4564
      %5387 = vmatmul.mubr.bf16.gmra.mrb[0].mxu0 %v4563
      %v5388 = vpop.f32.mrb[0].mxu0
      %v5389 = vadd.f32 0.0, %v5388
      %v5390 = vpop.f32.mrb[0].mxu0
      %v5391 = vadd.f32 0.0, %v5390
      %v5392 = vpop.f32.mrb[0].mxu0
      %v5393 = vadd.f32 0.0, %v5392
      %v5394 = vpop.f32.mrb[0].mxu0
      %v5395 = vadd.f32 0.0, %v5394
      %5396 = vmatprep.mubr.bf16.mxu0 %v4568
      %5397 = vmatmul.mubr.bf16.gmra.mrb[0].mxu0 %v4567
      %v5398 = vpop.f32.mrb[0].mxu0
      %v5399 = vadd.f32 0.0, %v5398
      %v5400 = vpop.f32.mrb[0].mxu0
      %v5401 = vadd.f32 0.0, %v5400
      %v5402 = vpop.f32.mrb[0].mxu0
      %v5403 = vadd.f32 0.0, %v5402
      %v5404 = vpop.f32.mrb[0].mxu0
      %v5405 = vadd.f32 0.0, %v5404
      %5406 = vmatprep.mubr.bf16.mxu0 %v4572
      %5407 = vmatmul.mubr.bf16.gmra.mrb[0].mxu0 %v4571
      %v5408 = vpop.f32.mrb[0].mxu0
      %v5409 = vadd.f32 0.0, %v5408
      %v5410 = vpop.f32.mrb[0].mxu0
      %v5411 = vadd.f32 0.0, %v5410
      %v5412 = vpop.f32.mrb[0].mxu0
      %v5413 = vadd.f32 0.0, %v5412
      %v5414 = vpop.f32.mrb[0].mxu0
      %v5415 = vadd.f32 0.0, %v5414
      %5416 = vdwg.mxu0
      %5417 = vmatprep.subr.bf16.mxu0 %v5153
      %5418 = vmatpush1.bf16.msra.mxu0 %v5152
      %5419 = vmatprep.subr.bf16.mxu0 %v5157
      %5420 = vmatpush1.bf16.msra.mxu0 %v5156
      %5421 = vmatprep.subr.bf16.mxu0 %v5161
      %5422 = vmatpush1.bf16.msra.mxu0 %v5160
      %5423 = vmatprep.subr.bf16.mxu0 %v5165
      %5424 = vmatpush1.bf16.msra.mxu0 %v5164
      %5425 = vmatprep.subr.bf16.mxu0 %v5169
      %5426 = vmatpush1.bf16.msra.mxu0 %v5168
      %5427 = vmatprep.subr.bf16.mxu0 %v5173
      %5428 = vmatpush1.bf16.msra.mxu0 %v5172
      %5429 = vmatprep.subr.bf16.mxu0 %v5177
      %5430 = vmatpush1.bf16.msra.mxu0 %v5176
      %5431 = vmatprep.subr.bf16.mxu0 %v5181
      %5432 = vmatpush1.bf16.msra.mxu0 %v5180
      %5433 = vmatprep.subr.bf16.mxu0 %v5185
      %5434 = vmatpush1.bf16.msra.mxu0 %v5184
      %5435 = vmatprep.subr.bf16.mxu0 %v5189
      %5436 = vmatpush1.bf16.msra.mxu0 %v5188
      %5437 = vmatprep.subr.bf16.mxu0 %v5193
      %5438 = vmatpush1.bf16.msra.mxu0 %v5192
      %5439 = vmatprep.subr.bf16.mxu0 %v5197
      %5440 = vmatpush1.bf16.msra.mxu0 %v5196
      %5441 = vmatprep.subr.bf16.mxu0 %v5201
      %5442 = vmatpush1.bf16.msra.mxu0 %v5200
      %5443 = vmatprep.subr.bf16.mxu0 %v5205
      %5444 = vmatpush1.bf16.msra.mxu0 %v5204
      %5445 = vmatprep.subr.bf16.mxu0 %v5209
      %5446 = vmatpush1.bf16.msra.mxu0 %v5208
      %5447 = vmatprep.subr.bf16.mxu0 %v5213
      %5448 = vmatpush1.bf16.msra.mxu0 %v5212
      %5449 = vmatprep.mubr.bf16.mxu0 %v4562
      %5450 = vmatmul.mubr.bf16.gmra.mrb[0].mxu0 %v4561
      %v5451 = vpop.f32.mrb[0].mxu0
      %v5452 = vadd.f32 %v5379, %v5451
      %v5453 = vpop.f32.mrb[0].mxu0
      %v5454 = vadd.f32 %v5381, %v5453
      %v5455 = vpop.f32.mrb[0].mxu0
      %v5456 = vadd.f32 %v5383, %v5455
      %v5457 = vpop.f32.mrb[0].mxu0
      %v5458 = vadd.f32 %v5385, %v5457
      %5459 = vmatprep.mubr.bf16.mxu0 %v4566
      %5460 = vmatmul.mubr.bf16.gmra.mrb[0].mxu0 %v4565
      %v5461 = vpop.f32.mrb[0].mxu0
      %v5462 = vadd.f32 %v5389, %v5461
      %v5463 = vpop.f32.mrb[0].mxu0
      %v5464 = vadd.f32 %v5391, %v5463
      %v5465 = vpop.f32.mrb[0].mxu0
      %v5466 = vadd.f32 %v5393, %v5465
      %v5467 = vpop.f32.mrb[0].mxu0
      %v5468 = vadd.f32 %v5395, %v5467
      %5469 = vmatprep.mubr.bf16.mxu0 %v4570
      %5470 = vmatmul.mubr.bf16.gmra.mrb[0].mxu0 %v4569
      %v5471 = vpop.f32.mrb[0].mxu0
      %v5472 = vadd.f32 %v5399, %v5471
      %v5473 = vpop.f32.mrb[0].mxu0
      %v5474 = vadd.f32 %v5401, %v5473
      %v5475 = vpop.f32.mrb[0].mxu0
      %v5476 = vadd.f32 %v5403, %v5475
      %v5477 = vpop.f32.mrb[0].mxu0
      %v5478 = vadd.f32 %v5405, %v5477
      %5479 = vmatprep.mubr.bf16.mxu0 %v4574
      %5480 = vmatmul.mubr.bf16.gmra.mrb[0].mxu0 %v4573
      %v5481 = vpop.f32.mrb[0].mxu0
      %v5482 = vadd.f32 %v5409, %v5481
      %v5483 = vpop.f32.mrb[0].mxu0
      %v5484 = vadd.f32 %v5411, %v5483
      %v5485 = vpop.f32.mrb[0].mxu0
      %v5486 = vadd.f32 %v5413, %v5485
      %v5487 = vpop.f32.mrb[0].mxu0
      %v5488 = vadd.f32 %v5415, %v5487
      %5489 = vdwg.mxu0
      %5490 = vmatprep.subr.bf16.mxu0 %v5091
      %5491 = vmatpush1.bf16.msra.mxu0 %v5090
      %5492 = vmatprep.subr.bf16.mxu0 %v5095
      %5493 = vmatpush1.bf16.msra.mxu0 %v5094
      %5494 = vmatprep.subr.bf16.mxu0 %v5099
      %5495 = vmatpush1.bf16.msra.mxu0 %v5098
      %5496 = vmatprep.subr.bf16.mxu0 %v5103
      %5497 = vmatpush1.bf16.msra.mxu0 %v5102
      %5498 = vmatprep.subr.bf16.mxu0 %v5107
      %5499 = vmatpush1.bf16.msra.mxu0 %v5106
      %5500 = vmatprep.subr.bf16.mxu0 %v5111
      %5501 = vmatpush1.bf16.msra.mxu0 %v5110
      %5502 = vmatprep.subr.bf16.mxu0 %v5115
      %5503 = vmatpush1.bf16.msra.mxu0 %v5114
      %5504 = vmatprep.subr.bf16.mxu0 %v5119
      %5505 = vmatpush1.bf16.msra.mxu0 %v5118
      %5506 = vmatprep.subr.bf16.mxu0 %v5123
      %5507 = vmatpush1.bf16.msra.mxu0 %v5122
      %5508 = vmatprep.subr.bf16.mxu0 %v5127
      %5509 = vmatpush1.bf16.msra.mxu0 %v5126
      %5510 = vmatprep.subr.bf16.mxu0 %v5131
      %5511 = vmatpush1.bf16.msra.mxu0 %v5130
      %5512 = vmatprep.subr.bf16.mxu0 %v5135
      %5513 = vmatpush1.bf16.msra.mxu0 %v5134
      %5514 = vmatprep.subr.bf16.mxu0 %v5139
      %5515 = vmatpush1.bf16.msra.mxu0 %v5138
      %5516 = vmatprep.subr.bf16.mxu0 %v5143
      %5517 = vmatpush1.bf16.msra.mxu0 %v5142
      %5518 = vmatprep.subr.bf16.mxu0 %v5147
      %5519 = vmatpush1.bf16.msra.mxu0 %v5146
      %5520 = vmatprep.subr.bf16.mxu0 %v5151
      %5521 = vmatpush1.bf16.msra.mxu0 %v5150
      %5522 = vmatprep.mubr.bf16.mxu0 %v4560
      %5523 = vmatmul.mubr.bf16.gmra.mrb[0].mxu0 %v4559
      %v5524 = vpop.f32.mrb[0].mxu0
      %v5525 = vadd.f32 0.0, %v5524
      %v5526 = vpop.f32.mrb[0].mxu0
      %v5527 = vadd.f32 0.0, %v5526
      %v5528 = vpop.f32.mrb[0].mxu0
      %v5529 = vadd.f32 0.0, %v5528
      %v5530 = vpop.f32.mrb[0].mxu0
      %v5531 = vadd.f32 0.0, %v5530
      %5532 = vmatprep.mubr.bf16.mxu0 %v4564
      %5533 = vmatmul.mubr.bf16.gmra.mrb[0].mxu0 %v4563
      %v5534 = vpop.f32.mrb[0].mxu0
      %v5535 = vadd.f32 0.0, %v5534
      %v5536 = vpop.f32.mrb[0].mxu0
      %v5537 = vadd.f32 0.0, %v5536
      %v5538 = vpop.f32.mrb[0].mxu0
      %v5539 = vadd.f32 0.0, %v5538
      %v5540 = vpop.f32.mrb[0].mxu0
      %v5541 = vadd.f32 0.0, %v5540
      %5542 = vmatprep.mubr.bf16.mxu0 %v4568
      %5543 = vmatmul.mubr.bf16.gmra.mrb[0].mxu0 %v4567
      %v5544 = vpop.f32.mrb[0].mxu0
      %v5545 = vadd.f32 0.0, %v5544
      %v5546 = vpop.f32.mrb[0].mxu0
      %v5547 = vadd.f32 0.0, %v5546
      %v5548 = vpop.f32.mrb[0].mxu0
      %v5549 = vadd.f32 0.0, %v5548
      %v5550 = vpop.f32.mrb[0].mxu0
      %v5551 = vadd.f32 0.0, %v5550
      %5552 = vmatprep.mubr.bf16.mxu0 %v4572
      %5553 = vmatmul.mubr.bf16.gmra.mrb[0].mxu0 %v4571
      %v5554 = vpop.f32.mrb[0].mxu0
      %v5555 = vadd.f32 0.0, %v5554
      %v5556 = vpop.f32.mrb[0].mxu0
      %v5557 = vadd.f32 0.0, %v5556
      %v5558 = vpop.f32.mrb[0].mxu0
      %v5559 = vadd.f32 0.0, %v5558
      %v5560 = vpop.f32.mrb[0].mxu0
      %v5561 = vadd.f32 0.0, %v5560
      %5562 = vdwg.mxu0
      %5563 = vmatprep.subr.bf16.mxu0 %v5155
      %5564 = vmatpush1.bf16.msra.mxu0 %v5154
      %5565 = vmatprep.subr.bf16.mxu0 %v5159
      %5566 = vmatpush1.bf16.msra.mxu0 %v5158
      %5567 = vmatprep.subr.bf16.mxu0 %v5163
      %5568 = vmatpush1.bf16.msra.mxu0 %v5162
      %5569 = vmatprep.subr.bf16.mxu0 %v5167
      %5570 = vmatpush1.bf16.msra.mxu0 %v5166
      %5571 = vmatprep.subr.bf16.mxu0 %v5171
      %5572 = vmatpush1.bf16.msra.mxu0 %v5170
      %5573 = vmatprep.subr.bf16.mxu0 %v5175
      %5574 = vmatpush1.bf16.msra.mxu0 %v5174
      %5575 = vmatprep.subr.bf16.mxu0 %v5179
      %5576 = vmatpush1.bf16.msra.mxu0 %v5178
      %5577 = vmatprep.subr.bf16.mxu0 %v5183
      %5578 = vmatpush1.bf16.msra.mxu0 %v5182
      %5579 = vmatprep.subr.bf16.mxu0 %v5187
      %5580 = vmatpush1.bf16.msra.mxu0 %v5186
      %5581 = vmatprep.subr.bf16.mxu0 %v5191
      %5582 = vmatpush1.bf16.msra.mxu0 %v5190
      %5583 = vmatprep.subr.bf16.mxu0 %v5195
      %5584 = vmatpush1.bf16.msra.mxu0 %v5194
      %5585 = vmatprep.subr.bf16.mxu0 %v5199
      %5586 = vmatpush1.bf16.msra.mxu0 %v5198
      %5587 = vmatprep.subr.bf16.mxu0 %v5203
      %5588 = vmatpush1.bf16.msra.mxu0 %v5202
      %5589 = vmatprep.subr.bf16.mxu0 %v5207
      %5590 = vmatpush1.bf16.msra.mxu0 %v5206
      %5591 = vmatprep.subr.bf16.mxu0 %v5211
      %5592 = vmatpush1.bf16.msra.mxu0 %v5210
      %5593 = vmatprep.subr.bf16.mxu0 %v5215
      %5594 = vmatpush1.bf16.msra.mxu0 %v5214
      %5595 = vmatprep.mubr.bf16.mxu0 %v4562
      %5596 = vmatmul.mubr.bf16.gmra.mrb[0].mxu0 %v4561
      %v5597 = vpop.f32.mrb[0].mxu0
      %v5598 = vadd.f32 %v5525, %v5597
      %v5599 = vpop.f32.mrb[0].mxu0
      %v5600 = vadd.f32 %v5527, %v5599
      %v5601 = vpop.f32.mrb[0].mxu0
      %v5602 = vadd.f32 %v5529, %v5601
      %v5603 = vpop.f32.mrb[0].mxu0
      %v5604 = vadd.f32 %v5531, %v5603
      %5605 = vmatprep.mubr.bf16.mxu0 %v4566
      %5606 = vmatmul.mubr.bf16.gmra.mrb[0].mxu0 %v4565
      %v5607 = vpop.f32.mrb[0].mxu0
      %v5608 = vadd.f32 %v5535, %v5607
      %v5609 = vpop.f32.mrb[0].mxu0
      %v5610 = vadd.f32 %v5537, %v5609
      %v5611 = vpop.f32.mrb[0].mxu0
      %v5612 = vadd.f32 %v5539, %v5611
      %v5613 = vpop.f32.mrb[0].mxu0
      %v5614 = vadd.f32 %v5541, %v5613
      %5615 = vmatprep.mubr.bf16.mxu0 %v4570
      %5616 = vmatmul.mubr.bf16.gmra.mrb[0].mxu0 %v4569
      %v5617 = vpop.f32.mrb[0].mxu0
      %v5618 = vadd.f32 %v5545, %v5617
      %v5619 = vpop.f32.mrb[0].mxu0
      %v5620 = vadd.f32 %v5547, %v5619
      %v5621 = vpop.f32.mrb[0].mxu0
      %v5622 = vadd.f32 %v5549, %v5621
      %v5623 = vpop.f32.mrb[0].mxu0
      %v5624 = vadd.f32 %v5551, %v5623
      %5625 = vmatprep.mubr.bf16.mxu0 %v4574
      %5626 = vmatmul.mubr.bf16.gmra.mrb[0].mxu0 %v4573
      %v5627 = vpop.f32.mrb[0].mxu0
      %v5628 = vadd.f32 %v5555, %v5627
      %v5629 = vpop.f32.mrb[0].mxu0
      %v5630 = vadd.f32 %v5557, %v5629
      %v5631 = vpop.f32.mrb[0].mxu0
      %v5632 = vadd.f32 %v5559, %v5631
      %v5633 = vpop.f32.mrb[0].mxu0
      %v5634 = vadd.f32 %v5561, %v5633
      %5635 = vdwg.mxu0
      %v5636 = vadd.f32 %v4375, %v5452
      %v5637 = vadd.f32 %v4377, %v5454
      %v5638 = vadd.f32 %v4521, %v5598
      %v5639 = vadd.f32 %v4523, %v5600
      %v5640 = vadd.f32 %v4379, %v5456
      %v5641 = vadd.f32 %v4381, %v5458
      %v5642 = vadd.f32 %v4525, %v5602
      %v5643 = vadd.f32 %v4527, %v5604
      %v5644 = vadd.f32 %v4385, %v5462
      %v5645 = vadd.f32 %v4387, %v5464
      %v5646 = vadd.f32 %v4531, %v5608
      %v5647 = vadd.f32 %v4533, %v5610
      %v5648 = vadd.f32 %v4389, %v5466
      %v5649 = vadd.f32 %v4391, %v5468
      %v5650 = vadd.f32 %v4535, %v5612
      %v5651 = vadd.f32 %v4537, %v5614
      %v5652 = vadd.f32 %v4395, %v5472
      %v5653 = vadd.f32 %v4397, %v5474
      %v5654 = vadd.f32 %v4541, %v5618
      %v5655 = vadd.f32 %v4543, %v5620
      %v5656 = vadd.f32 %v4399, %v5476
      %v5657 = vadd.f32 %v4401, %v5478
      %v5658 = vadd.f32 %v4545, %v5622
      %v5659 = vadd.f32 %v4547, %v5624
      %v5660 = vadd.f32 %v4405, %v5482
      %v5661 = vadd.f32 %v4407, %v5484
      %v5662 = vadd.f32 %v4551, %v5628
      %v5663 = vadd.f32 %v4553, %v5630
      %v5664 = vadd.f32 %v4409, %v5486
      %v5665 = vadd.f32 %v4411, %v5488
      %v5666 = vadd.f32 %v4555, %v5632
      %v5667 = vadd.f32 %v4557, %v5634
      %v5668 = vmul.f32 %v5636, %v5636
      %v5669 = vmul.f32 %v5637, %v5637
      %v5670 = vmul.f32 %v5638, %v5638
      %v5671 = vmul.f32 %v5639, %v5639
      %v5672 = vmul.f32 %v5640, %v5640
      %v5673 = vmul.f32 %v5641, %v5641
      %v5674 = vmul.f32 %v5642, %v5642
      %v5675 = vmul.f32 %v5643, %v5643
      %v5676 = vmul.f32 %v5644, %v5644
      %v5677 = vmul.f32 %v5645, %v5645
      %v5678 = vmul.f32 %v5646, %v5646
      %v5679 = vmul.f32 %v5647, %v5647
      %v5680 = vmul.f32 %v5648, %v5648
      %v5681 = vmul.f32 %v5649, %v5649
      %v5682 = vmul.f32 %v5650, %v5650
      %v5683 = vmul.f32 %v5651, %v5651
      %v5684 = vmul.f32 %v5652, %v5652
      %v5685 = vmul.f32 %v5653, %v5653
      %v5686 = vmul.f32 %v5654, %v5654
      %v5687 = vmul.f32 %v5655, %v5655
      %v5688 = vmul.f32 %v5656, %v5656
      %v5689 = vmul.f32 %v5657, %v5657
      %v5690 = vmul.f32 %v5658, %v5658
      %v5691 = vmul.f32 %v5659, %v5659
      %v5692 = vmul.f32 %v5660, %v5660
      %v5693 = vmul.f32 %v5661, %v5661
      %v5694 = vmul.f32 %v5662, %v5662
      %v5695 = vmul.f32 %v5663, %v5663
      %v5696 = vmul.f32 %v5664, %v5664
      %v5697 = vmul.f32 %v5665, %v5665
      %v5698 = vmul.f32 %v5666, %v5666
      %v5699 = vmul.f32 %v5667, %v5667
      %v5700 = vadd.f32 %v5668, %v5672
      %v5701 = vrot.slane %v5700, 4
      %v5702 = vadd.f32 %v5700, %v5701
      %v5703 = vrot.slane %v5702, 2
      %v5704 = vadd.f32 %v5702, %v5703
      %v5705 = vrot.slane %v5704, 1
      %v5706 = vadd.f32 %v5704, %v5705
      %v5707 = vadd.f32 %v5669, %v5673
      %v5708 = vrot.slane %v5707, 4
      %v5709 = vadd.f32 %v5707, %v5708
      %v5710 = vrot.slane %v5709, 2
      %v5711 = vadd.f32 %v5709, %v5710
      %v5712 = vrot.slane %v5711, 1
      %v5713 = vadd.f32 %v5711, %v5712
      %v5714 = vadd.f32 %v5670, %v5674
      %v5715 = vrot.slane %v5714, 4
      %v5716 = vadd.f32 %v5714, %v5715
      %v5717 = vrot.slane %v5716, 2
      %v5718 = vadd.f32 %v5716, %v5717
      %v5719 = vrot.slane %v5718, 1
      %v5720 = vadd.f32 %v5718, %v5719
      %v5721 = vadd.f32 %v5671, %v5675
      %v5722 = vrot.slane %v5721, 4
      %v5723 = vadd.f32 %v5721, %v5722
      %v5724 = vrot.slane %v5723, 2
      %v5725 = vadd.f32 %v5723, %v5724
      %v5726 = vrot.slane %v5725, 1
      %v5727 = vadd.f32 %v5725, %v5726
      %v5728 = vadd.f32 %v5676, %v5680
      %v5729 = vrot.slane %v5728, 4
      %v5730 = vadd.f32 %v5728, %v5729
      %v5731 = vrot.slane %v5730, 2
      %v5732 = vadd.f32 %v5730, %v5731
      %v5733 = vrot.slane %v5732, 1
      %v5734 = vadd.f32 %v5732, %v5733
      %v5735 = vadd.f32 %v5677, %v5681
      %v5736 = vrot.slane %v5735, 4
      %v5737 = vadd.f32 %v5735, %v5736
      %v5738 = vrot.slane %v5737, 2
      %v5739 = vadd.f32 %v5737, %v5738
      %v5740 = vrot.slane %v5739, 1
      %v5741 = vadd.f32 %v5739, %v5740
      %v5742 = vadd.f32 %v5678, %v5682
      %v5743 = vrot.slane %v5742, 4
      %v5744 = vadd.f32 %v5742, %v5743
      %v5745 = vrot.slane %v5744, 2
      %v5746 = vadd.f32 %v5744, %v5745
      %v5747 = vrot.slane %v5746, 1
      %v5748 = vadd.f32 %v5746, %v5747
      %v5749 = vadd.f32 %v5679, %v5683
      %v5750 = vrot.slane %v5749, 4
      %v5751 = vadd.f32 %v5749, %v5750
      %v5752 = vrot.slane %v5751, 2
      %v5753 = vadd.f32 %v5751, %v5752
      %v5754 = vrot.slane %v5753, 1
      %v5755 = vadd.f32 %v5753, %v5754
      %v5756 = vadd.f32 %v5684, %v5688
      %v5757 = vrot.slane %v5756, 4
      %v5758 = vadd.f32 %v5756, %v5757
      %v5759 = vrot.slane %v5758, 2
      %v5760 = vadd.f32 %v5758, %v5759
      %v5761 = vrot.slane %v5760, 1
      %v5762 = vadd.f32 %v5760, %v5761
      %v5763 = vadd.f32 %v5685, %v5689
      %v5764 = vrot.slane %v5763, 4
      %v5765 = vadd.f32 %v5763, %v5764
      %v5766 = vrot.slane %v5765, 2
      %v5767 = vadd.f32 %v5765, %v5766
      %v5768 = vrot.slane %v5767, 1
      %v5769 = vadd.f32 %v5767, %v5768
      %v5770 = vadd.f32 %v5686, %v5690
      %v5771 = vrot.slane %v5770, 4
      %v5772 = vadd.f32 %v5770, %v5771
      %v5773 = vrot.slane %v5772, 2
      %v5774 = vadd.f32 %v5772, %v5773
      %v5775 = vrot.slane %v5774, 1
      %v5776 = vadd.f32 %v5774, %v5775
      %v5777 = vadd.f32 %v5687, %v5691
      %v5778 = vrot.slane %v5777, 4
      %v5779 = vadd.f32 %v5777, %v5778
      %v5780 = vrot.slane %v5779, 2
      %v5781 = vadd.f32 %v5779, %v5780
      %v5782 = vrot.slane %v5781, 1
      %v5783 = vadd.f32 %v5781, %v5782
      %v5784 = vadd.f32 %v5692, %v5696
      %v5785 = vrot.slane %v5784, 4
      %v5786 = vadd.f32 %v5784, %v5785
      %v5787 = vrot.slane %v5786, 2
      %v5788 = vadd.f32 %v5786, %v5787
      %v5789 = vrot.slane %v5788, 1
      %v5790 = vadd.f32 %v5788, %v5789
      %v5791 = vadd.f32 %v5693, %v5697
      %v5792 = vrot.slane %v5791, 4
      %v5793 = vadd.f32 %v5791, %v5792
      %v5794 = vrot.slane %v5793, 2
      %v5795 = vadd.f32 %v5793, %v5794
      %v5796 = vrot.slane %v5795, 1
      %v5797 = vadd.f32 %v5795, %v5796
      %v5798 = vadd.f32 %v5694, %v5698
      %v5799 = vrot.slane %v5798, 4
      %v5800 = vadd.f32 %v5798, %v5799
      %v5801 = vrot.slane %v5800, 2
      %v5802 = vadd.f32 %v5800, %v5801
      %v5803 = vrot.slane %v5802, 1
      %v5804 = vadd.f32 %v5802, %v5803
      %v5805 = vadd.f32 %v5695, %v5699
      %v5806 = vrot.slane %v5805, 4
      %v5807 = vadd.f32 %v5805, %v5806
      %v5808 = vrot.slane %v5807, 2
      %v5809 = vadd.f32 %v5807, %v5808
      %v5810 = vrot.slane %v5809, 1
      %v5811 = vadd.f32 %v5809, %v5810
      %v5812 = vrsqrt.pop %v5706
      %v5813 = vmul.f32 %v5706, %v5812
      %vm5814 = vcmp.eq.f32.partialorder %v5706, inf
      %v5815 = vsel %vm5814, %v5706, %v5813
      %vm5816 = vcmp.eq.f32.partialorder %v5706, 0.0
      %v5817 = vand.u32 %v5706, 2147483648
      %v5818 = vsel %vm5816, %v5817, %v5815
      %v5819 = vrsqrt.pop %v5713
      %v5820 = vmul.f32 %v5713, %v5819
      %vm5821 = vcmp.eq.f32.partialorder %v5713, inf
      %v5822 = vsel %vm5821, %v5713, %v5820
      %vm5823 = vcmp.eq.f32.partialorder %v5713, 0.0
      %v5824 = vand.u32 %v5713, 2147483648
      %v5825 = vsel %vm5823, %v5824, %v5822
      %v5826 = vrsqrt.pop %v5720
      %v5827 = vmul.f32 %v5720, %v5826
      %vm5828 = vcmp.eq.f32.partialorder %v5720, inf
      %v5829 = vsel %vm5828, %v5720, %v5827
      %vm5830 = vcmp.eq.f32.partialorder %v5720, 0.0
      %v5831 = vand.u32 %v5720, 2147483648
      %v5832 = vsel %vm5830, %v5831, %v5829
      %v5833 = vrsqrt.pop %v5727
      %v5834 = vmul.f32 %v5727, %v5833
      %vm5835 = vcmp.eq.f32.partialorder %v5727, inf
      %v5836 = vsel %vm5835, %v5727, %v5834
      %vm5837 = vcmp.eq.f32.partialorder %v5727, 0.0
      %v5838 = vand.u32 %v5727, 2147483648
      %v5839 = vsel %vm5837, %v5838, %v5836
      %v5840 = vrsqrt.pop %v5734
      %v5841 = vmul.f32 %v5734, %v5840
      %vm5842 = vcmp.eq.f32.partialorder %v5734, inf
      %v5843 = vsel %vm5842, %v5734, %v5841
      %vm5844 = vcmp.eq.f32.partialorder %v5734, 0.0
      %v5845 = vand.u32 %v5734, 2147483648
      %v5846 = vsel %vm5844, %v5845, %v5843
      %v5847 = vrsqrt.pop %v5741
      %v5848 = vmul.f32 %v5741, %v5847
      %vm5849 = vcmp.eq.f32.partialorder %v5741, inf
      %v5850 = vsel %vm5849, %v5741, %v5848
      %vm5851 = vcmp.eq.f32.partialorder %v5741, 0.0
      %v5852 = vand.u32 %v5741, 2147483648
      %v5853 = vsel %vm5851, %v5852, %v5850
      %v5854 = vrsqrt.pop %v5748
      %v5855 = vmul.f32 %v5748, %v5854
      %vm5856 = vcmp.eq.f32.partialorder %v5748, inf
      %v5857 = vsel %vm5856, %v5748, %v5855
      %vm5858 = vcmp.eq.f32.partialorder %v5748, 0.0
      %v5859 = vand.u32 %v5748, 2147483648
      %v5860 = vsel %vm5858, %v5859, %v5857
      %v5861 = vrsqrt.pop %v5755
      %v5862 = vmul.f32 %v5755, %v5861
      %vm5863 = vcmp.eq.f32.partialorder %v5755, inf
      %v5864 = vsel %vm5863, %v5755, %v5862
      %vm5865 = vcmp.eq.f32.partialorder %v5755, 0.0
      %v5866 = vand.u32 %v5755, 2147483648
      %v5867 = vsel %vm5865, %v5866, %v5864
      %v5868 = vrsqrt.pop %v5762
      %v5869 = vmul.f32 %v5762, %v5868
      %vm5870 = vcmp.eq.f32.partialorder %v5762, inf
      %v5871 = vsel %vm5870, %v5762, %v5869
      %vm5872 = vcmp.eq.f32.partialorder %v5762, 0.0
      %v5873 = vand.u32 %v5762, 2147483648
      %v5874 = vsel %vm5872, %v5873, %v5871
      %v5875 = vrsqrt.pop %v5769
      %v5876 = vmul.f32 %v5769, %v5875
      %vm5877 = vcmp.eq.f32.partialorder %v5769, inf
      %v5878 = vsel %vm5877, %v5769, %v5876
      %vm5879 = vcmp.eq.f32.partialorder %v5769, 0.0
      %v5880 = vand.u32 %v5769, 2147483648
      %v5881 = vsel %vm5879, %v5880, %v5878
      %v5882 = vrsqrt.pop %v5776
      %v5883 = vmul.f32 %v5776, %v5882
      %vm5884 = vcmp.eq.f32.partialorder %v5776, inf
      %v5885 = vsel %vm5884, %v5776, %v5883
      %vm5886 = vcmp.eq.f32.partialorder %v5776, 0.0
      %v5887 = vand.u32 %v5776, 2147483648
      %v5888 = vsel %vm5886, %v5887, %v5885
      %v5889 = vrsqrt.pop %v5783
      %v5890 = vmul.f32 %v5783, %v5889
      %vm5891 = vcmp.eq.f32.partialorder %v5783, inf
      %v5892 = vsel %vm5891, %v5783, %v5890
      %vm5893 = vcmp.eq.f32.partialorder %v5783, 0.0
      %v5894 = vand.u32 %v5783, 2147483648
      %v5895 = vsel %vm5893, %v5894, %v5892
      %v5896 = vrsqrt.pop %v5790
      %v5897 = vmul.f32 %v5790, %v5896
      %vm5898 = vcmp.eq.f32.partialorder %v5790, inf
      %v5899 = vsel %vm5898, %v5790, %v5897
      %vm5900 = vcmp.eq.f32.partialorder %v5790, 0.0
      %v5901 = vand.u32 %v5790, 2147483648
      %v5902 = vsel %vm5900, %v5901, %v5899
      %v5903 = vrsqrt.pop %v5797
      %v5904 = vmul.f32 %v5797, %v5903
      %vm5905 = vcmp.eq.f32.partialorder %v5797, inf
      %v5906 = vsel %vm5905, %v5797, %v5904
      %vm5907 = vcmp.eq.f32.partialorder %v5797, 0.0
      %v5908 = vand.u32 %v5797, 2147483648
      %v5909 = vsel %vm5907, %v5908, %v5906
      %v5910 = vrsqrt.pop %v5804
      %v5911 = vmul.f32 %v5804, %v5910
      %vm5912 = vcmp.eq.f32.partialorder %v5804, inf
      %v5913 = vsel %vm5912, %v5804, %v5911
      %vm5914 = vcmp.eq.f32.partialorder %v5804, 0.0
      %v5915 = vand.u32 %v5804, 2147483648
      %v5916 = vsel %vm5914, %v5915, %v5913
      %v5917 = vrsqrt.pop %v5811
      %v5918 = vmul.f32 %v5811, %v5917
      %vm5919 = vcmp.eq.f32.partialorder %v5811, inf
      %v5920 = vsel %vm5919, %v5811, %v5918
      %vm5921 = vcmp.eq.f32.partialorder %v5811, 0.0
      %v5922 = vand.u32 %v5811, 2147483648
      %v5923 = vsel %vm5921, %v5922, %v5920
      %v5924 = vmax.f32 %v5818, 1e-08
      %v5925 = vmax.f32 %v5825, 1e-08
      %v5926 = vmax.f32 %v5832, 1e-08
      %v5927 = vmax.f32 %v5839, 1e-08
      %v5928 = vmax.f32 %v5846, 1e-08
      %v5929 = vmax.f32 %v5853, 1e-08
      %v5930 = vmax.f32 %v5860, 1e-08
      %v5931 = vmax.f32 %v5867, 1e-08
      %v5932 = vmax.f32 %v5874, 1e-08
      %v5933 = vmax.f32 %v5881, 1e-08
      %v5934 = vmax.f32 %v5888, 1e-08
      %v5935 = vmax.f32 %v5895, 1e-08
      %v5936 = vmax.f32 %v5902, 1e-08
      %v5937 = vmax.f32 %v5909, 1e-08
      %v5938 = vmax.f32 %v5916, 1e-08
      %v5939 = vmax.f32 %v5923, 1e-08
      %v5940 = vtanh.pop %v5924
      %v5941 = vtanh.pop %v5925
      %v5942 = vtanh.pop %v5926
      %v5943 = vtanh.pop %v5927
      %v5944 = vtanh.pop %v5928
      %v5945 = vtanh.pop %v5929
      %v5946 = vtanh.pop %v5930
      %v5947 = vtanh.pop %v5931
      %v5948 = vtanh.pop %v5932
      %v5949 = vtanh.pop %v5933
      %v5950 = vtanh.pop %v5934
      %v5951 = vtanh.pop %v5935
      %v5952 = vtanh.pop %v5936
      %v5953 = vtanh.pop %v5937
      %v5954 = vtanh.pop %v5938
      %v5955 = vtanh.pop %v5939
      %v5956 = vrcp.pop %v5924
      %v5957 = vrcp.pop %v5925
      %v5958 = vrcp.pop %v5926
      %v5959 = vrcp.pop %v5927
      %v5960 = vrcp.pop %v5928
      %v5961 = vrcp.pop %v5929
      %v5962 = vrcp.pop %v5930
      %v5963 = vrcp.pop %v5931
      %v5964 = vrcp.pop %v5932
      %v5965 = vrcp.pop %v5933
      %v5966 = vrcp.pop %v5934
      %v5967 = vrcp.pop %v5935
      %v5968 = vrcp.pop %v5936
      %v5969 = vrcp.pop %v5937
      %v5970 = vrcp.pop %v5938
      %v5971 = vrcp.pop %v5939
      %v5972 = vmul.f32 %v5940, %v5956
      %v5973 = vmul.f32 %v5941, %v5957
      %v5974 = vmul.f32 %v5942, %v5958
      %v5975 = vmul.f32 %v5943, %v5959
      %v5976 = vmul.f32 %v5944, %v5960
      %v5977 = vmul.f32 %v5945, %v5961
      %v5978 = vmul.f32 %v5946, %v5962
      %v5979 = vmul.f32 %v5947, %v5963
      %v5980 = vmul.f32 %v5948, %v5964
      %v5981 = vmul.f32 %v5949, %v5965
      %v5982 = vmul.f32 %v5950, %v5966
      %v5983 = vmul.f32 %v5951, %v5967
      %v5984 = vmul.f32 %v5952, %v5968
      %v5985 = vmul.f32 %v5953, %v5969
      %v5986 = vmul.f32 %v5954, %v5970
      %v5987 = vmul.f32 %v5955, %v5971
      %v5988 = vmul.f32 %v5636, %v5972
      %v5989 = vmul.f32 %v5637, %v5973
      %v5990 = vmul.f32 %v5638, %v5974
      %v5991 = vmul.f32 %v5639, %v5975
      %v5992 = vmul.f32 %v5640, %v5972
      %v5993 = vmul.f32 %v5641, %v5973
      %v5994 = vmul.f32 %v5642, %v5974
      %v5995 = vmul.f32 %v5643, %v5975
      %v5996 = vmul.f32 %v5644, %v5976
      %v5997 = vmul.f32 %v5645, %v5977
      %v5998 = vmul.f32 %v5646, %v5978
      %v5999 = vmul.f32 %v5647, %v5979
      %v6000 = vmul.f32 %v5648, %v5976
      %v6001 = vmul.f32 %v5649, %v5977
      %v6002 = vmul.f32 %v5650, %v5978
      %v6003 = vmul.f32 %v5651, %v5979
      %v6004 = vmul.f32 %v5652, %v5980
      %v6005 = vmul.f32 %v5653, %v5981
      %v6006 = vmul.f32 %v5654, %v5982
      %v6007 = vmul.f32 %v5655, %v5983
      %v6008 = vmul.f32 %v5656, %v5980
      %v6009 = vmul.f32 %v5657, %v5981
      %v6010 = vmul.f32 %v5658, %v5982
      %v6011 = vmul.f32 %v5659, %v5983
      %v6012 = vmul.f32 %v5660, %v5984
      %v6013 = vmul.f32 %v5661, %v5985
      %v6014 = vmul.f32 %v5662, %v5986
      %v6015 = vmul.f32 %v5663, %v5987
      %v6016 = vmul.f32 %v5664, %v5984
      %v6017 = vmul.f32 %v5665, %v5985
      %v6018 = vmul.f32 %v5666, %v5986
      %v6019 = vmul.f32 %v5667, %v5987
      %v6020 = vmax.f32 %v5988, 0.0
      %v6021 = vmax.f32 %v5989, 0.0
      %v6022 = vmax.f32 %v5990, 0.0
      %v6023 = vmax.f32 %v5991, 0.0
      %v6024 = vmax.f32 %v5992, 0.0
      %v6025 = vmax.f32 %v5993, 0.0
      %v6026 = vmax.f32 %v5994, 0.0
      %v6027 = vmax.f32 %v5995, 0.0
      %v6028 = vmax.f32 %v5996, 0.0
      %v6029 = vmax.f32 %v5997, 0.0
      %v6030 = vmax.f32 %v5998, 0.0
      %v6031 = vmax.f32 %v5999, 0.0
      %v6032 = vmax.f32 %v6000, 0.0
      %v6033 = vmax.f32 %v6001, 0.0
      %v6034 = vmax.f32 %v6002, 0.0
      %v6035 = vmax.f32 %v6003, 0.0
      %v6036 = vmax.f32 %v6004, 0.0
      %v6037 = vmax.f32 %v6005, 0.0
      %v6038 = vmax.f32 %v6006, 0.0
      %v6039 = vmax.f32 %v6007, 0.0
      %v6040 = vmax.f32 %v6008, 0.0
      %v6041 = vmax.f32 %v6009, 0.0
      %v6042 = vmax.f32 %v6010, 0.0
      %v6043 = vmax.f32 %v6011, 0.0
      %v6044 = vmax.f32 %v6012, 0.0
      %v6045 = vmax.f32 %v6013, 0.0
      %v6046 = vmax.f32 %v6014, 0.0
      %v6047 = vmax.f32 %v6015, 0.0
      %v6048 = vmax.f32 %v6016, 0.0
      %v6049 = vmax.f32 %v6017, 0.0
      %v6050 = vmax.f32 %v6018, 0.0
      %v6051 = vmax.f32 %v6019, 0.0
      %v6052 = vmul.f32 %v6020, %v6020
      %v6053 = vmul.f32 %v6021, %v6021
      %v6054 = vmul.f32 %v6022, %v6022
      %v6055 = vmul.f32 %v6023, %v6023
      %v6056 = vmul.f32 %v6024, %v6024
      %v6057 = vmul.f32 %v6025, %v6025
      %v6058 = vmul.f32 %v6026, %v6026
      %v6059 = vmul.f32 %v6027, %v6027
      %v6060 = vmul.f32 %v6028, %v6028
      %v6061 = vmul.f32 %v6029, %v6029
      %v6062 = vmul.f32 %v6030, %v6030
      %v6063 = vmul.f32 %v6031, %v6031
      %v6064 = vmul.f32 %v6032, %v6032
      %v6065 = vmul.f32 %v6033, %v6033
      %v6066 = vmul.f32 %v6034, %v6034
      %v6067 = vmul.f32 %v6035, %v6035
      %v6068 = vmul.f32 %v6036, %v6036
      %v6069 = vmul.f32 %v6037, %v6037
      %v6070 = vmul.f32 %v6038, %v6038
      %v6071 = vmul.f32 %v6039, %v6039
      %v6072 = vmul.f32 %v6040, %v6040
      %v6073 = vmul.f32 %v6041, %v6041
      %v6074 = vmul.f32 %v6042, %v6042
      %v6075 = vmul.f32 %v6043, %v6043
      %v6076 = vmul.f32 %v6044, %v6044
      %v6077 = vmul.f32 %v6045, %v6045
      %v6078 = vmul.f32 %v6046, %v6046
      %v6079 = vmul.f32 %v6047, %v6047
      %v6080 = vmul.f32 %v6048, %v6048
      %v6081 = vmul.f32 %v6049, %v6049
      %v6082 = vmul.f32 %v6050, %v6050
      %v6083 = vmul.f32 %v6051, %v6051
      %v6084 = vadd.f32 %v6052, %v6056
      %v6085 = vrot.slane %v6084, 4
      %v6086 = vadd.f32 %v6084, %v6085
      %v6087 = vrot.slane %v6086, 2
      %v6088 = vadd.f32 %v6086, %v6087
      %v6089 = vrot.slane %v6088, 1
      %v6090 = vadd.f32 %v6088, %v6089
      %v6091 = vadd.f32 %v6053, %v6057
      %v6092 = vrot.slane %v6091, 4
      %v6093 = vadd.f32 %v6091, %v6092
      %v6094 = vrot.slane %v6093, 2
      %v6095 = vadd.f32 %v6093, %v6094
      %v6096 = vrot.slane %v6095, 1
      %v6097 = vadd.f32 %v6095, %v6096
      %v6098 = vadd.f32 %v6054, %v6058
      %v6099 = vrot.slane %v6098, 4
      %v6100 = vadd.f32 %v6098, %v6099
      %v6101 = vrot.slane %v6100, 2
      %v6102 = vadd.f32 %v6100, %v6101
      %v6103 = vrot.slane %v6102, 1
      %v6104 = vadd.f32 %v6102, %v6103
      %v6105 = vadd.f32 %v6055, %v6059
      %v6106 = vrot.slane %v6105, 4
      %v6107 = vadd.f32 %v6105, %v6106
      %v6108 = vrot.slane %v6107, 2
      %v6109 = vadd.f32 %v6107, %v6108
      %v6110 = vrot.slane %v6109, 1
      %v6111 = vadd.f32 %v6109, %v6110
      %v6112 = vadd.f32 %v6060, %v6064
      %v6113 = vrot.slane %v6112, 4
      %v6114 = vadd.f32 %v6112, %v6113
      %v6115 = vrot.slane %v6114, 2
      %v6116 = vadd.f32 %v6114, %v6115
      %v6117 = vrot.slane %v6116, 1
      %v6118 = vadd.f32 %v6116, %v6117
      %v6119 = vadd.f32 %v6061, %v6065
      %v6120 = vrot.slane %v6119, 4
      %v6121 = vadd.f32 %v6119, %v6120
      %v6122 = vrot.slane %v6121, 2
      %v6123 = vadd.f32 %v6121, %v6122
      %v6124 = vrot.slane %v6123, 1
      %v6125 = vadd.f32 %v6123, %v6124
      %v6126 = vadd.f32 %v6062, %v6066
      %v6127 = vrot.slane %v6126, 4
      %v6128 = vadd.f32 %v6126, %v6127
      %v6129 = vrot.slane %v6128, 2
      %v6130 = vadd.f32 %v6128, %v6129
      %v6131 = vrot.slane %v6130, 1
      %v6132 = vadd.f32 %v6130, %v6131
      %v6133 = vadd.f32 %v6063, %v6067
      %v6134 = vrot.slane %v6133, 4
      %v6135 = vadd.f32 %v6133, %v6134
      %v6136 = vrot.slane %v6135, 2
      %v6137 = vadd.f32 %v6135, %v6136
      %v6138 = vrot.slane %v6137, 1
      %v6139 = vadd.f32 %v6137, %v6138
      %v6140 = vadd.f32 %v6068, %v6072
      %v6141 = vrot.slane %v6140, 4
      %v6142 = vadd.f32 %v6140, %v6141
      %v6143 = vrot.slane %v6142, 2
      %v6144 = vadd.f32 %v6142, %v6143
      %v6145 = vrot.slane %v6144, 1
      %v6146 = vadd.f32 %v6144, %v6145
      %v6147 = vadd.f32 %v6069, %v6073
      %v6148 = vrot.slane %v6147, 4
      %v6149 = vadd.f32 %v6147, %v6148
      %v6150 = vrot.slane %v6149, 2
      %v6151 = vadd.f32 %v6149, %v6150
      %v6152 = vrot.slane %v6151, 1
      %v6153 = vadd.f32 %v6151, %v6152
      %v6154 = vadd.f32 %v6070, %v6074
      %v6155 = vrot.slane %v6154, 4
      %v6156 = vadd.f32 %v6154, %v6155
      %v6157 = vrot.slane %v6156, 2
      %v6158 = vadd.f32 %v6156, %v6157
      %v6159 = vrot.slane %v6158, 1
      %v6160 = vadd.f32 %v6158, %v6159
      %v6161 = vadd.f32 %v6071, %v6075
      %v6162 = vrot.slane %v6161, 4
      %v6163 = vadd.f32 %v6161, %v6162
      %v6164 = vrot.slane %v6163, 2
      %v6165 = vadd.f32 %v6163, %v6164
      %v6166 = vrot.slane %v6165, 1
      %v6167 = vadd.f32 %v6165, %v6166
      %v6168 = vadd.f32 %v6076, %v6080
      %v6169 = vrot.slane %v6168, 4
      %v6170 = vadd.f32 %v6168, %v6169
      %v6171 = vrot.slane %v6170, 2
      %v6172 = vadd.f32 %v6170, %v6171
      %v6173 = vrot.slane %v6172, 1
      %v6174 = vadd.f32 %v6172, %v6173
      %v6175 = vadd.f32 %v6077, %v6081
      %v6176 = vrot.slane %v6175, 4
      %v6177 = vadd.f32 %v6175, %v6176
      %v6178 = vrot.slane %v6177, 2
      %v6179 = vadd.f32 %v6177, %v6178
      %v6180 = vrot.slane %v6179, 1
      %v6181 = vadd.f32 %v6179, %v6180
      %v6182 = vadd.f32 %v6078, %v6082
      %v6183 = vrot.slane %v6182, 4
      %v6184 = vadd.f32 %v6182, %v6183
      %v6185 = vrot.slane %v6184, 2
      %v6186 = vadd.f32 %v6184, %v6185
      %v6187 = vrot.slane %v6186, 1
      %v6188 = vadd.f32 %v6186, %v6187
      %v6189 = vadd.f32 %v6079, %v6083
      %v6190 = vrot.slane %v6189, 4
      %v6191 = vadd.f32 %v6189, %v6190
      %v6192 = vrot.slane %v6191, 2
      %v6193 = vadd.f32 %v6191, %v6192
      %v6194 = vrot.slane %v6193, 1
      %v6195 = vadd.f32 %v6193, %v6194
      %v6196 = vrsqrt.pop %v6090
      %v6197 = vmul.f32 %v6090, %v6196
      %vm6198 = vcmp.eq.f32.partialorder %v6090, inf
      %v6199 = vsel %vm6198, %v6090, %v6197
      %vm6200 = vcmp.eq.f32.partialorder %v6090, 0.0
      %v6201 = vand.u32 %v6090, 2147483648
      %v6202 = vsel %vm6200, %v6201, %v6199
      %v6203 = vrsqrt.pop %v6097
      %v6204 = vmul.f32 %v6097, %v6203
      %vm6205 = vcmp.eq.f32.partialorder %v6097, inf
      %v6206 = vsel %vm6205, %v6097, %v6204
      %vm6207 = vcmp.eq.f32.partialorder %v6097, 0.0
      %v6208 = vand.u32 %v6097, 2147483648
      %v6209 = vsel %vm6207, %v6208, %v6206
      %v6210 = vrsqrt.pop %v6104
      %v6211 = vmul.f32 %v6104, %v6210
      %vm6212 = vcmp.eq.f32.partialorder %v6104, inf
      %v6213 = vsel %vm6212, %v6104, %v6211
      %vm6214 = vcmp.eq.f32.partialorder %v6104, 0.0
      %v6215 = vand.u32 %v6104, 2147483648
      %v6216 = vsel %vm6214, %v6215, %v6213
      %v6217 = vrsqrt.pop %v6111
      %v6218 = vmul.f32 %v6111, %v6217
      %vm6219 = vcmp.eq.f32.partialorder %v6111, inf
      %v6220 = vsel %vm6219, %v6111, %v6218
      %vm6221 = vcmp.eq.f32.partialorder %v6111, 0.0
      %v6222 = vand.u32 %v6111, 2147483648
      %v6223 = vsel %vm6221, %v6222, %v6220
      %v6224 = vrsqrt.pop %v6118
      %v6225 = vmul.f32 %v6118, %v6224
      %vm6226 = vcmp.eq.f32.partialorder %v6118, inf
      %v6227 = vsel %vm6226, %v6118, %v6225
      %vm6228 = vcmp.eq.f32.partialorder %v6118, 0.0
      %v6229 = vand.u32 %v6118, 2147483648
      %v6230 = vsel %vm6228, %v6229, %v6227
      %v6231 = vrsqrt.pop %v6125
      %v6232 = vmul.f32 %v6125, %v6231
      %vm6233 = vcmp.eq.f32.partialorder %v6125, inf
      %v6234 = vsel %vm6233, %v6125, %v6232
      %vm6235 = vcmp.eq.f32.partialorder %v6125, 0.0
      %v6236 = vand.u32 %v6125, 2147483648
      %v6237 = vsel %vm6235, %v6236, %v6234
      %v6238 = vrsqrt.pop %v6132
      %v6239 = vmul.f32 %v6132, %v6238
      %vm6240 = vcmp.eq.f32.partialorder %v6132, inf
      %v6241 = vsel %vm6240, %v6132, %v6239
      %vm6242 = vcmp.eq.f32.partialorder %v6132, 0.0
      %v6243 = vand.u32 %v6132, 2147483648
      %v6244 = vsel %vm6242, %v6243, %v6241
      %v6245 = vrsqrt.pop %v6139
      %v6246 = vmul.f32 %v6139, %v6245
      %vm6247 = vcmp.eq.f32.partialorder %v6139, inf
      %v6248 = vsel %vm6247, %v6139, %v6246
      %vm6249 = vcmp.eq.f32.partialorder %v6139, 0.0
      %v6250 = vand.u32 %v6139, 2147483648
      %v6251 = vsel %vm6249, %v6250, %v6248
      %v6252 = vrsqrt.pop %v6146
      %v6253 = vmul.f32 %v6146, %v6252
      %vm6254 = vcmp.eq.f32.partialorder %v6146, inf
      %v6255 = vsel %vm6254, %v6146, %v6253
      %vm6256 = vcmp.eq.f32.partialorder %v6146, 0.0
      %v6257 = vand.u32 %v6146, 2147483648
      %v6258 = vsel %vm6256, %v6257, %v6255
      %v6259 = vrsqrt.pop %v6153
      %v6260 = vmul.f32 %v6153, %v6259
      %vm6261 = vcmp.eq.f32.partialorder %v6153, inf
      %v6262 = vsel %vm6261, %v6153, %v6260
      %vm6263 = vcmp.eq.f32.partialorder %v6153, 0.0
      %v6264 = vand.u32 %v6153, 2147483648
      %v6265 = vsel %vm6263, %v6264, %v6262
      %v6266 = vrsqrt.pop %v6160
      %v6267 = vmul.f32 %v6160, %v6266
      %vm6268 = vcmp.eq.f32.partialorder %v6160, inf
      %v6269 = vsel %vm6268, %v6160, %v6267
      %vm6270 = vcmp.eq.f32.partialorder %v6160, 0.0
      %v6271 = vand.u32 %v6160, 2147483648
      %v6272 = vsel %vm6270, %v6271, %v6269
      %v6273 = vrsqrt.pop %v6167
      %v6274 = vmul.f32 %v6167, %v6273
      %vm6275 = vcmp.eq.f32.partialorder %v6167, inf
      %v6276 = vsel %vm6275, %v6167, %v6274
      %vm6277 = vcmp.eq.f32.partialorder %v6167, 0.0
      %v6278 = vand.u32 %v6167, 2147483648
      %v6279 = vsel %vm6277, %v6278, %v6276
      %v6280 = vrsqrt.pop %v6174
      %v6281 = vmul.f32 %v6174, %v6280
      %vm6282 = vcmp.eq.f32.partialorder %v6174, inf
      %v6283 = vsel %vm6282, %v6174, %v6281
      %vm6284 = vcmp.eq.f32.partialorder %v6174, 0.0
      %v6285 = vand.u32 %v6174, 2147483648
      %v6286 = vsel %vm6284, %v6285, %v6283
      %v6287 = vrsqrt.pop %v6181
      %v6288 = vmul.f32 %v6181, %v6287
      %vm6289 = vcmp.eq.f32.partialorder %v6181, inf
      %v6290 = vsel %vm6289, %v6181, %v6288
      %vm6291 = vcmp.eq.f32.partialorder %v6181, 0.0
      %v6292 = vand.u32 %v6181, 2147483648
      %v6293 = vsel %vm6291, %v6292, %v6290
      %v6294 = vrsqrt.pop %v6188
      %v6295 = vmul.f32 %v6188, %v6294
      %vm6296 = vcmp.eq.f32.partialorder %v6188, inf
      %v6297 = vsel %vm6296, %v6188, %v6295
      %vm6298 = vcmp.eq.f32.partialorder %v6188, 0.0
      %v6299 = vand.u32 %v6188, 2147483648
      %v6300 = vsel %vm6298, %v6299, %v6297
      %v6301 = vrsqrt.pop %v6195
      %v6302 = vmul.f32 %v6195, %v6301
      %vm6303 = vcmp.eq.f32.partialorder %v6195, inf
      %v6304 = vsel %vm6303, %v6195, %v6302
      %vm6305 = vcmp.eq.f32.partialorder %v6195, 0.0
      %v6306 = vand.u32 %v6195, 2147483648
      %v6307 = vsel %vm6305, %v6306, %v6304
      %v6308 = vmax.f32 %v6202, 1e-08
      %v6309 = vmax.f32 %v6209, 1e-08
      %v6310 = vmax.f32 %v6216, 1e-08
      %v6311 = vmax.f32 %v6223, 1e-08
      %v6312 = vmax.f32 %v6230, 1e-08
      %v6313 = vmax.f32 %v6237, 1e-08
      %v6314 = vmax.f32 %v6244, 1e-08
      %v6315 = vmax.f32 %v6251, 1e-08
      %v6316 = vmax.f32 %v6258, 1e-08
      %v6317 = vmax.f32 %v6265, 1e-08
      %v6318 = vmax.f32 %v6272, 1e-08
      %v6319 = vmax.f32 %v6279, 1e-08
      %v6320 = vmax.f32 %v6286, 1e-08
      %v6321 = vmax.f32 %v6293, 1e-08
      %v6322 = vmax.f32 %v6300, 1e-08
      %v6323 = vmax.f32 %v6307, 1e-08
      %v6324 = vmin.f32 %v6308, 0.999999
      %v6325 = vmin.f32 %v6309, 0.999999
      %v6326 = vmin.f32 %v6310, 0.999999
      %v6327 = vmin.f32 %v6311, 0.999999
      %v6328 = vmin.f32 %v6312, 0.999999
      %v6329 = vmin.f32 %v6313, 0.999999
      %v6330 = vmin.f32 %v6314, 0.999999
      %v6331 = vmin.f32 %v6315, 0.999999
      %v6332 = vmin.f32 %v6316, 0.999999
      %v6333 = vmin.f32 %v6317, 0.999999
      %v6334 = vmin.f32 %v6318, 0.999999
      %v6335 = vmin.f32 %v6319, 0.999999
      %v6336 = vmin.f32 %v6320, 0.999999
      %v6337 = vmin.f32 %v6321, 0.999999
      %v6338 = vmin.f32 %v6322, 0.999999
      %v6339 = vmin.f32 %v6323, 0.999999
      %v6340 = vadd.f32 %v6324, 1.0
      %v6341 = vadd.f32 %v6325, 1.0
      %v6342 = vadd.f32 %v6326, 1.0
      %v6343 = vadd.f32 %v6327, 1.0
      %v6344 = vadd.f32 %v6328, 1.0
      %v6345 = vadd.f32 %v6329, 1.0
      %v6346 = vadd.f32 %v6330, 1.0
      %v6347 = vadd.f32 %v6331, 1.0
      %v6348 = vadd.f32 %v6332, 1.0
      %v6349 = vadd.f32 %v6333, 1.0
      %v6350 = vadd.f32 %v6334, 1.0
      %v6351 = vadd.f32 %v6335, 1.0
      %v6352 = vadd.f32 %v6336, 1.0
      %v6353 = vadd.f32 %v6337, 1.0
      %v6354 = vadd.f32 %v6338, 1.0
      %v6355 = vadd.f32 %v6339, 1.0
      %v6356 = vsub.f32 1.0, %v6324
      %v6357 = vsub.f32 1.0, %v6325
      %v6358 = vsub.f32 1.0, %v6326
      %v6359 = vsub.f32 1.0, %v6327
      %v6360 = vsub.f32 1.0, %v6328
      %v6361 = vsub.f32 1.0, %v6329
      %v6362 = vsub.f32 1.0, %v6330
      %v6363 = vsub.f32 1.0, %v6331
      %v6364 = vsub.f32 1.0, %v6332
      %v6365 = vsub.f32 1.0, %v6333
      %v6366 = vsub.f32 1.0, %v6334
      %v6367 = vsub.f32 1.0, %v6335
      %v6368 = vsub.f32 1.0, %v6336
      %v6369 = vsub.f32 1.0, %v6337
      %v6370 = vsub.f32 1.0, %v6338
      %v6371 = vsub.f32 1.0, %v6339
      %v6372 = vrcp.pop %v6356
      %v6373 = vmul.f32 %v6340, %v6372
      %v6374 = vrcp.pop %v6357
      %v6375 = vmul.f32 %v6341, %v6374
      %v6376 = vrcp.pop %v6358
      %v6377 = vmul.f32 %v6342, %v6376
      %v6378 = vrcp.pop %v6359
      %v6379 = vmul.f32 %v6343, %v6378
      %v6380 = vrcp.pop %v6360
      %v6381 = vmul.f32 %v6344, %v6380
      %v6382 = vrcp.pop %v6361
      %v6383 = vmul.f32 %v6345, %v6382
      %v6384 = vrcp.pop %v6362
      %v6385 = vmul.f32 %v6346, %v6384
      %v6386 = vrcp.pop %v6363
      %v6387 = vmul.f32 %v6347, %v6386
      %v6388 = vrcp.pop %v6364
      %v6389 = vmul.f32 %v6348, %v6388
      %v6390 = vrcp.pop %v6365
      %v6391 = vmul.f32 %v6349, %v6390
      %v6392 = vrcp.pop %v6366
      %v6393 = vmul.f32 %v6350, %v6392
      %v6394 = vrcp.pop %v6367
      %v6395 = vmul.f32 %v6351, %v6394
      %v6396 = vrcp.pop %v6368
      %v6397 = vmul.f32 %v6352, %v6396
      %v6398 = vrcp.pop %v6369
      %v6399 = vmul.f32 %v6353, %v6398
      %v6400 = vrcp.pop %v6370
      %v6401 = vmul.f32 %v6354, %v6400
      %v6402 = vrcp.pop %v6371
      %v6403 = vmul.f32 %v6355, %v6402
      %v6404 = vlog2.pop %v6373
      %v6405 = vmul.f32 %v6404, 0.6931472
      %v6406 = vlog2.pop %v6375
      %v6407 = vmul.f32 %v6406, 0.6931472
      %v6408 = vlog2.pop %v6377
      %v6409 = vmul.f32 %v6408, 0.6931472
      %v6410 = vlog2.pop %v6379
      %v6411 = vmul.f32 %v6410, 0.6931472
      %v6412 = vlog2.pop %v6381
      %v6413 = vmul.f32 %v6412, 0.6931472
      %v6414 = vlog2.pop %v6383
      %v6415 = vmul.f32 %v6414, 0.6931472
      %v6416 = vlog2.pop %v6385
      %v6417 = vmul.f32 %v6416, 0.6931472
      %v6418 = vlog2.pop %v6387
      %v6419 = vmul.f32 %v6418, 0.6931472
      %v6420 = vlog2.pop %v6389
      %v6421 = vmul.f32 %v6420, 0.6931472
      %v6422 = vlog2.pop %v6391
      %v6423 = vmul.f32 %v6422, 0.6931472
      %v6424 = vlog2.pop %v6393
      %v6425 = vmul.f32 %v6424, 0.6931472
      %v6426 = vlog2.pop %v6395
      %v6427 = vmul.f32 %v6426, 0.6931472
      %v6428 = vlog2.pop %v6397
      %v6429 = vmul.f32 %v6428, 0.6931472
      %v6430 = vlog2.pop %v6399
      %v6431 = vmul.f32 %v6430, 0.6931472
      %v6432 = vlog2.pop %v6401
      %v6433 = vmul.f32 %v6432, 0.6931472
      %v6434 = vlog2.pop %v6403
      %v6435 = vmul.f32 %v6434, 0.6931472
      %v6436 = vrcp.pop %v6308
      %v6437 = vrcp.pop %v6309
      %v6438 = vrcp.pop %v6310
      %v6439 = vrcp.pop %v6311
      %v6440 = vrcp.pop %v6312
      %v6441 = vrcp.pop %v6313
      %v6442 = vrcp.pop %v6314
      %v6443 = vrcp.pop %v6315
      %v6444 = vrcp.pop %v6316
      %v6445 = vrcp.pop %v6317
      %v6446 = vrcp.pop %v6318
      %v6447 = vrcp.pop %v6319
      %v6448 = vrcp.pop %v6320
      %v6449 = vrcp.pop %v6321
      %v6450 = vrcp.pop %v6322
      %v6451 = vrcp.pop %v6323
      %v6452 = vmul.f32 %v6405, %v6436
      %v6453 = vmul.f32 %v6407, %v6437
      %v6454 = vmul.f32 %v6409, %v6438
      %v6455 = vmul.f32 %v6411, %v6439
      %v6456 = vmul.f32 %v6413, %v6440
      %v6457 = vmul.f32 %v6415, %v6441
      %v6458 = vmul.f32 %v6417, %v6442
      %v6459 = vmul.f32 %v6419, %v6443
      %v6460 = vmul.f32 %v6421, %v6444
      %v6461 = vmul.f32 %v6423, %v6445
      %v6462 = vmul.f32 %v6425, %v6446
      %v6463 = vmul.f32 %v6427, %v6447
      %v6464 = vmul.f32 %v6429, %v6448
      %v6465 = vmul.f32 %v6431, %v6449
      %v6466 = vmul.f32 %v6433, %v6450
      %v6467 = vmul.f32 %v6435, %v6451
      %v6468 = vmul.f32 %v6020, %v6452
      %v6469 = vmul.f32 %v6021, %v6453
      %v6470 = vmul.f32 %v6022, %v6454
      %v6471 = vmul.f32 %v6023, %v6455
      %v6472 = vmul.f32 %v6024, %v6452
      %v6473 = vmul.f32 %v6025, %v6453
      %v6474 = vmul.f32 %v6026, %v6454
      %v6475 = vmul.f32 %v6027, %v6455
      %v6476 = vmul.f32 %v6028, %v6456
      %v6477 = vmul.f32 %v6029, %v6457
      %v6478 = vmul.f32 %v6030, %v6458
      %v6479 = vmul.f32 %v6031, %v6459
      %v6480 = vmul.f32 %v6032, %v6456
      %v6481 = vmul.f32 %v6033, %v6457
      %v6482 = vmul.f32 %v6034, %v6458
      %v6483 = vmul.f32 %v6035, %v6459
      %v6484 = vmul.f32 %v6036, %v6460
      %v6485 = vmul.f32 %v6037, %v6461
      %v6486 = vmul.f32 %v6038, %v6462
      %v6487 = vmul.f32 %v6039, %v6463
      %v6488 = vmul.f32 %v6040, %v6460
      %v6489 = vmul.f32 %v6041, %v6461
      %v6490 = vmul.f32 %v6042, %v6462
      %v6491 = vmul.f32 %v6043, %v6463
      %v6492 = vmul.f32 %v6044, %v6464
      %v6493 = vmul.f32 %v6045, %v6465
      %v6494 = vmul.f32 %v6046, %v6466
      %v6495 = vmul.f32 %v6047, %v6467
      %v6496 = vmul.f32 %v6048, %v6464
      %v6497 = vmul.f32 %v6049, %v6465
      %v6498 = vmul.f32 %v6050, %v6466
      %v6499 = vmul.f32 %v6051, %v6467
      %v6500 = vrot.slane %v6468, 7
      %v6501 = vrot.slane %v6469, 7
      %v6502 = vrot.slane %v6470, 7
      %v6503 = vrot.slane %v6471, 7
      %v6504 = vrot.slane %v6472, 7
      %v6505 = vrot.slane %v6473, 7
      %v6506 = vrot.slane %v6474, 7
      %v6507 = vrot.slane %v6475, 7
      %v6508 = vrot.slane %v6476, 7
      %v6509 = vrot.slane %v6477, 7
      %v6510 = vrot.slane %v6478, 7
      %v6511 = vrot.slane %v6479, 7
      %v6512 = vrot.slane %v6480, 7
      %v6513 = vrot.slane %v6481, 7
      %v6514 = vrot.slane %v6482, 7
      %v6515 = vrot.slane %v6483, 7
      %v6516 = vrot.slane %v6484, 7
      %v6517 = vrot.slane %v6485, 7
      %v6518 = vrot.slane %v6486, 7
      %v6519 = vrot.slane %v6487, 7
      %v6520 = vrot.slane %v6488, 7
      %v6521 = vrot.slane %v6489, 7
      %v6522 = vrot.slane %v6490, 7
      %v6523 = vrot.slane %v6491, 7
      %v6524 = vrot.slane %v6492, 7
      %v6525 = vrot.slane %v6493, 7
      %v6526 = vrot.slane %v6494, 7
      %v6527 = vrot.slane %v6495, 7
      %v6528 = vrot.slane %v6496, 7
      %v6529 = vrot.slane %v6497, 7
      %v6530 = vrot.slane %v6498, 7
      %v6531 = vrot.slane %v6499, 7
      %v6532 = vsel %vm2212, %v6524, %v6528
      %v6533 = vsel %vm2212, %v6525, %v6529
      %v6534 = vsel %vm2212, %v6526, %v6530
      %v6535 = vsel %vm2212, %v6527, %v6531
      %v6536 = vsel %vm2212, %v6520, %v6524
      %v6537 = vsel %vm2212, %v6521, %v6525
      %v6538 = vsel %vm2212, %v6522, %v6526
      %v6539 = vsel %vm2212, %v6523, %v6527
      %v6540 = vsel %vm2212, %v6516, %v6520
      %v6541 = vsel %vm2212, %v6517, %v6521
      %v6542 = vsel %vm2212, %v6518, %v6522
      %v6543 = vsel %vm2212, %v6519, %v6523
      %v6544 = vsel %vm2212, %v6512, %v6516
      %v6545 = vsel %vm2212, %v6513, %v6517
      %v6546 = vsel %vm2212, %v6514, %v6518
      %v6547 = vsel %vm2212, %v6515, %v6519
      %v6548 = vsel %vm2212, %v6508, %v6512
      %v6549 = vsel %vm2212, %v6509, %v6513
      %v6550 = vsel %vm2212, %v6510, %v6514
      %v6551 = vsel %vm2212, %v6511, %v6515
      %v6552 = vsel %vm2212, %v6504, %v6508
      %v6553 = vsel %vm2212, %v6505, %v6509
      %v6554 = vsel %vm2212, %v6506, %v6510
      %v6555 = vsel %vm2212, %v6507, %v6511
      %v6556 = vsel %vm2212, %v6500, %v6504
      %v6557 = vsel %vm2212, %v6501, %v6505
      %v6558 = vsel %vm2212, %v6502, %v6506
      %v6559 = vsel %vm2212, %v6503, %v6507
      %v6560 = vsel %vm2212, %v6528, %v6500
      %v6561 = vsel %vm2212, %v6529, %v6501
      %v6562 = vsel %vm2212, %v6530, %v6502
      %v6563 = vsel %vm2212, %v6531, %v6503
      %v6564 = vsel %vm2253, 0.0, %v6560
      %v6565 = vsel %vm2253, 0.0, %v6561
      %v6566 = vsel %vm2253, 0.0, %v6562
      %v6567 = vsel %vm2253, 0.0, %v6563
      %v6568 = vsel %vm2254, 0.0, %v6556
      %v6569 = vsel %vm2254, 0.0, %v6557
      %v6570 = vsel %vm2254, 0.0, %v6558
      %v6571 = vsel %vm2254, 0.0, %v6559
      %v6572 = vsel %vm2255, 0.0, %v6552
      %v6573 = vsel %vm2255, 0.0, %v6553
      %v6574 = vsel %vm2255, 0.0, %v6554
      %v6575 = vsel %vm2255, 0.0, %v6555
      %v6576 = vsel %vm2256, 0.0, %v6548
      %v6577 = vsel %vm2256, 0.0, %v6549
      %v6578 = vsel %vm2256, 0.0, %v6550
      %v6579 = vsel %vm2256, 0.0, %v6551
      %v6580 = vsel %vm2257, 0.0, %v6544
      %v6581 = vsel %vm2257, 0.0, %v6545
      %v6582 = vsel %vm2257, 0.0, %v6546
      %v6583 = vsel %vm2257, 0.0, %v6547
      %v6584 = vsel %vm2258, 0.0, %v6540
      %v6585 = vsel %vm2258, 0.0, %v6541
      %v6586 = vsel %vm2258, 0.0, %v6542
      %v6587 = vsel %vm2258, 0.0, %v6543
      %v6588 = vsel %vm2259, 0.0, %v6536
      %v6589 = vsel %vm2259, 0.0, %v6537
      %v6590 = vsel %vm2259, 0.0, %v6538
      %v6591 = vsel %vm2259, 0.0, %v6539
      %v6592 = vsel %vm2260, 0.0, %v6532
      %v6593 = vsel %vm2260, 0.0, %v6533
      %v6594 = vsel %vm2260, 0.0, %v6534
      %v6595 = vsel %vm2260, 0.0, %v6535
      %v6596 = vrot.slane %v6468, 1
      %v6597 = vrot.slane %v6469, 1
      %v6598 = vrot.slane %v6470, 1
      %v6599 = vrot.slane %v6471, 1
      %v6600 = vrot.slane %v6472, 1
      %v6601 = vrot.slane %v6473, 1
      %v6602 = vrot.slane %v6474, 1
      %v6603 = vrot.slane %v6475, 1
      %v6604 = vrot.slane %v6476, 1
      %v6605 = vrot.slane %v6477, 1
      %v6606 = vrot.slane %v6478, 1
      %v6607 = vrot.slane %v6479, 1
      %v6608 = vrot.slane %v6480, 1
      %v6609 = vrot.slane %v6481, 1
      %v6610 = vrot.slane %v6482, 1
      %v6611 = vrot.slane %v6483, 1
      %v6612 = vrot.slane %v6484, 1
      %v6613 = vrot.slane %v6485, 1
      %v6614 = vrot.slane %v6486, 1
      %v6615 = vrot.slane %v6487, 1
      %v6616 = vrot.slane %v6488, 1
      %v6617 = vrot.slane %v6489, 1
      %v6618 = vrot.slane %v6490, 1
      %v6619 = vrot.slane %v6491, 1
      %v6620 = vrot.slane %v6492, 1
      %v6621 = vrot.slane %v6493, 1
      %v6622 = vrot.slane %v6494, 1
      %v6623 = vrot.slane %v6495, 1
      %v6624 = vrot.slane %v6496, 1
      %v6625 = vrot.slane %v6497, 1
      %v6626 = vrot.slane %v6498, 1
      %v6627 = vrot.slane %v6499, 1
      %v6628 = vsel %vm2325, %v6620, %v6624
      %v6629 = vsel %vm2325, %v6621, %v6625
      %v6630 = vsel %vm2325, %v6622, %v6626
      %v6631 = vsel %vm2325, %v6623, %v6627
      %v6632 = vsel %vm2325, %v6616, %v6620
      %v6633 = vsel %vm2325, %v6617, %v6621
      %v6634 = vsel %vm2325, %v6618, %v6622
      %v6635 = vsel %vm2325, %v6619, %v6623
      %v6636 = vsel %vm2325, %v6612, %v6616
      %v6637 = vsel %vm2325, %v6613, %v6617
      %v6638 = vsel %vm2325, %v6614, %v6618
      %v6639 = vsel %vm2325, %v6615, %v6619
      %v6640 = vsel %vm2325, %v6608, %v6612
      %v6641 = vsel %vm2325, %v6609, %v6613
      %v6642 = vsel %vm2325, %v6610, %v6614
      %v6643 = vsel %vm2325, %v6611, %v6615
      %v6644 = vsel %vm2325, %v6604, %v6608
      %v6645 = vsel %vm2325, %v6605, %v6609
      %v6646 = vsel %vm2325, %v6606, %v6610
      %v6647 = vsel %vm2325, %v6607, %v6611
      %v6648 = vsel %vm2325, %v6600, %v6604
      %v6649 = vsel %vm2325, %v6601, %v6605
      %v6650 = vsel %vm2325, %v6602, %v6606
      %v6651 = vsel %vm2325, %v6603, %v6607
      %v6652 = vsel %vm2325, %v6596, %v6600
      %v6653 = vsel %vm2325, %v6597, %v6601
      %v6654 = vsel %vm2325, %v6598, %v6602
      %v6655 = vsel %vm2325, %v6599, %v6603
      %v6656 = vsel %vm2325, %v6624, %v6596
      %v6657 = vsel %vm2325, %v6625, %v6597
      %v6658 = vsel %vm2325, %v6626, %v6598
      %v6659 = vsel %vm2325, %v6627, %v6599
      %v6660 = vsel %vm2366, 0.0, %v6652
      %v6661 = vsel %vm2366, 0.0, %v6653
      %v6662 = vsel %vm2366, 0.0, %v6654
      %v6663 = vsel %vm2366, 0.0, %v6655
      %v6664 = vsel %vm2367, 0.0, %v6648
      %v6665 = vsel %vm2367, 0.0, %v6649
      %v6666 = vsel %vm2367, 0.0, %v6650
      %v6667 = vsel %vm2367, 0.0, %v6651
      %v6668 = vsel %vm2368, 0.0, %v6644
      %v6669 = vsel %vm2368, 0.0, %v6645
      %v6670 = vsel %vm2368, 0.0, %v6646
      %v6671 = vsel %vm2368, 0.0, %v6647
      %v6672 = vsel %vm2369, 0.0, %v6640
      %v6673 = vsel %vm2369, 0.0, %v6641
      %v6674 = vsel %vm2369, 0.0, %v6642
      %v6675 = vsel %vm2369, 0.0, %v6643
      %v6676 = vsel %vm2370, 0.0, %v6636
      %v6677 = vsel %vm2370, 0.0, %v6637
      %v6678 = vsel %vm2370, 0.0, %v6638
      %v6679 = vsel %vm2370, 0.0, %v6639
      %v6680 = vsel %vm2371, 0.0, %v6632
      %v6681 = vsel %vm2371, 0.0, %v6633
      %v6682 = vsel %vm2371, 0.0, %v6634
      %v6683 = vsel %vm2371, 0.0, %v6635
      %v6684 = vsel %vm2372, 0.0, %v6628
      %v6685 = vsel %vm2372, 0.0, %v6629
      %v6686 = vsel %vm2372, 0.0, %v6630
      %v6687 = vsel %vm2372, 0.0, %v6631
      %v6688 = vsel %vm2373, 0.0, %v6656
      %v6689 = vsel %vm2373, 0.0, %v6657
      %v6690 = vsel %vm2373, 0.0, %v6658
      %v6691 = vsel %vm2373, 0.0, %v6659
      %v6692 = vpack.c.bf16 %v6472, %v6468
      %v6693 = vpack.c.bf16 %v6473, %v6469
      %v6694 = vpack.c.bf16 %v6474, %v6470
      %v6695 = vpack.c.bf16 %v6475, %v6471
      %v6696 = vpack.c.bf16 %v6480, %v6476
      %v6697 = vpack.c.bf16 %v6481, %v6477
      %v6698 = vpack.c.bf16 %v6482, %v6478
      %v6699 = vpack.c.bf16 %v6483, %v6479
      %v6700 = vpack.c.bf16 %v6488, %v6484
      %v6701 = vpack.c.bf16 %v6489, %v6485
      %v6702 = vpack.c.bf16 %v6490, %v6486
      %v6703 = vpack.c.bf16 %v6491, %v6487
      %v6704 = vpack.c.bf16 %v6496, %v6492
      %v6705 = vpack.c.bf16 %v6497, %v6493
      %v6706 = vpack.c.bf16 %v6498, %v6494
      %v6707 = vpack.c.bf16 %v6499, %v6495
      %s6708 = scalar_lea.vmem %s5, 4096
      %v6709 = vld [vmem:[%s6708] sm:$0xff]
      %v6710 = vld [vmem:[%s6708 + $0x8] sm:$0xff]
      %v6711 = vld [vmem:[%s6708 + $0x10] sm:$0xff]
      %v6712 = vld [vmem:[%s6708 + $0x18] sm:$0xff]
      %v6713 = vld [vmem:[%s6708 + $0x20] sm:$0xff]
      %v6714 = vld [vmem:[%s6708 + $0x28] sm:$0xff]
      %v6715 = vld [vmem:[%s6708 + $0x30] sm:$0xff]
      %v6716 = vld [vmem:[%s6708 + $0x38] sm:$0xff]
      %v6717 = vld [vmem:[%s6708 + $0x40] sm:$0xff]
      %v6718 = vld [vmem:[%s6708 + $0x48] sm:$0xff]
      %v6719 = vld [vmem:[%s6708 + $0x50] sm:$0xff]
      %v6720 = vld [vmem:[%s6708 + $0x58] sm:$0xff]
      %v6721 = vld [vmem:[%s6708 + $0x60] sm:$0xff]
      %v6722 = vld [vmem:[%s6708 + $0x68] sm:$0xff]
      %v6723 = vld [vmem:[%s6708 + $0x70] sm:$0xff]
      %v6724 = vld [vmem:[%s6708 + $0x78] sm:$0xff]
      %v6725 = vld [vmem:[%s6708 + $0x80] sm:$0xff]
      %v6726 = vld [vmem:[%s6708 + $0x88] sm:$0xff]
      %v6727 = vld [vmem:[%s6708 + $0x90] sm:$0xff]
      %v6728 = vld [vmem:[%s6708 + $0x98] sm:$0xff]
      %v6729 = vld [vmem:[%s6708 + $0xa0] sm:$0xff]
      %v6730 = vld [vmem:[%s6708 + $0xa8] sm:$0xff]
      %v6731 = vld [vmem:[%s6708 + $0xb0] sm:$0xff]
      %v6732 = vld [vmem:[%s6708 + $0xb8] sm:$0xff]
      %v6733 = vld [vmem:[%s6708 + $0xc0] sm:$0xff]
      %v6734 = vld [vmem:[%s6708 + $0xc8] sm:$0xff]
      %v6735 = vld [vmem:[%s6708 + $0xd0] sm:$0xff]
      %v6736 = vld [vmem:[%s6708 + $0xd8] sm:$0xff]
      %v6737 = vld [vmem:[%s6708 + $0xe0] sm:$0xff]
      %v6738 = vld [vmem:[%s6708 + $0xe8] sm:$0xff]
      %v6739 = vld [vmem:[%s6708 + $0xf0] sm:$0xff]
      %v6740 = vld [vmem:[%s6708 + $0xf8] sm:$0xff]
      %v6741 = vld [vmem:[%s6708 + $0x100] sm:$0xff]
      %v6742 = vld [vmem:[%s6708 + $0x108] sm:$0xff]
      %v6743 = vld [vmem:[%s6708 + $0x110] sm:$0xff]
      %v6744 = vld [vmem:[%s6708 + $0x118] sm:$0xff]
      %v6745 = vld [vmem:[%s6708 + $0x120] sm:$0xff]
      %v6746 = vld [vmem:[%s6708 + $0x128] sm:$0xff]
      %v6747 = vld [vmem:[%s6708 + $0x130] sm:$0xff]
      %v6748 = vld [vmem:[%s6708 + $0x138] sm:$0xff]
      %v6749 = vld [vmem:[%s6708 + $0x140] sm:$0xff]
      %v6750 = vld [vmem:[%s6708 + $0x148] sm:$0xff]
      %v6751 = vld [vmem:[%s6708 + $0x150] sm:$0xff]
      %v6752 = vld [vmem:[%s6708 + $0x158] sm:$0xff]
      %v6753 = vld [vmem:[%s6708 + $0x160] sm:$0xff]
      %v6754 = vld [vmem:[%s6708 + $0x168] sm:$0xff]
      %v6755 = vld [vmem:[%s6708 + $0x170] sm:$0xff]
      %v6756 = vld [vmem:[%s6708 + $0x178] sm:$0xff]
      %v6757 = vld [vmem:[%s6708 + $0x180] sm:$0xff]
      %v6758 = vld [vmem:[%s6708 + $0x188] sm:$0xff]
      %v6759 = vld [vmem:[%s6708 + $0x190] sm:$0xff]
      %v6760 = vld [vmem:[%s6708 + $0x198] sm:$0xff]
      %v6761 = vld [vmem:[%s6708 + $0x1a0] sm:$0xff]
      %v6762 = vld [vmem:[%s6708 + $0x1a8] sm:$0xff]
      %v6763 = vld [vmem:[%s6708 + $0x1b0] sm:$0xff]
      %v6764 = vld [vmem:[%s6708 + $0x1b8] sm:$0xff]
      %v6765 = vld [vmem:[%s6708 + $0x1c0] sm:$0xff]
      %v6766 = vld [vmem:[%s6708 + $0x1c8] sm:$0xff]
      %v6767 = vld [vmem:[%s6708 + $0x1d0] sm:$0xff]
      %v6768 = vld [vmem:[%s6708 + $0x1d8] sm:$0xff]
      %v6769 = vld [vmem:[%s6708 + $0x1e0] sm:$0xff]
      %v6770 = vld [vmem:[%s6708 + $0x1e8] sm:$0xff]
      %v6771 = vld [vmem:[%s6708 + $0x1f0] sm:$0xff]
      %v6772 = vld [vmem:[%s6708 + $0x1f8] sm:$0xff]
      %v6773 = vld [vmem:[%s6708 + $0x200] sm:$0xff]
      %v6774 = vld [vmem:[%s6708 + $0x208] sm:$0xff]
      %v6775 = vld [vmem:[%s6708 + $0x210] sm:$0xff]
      %v6776 = vld [vmem:[%s6708 + $0x218] sm:$0xff]
      %v6777 = vld [vmem:[%s6708 + $0x220] sm:$0xff]
      %v6778 = vld [vmem:[%s6708 + $0x228] sm:$0xff]
      %v6779 = vld [vmem:[%s6708 + $0x230] sm:$0xff]
      %v6780 = vld [vmem:[%s6708 + $0x238] sm:$0xff]
      %v6781 = vld [vmem:[%s6708 + $0x240] sm:$0xff]
      %v6782 = vld [vmem:[%s6708 + $0x248] sm:$0xff]
      %v6783 = vld [vmem:[%s6708 + $0x250] sm:$0xff]
      %v6784 = vld [vmem:[%s6708 + $0x258] sm:$0xff]
      %v6785 = vld [vmem:[%s6708 + $0x260] sm:$0xff]
      %v6786 = vld [vmem:[%s6708 + $0x268] sm:$0xff]
      %v6787 = vld [vmem:[%s6708 + $0x270] sm:$0xff]
      %v6788 = vld [vmem:[%s6708 + $0x278] sm:$0xff]
      %v6789 = vld [vmem:[%s6708 + $0x280] sm:$0xff]
      %v6790 = vld [vmem:[%s6708 + $0x288] sm:$0xff]
      %v6791 = vld [vmem:[%s6708 + $0x290] sm:$0xff]
      %v6792 = vld [vmem:[%s6708 + $0x298] sm:$0xff]
      %v6793 = vld [vmem:[%s6708 + $0x2a0] sm:$0xff]
      %v6794 = vld [vmem:[%s6708 + $0x2a8] sm:$0xff]
      %v6795 = vld [vmem:[%s6708 + $0x2b0] sm:$0xff]
      %v6796 = vld [vmem:[%s6708 + $0x2b8] sm:$0xff]
      %v6797 = vld [vmem:[%s6708 + $0x2c0] sm:$0xff]
      %v6798 = vld [vmem:[%s6708 + $0x2c8] sm:$0xff]
      %v6799 = vld [vmem:[%s6708 + $0x2d0] sm:$0xff]
      %v6800 = vld [vmem:[%s6708 + $0x2d8] sm:$0xff]
      %v6801 = vld [vmem:[%s6708 + $0x2e0] sm:$0xff]
      %v6802 = vld [vmem:[%s6708 + $0x2e8] sm:$0xff]
      %v6803 = vld [vmem:[%s6708 + $0x2f0] sm:$0xff]
      %v6804 = vld [vmem:[%s6708 + $0x2f8] sm:$0xff]
      %v6805 = vld [vmem:[%s6708 + $0x300] sm:$0xff]
      %v6806 = vld [vmem:[%s6708 + $0x308] sm:$0xff]
      %v6807 = vld [vmem:[%s6708 + $0x310] sm:$0xff]
      %v6808 = vld [vmem:[%s6708 + $0x318] sm:$0xff]
      %v6809 = vld [vmem:[%s6708 + $0x320] sm:$0xff]
      %v6810 = vld [vmem:[%s6708 + $0x328] sm:$0xff]
      %v6811 = vld [vmem:[%s6708 + $0x330] sm:$0xff]
      %v6812 = vld [vmem:[%s6708 + $0x338] sm:$0xff]
      %v6813 = vld [vmem:[%s6708 + $0x340] sm:$0xff]
      %v6814 = vld [vmem:[%s6708 + $0x348] sm:$0xff]
      %v6815 = vld [vmem:[%s6708 + $0x350] sm:$0xff]
      %v6816 = vld [vmem:[%s6708 + $0x358] sm:$0xff]
      %v6817 = vld [vmem:[%s6708 + $0x360] sm:$0xff]
      %v6818 = vld [vmem:[%s6708 + $0x368] sm:$0xff]
      %v6819 = vld [vmem:[%s6708 + $0x370] sm:$0xff]
      %v6820 = vld [vmem:[%s6708 + $0x378] sm:$0xff]
      %v6821 = vld [vmem:[%s6708 + $0x380] sm:$0xff]
      %v6822 = vld [vmem:[%s6708 + $0x388] sm:$0xff]
      %v6823 = vld [vmem:[%s6708 + $0x390] sm:$0xff]
      %v6824 = vld [vmem:[%s6708 + $0x398] sm:$0xff]
      %v6825 = vld [vmem:[%s6708 + $0x3a0] sm:$0xff]
      %v6826 = vld [vmem:[%s6708 + $0x3a8] sm:$0xff]
      %v6827 = vld [vmem:[%s6708 + $0x3b0] sm:$0xff]
      %v6828 = vld [vmem:[%s6708 + $0x3b8] sm:$0xff]
      %v6829 = vld [vmem:[%s6708 + $0x3c0] sm:$0xff]
      %v6830 = vld [vmem:[%s6708 + $0x3c8] sm:$0xff]
      %v6831 = vld [vmem:[%s6708 + $0x3d0] sm:$0xff]
      %v6832 = vld [vmem:[%s6708 + $0x3d8] sm:$0xff]
      %v6833 = vld [vmem:[%s6708 + $0x3e0] sm:$0xff]
      %v6834 = vld [vmem:[%s6708 + $0x3e8] sm:$0xff]
      %v6835 = vld [vmem:[%s6708 + $0x3f0] sm:$0xff]
      %v6836 = vld [vmem:[%s6708 + $0x3f8] sm:$0xff]
      %v6837 = vpack.c.bf16 %v6568, %v6564
      %v6838 = vpack.c.bf16 %v6569, %v6565
      %v6839 = vpack.c.bf16 %v6570, %v6566
      %v6840 = vpack.c.bf16 %v6571, %v6567
      %v6841 = vpack.c.bf16 %v6576, %v6572
      %v6842 = vpack.c.bf16 %v6577, %v6573
      %v6843 = vpack.c.bf16 %v6578, %v6574
      %v6844 = vpack.c.bf16 %v6579, %v6575
      %v6845 = vpack.c.bf16 %v6584, %v6580
      %v6846 = vpack.c.bf16 %v6585, %v6581
      %v6847 = vpack.c.bf16 %v6586, %v6582
      %v6848 = vpack.c.bf16 %v6587, %v6583
      %v6849 = vpack.c.bf16 %v6592, %v6588
      %v6850 = vpack.c.bf16 %v6593, %v6589
      %v6851 = vpack.c.bf16 %v6594, %v6590
      %v6852 = vpack.c.bf16 %v6595, %v6591
      %s6853 = scalar_lea.vmem %s5, 3072
      %v6854 = vld [vmem:[%s6853] sm:$0xff]
      %v6855 = vld [vmem:[%s6853 + $0x8] sm:$0xff]
      %v6856 = vld [vmem:[%s6853 + $0x10] sm:$0xff]
      %v6857 = vld [vmem:[%s6853 + $0x18] sm:$0xff]
      %v6858 = vld [vmem:[%s6853 + $0x20] sm:$0xff]
      %v6859 = vld [vmem:[%s6853 + $0x28] sm:$0xff]
      %v6860 = vld [vmem:[%s6853 + $0x30] sm:$0xff]
      %v6861 = vld [vmem:[%s6853 + $0x38] sm:$0xff]
      %v6862 = vld [vmem:[%s6853 + $0x40] sm:$0xff]
      %v6863 = vld [vmem:[%s6853 + $0x48] sm:$0xff]
      %v6864 = vld [vmem:[%s6853 + $0x50] sm:$0xff]
      %v6865 = vld [vmem:[%s6853 + $0x58] sm:$0xff]
      %v6866 = vld [vmem:[%s6853 + $0x60] sm:$0xff]
      %v6867 = vld [vmem:[%s6853 + $0x68] sm:$0xff]
      %v6868 = vld [vmem:[%s6853 + $0x70] sm:$0xff]
      %v6869 = vld [vmem:[%s6853 + $0x78] sm:$0xff]
      %v6870 = vld [vmem:[%s6853 + $0x80] sm:$0xff]
      %v6871 = vld [vmem:[%s6853 + $0x88] sm:$0xff]
      %v6872 = vld [vmem:[%s6853 + $0x90] sm:$0xff]
      %v6873 = vld [vmem:[%s6853 + $0x98] sm:$0xff]
      %v6874 = vld [vmem:[%s6853 + $0xa0] sm:$0xff]
      %v6875 = vld [vmem:[%s6853 + $0xa8] sm:$0xff]
      %v6876 = vld [vmem:[%s6853 + $0xb0] sm:$0xff]
      %v6877 = vld [vmem:[%s6853 + $0xb8] sm:$0xff]
      %v6878 = vld [vmem:[%s6853 + $0xc0] sm:$0xff]
      %v6879 = vld [vmem:[%s6853 + $0xc8] sm:$0xff]
      %v6880 = vld [vmem:[%s6853 + $0xd0] sm:$0xff]
      %v6881 = vld [vmem:[%s6853 + $0xd8] sm:$0xff]
      %v6882 = vld [vmem:[%s6853 + $0xe0] sm:$0xff]
      %v6883 = vld [vmem:[%s6853 + $0xe8] sm:$0xff]
      %v6884 = vld [vmem:[%s6853 + $0xf0] sm:$0xff]
      %v6885 = vld [vmem:[%s6853 + $0xf8] sm:$0xff]
      %v6886 = vld [vmem:[%s6853 + $0x100] sm:$0xff]
      %v6887 = vld [vmem:[%s6853 + $0x108] sm:$0xff]
      %v6888 = vld [vmem:[%s6853 + $0x110] sm:$0xff]
      %v6889 = vld [vmem:[%s6853 + $0x118] sm:$0xff]
      %v6890 = vld [vmem:[%s6853 + $0x120] sm:$0xff]
      %v6891 = vld [vmem:[%s6853 + $0x128] sm:$0xff]
      %v6892 = vld [vmem:[%s6853 + $0x130] sm:$0xff]
      %v6893 = vld [vmem:[%s6853 + $0x138] sm:$0xff]
      %v6894 = vld [vmem:[%s6853 + $0x140] sm:$0xff]
      %v6895 = vld [vmem:[%s6853 + $0x148] sm:$0xff]
      %v6896 = vld [vmem:[%s6853 + $0x150] sm:$0xff]
      %v6897 = vld [vmem:[%s6853 + $0x158] sm:$0xff]
      %v6898 = vld [vmem:[%s6853 + $0x160] sm:$0xff]
      %v6899 = vld [vmem:[%s6853 + $0x168] sm:$0xff]
      %v6900 = vld [vmem:[%s6853 + $0x170] sm:$0xff]
      %v6901 = vld [vmem:[%s6853 + $0x178] sm:$0xff]
      %v6902 = vld [vmem:[%s6853 + $0x180] sm:$0xff]
      %v6903 = vld [vmem:[%s6853 + $0x188] sm:$0xff]
      %v6904 = vld [vmem:[%s6853 + $0x190] sm:$0xff]
      %v6905 = vld [vmem:[%s6853 + $0x198] sm:$0xff]
      %v6906 = vld [vmem:[%s6853 + $0x1a0] sm:$0xff]
      %v6907 = vld [vmem:[%s6853 + $0x1a8] sm:$0xff]
      %v6908 = vld [vmem:[%s6853 + $0x1b0] sm:$0xff]
      %v6909 = vld [vmem:[%s6853 + $0x1b8] sm:$0xff]
      %v6910 = vld [vmem:[%s6853 + $0x1c0] sm:$0xff]
      %v6911 = vld [vmem:[%s6853 + $0x1c8] sm:$0xff]
      %v6912 = vld [vmem:[%s6853 + $0x1d0] sm:$0xff]
      %v6913 = vld [vmem:[%s6853 + $0x1d8] sm:$0xff]
      %v6914 = vld [vmem:[%s6853 + $0x1e0] sm:$0xff]
      %v6915 = vld [vmem:[%s6853 + $0x1e8] sm:$0xff]
      %v6916 = vld [vmem:[%s6853 + $0x1f0] sm:$0xff]
      %v6917 = vld [vmem:[%s6853 + $0x1f8] sm:$0xff]
      %v6918 = vld [vmem:[%s6853 + $0x200] sm:$0xff]
      %v6919 = vld [vmem:[%s6853 + $0x208] sm:$0xff]
      %v6920 = vld [vmem:[%s6853 + $0x210] sm:$0xff]
      %v6921 = vld [vmem:[%s6853 + $0x218] sm:$0xff]
      %v6922 = vld [vmem:[%s6853 + $0x220] sm:$0xff]
      %v6923 = vld [vmem:[%s6853 + $0x228] sm:$0xff]
      %v6924 = vld [vmem:[%s6853 + $0x230] sm:$0xff]
      %v6925 = vld [vmem:[%s6853 + $0x238] sm:$0xff]
      %v6926 = vld [vmem:[%s6853 + $0x240] sm:$0xff]
      %v6927 = vld [vmem:[%s6853 + $0x248] sm:$0xff]
      %v6928 = vld [vmem:[%s6853 + $0x250] sm:$0xff]
      %v6929 = vld [vmem:[%s6853 + $0x258] sm:$0xff]
      %v6930 = vld [vmem:[%s6853 + $0x260] sm:$0xff]
      %v6931 = vld [vmem:[%s6853 + $0x268] sm:$0xff]
      %v6932 = vld [vmem:[%s6853 + $0x270] sm:$0xff]
      %v6933 = vld [vmem:[%s6853 + $0x278] sm:$0xff]
      %v6934 = vld [vmem:[%s6853 + $0x280] sm:$0xff]
      %v6935 = vld [vmem:[%s6853 + $0x288] sm:$0xff]
      %v6936 = vld [vmem:[%s6853 + $0x290] sm:$0xff]
      %v6937 = vld [vmem:[%s6853 + $0x298] sm:$0xff]
      %v6938 = vld [vmem:[%s6853 + $0x2a0] sm:$0xff]
      %v6939 = vld [vmem:[%s6853 + $0x2a8] sm:$0xff]
      %v6940 = vld [vmem:[%s6853 + $0x2b0] sm:$0xff]
      %v6941 = vld [vmem:[%s6853 + $0x2b8] sm:$0xff]
      %v6942 = vld [vmem:[%s6853 + $0x2c0] sm:$0xff]
      %v6943 = vld [vmem:[%s6853 + $0x2c8] sm:$0xff]
      %v6944 = vld [vmem:[%s6853 + $0x2d0] sm:$0xff]
      %v6945 = vld [vmem:[%s6853 + $0x2d8] sm:$0xff]
      %v6946 = vld [vmem:[%s6853 + $0x2e0] sm:$0xff]
      %v6947 = vld [vmem:[%s6853 + $0x2e8] sm:$0xff]
      %v6948 = vld [vmem:[%s6853 + $0x2f0] sm:$0xff]
      %v6949 = vld [vmem:[%s6853 + $0x2f8] sm:$0xff]
      %v6950 = vld [vmem:[%s6853 + $0x300] sm:$0xff]
      %v6951 = vld [vmem:[%s6853 + $0x308] sm:$0xff]
      %v6952 = vld [vmem:[%s6853 + $0x310] sm:$0xff]
      %v6953 = vld [vmem:[%s6853 + $0x318] sm:$0xff]
      %v6954 = vld [vmem:[%s6853 + $0x320] sm:$0xff]
      %v6955 = vld [vmem:[%s6853 + $0x328] sm:$0xff]
      %v6956 = vld [vmem:[%s6853 + $0x330] sm:$0xff]
      %v6957 = vld [vmem:[%s6853 + $0x338] sm:$0xff]
      %v6958 = vld [vmem:[%s6853 + $0x340] sm:$0xff]
      %v6959 = vld [vmem:[%s6853 + $0x348] sm:$0xff]
      %v6960 = vld [vmem:[%s6853 + $0x350] sm:$0xff]
      %v6961 = vld [vmem:[%s6853 + $0x358] sm:$0xff]
      %v6962 = vld [vmem:[%s6853 + $0x360] sm:$0xff]
      %v6963 = vld [vmem:[%s6853 + $0x368] sm:$0xff]
      %v6964 = vld [vmem:[%s6853 + $0x370] sm:$0xff]
      %v6965 = vld [vmem:[%s6853 + $0x378] sm:$0xff]
      %v6966 = vld [vmem:[%s6853 + $0x380] sm:$0xff]
      %v6967 = vld [vmem:[%s6853 + $0x388] sm:$0xff]
      %v6968 = vld [vmem:[%s6853 + $0x390] sm:$0xff]
      %v6969 = vld [vmem:[%s6853 + $0x398] sm:$0xff]
      %v6970 = vld [vmem:[%s6853 + $0x3a0] sm:$0xff]
      %v6971 = vld [vmem:[%s6853 + $0x3a8] sm:$0xff]
      %v6972 = vld [vmem:[%s6853 + $0x3b0] sm:$0xff]
      %v6973 = vld [vmem:[%s6853 + $0x3b8] sm:$0xff]
      %v6974 = vld [vmem:[%s6853 + $0x3c0] sm:$0xff]
      %v6975 = vld [vmem:[%s6853 + $0x3c8] sm:$0xff]
      %v6976 = vld [vmem:[%s6853 + $0x3d0] sm:$0xff]
      %v6977 = vld [vmem:[%s6853 + $0x3d8] sm:$0xff]
      %v6978 = vld [vmem:[%s6853 + $0x3e0] sm:$0xff]
      %v6979 = vld [vmem:[%s6853 + $0x3e8] sm:$0xff]
      %v6980 = vld [vmem:[%s6853 + $0x3f0] sm:$0xff]
      %v6981 = vld [vmem:[%s6853 + $0x3f8] sm:$0xff]
      %v7110 = vunpack.c.l.b16 %v6854
      %v7111 = vunpack.c.h.b16 %v6854
      %v7112 = vunpack.c.l.b16 %v6855
      %v7113 = vunpack.c.h.b16 %v6855
      %v7114 = vunpack.c.l.b16 %v6856
      %v7115 = vunpack.c.h.b16 %v6856
      %v7116 = vunpack.c.l.b16 %v6857
      %v7117 = vunpack.c.h.b16 %v6857
      %v7118 = vunpack.c.l.b16 %v6858
      %v7119 = vunpack.c.h.b16 %v6858
      %v7120 = vunpack.c.l.b16 %v6859
      %v7121 = vunpack.c.h.b16 %v6859
      %v7122 = vunpack.c.l.b16 %v6860
      %v7123 = vunpack.c.h.b16 %v6860
      %v7124 = vunpack.c.l.b16 %v6861
      %v7125 = vunpack.c.h.b16 %v6861
      %v7126 = vunpack.c.l.b16 %v6862
      %v7127 = vunpack.c.h.b16 %v6862
      %v7128 = vunpack.c.l.b16 %v6863
      %v7129 = vunpack.c.h.b16 %v6863
      %v7130 = vunpack.c.l.b16 %v6864
      %v7131 = vunpack.c.h.b16 %v6864
      %v7132 = vunpack.c.l.b16 %v6865
      %v7133 = vunpack.c.h.b16 %v6865
      %v7134 = vunpack.c.l.b16 %v6866
      %v7135 = vunpack.c.h.b16 %v6866
      %v7136 = vunpack.c.l.b16 %v6867
      %v7137 = vunpack.c.h.b16 %v6867
      %v7138 = vunpack.c.l.b16 %v6868
      %v7139 = vunpack.c.h.b16 %v6868
      %v7140 = vunpack.c.l.b16 %v6869
      %v7141 = vunpack.c.h.b16 %v6869
      %v7142 = vunpack.c.l.b16 %v6870
      %v7143 = vunpack.c.h.b16 %v6870
      %v7144 = vunpack.c.l.b16 %v6871
      %v7145 = vunpack.c.h.b16 %v6871
      %v7146 = vunpack.c.l.b16 %v6872
      %v7147 = vunpack.c.h.b16 %v6872
      %v7148 = vunpack.c.l.b16 %v6873
      %v7149 = vunpack.c.h.b16 %v6873
      %v7150 = vunpack.c.l.b16 %v6874
      %v7151 = vunpack.c.h.b16 %v6874
      %v7152 = vunpack.c.l.b16 %v6875
      %v7153 = vunpack.c.h.b16 %v6875
      %v7154 = vunpack.c.l.b16 %v6876
      %v7155 = vunpack.c.h.b16 %v6876
      %v7156 = vunpack.c.l.b16 %v6877
      %v7157 = vunpack.c.h.b16 %v6877
      %v7158 = vunpack.c.l.b16 %v6878
      %v7159 = vunpack.c.h.b16 %v6878
      %v7160 = vunpack.c.l.b16 %v6879
      %v7161 = vunpack.c.h.b16 %v6879
      %v7162 = vunpack.c.l.b16 %v6880
      %v7163 = vunpack.c.h.b16 %v6880
      %v7164 = vunpack.c.l.b16 %v6881
      %v7165 = vunpack.c.h.b16 %v6881
      %v7166 = vunpack.c.l.b16 %v6882
      %v7167 = vunpack.c.h.b16 %v6882
      %v7168 = vunpack.c.l.b16 %v6883
      %v7169 = vunpack.c.h.b16 %v6883
      %v7170 = vunpack.c.l.b16 %v6884
      %v7171 = vunpack.c.h.b16 %v6884
      %v7172 = vunpack.c.l.b16 %v6885
      %v7173 = vunpack.c.h.b16 %v6885
      %v7174 = vunpack.c.l.b16 %v6886
      %v7175 = vunpack.c.h.b16 %v6886
      %v7176 = vunpack.c.l.b16 %v6887
      %v7177 = vunpack.c.h.b16 %v6887
      %v7178 = vunpack.c.l.b16 %v6888
      %v7179 = vunpack.c.h.b16 %v6888
      %v7180 = vunpack.c.l.b16 %v6889
      %v7181 = vunpack.c.h.b16 %v6889
      %v7182 = vunpack.c.l.b16 %v6890
      %v7183 = vunpack.c.h.b16 %v6890
      %v7184 = vunpack.c.l.b16 %v6891
      %v7185 = vunpack.c.h.b16 %v6891
      %v7186 = vunpack.c.l.b16 %v6892
      %v7187 = vunpack.c.h.b16 %v6892
      %v7188 = vunpack.c.l.b16 %v6893
      %v7189 = vunpack.c.h.b16 %v6893
      %v7190 = vunpack.c.l.b16 %v6894
      %v7191 = vunpack.c.h.b16 %v6894
      %v7192 = vunpack.c.l.b16 %v6895
      %v7193 = vunpack.c.h.b16 %v6895
      %v7194 = vunpack.c.l.b16 %v6896
      %v7195 = vunpack.c.h.b16 %v6896
      %v7196 = vunpack.c.l.b16 %v6897
      %v7197 = vunpack.c.h.b16 %v6897
      %v7198 = vunpack.c.l.b16 %v6898
      %v7199 = vunpack.c.h.b16 %v6898
      %v7200 = vunpack.c.l.b16 %v6899
      %v7201 = vunpack.c.h.b16 %v6899
      %v7202 = vunpack.c.l.b16 %v6900
      %v7203 = vunpack.c.h.b16 %v6900
      %v7204 = vunpack.c.l.b16 %v6901
      %v7205 = vunpack.c.h.b16 %v6901
      %v7206 = vunpack.c.l.b16 %v6902
      %v7207 = vunpack.c.h.b16 %v6902
      %v7208 = vunpack.c.l.b16 %v6903
      %v7209 = vunpack.c.h.b16 %v6903
      %v7210 = vunpack.c.l.b16 %v6904
      %v7211 = vunpack.c.h.b16 %v6904
      %v7212 = vunpack.c.l.b16 %v6905
      %v7213 = vunpack.c.h.b16 %v6905
      %v7214 = vunpack.c.l.b16 %v6906
      %v7215 = vunpack.c.h.b16 %v6906
      %v7216 = vunpack.c.l.b16 %v6907
      %v7217 = vunpack.c.h.b16 %v6907
      %v7218 = vunpack.c.l.b16 %v6908
      %v7219 = vunpack.c.h.b16 %v6908
      %v7220 = vunpack.c.l.b16 %v6909
      %v7221 = vunpack.c.h.b16 %v6909
      %v7222 = vunpack.c.l.b16 %v6910
      %v7223 = vunpack.c.h.b16 %v6910
      %v7224 = vunpack.c.l.b16 %v6911
      %v7225 = vunpack.c.h.b16 %v6911
      %v7226 = vunpack.c.l.b16 %v6912
      %v7227 = vunpack.c.h.b16 %v6912
      %v7228 = vunpack.c.l.b16 %v6913
      %v7229 = vunpack.c.h.b16 %v6913
      %v7230 = vunpack.c.l.b16 %v6914
      %v7231 = vunpack.c.h.b16 %v6914
      %v7232 = vunpack.c.l.b16 %v6915
      %v7233 = vunpack.c.h.b16 %v6915
      %v7234 = vunpack.c.l.b16 %v6916
      %v7235 = vunpack.c.h.b16 %v6916
      %v7236 = vunpack.c.l.b16 %v6917
      %v7237 = vunpack.c.h.b16 %v6917
      %v7238 = vunpack.c.l.b16 %v6918
      %v7239 = vunpack.c.h.b16 %v6918
      %v7240 = vunpack.c.l.b16 %v6919
      %v7241 = vunpack.c.h.b16 %v6919
      %v7242 = vunpack.c.l.b16 %v6920
      %v7243 = vunpack.c.h.b16 %v6920
      %v7244 = vunpack.c.l.b16 %v6921
      %v7245 = vunpack.c.h.b16 %v6921
      %v7246 = vunpack.c.l.b16 %v6922
      %v7247 = vunpack.c.h.b16 %v6922
      %v7248 = vunpack.c.l.b16 %v6923
      %v7249 = vunpack.c.h.b16 %v6923
      %v7250 = vunpack.c.l.b16 %v6924
      %v7251 = vunpack.c.h.b16 %v6924
      %v7252 = vunpack.c.l.b16 %v6925
      %v7253 = vunpack.c.h.b16 %v6925
      %v7254 = vunpack.c.l.b16 %v6926
      %v7255 = vunpack.c.h.b16 %v6926
      %v7256 = vunpack.c.l.b16 %v6927
      %v7257 = vunpack.c.h.b16 %v6927
      %v7258 = vunpack.c.l.b16 %v6928
      %v7259 = vunpack.c.h.b16 %v6928
      %v7260 = vunpack.c.l.b16 %v6929
      %v7261 = vunpack.c.h.b16 %v6929
      %v7262 = vunpack.c.l.b16 %v6930
      %v7263 = vunpack.c.h.b16 %v6930
      %v7264 = vunpack.c.l.b16 %v6931
      %v7265 = vunpack.c.h.b16 %v6931
      %v7266 = vunpack.c.l.b16 %v6932
      %v7267 = vunpack.c.h.b16 %v6932
      %v7268 = vunpack.c.l.b16 %v6933
      %v7269 = vunpack.c.h.b16 %v6933
      %v7270 = vunpack.c.l.b16 %v6934
      %v7271 = vunpack.c.h.b16 %v6934
      %v7272 = vunpack.c.l.b16 %v6935
      %v7273 = vunpack.c.h.b16 %v6935
      %v7274 = vunpack.c.l.b16 %v6936
      %v7275 = vunpack.c.h.b16 %v6936
      %v7276 = vunpack.c.l.b16 %v6937
      %v7277 = vunpack.c.h.b16 %v6937
      %v7278 = vunpack.c.l.b16 %v6938
      %v7279 = vunpack.c.h.b16 %v6938
      %v7280 = vunpack.c.l.b16 %v6939
      %v7281 = vunpack.c.h.b16 %v6939
      %v7282 = vunpack.c.l.b16 %v6940
      %v7283 = vunpack.c.h.b16 %v6940
      %v7284 = vunpack.c.l.b16 %v6941
      %v7285 = vunpack.c.h.b16 %v6941
      %v7286 = vunpack.c.l.b16 %v6942
      %v7287 = vunpack.c.h.b16 %v6942
      %v7288 = vunpack.c.l.b16 %v6943
      %v7289 = vunpack.c.h.b16 %v6943
      %v7290 = vunpack.c.l.b16 %v6944
      %v7291 = vunpack.c.h.b16 %v6944
      %v7292 = vunpack.c.l.b16 %v6945
      %v7293 = vunpack.c.h.b16 %v6945
      %v7294 = vunpack.c.l.b16 %v6946
      %v7295 = vunpack.c.h.b16 %v6946
      %v7296 = vunpack.c.l.b16 %v6947
      %v7297 = vunpack.c.h.b16 %v6947
      %v7298 = vunpack.c.l.b16 %v6948
      %v7299 = vunpack.c.h.b16 %v6948
      %v7300 = vunpack.c.l.b16 %v6949
      %v7301 = vunpack.c.h.b16 %v6949
      %v7302 = vunpack.c.l.b16 %v6950
      %v7303 = vunpack.c.h.b16 %v6950
      %v7304 = vunpack.c.l.b16 %v6951
      %v7305 = vunpack.c.h.b16 %v6951
      %v7306 = vunpack.c.l.b16 %v6952
      %v7307 = vunpack.c.h.b16 %v6952
      %v7308 = vunpack.c.l.b16 %v6953
      %v7309 = vunpack.c.h.b16 %v6953
      %v7310 = vunpack.c.l.b16 %v6954
      %v7311 = vunpack.c.h.b16 %v6954
      %v7312 = vunpack.c.l.b16 %v6955
      %v7313 = vunpack.c.h.b16 %v6955
      %v7314 = vunpack.c.l.b16 %v6956
      %v7315 = vunpack.c.h.b16 %v6956
      %v7316 = vunpack.c.l.b16 %v6957
      %v7317 = vunpack.c.h.b16 %v6957
      %v7318 = vunpack.c.l.b16 %v6958
      %v7319 = vunpack.c.h.b16 %v6958
      %v7320 = vunpack.c.l.b16 %v6959
      %v7321 = vunpack.c.h.b16 %v6959
      %v7322 = vunpack.c.l.b16 %v6960
      %v7323 = vunpack.c.h.b16 %v6960
      %v7324 = vunpack.c.l.b16 %v6961
      %v7325 = vunpack.c.h.b16 %v6961
      %v7326 = vunpack.c.l.b16 %v6962
      %v7327 = vunpack.c.h.b16 %v6962
      %v7328 = vunpack.c.l.b16 %v6963
      %v7329 = vunpack.c.h.b16 %v6963
      %v7330 = vunpack.c.l.b16 %v6964
      %v7331 = vunpack.c.h.b16 %v6964
      %v7332 = vunpack.c.l.b16 %v6965
      %v7333 = vunpack.c.h.b16 %v6965
      %v7334 = vunpack.c.l.b16 %v6966
      %v7335 = vunpack.c.h.b16 %v6966
      %v7336 = vunpack.c.l.b16 %v6967
      %v7337 = vunpack.c.h.b16 %v6967
      %v7338 = vunpack.c.l.b16 %v6968
      %v7339 = vunpack.c.h.b16 %v6968
      %v7340 = vunpack.c.l.b16 %v6969
      %v7341 = vunpack.c.h.b16 %v6969
      %v7342 = vunpack.c.l.b16 %v6970
      %v7343 = vunpack.c.h.b16 %v6970
      %v7344 = vunpack.c.l.b16 %v6971
      %v7345 = vunpack.c.h.b16 %v6971
      %v7346 = vunpack.c.l.b16 %v6972
      %v7347 = vunpack.c.h.b16 %v6972
      %v7348 = vunpack.c.l.b16 %v6973
      %v7349 = vunpack.c.h.b16 %v6973
      %v7350 = vunpack.c.l.b16 %v6974
      %v7351 = vunpack.c.h.b16 %v6974
      %v7352 = vunpack.c.l.b16 %v6975
      %v7353 = vunpack.c.h.b16 %v6975
      %v7354 = vunpack.c.l.b16 %v6976
      %v7355 = vunpack.c.h.b16 %v6976
      %v7356 = vunpack.c.l.b16 %v6977
      %v7357 = vunpack.c.h.b16 %v6977
      %v7358 = vunpack.c.l.b16 %v6978
      %v7359 = vunpack.c.h.b16 %v6978
      %v7360 = vunpack.c.l.b16 %v6979
      %v7361 = vunpack.c.h.b16 %v6979
      %v7362 = vunpack.c.l.b16 %v6980
      %v7363 = vunpack.c.h.b16 %v6980
      %v7364 = vunpack.c.l.b16 %v6981
      %v7365 = vunpack.c.h.b16 %v6981
      %v7366 = vpack.c.b16 %v7114, %v7110
      %v7367 = vpack.c.b16 %v7115, %v7111
      %v7368 = vpack.c.b16 %v7116, %v7112
      %v7369 = vpack.c.b16 %v7117, %v7113
      %v7370 = vpack.c.b16 %v7122, %v7118
      %v7371 = vpack.c.b16 %v7123, %v7119
      %v7372 = vpack.c.b16 %v7124, %v7120
      %v7373 = vpack.c.b16 %v7125, %v7121
      %v7374 = vpack.c.b16 %v7130, %v7126
      %v7375 = vpack.c.b16 %v7131, %v7127
      %v7376 = vpack.c.b16 %v7132, %v7128
      %v7377 = vpack.c.b16 %v7133, %v7129
      %v7378 = vpack.c.b16 %v7138, %v7134
      %v7379 = vpack.c.b16 %v7139, %v7135
      %v7380 = vpack.c.b16 %v7140, %v7136
      %v7381 = vpack.c.b16 %v7141, %v7137
      %v7382 = vpack.c.b16 %v7146, %v7142
      %v7383 = vpack.c.b16 %v7147, %v7143
      %v7384 = vpack.c.b16 %v7148, %v7144
      %v7385 = vpack.c.b16 %v7149, %v7145
      %v7386 = vpack.c.b16 %v7154, %v7150
      %v7387 = vpack.c.b16 %v7155, %v7151
      %v7388 = vpack.c.b16 %v7156, %v7152
      %v7389 = vpack.c.b16 %v7157, %v7153
      %v7390 = vpack.c.b16 %v7162, %v7158
      %v7391 = vpack.c.b16 %v7163, %v7159
      %v7392 = vpack.c.b16 %v7164, %v7160
      %v7393 = vpack.c.b16 %v7165, %v7161
      %v7394 = vpack.c.b16 %v7170, %v7166
      %v7395 = vpack.c.b16 %v7171, %v7167
      %v7396 = vpack.c.b16 %v7172, %v7168
      %v7397 = vpack.c.b16 %v7173, %v7169
      %v7398 = vpack.c.b16 %v7178, %v7174
      %v7399 = vpack.c.b16 %v7179, %v7175
      %v7400 = vpack.c.b16 %v7180, %v7176
      %v7401 = vpack.c.b16 %v7181, %v7177
      %v7402 = vpack.c.b16 %v7186, %v7182
      %v7403 = vpack.c.b16 %v7187, %v7183
      %v7404 = vpack.c.b16 %v7188, %v7184
      %v7405 = vpack.c.b16 %v7189, %v7185
      %v7406 = vpack.c.b16 %v7194, %v7190
      %v7407 = vpack.c.b16 %v7195, %v7191
      %v7408 = vpack.c.b16 %v7196, %v7192
      %v7409 = vpack.c.b16 %v7197, %v7193
      %v7410 = vpack.c.b16 %v7202, %v7198
      %v7411 = vpack.c.b16 %v7203, %v7199
      %v7412 = vpack.c.b16 %v7204, %v7200
      %v7413 = vpack.c.b16 %v7205, %v7201
      %v7414 = vpack.c.b16 %v7210, %v7206
      %v7415 = vpack.c.b16 %v7211, %v7207
      %v7416 = vpack.c.b16 %v7212, %v7208
      %v7417 = vpack.c.b16 %v7213, %v7209
      %v7418 = vpack.c.b16 %v7218, %v7214
      %v7419 = vpack.c.b16 %v7219, %v7215
      %v7420 = vpack.c.b16 %v7220, %v7216
      %v7421 = vpack.c.b16 %v7221, %v7217
      %v7422 = vpack.c.b16 %v7226, %v7222
      %v7423 = vpack.c.b16 %v7227, %v7223
      %v7424 = vpack.c.b16 %v7228, %v7224
      %v7425 = vpack.c.b16 %v7229, %v7225
      %v7426 = vpack.c.b16 %v7234, %v7230
      %v7427 = vpack.c.b16 %v7235, %v7231
      %v7428 = vpack.c.b16 %v7236, %v7232
      %v7429 = vpack.c.b16 %v7237, %v7233
      %v7430 = vpack.c.b16 %v7242, %v7238
      %v7431 = vpack.c.b16 %v7243, %v7239
      %v7432 = vpack.c.b16 %v7244, %v7240
      %v7433 = vpack.c.b16 %v7245, %v7241
      %v7434 = vpack.c.b16 %v7250, %v7246
      %v7435 = vpack.c.b16 %v7251, %v7247
      %v7436 = vpack.c.b16 %v7252, %v7248
      %v7437 = vpack.c.b16 %v7253, %v7249
      %v7438 = vpack.c.b16 %v7258, %v7254
      %v7439 = vpack.c.b16 %v7259, %v7255
      %v7440 = vpack.c.b16 %v7260, %v7256
      %v7441 = vpack.c.b16 %v7261, %v7257
      %v7442 = vpack.c.b16 %v7266, %v7262
      %v7443 = vpack.c.b16 %v7267, %v7263
      %v7444 = vpack.c.b16 %v7268, %v7264
      %v7445 = vpack.c.b16 %v7269, %v7265
      %v7446 = vpack.c.b16 %v7274, %v7270
      %v7447 = vpack.c.b16 %v7275, %v7271
      %v7448 = vpack.c.b16 %v7276, %v7272
      %v7449 = vpack.c.b16 %v7277, %v7273
      %v7450 = vpack.c.b16 %v7282, %v7278
      %v7451 = vpack.c.b16 %v7283, %v7279
      %v7452 = vpack.c.b16 %v7284, %v7280
      %v7453 = vpack.c.b16 %v7285, %v7281
      %v7454 = vpack.c.b16 %v7290, %v7286
      %v7455 = vpack.c.b16 %v7291, %v7287
      %v7456 = vpack.c.b16 %v7292, %v7288
      %v7457 = vpack.c.b16 %v7293, %v7289
      %v7458 = vpack.c.b16 %v7298, %v7294
      %v7459 = vpack.c.b16 %v7299, %v7295
      %v7460 = vpack.c.b16 %v7300, %v7296
      %v7461 = vpack.c.b16 %v7301, %v7297
      %v7462 = vpack.c.b16 %v7306, %v7302
      %v7463 = vpack.c.b16 %v7307, %v7303
      %v7464 = vpack.c.b16 %v7308, %v7304
      %v7465 = vpack.c.b16 %v7309, %v7305
      %v7466 = vpack.c.b16 %v7314, %v7310
      %v7467 = vpack.c.b16 %v7315, %v7311
      %v7468 = vpack.c.b16 %v7316, %v7312
      %v7469 = vpack.c.b16 %v7317, %v7313
      %v7470 = vpack.c.b16 %v7322, %v7318
      %v7471 = vpack.c.b16 %v7323, %v7319
      %v7472 = vpack.c.b16 %v7324, %v7320
      %v7473 = vpack.c.b16 %v7325, %v7321
      %v7474 = vpack.c.b16 %v7330, %v7326
      %v7475 = vpack.c.b16 %v7331, %v7327
      %v7476 = vpack.c.b16 %v7332, %v7328
      %v7477 = vpack.c.b16 %v7333, %v7329
      %v7478 = vpack.c.b16 %v7338, %v7334
      %v7479 = vpack.c.b16 %v7339, %v7335
      %v7480 = vpack.c.b16 %v7340, %v7336
      %v7481 = vpack.c.b16 %v7341, %v7337
      %v7482 = vpack.c.b16 %v7346, %v7342
      %v7483 = vpack.c.b16 %v7347, %v7343
      %v7484 = vpack.c.b16 %v7348, %v7344
      %v7485 = vpack.c.b16 %v7349, %v7345
      %v7486 = vpack.c.b16 %v7354, %v7350
      %v7487 = vpack.c.b16 %v7355, %v7351
      %v7488 = vpack.c.b16 %v7356, %v7352
      %v7489 = vpack.c.b16 %v7357, %v7353
      %v7490 = vpack.c.b16 %v7362, %v7358
      %v7491 = vpack.c.b16 %v7363, %v7359
      %v7492 = vpack.c.b16 %v7364, %v7360
      %v7493 = vpack.c.b16 %v7365, %v7361
      %7622 = vmatprep.subr.bf16.mxu0 %v7367
      %7623 = vmatpush1.bf16.msra.mxu0 %v7366
      %7624 = vmatprep.subr.bf16.mxu0 %v7371
      %7625 = vmatpush1.bf16.msra.mxu0 %v7370
      %7626 = vmatprep.subr.bf16.mxu0 %v7375
      %7627 = vmatpush1.bf16.msra.mxu0 %v7374
      %7628 = vmatprep.subr.bf16.mxu0 %v7379
      %7629 = vmatpush1.bf16.msra.mxu0 %v7378
      %7630 = vmatprep.subr.bf16.mxu0 %v7383
      %7631 = vmatpush1.bf16.msra.mxu0 %v7382
      %7632 = vmatprep.subr.bf16.mxu0 %v7387
      %7633 = vmatpush1.bf16.msra.mxu0 %v7386
      %7634 = vmatprep.subr.bf16.mxu0 %v7391
      %7635 = vmatpush1.bf16.msra.mxu0 %v7390
      %7636 = vmatprep.subr.bf16.mxu0 %v7395
      %7637 = vmatpush1.bf16.msra.mxu0 %v7394
      %7638 = vmatprep.subr.bf16.mxu0 %v7399
      %7639 = vmatpush1.bf16.msra.mxu0 %v7398
      %7640 = vmatprep.subr.bf16.mxu0 %v7403
      %7641 = vmatpush1.bf16.msra.mxu0 %v7402
      %7642 = vmatprep.subr.bf16.mxu0 %v7407
      %7643 = vmatpush1.bf16.msra.mxu0 %v7406
      %7644 = vmatprep.subr.bf16.mxu0 %v7411
      %7645 = vmatpush1.bf16.msra.mxu0 %v7410
      %7646 = vmatprep.subr.bf16.mxu0 %v7415
      %7647 = vmatpush1.bf16.msra.mxu0 %v7414
      %7648 = vmatprep.subr.bf16.mxu0 %v7419
      %7649 = vmatpush1.bf16.msra.mxu0 %v7418
      %7650 = vmatprep.subr.bf16.mxu0 %v7423
      %7651 = vmatpush1.bf16.msra.mxu0 %v7422
      %7652 = vmatprep.subr.bf16.mxu0 %v7427
      %7653 = vmatpush1.bf16.msra.mxu0 %v7426
      %7654 = vmatprep.mubr.bf16.mxu0 %v6838
      %7655 = vmatmul.mubr.bf16.gmra.mrb[0].mxu0 %v6837
      %v7656 = vpop.f32.mrb[0].mxu0
      %v7657 = vadd.f32 0.0, %v7656
      %v7658 = vpop.f32.mrb[0].mxu0
      %v7659 = vadd.f32 0.0, %v7658
      %v7660 = vpop.f32.mrb[0].mxu0
      %v7661 = vadd.f32 0.0, %v7660
      %v7662 = vpop.f32.mrb[0].mxu0
      %v7663 = vadd.f32 0.0, %v7662
      %7664 = vmatprep.mubr.bf16.mxu0 %v6842
      %7665 = vmatmul.mubr.bf16.gmra.mrb[0].mxu0 %v6841
      %v7666 = vpop.f32.mrb[0].mxu0
      %v7667 = vadd.f32 0.0, %v7666
      %v7668 = vpop.f32.mrb[0].mxu0
      %v7669 = vadd.f32 0.0, %v7668
      %v7670 = vpop.f32.mrb[0].mxu0
      %v7671 = vadd.f32 0.0, %v7670
      %v7672 = vpop.f32.mrb[0].mxu0
      %v7673 = vadd.f32 0.0, %v7672
      %7674 = vmatprep.mubr.bf16.mxu0 %v6846
      %7675 = vmatmul.mubr.bf16.gmra.mrb[0].mxu0 %v6845
      %v7676 = vpop.f32.mrb[0].mxu0
      %v7677 = vadd.f32 0.0, %v7676
      %v7678 = vpop.f32.mrb[0].mxu0
      %v7679 = vadd.f32 0.0, %v7678
      %v7680 = vpop.f32.mrb[0].mxu0
      %v7681 = vadd.f32 0.0, %v7680
      %v7682 = vpop.f32.mrb[0].mxu0
      %v7683 = vadd.f32 0.0, %v7682
      %7684 = vmatprep.mubr.bf16.mxu0 %v6850
      %7685 = vmatmul.mubr.bf16.gmra.mrb[0].mxu0 %v6849
      %v7686 = vpop.f32.mrb[0].mxu0
      %v7687 = vadd.f32 0.0, %v7686
      %v7688 = vpop.f32.mrb[0].mxu0
      %v7689 = vadd.f32 0.0, %v7688
      %v7690 = vpop.f32.mrb[0].mxu0
      %v7691 = vadd.f32 0.0, %v7690
      %v7692 = vpop.f32.mrb[0].mxu0
      %v7693 = vadd.f32 0.0, %v7692
      %7694 = vdwg.mxu0
      %7695 = vmatprep.subr.bf16.mxu0 %v7431
      %7696 = vmatpush1.bf16.msra.mxu0 %v7430
      %7697 = vmatprep.subr.bf16.mxu0 %v7435
      %7698 = vmatpush1.bf16.msra.mxu0 %v7434
      %7699 = vmatprep.subr.bf16.mxu0 %v7439
      %7700 = vmatpush1.bf16.msra.mxu0 %v7438
      %7701 = vmatprep.subr.bf16.mxu0 %v7443
      %7702 = vmatpush1.bf16.msra.mxu0 %v7442
      %7703 = vmatprep.subr.bf16.mxu0 %v7447
      %7704 = vmatpush1.bf16.msra.mxu0 %v7446
      %7705 = vmatprep.subr.bf16.mxu0 %v7451
      %7706 = vmatpush1.bf16.msra.mxu0 %v7450
      %7707 = vmatprep.subr.bf16.mxu0 %v7455
      %7708 = vmatpush1.bf16.msra.mxu0 %v7454
      %7709 = vmatprep.subr.bf16.mxu0 %v7459
      %7710 = vmatpush1.bf16.msra.mxu0 %v7458
      %7711 = vmatprep.subr.bf16.mxu0 %v7463
      %7712 = vmatpush1.bf16.msra.mxu0 %v7462
      %7713 = vmatprep.subr.bf16.mxu0 %v7467
      %7714 = vmatpush1.bf16.msra.mxu0 %v7466
      %7715 = vmatprep.subr.bf16.mxu0 %v7471
      %7716 = vmatpush1.bf16.msra.mxu0 %v7470
      %7717 = vmatprep.subr.bf16.mxu0 %v7475
      %7718 = vmatpush1.bf16.msra.mxu0 %v7474
      %7719 = vmatprep.subr.bf16.mxu0 %v7479
      %7720 = vmatpush1.bf16.msra.mxu0 %v7478
      %7721 = vmatprep.subr.bf16.mxu0 %v7483
      %7722 = vmatpush1.bf16.msra.mxu0 %v7482
      %7723 = vmatprep.subr.bf16.mxu0 %v7487
      %7724 = vmatpush1.bf16.msra.mxu0 %v7486
      %7725 = vmatprep.subr.bf16.mxu0 %v7491
      %7726 = vmatpush1.bf16.msra.mxu0 %v7490
      %7727 = vmatprep.mubr.bf16.mxu0 %v6840
      %7728 = vmatmul.mubr.bf16.gmra.mrb[0].mxu0 %v6839
      %v7729 = vpop.f32.mrb[0].mxu0
      %v7730 = vadd.f32 %v7657, %v7729
      %v7731 = vpop.f32.mrb[0].mxu0
      %v7732 = vadd.f32 %v7659, %v7731
      %v7733 = vpop.f32.mrb[0].mxu0
      %v7734 = vadd.f32 %v7661, %v7733
      %v7735 = vpop.f32.mrb[0].mxu0
      %v7736 = vadd.f32 %v7663, %v7735
      %7737 = vmatprep.mubr.bf16.mxu0 %v6844
      %7738 = vmatmul.mubr.bf16.gmra.mrb[0].mxu0 %v6843
      %v7739 = vpop.f32.mrb[0].mxu0
      %v7740 = vadd.f32 %v7667, %v7739
      %v7741 = vpop.f32.mrb[0].mxu0
      %v7742 = vadd.f32 %v7669, %v7741
      %v7743 = vpop.f32.mrb[0].mxu0
      %v7744 = vadd.f32 %v7671, %v7743
      %v7745 = vpop.f32.mrb[0].mxu0
      %v7746 = vadd.f32 %v7673, %v7745
      %7747 = vmatprep.mubr.bf16.mxu0 %v6848
      %7748 = vmatmul.mubr.bf16.gmra.mrb[0].mxu0 %v6847
      %v7749 = vpop.f32.mrb[0].mxu0
      %v7750 = vadd.f32 %v7677, %v7749
      %v7751 = vpop.f32.mrb[0].mxu0
      %v7752 = vadd.f32 %v7679, %v7751
      %v7753 = vpop.f32.mrb[0].mxu0
      %v7754 = vadd.f32 %v7681, %v7753
      %v7755 = vpop.f32.mrb[0].mxu0
      %v7756 = vadd.f32 %v7683, %v7755
      %7757 = vmatprep.mubr.bf16.mxu0 %v6852
      %7758 = vmatmul.mubr.bf16.gmra.mrb[0].mxu0 %v6851
      %v7759 = vpop.f32.mrb[0].mxu0
      %v7760 = vadd.f32 %v7687, %v7759
      %v7761 = vpop.f32.mrb[0].mxu0
      %v7762 = vadd.f32 %v7689, %v7761
      %v7763 = vpop.f32.mrb[0].mxu0
      %v7764 = vadd.f32 %v7691, %v7763
      %v7765 = vpop.f32.mrb[0].mxu0
      %v7766 = vadd.f32 %v7693, %v7765
      %7767 = vdwg.mxu0
      %7768 = vmatprep.subr.bf16.mxu0 %v7369
      %7769 = vmatpush1.bf16.msra.mxu0 %v7368
      %7770 = vmatprep.subr.bf16.mxu0 %v7373
      %7771 = vmatpush1.bf16.msra.mxu0 %v7372
      %7772 = vmatprep.subr.bf16.mxu0 %v7377
      %7773 = vmatpush1.bf16.msra.mxu0 %v7376
      %7774 = vmatprep.subr.bf16.mxu0 %v7381
      %7775 = vmatpush1.bf16.msra.mxu0 %v7380
      %7776 = vmatprep.subr.bf16.mxu0 %v7385
      %7777 = vmatpush1.bf16.msra.mxu0 %v7384
      %7778 = vmatprep.subr.bf16.mxu0 %v7389
      %7779 = vmatpush1.bf16.msra.mxu0 %v7388
      %7780 = vmatprep.subr.bf16.mxu0 %v7393
      %7781 = vmatpush1.bf16.msra.mxu0 %v7392
      %7782 = vmatprep.subr.bf16.mxu0 %v7397
      %7783 = vmatpush1.bf16.msra.mxu0 %v7396
      %7784 = vmatprep.subr.bf16.mxu0 %v7401
      %7785 = vmatpush1.bf16.msra.mxu0 %v7400
      %7786 = vmatprep.subr.bf16.mxu0 %v7405
      %7787 = vmatpush1.bf16.msra.mxu0 %v7404
      %7788 = vmatprep.subr.bf16.mxu0 %v7409
      %7789 = vmatpush1.bf16.msra.mxu0 %v7408
      %7790 = vmatprep.subr.bf16.mxu0 %v7413
      %7791 = vmatpush1.bf16.msra.mxu0 %v7412
      %7792 = vmatprep.subr.bf16.mxu0 %v7417
      %7793 = vmatpush1.bf16.msra.mxu0 %v7416
      %7794 = vmatprep.subr.bf16.mxu0 %v7421
      %7795 = vmatpush1.bf16.msra.mxu0 %v7420
      %7796 = vmatprep.subr.bf16.mxu0 %v7425
      %7797 = vmatpush1.bf16.msra.mxu0 %v7424
      %7798 = vmatprep.subr.bf16.mxu0 %v7429
      %7799 = vmatpush1.bf16.msra.mxu0 %v7428
      %7800 = vmatprep.mubr.bf16.mxu0 %v6838
      %7801 = vmatmul.mubr.bf16.gmra.mrb[0].mxu0 %v6837
      %v7802 = vpop.f32.mrb[0].mxu0
      %v7803 = vadd.f32 0.0, %v7802
      %v7804 = vpop.f32.mrb[0].mxu0
      %v7805 = vadd.f32 0.0, %v7804
      %v7806 = vpop.f32.mrb[0].mxu0
      %v7807 = vadd.f32 0.0, %v7806
      %v7808 = vpop.f32.mrb[0].mxu0
      %v7809 = vadd.f32 0.0, %v7808
      %7810 = vmatprep.mubr.bf16.mxu0 %v6842
      %7811 = vmatmul.mubr.bf16.gmra.mrb[0].mxu0 %v6841
      %v7812 = vpop.f32.mrb[0].mxu0
      %v7813 = vadd.f32 0.0, %v7812
      %v7814 = vpop.f32.mrb[0].mxu0
      %v7815 = vadd.f32 0.0, %v7814
      %v7816 = vpop.f32.mrb[0].mxu0
      %v7817 = vadd.f32 0.0, %v7816
      %v7818 = vpop.f32.mrb[0].mxu0
      %v7819 = vadd.f32 0.0, %v7818
      %7820 = vmatprep.mubr.bf16.mxu0 %v6846
      %7821 = vmatmul.mubr.bf16.gmra.mrb[0].mxu0 %v6845
      %v7822 = vpop.f32.mrb[0].mxu0
      %v7823 = vadd.f32 0.0, %v7822
      %v7824 = vpop.f32.mrb[0].mxu0
      %v7825 = vadd.f32 0.0, %v7824
      %v7826 = vpop.f32.mrb[0].mxu0
      %v7827 = vadd.f32 0.0, %v7826
      %v7828 = vpop.f32.mrb[0].mxu0
      %v7829 = vadd.f32 0.0, %v7828
      %7830 = vmatprep.mubr.bf16.mxu0 %v6850
      %7831 = vmatmul.mubr.bf16.gmra.mrb[0].mxu0 %v6849
      %v7832 = vpop.f32.mrb[0].mxu0
      %v7833 = vadd.f32 0.0, %v7832
      %v7834 = vpop.f32.mrb[0].mxu0
      %v7835 = vadd.f32 0.0, %v7834
      %v7836 = vpop.f32.mrb[0].mxu0
      %v7837 = vadd.f32 0.0, %v7836
      %v7838 = vpop.f32.mrb[0].mxu0
      %v7839 = vadd.f32 0.0, %v7838
      %7840 = vdwg.mxu0
      %7841 = vmatprep.subr.bf16.mxu0 %v7433
      %7842 = vmatpush1.bf16.msra.mxu0 %v7432
      %7843 = vmatprep.subr.bf16.mxu0 %v7437
      %7844 = vmatpush1.bf16.msra.mxu0 %v7436
      %7845 = vmatprep.subr.bf16.mxu0 %v7441
      %7846 = vmatpush1.bf16.msra.mxu0 %v7440
      %7847 = vmatprep.subr.bf16.mxu0 %v7445
      %7848 = vmatpush1.bf16.msra.mxu0 %v7444
      %7849 = vmatprep.subr.bf16.mxu0 %v7449
      %7850 = vmatpush1.bf16.msra.mxu0 %v7448
      %7851 = vmatprep.subr.bf16.mxu0 %v7453
      %7852 = vmatpush1.bf16.msra.mxu0 %v7452
      %7853 = vmatprep.subr.bf16.mxu0 %v7457
      %7854 = vmatpush1.bf16.msra.mxu0 %v7456
      %7855 = vmatprep.subr.bf16.mxu0 %v7461
      %7856 = vmatpush1.bf16.msra.mxu0 %v7460
      %7857 = vmatprep.subr.bf16.mxu0 %v7465
      %7858 = vmatpush1.bf16.msra.mxu0 %v7464
      %7859 = vmatprep.subr.bf16.mxu0 %v7469
      %7860 = vmatpush1.bf16.msra.mxu0 %v7468
      %7861 = vmatprep.subr.bf16.mxu0 %v7473
      %7862 = vmatpush1.bf16.msra.mxu0 %v7472
      %7863 = vmatprep.subr.bf16.mxu0 %v7477
      %7864 = vmatpush1.bf16.msra.mxu0 %v7476
      %7865 = vmatprep.subr.bf16.mxu0 %v7481
      %7866 = vmatpush1.bf16.msra.mxu0 %v7480
      %7867 = vmatprep.subr.bf16.mxu0 %v7485
      %7868 = vmatpush1.bf16.msra.mxu0 %v7484
      %7869 = vmatprep.subr.bf16.mxu0 %v7489
      %7870 = vmatpush1.bf16.msra.mxu0 %v7488
      %7871 = vmatprep.subr.bf16.mxu0 %v7493
      %7872 = vmatpush1.bf16.msra.mxu0 %v7492
      %7873 = vmatprep.mubr.bf16.mxu0 %v6840
      %7874 = vmatmul.mubr.bf16.gmra.mrb[0].mxu0 %v6839
      %v7875 = vpop.f32.mrb[0].mxu0
      %v7876 = vadd.f32 %v7803, %v7875
      %v7877 = vpop.f32.mrb[0].mxu0
      %v7878 = vadd.f32 %v7805, %v7877
      %v7879 = vpop.f32.mrb[0].mxu0
      %v7880 = vadd.f32 %v7807, %v7879
      %v7881 = vpop.f32.mrb[0].mxu0
      %v7882 = vadd.f32 %v7809, %v7881
      %7883 = vmatprep.mubr.bf16.mxu0 %v6844
      %7884 = vmatmul.mubr.bf16.gmra.mrb[0].mxu0 %v6843
      %v7885 = vpop.f32.mrb[0].mxu0
      %v7886 = vadd.f32 %v7813, %v7885
      %v7887 = vpop.f32.mrb[0].mxu0
      %v7888 = vadd.f32 %v7815, %v7887
      %v7889 = vpop.f32.mrb[0].mxu0
      %v7890 = vadd.f32 %v7817, %v7889
      %v7891 = vpop.f32.mrb[0].mxu0
      %v7892 = vadd.f32 %v7819, %v7891
      %7893 = vmatprep.mubr.bf16.mxu0 %v6848
      %7894 = vmatmul.mubr.bf16.gmra.mrb[0].mxu0 %v6847
      %v7895 = vpop.f32.mrb[0].mxu0
      %v7896 = vadd.f32 %v7823, %v7895
      %v7897 = vpop.f32.mrb[0].mxu0
      %v7898 = vadd.f32 %v7825, %v7897
      %v7899 = vpop.f32.mrb[0].mxu0
      %v7900 = vadd.f32 %v7827, %v7899
      %v7901 = vpop.f32.mrb[0].mxu0
      %v7902 = vadd.f32 %v7829, %v7901
      %7903 = vmatprep.mubr.bf16.mxu0 %v6852
      %7904 = vmatmul.mubr.bf16.gmra.mrb[0].mxu0 %v6851
      %v7905 = vpop.f32.mrb[0].mxu0
      %v7906 = vadd.f32 %v7833, %v7905
      %v7907 = vpop.f32.mrb[0].mxu0
      %v7908 = vadd.f32 %v7835, %v7907
      %v7909 = vpop.f32.mrb[0].mxu0
      %v7910 = vadd.f32 %v7837, %v7909
      %v7911 = vpop.f32.mrb[0].mxu0
      %v7912 = vadd.f32 %v7839, %v7911
      %7913 = vdwg.mxu0
      %v8042 = vunpack.c.l.b16 %v6709
      %v8043 = vunpack.c.h.b16 %v6709
      %v8044 = vunpack.c.l.b16 %v6710
      %v8045 = vunpack.c.h.b16 %v6710
      %v8046 = vunpack.c.l.b16 %v6711
      %v8047 = vunpack.c.h.b16 %v6711
      %v8048 = vunpack.c.l.b16 %v6712
      %v8049 = vunpack.c.h.b16 %v6712
      %v8050 = vunpack.c.l.b16 %v6713
      %v8051 = vunpack.c.h.b16 %v6713
      %v8052 = vunpack.c.l.b16 %v6714
      %v8053 = vunpack.c.h.b16 %v6714
      %v8054 = vunpack.c.l.b16 %v6715
      %v8055 = vunpack.c.h.b16 %v6715
      %v8056 = vunpack.c.l.b16 %v6716
      %v8057 = vunpack.c.h.b16 %v6716
      %v8058 = vunpack.c.l.b16 %v6717
      %v8059 = vunpack.c.h.b16 %v6717
      %v8060 = vunpack.c.l.b16 %v6718
      %v8061 = vunpack.c.h.b16 %v6718
      %v8062 = vunpack.c.l.b16 %v6719
      %v8063 = vunpack.c.h.b16 %v6719
      %v8064 = vunpack.c.l.b16 %v6720
      %v8065 = vunpack.c.h.b16 %v6720
      %v8066 = vunpack.c.l.b16 %v6721
      %v8067 = vunpack.c.h.b16 %v6721
      %v8068 = vunpack.c.l.b16 %v6722
      %v8069 = vunpack.c.h.b16 %v6722
      %v8070 = vunpack.c.l.b16 %v6723
      %v8071 = vunpack.c.h.b16 %v6723
      %v8072 = vunpack.c.l.b16 %v6724
      %v8073 = vunpack.c.h.b16 %v6724
      %v8074 = vunpack.c.l.b16 %v6725
      %v8075 = vunpack.c.h.b16 %v6725
      %v8076 = vunpack.c.l.b16 %v6726
      %v8077 = vunpack.c.h.b16 %v6726
      %v8078 = vunpack.c.l.b16 %v6727
      %v8079 = vunpack.c.h.b16 %v6727
      %v8080 = vunpack.c.l.b16 %v6728
      %v8081 = vunpack.c.h.b16 %v6728
      %v8082 = vunpack.c.l.b16 %v6729
      %v8083 = vunpack.c.h.b16 %v6729
      %v8084 = vunpack.c.l.b16 %v6730
      %v8085 = vunpack.c.h.b16 %v6730
      %v8086 = vunpack.c.l.b16 %v6731
      %v8087 = vunpack.c.h.b16 %v6731
      %v8088 = vunpack.c.l.b16 %v6732
      %v8089 = vunpack.c.h.b16 %v6732
      %v8090 = vunpack.c.l.b16 %v6733
      %v8091 = vunpack.c.h.b16 %v6733
      %v8092 = vunpack.c.l.b16 %v6734
      %v8093 = vunpack.c.h.b16 %v6734
      %v8094 = vunpack.c.l.b16 %v6735
      %v8095 = vunpack.c.h.b16 %v6735
      %v8096 = vunpack.c.l.b16 %v6736
      %v8097 = vunpack.c.h.b16 %v6736
      %v8098 = vunpack.c.l.b16 %v6737
      %v8099 = vunpack.c.h.b16 %v6737
      %v8100 = vunpack.c.l.b16 %v6738
      %v8101 = vunpack.c.h.b16 %v6738
      %v8102 = vunpack.c.l.b16 %v6739
      %v8103 = vunpack.c.h.b16 %v6739
      %v8104 = vunpack.c.l.b16 %v6740
      %v8105 = vunpack.c.h.b16 %v6740
      %v8106 = vunpack.c.l.b16 %v6741
      %v8107 = vunpack.c.h.b16 %v6741
      %v8108 = vunpack.c.l.b16 %v6742
      %v8109 = vunpack.c.h.b16 %v6742
      %v8110 = vunpack.c.l.b16 %v6743
      %v8111 = vunpack.c.h.b16 %v6743
      %v8112 = vunpack.c.l.b16 %v6744
      %v8113 = vunpack.c.h.b16 %v6744
      %v8114 = vunpack.c.l.b16 %v6745
      %v8115 = vunpack.c.h.b16 %v6745
      %v8116 = vunpack.c.l.b16 %v6746
      %v8117 = vunpack.c.h.b16 %v6746
      %v8118 = vunpack.c.l.b16 %v6747
      %v8119 = vunpack.c.h.b16 %v6747
      %v8120 = vunpack.c.l.b16 %v6748
      %v8121 = vunpack.c.h.b16 %v6748
      %v8122 = vunpack.c.l.b16 %v6749
      %v8123 = vunpack.c.h.b16 %v6749
      %v8124 = vunpack.c.l.b16 %v6750
      %v8125 = vunpack.c.h.b16 %v6750
      %v8126 = vunpack.c.l.b16 %v6751
      %v8127 = vunpack.c.h.b16 %v6751
      %v8128 = vunpack.c.l.b16 %v6752
      %v8129 = vunpack.c.h.b16 %v6752
      %v8130 = vunpack.c.l.b16 %v6753
      %v8131 = vunpack.c.h.b16 %v6753
      %v8132 = vunpack.c.l.b16 %v6754
      %v8133 = vunpack.c.h.b16 %v6754
      %v8134 = vunpack.c.l.b16 %v6755
      %v8135 = vunpack.c.h.b16 %v6755
      %v8136 = vunpack.c.l.b16 %v6756
      %v8137 = vunpack.c.h.b16 %v6756
      %v8138 = vunpack.c.l.b16 %v6757
      %v8139 = vunpack.c.h.b16 %v6757
      %v8140 = vunpack.c.l.b16 %v6758
      %v8141 = vunpack.c.h.b16 %v6758
      %v8142 = vunpack.c.l.b16 %v6759
      %v8143 = vunpack.c.h.b16 %v6759
      %v8144 = vunpack.c.l.b16 %v6760
      %v8145 = vunpack.c.h.b16 %v6760
      %v8146 = vunpack.c.l.b16 %v6761
      %v8147 = vunpack.c.h.b16 %v6761
      %v8148 = vunpack.c.l.b16 %v6762
      %v8149 = vunpack.c.h.b16 %v6762
      %v8150 = vunpack.c.l.b16 %v6763
      %v8151 = vunpack.c.h.b16 %v6763
      %v8152 = vunpack.c.l.b16 %v6764
      %v8153 = vunpack.c.h.b16 %v6764
      %v8154 = vunpack.c.l.b16 %v6765
      %v8155 = vunpack.c.h.b16 %v6765
      %v8156 = vunpack.c.l.b16 %v6766
      %v8157 = vunpack.c.h.b16 %v6766
      %v8158 = vunpack.c.l.b16 %v6767
      %v8159 = vunpack.c.h.b16 %v6767
      %v8160 = vunpack.c.l.b16 %v6768
      %v8161 = vunpack.c.h.b16 %v6768
      %v8162 = vunpack.c.l.b16 %v6769
      %v8163 = vunpack.c.h.b16 %v6769
      %v8164 = vunpack.c.l.b16 %v6770
      %v8165 = vunpack.c.h.b16 %v6770
      %v8166 = vunpack.c.l.b16 %v6771
      %v8167 = vunpack.c.h.b16 %v6771
      %v8168 = vunpack.c.l.b16 %v6772
      %v8169 = vunpack.c.h.b16 %v6772
      %v8170 = vunpack.c.l.b16 %v6773
      %v8171 = vunpack.c.h.b16 %v6773
      %v8172 = vunpack.c.l.b16 %v6774
      %v8173 = vunpack.c.h.b16 %v6774
      %v8174 = vunpack.c.l.b16 %v6775
      %v8175 = vunpack.c.h.b16 %v6775
      %v8176 = vunpack.c.l.b16 %v6776
      %v8177 = vunpack.c.h.b16 %v6776
      %v8178 = vunpack.c.l.b16 %v6777
      %v8179 = vunpack.c.h.b16 %v6777
      %v8180 = vunpack.c.l.b16 %v6778
      %v8181 = vunpack.c.h.b16 %v6778
      %v8182 = vunpack.c.l.b16 %v6779
      %v8183 = vunpack.c.h.b16 %v6779
      %v8184 = vunpack.c.l.b16 %v6780
      %v8185 = vunpack.c.h.b16 %v6780
      %v8186 = vunpack.c.l.b16 %v6781
      %v8187 = vunpack.c.h.b16 %v6781
      %v8188 = vunpack.c.l.b16 %v6782
      %v8189 = vunpack.c.h.b16 %v6782
      %v8190 = vunpack.c.l.b16 %v6783
      %v8191 = vunpack.c.h.b16 %v6783
      %v8192 = vunpack.c.l.b16 %v6784
      %v8193 = vunpack.c.h.b16 %v6784
      %v8194 = vunpack.c.l.b16 %v6785
      %v8195 = vunpack.c.h.b16 %v6785
      %v8196 = vunpack.c.l.b16 %v6786
      %v8197 = vunpack.c.h.b16 %v6786
      %v8198 = vunpack.c.l.b16 %v6787
      %v8199 = vunpack.c.h.b16 %v6787
      %v8200 = vunpack.c.l.b16 %v6788
      %v8201 = vunpack.c.h.b16 %v6788
      %v8202 = vunpack.c.l.b16 %v6789
      %v8203 = vunpack.c.h.b16 %v6789
      %v8204 = vunpack.c.l.b16 %v6790
      %v8205 = vunpack.c.h.b16 %v6790
      %v8206 = vunpack.c.l.b16 %v6791
      %v8207 = vunpack.c.h.b16 %v6791
      %v8208 = vunpack.c.l.b16 %v6792
      %v8209 = vunpack.c.h.b16 %v6792
      %v8210 = vunpack.c.l.b16 %v6793
      %v8211 = vunpack.c.h.b16 %v6793
      %v8212 = vunpack.c.l.b16 %v6794
      %v8213 = vunpack.c.h.b16 %v6794
      %v8214 = vunpack.c.l.b16 %v6795
      %v8215 = vunpack.c.h.b16 %v6795
      %v8216 = vunpack.c.l.b16 %v6796
      %v8217 = vunpack.c.h.b16 %v6796
      %v8218 = vunpack.c.l.b16 %v6797
      %v8219 = vunpack.c.h.b16 %v6797
      %v8220 = vunpack.c.l.b16 %v6798
      %v8221 = vunpack.c.h.b16 %v6798
      %v8222 = vunpack.c.l.b16 %v6799
      %v8223 = vunpack.c.h.b16 %v6799
      %v8224 = vunpack.c.l.b16 %v6800
      %v8225 = vunpack.c.h.b16 %v6800
      %v8226 = vunpack.c.l.b16 %v6801
      %v8227 = vunpack.c.h.b16 %v6801
      %v8228 = vunpack.c.l.b16 %v6802
      %v8229 = vunpack.c.h.b16 %v6802
      %v8230 = vunpack.c.l.b16 %v6803
      %v8231 = vunpack.c.h.b16 %v6803
      %v8232 = vunpack.c.l.b16 %v6804
      %v8233 = vunpack.c.h.b16 %v6804
      %v8234 = vunpack.c.l.b16 %v6805
      %v8235 = vunpack.c.h.b16 %v6805
      %v8236 = vunpack.c.l.b16 %v6806
      %v8237 = vunpack.c.h.b16 %v6806
      %v8238 = vunpack.c.l.b16 %v6807
      %v8239 = vunpack.c.h.b16 %v6807
      %v8240 = vunpack.c.l.b16 %v6808
      %v8241 = vunpack.c.h.b16 %v6808
      %v8242 = vunpack.c.l.b16 %v6809
      %v8243 = vunpack.c.h.b16 %v6809
      %v8244 = vunpack.c.l.b16 %v6810
      %v8245 = vunpack.c.h.b16 %v6810
      %v8246 = vunpack.c.l.b16 %v6811
      %v8247 = vunpack.c.h.b16 %v6811
      %v8248 = vunpack.c.l.b16 %v6812
      %v8249 = vunpack.c.h.b16 %v6812
      %v8250 = vunpack.c.l.b16 %v6813
      %v8251 = vunpack.c.h.b16 %v6813
      %v8252 = vunpack.c.l.b16 %v6814
      %v8253 = vunpack.c.h.b16 %v6814
      %v8254 = vunpack.c.l.b16 %v6815
      %v8255 = vunpack.c.h.b16 %v6815
      %v8256 = vunpack.c.l.b16 %v6816
      %v8257 = vunpack.c.h.b16 %v6816
      %v8258 = vunpack.c.l.b16 %v6817
      %v8259 = vunpack.c.h.b16 %v6817
      %v8260 = vunpack.c.l.b16 %v6818
      %v8261 = vunpack.c.h.b16 %v6818
      %v8262 = vunpack.c.l.b16 %v6819
      %v8263 = vunpack.c.h.b16 %v6819
      %v8264 = vunpack.c.l.b16 %v6820
      %v8265 = vunpack.c.h.b16 %v6820
      %v8266 = vunpack.c.l.b16 %v6821
      %v8267 = vunpack.c.h.b16 %v6821
      %v8268 = vunpack.c.l.b16 %v6822
      %v8269 = vunpack.c.h.b16 %v6822
      %v8270 = vunpack.c.l.b16 %v6823
      %v8271 = vunpack.c.h.b16 %v6823
      %v8272 = vunpack.c.l.b16 %v6824
      %v8273 = vunpack.c.h.b16 %v6824
      %v8274 = vunpack.c.l.b16 %v6825
      %v8275 = vunpack.c.h.b16 %v6825
      %v8276 = vunpack.c.l.b16 %v6826
      %v8277 = vunpack.c.h.b16 %v6826
      %v8278 = vunpack.c.l.b16 %v6827
      %v8279 = vunpack.c.h.b16 %v6827
      %v8280 = vunpack.c.l.b16 %v6828
      %v8281 = vunpack.c.h.b16 %v6828
      %v8282 = vunpack.c.l.b16 %v6829
      %v8283 = vunpack.c.h.b16 %v6829
      %v8284 = vunpack.c.l.b16 %v6830
      %v8285 = vunpack.c.h.b16 %v6830
      %v8286 = vunpack.c.l.b16 %v6831
      %v8287 = vunpack.c.h.b16 %v6831
      %v8288 = vunpack.c.l.b16 %v6832
      %v8289 = vunpack.c.h.b16 %v6832
      %v8290 = vunpack.c.l.b16 %v6833
      %v8291 = vunpack.c.h.b16 %v6833
      %v8292 = vunpack.c.l.b16 %v6834
      %v8293 = vunpack.c.h.b16 %v6834
      %v8294 = vunpack.c.l.b16 %v6835
      %v8295 = vunpack.c.h.b16 %v6835
      %v8296 = vunpack.c.l.b16 %v6836
      %v8297 = vunpack.c.h.b16 %v6836
      %v8298 = vpack.c.b16 %v8046, %v8042
      %v8299 = vpack.c.b16 %v8047, %v8043
      %v8300 = vpack.c.b16 %v8048, %v8044
      %v8301 = vpack.c.b16 %v8049, %v8045
      %v8302 = vpack.c.b16 %v8054, %v8050
      %v8303 = vpack.c.b16 %v8055, %v8051
      %v8304 = vpack.c.b16 %v8056, %v8052
      %v8305 = vpack.c.b16 %v8057, %v8053
      %v8306 = vpack.c.b16 %v8062, %v8058
      %v8307 = vpack.c.b16 %v8063, %v8059
      %v8308 = vpack.c.b16 %v8064, %v8060
      %v8309 = vpack.c.b16 %v8065, %v8061
      %v8310 = vpack.c.b16 %v8070, %v8066
      %v8311 = vpack.c.b16 %v8071, %v8067
      %v8312 = vpack.c.b16 %v8072, %v8068
      %v8313 = vpack.c.b16 %v8073, %v8069
      %v8314 = vpack.c.b16 %v8078, %v8074
      %v8315 = vpack.c.b16 %v8079, %v8075
      %v8316 = vpack.c.b16 %v8080, %v8076
      %v8317 = vpack.c.b16 %v8081, %v8077
      %v8318 = vpack.c.b16 %v8086, %v8082
      %v8319 = vpack.c.b16 %v8087, %v8083
      %v8320 = vpack.c.b16 %v8088, %v8084
      %v8321 = vpack.c.b16 %v8089, %v8085
      %v8322 = vpack.c.b16 %v8094, %v8090
      %v8323 = vpack.c.b16 %v8095, %v8091
      %v8324 = vpack.c.b16 %v8096, %v8092
      %v8325 = vpack.c.b16 %v8097, %v8093
      %v8326 = vpack.c.b16 %v8102, %v8098
      %v8327 = vpack.c.b16 %v8103, %v8099
      %v8328 = vpack.c.b16 %v8104, %v8100
      %v8329 = vpack.c.b16 %v8105, %v8101
      %v8330 = vpack.c.b16 %v8110, %v8106
      %v8331 = vpack.c.b16 %v8111, %v8107
      %v8332 = vpack.c.b16 %v8112, %v8108
      %v8333 = vpack.c.b16 %v8113, %v8109
      %v8334 = vpack.c.b16 %v8118, %v8114
      %v8335 = vpack.c.b16 %v8119, %v8115
      %v8336 = vpack.c.b16 %v8120, %v8116
      %v8337 = vpack.c.b16 %v8121, %v8117
      %v8338 = vpack.c.b16 %v8126, %v8122
      %v8339 = vpack.c.b16 %v8127, %v8123
      %v8340 = vpack.c.b16 %v8128, %v8124
      %v8341 = vpack.c.b16 %v8129, %v8125
      %v8342 = vpack.c.b16 %v8134, %v8130
      %v8343 = vpack.c.b16 %v8135, %v8131
      %v8344 = vpack.c.b16 %v8136, %v8132
      %v8345 = vpack.c.b16 %v8137, %v8133
      %v8346 = vpack.c.b16 %v8142, %v8138
      %v8347 = vpack.c.b16 %v8143, %v8139
      %v8348 = vpack.c.b16 %v8144, %v8140
      %v8349 = vpack.c.b16 %v8145, %v8141
      %v8350 = vpack.c.b16 %v8150, %v8146
      %v8351 = vpack.c.b16 %v8151, %v8147
      %v8352 = vpack.c.b16 %v8152, %v8148
      %v8353 = vpack.c.b16 %v8153, %v8149
      %v8354 = vpack.c.b16 %v8158, %v8154
      %v8355 = vpack.c.b16 %v8159, %v8155
      %v8356 = vpack.c.b16 %v8160, %v8156
      %v8357 = vpack.c.b16 %v8161, %v8157
      %v8358 = vpack.c.b16 %v8166, %v8162
      %v8359 = vpack.c.b16 %v8167, %v8163
      %v8360 = vpack.c.b16 %v8168, %v8164
      %v8361 = vpack.c.b16 %v8169, %v8165
      %v8362 = vpack.c.b16 %v8174, %v8170
      %v8363 = vpack.c.b16 %v8175, %v8171
      %v8364 = vpack.c.b16 %v8176, %v8172
      %v8365 = vpack.c.b16 %v8177, %v8173
      %v8366 = vpack.c.b16 %v8182, %v8178
      %v8367 = vpack.c.b16 %v8183, %v8179
      %v8368 = vpack.c.b16 %v8184, %v8180
      %v8369 = vpack.c.b16 %v8185, %v8181
      %v8370 = vpack.c.b16 %v8190, %v8186
      %v8371 = vpack.c.b16 %v8191, %v8187
      %v8372 = vpack.c.b16 %v8192, %v8188
      %v8373 = vpack.c.b16 %v8193, %v8189
      %v8374 = vpack.c.b16 %v8198, %v8194
      %v8375 = vpack.c.b16 %v8199, %v8195
      %v8376 = vpack.c.b16 %v8200, %v8196
      %v8377 = vpack.c.b16 %v8201, %v8197
      %v8378 = vpack.c.b16 %v8206, %v8202
      %v8379 = vpack.c.b16 %v8207, %v8203
      %v8380 = vpack.c.b16 %v8208, %v8204
      %v8381 = vpack.c.b16 %v8209, %v8205
      %v8382 = vpack.c.b16 %v8214, %v8210
      %v8383 = vpack.c.b16 %v8215, %v8211
      %v8384 = vpack.c.b16 %v8216, %v8212
      %v8385 = vpack.c.b16 %v8217, %v8213
      %v8386 = vpack.c.b16 %v8222, %v8218
      %v8387 = vpack.c.b16 %v8223, %v8219
      %v8388 = vpack.c.b16 %v8224, %v8220
      %v8389 = vpack.c.b16 %v8225, %v8221
      %v8390 = vpack.c.b16 %v8230, %v8226
      %v8391 = vpack.c.b16 %v8231, %v8227
      %v8392 = vpack.c.b16 %v8232, %v8228
      %v8393 = vpack.c.b16 %v8233, %v8229
      %v8394 = vpack.c.b16 %v8238, %v8234
      %v8395 = vpack.c.b16 %v8239, %v8235
      %v8396 = vpack.c.b16 %v8240, %v8236
      %v8397 = vpack.c.b16 %v8241, %v8237
      %v8398 = vpack.c.b16 %v8246, %v8242
      %v8399 = vpack.c.b16 %v8247, %v8243
      %v8400 = vpack.c.b16 %v8248, %v8244
      %v8401 = vpack.c.b16 %v8249, %v8245
      %v8402 = vpack.c.b16 %v8254, %v8250
      %v8403 = vpack.c.b16 %v8255, %v8251
      %v8404 = vpack.c.b16 %v8256, %v8252
      %v8405 = vpack.c.b16 %v8257, %v8253
      %v8406 = vpack.c.b16 %v8262, %v8258
      %v8407 = vpack.c.b16 %v8263, %v8259
      %v8408 = vpack.c.b16 %v8264, %v8260
      %v8409 = vpack.c.b16 %v8265, %v8261
      %v8410 = vpack.c.b16 %v8270, %v8266
      %v8411 = vpack.c.b16 %v8271, %v8267
      %v8412 = vpack.c.b16 %v8272, %v8268
      %v8413 = vpack.c.b16 %v8273, %v8269
      %v8414 = vpack.c.b16 %v8278, %v8274
      %v8415 = vpack.c.b16 %v8279, %v8275
      %v8416 = vpack.c.b16 %v8280, %v8276
      %v8417 = vpack.c.b16 %v8281, %v8277
      %v8418 = vpack.c.b16 %v8286, %v8282
      %v8419 = vpack.c.b16 %v8287, %v8283
      %v8420 = vpack.c.b16 %v8288, %v8284
      %v8421 = vpack.c.b16 %v8289, %v8285
      %v8422 = vpack.c.b16 %v8294, %v8290
      %v8423 = vpack.c.b16 %v8295, %v8291
      %v8424 = vpack.c.b16 %v8296, %v8292
      %v8425 = vpack.c.b16 %v8297, %v8293
      %8554 = vmatprep.subr.bf16.mxu0 %v8299
      %8555 = vmatpush1.bf16.msra.mxu0 %v8298
      %8556 = vmatprep.subr.bf16.mxu0 %v8303
      %8557 = vmatpush1.bf16.msra.mxu0 %v8302
      %8558 = vmatprep.subr.bf16.mxu0 %v8307
      %8559 = vmatpush1.bf16.msra.mxu0 %v8306
      %8560 = vmatprep.subr.bf16.mxu0 %v8311
      %8561 = vmatpush1.bf16.msra.mxu0 %v8310
      %8562 = vmatprep.subr.bf16.mxu0 %v8315
      %8563 = vmatpush1.bf16.msra.mxu0 %v8314
      %8564 = vmatprep.subr.bf16.mxu0 %v8319
      %8565 = vmatpush1.bf16.msra.mxu0 %v8318
      %8566 = vmatprep.subr.bf16.mxu0 %v8323
      %8567 = vmatpush1.bf16.msra.mxu0 %v8322
      %8568 = vmatprep.subr.bf16.mxu0 %v8327
      %8569 = vmatpush1.bf16.msra.mxu0 %v8326
      %8570 = vmatprep.subr.bf16.mxu0 %v8331
      %8571 = vmatpush1.bf16.msra.mxu0 %v8330
      %8572 = vmatprep.subr.bf16.mxu0 %v8335
      %8573 = vmatpush1.bf16.msra.mxu0 %v8334
      %8574 = vmatprep.subr.bf16.mxu0 %v8339
      %8575 = vmatpush1.bf16.msra.mxu0 %v8338
      %8576 = vmatprep.subr.bf16.mxu0 %v8343
      %8577 = vmatpush1.bf16.msra.mxu0 %v8342
      %8578 = vmatprep.subr.bf16.mxu0 %v8347
      %8579 = vmatpush1.bf16.msra.mxu0 %v8346
      %8580 = vmatprep.subr.bf16.mxu0 %v8351
      %8581 = vmatpush1.bf16.msra.mxu0 %v8350
      %8582 = vmatprep.subr.bf16.mxu0 %v8355
      %8583 = vmatpush1.bf16.msra.mxu0 %v8354
      %8584 = vmatprep.subr.bf16.mxu0 %v8359
      %8585 = vmatpush1.bf16.msra.mxu0 %v8358
      %8586 = vmatprep.mubr.bf16.mxu0 %v6693
      %8587 = vmatmul.mubr.bf16.gmra.mrb[0].mxu0 %v6692
      %v8588 = vpop.f32.mrb[0].mxu0
      %v8589 = vadd.f32 %v7730, %v8588
      %v8590 = vpop.f32.mrb[0].mxu0
      %v8591 = vadd.f32 %v7732, %v8590
      %v8592 = vpop.f32.mrb[0].mxu0
      %v8593 = vadd.f32 %v7734, %v8592
      %v8594 = vpop.f32.mrb[0].mxu0
      %v8595 = vadd.f32 %v7736, %v8594
      %8596 = vmatprep.mubr.bf16.mxu0 %v6697
      %8597 = vmatmul.mubr.bf16.gmra.mrb[0].mxu0 %v6696
      %v8598 = vpop.f32.mrb[0].mxu0
      %v8599 = vadd.f32 %v7740, %v8598
      %v8600 = vpop.f32.mrb[0].mxu0
      %v8601 = vadd.f32 %v7742, %v8600
      %v8602 = vpop.f32.mrb[0].mxu0
      %v8603 = vadd.f32 %v7744, %v8602
      %v8604 = vpop.f32.mrb[0].mxu0
      %v8605 = vadd.f32 %v7746, %v8604
      %8606 = vmatprep.mubr.bf16.mxu0 %v6701
      %8607 = vmatmul.mubr.bf16.gmra.mrb[0].mxu0 %v6700
      %v8608 = vpop.f32.mrb[0].mxu0
      %v8609 = vadd.f32 %v7750, %v8608
      %v8610 = vpop.f32.mrb[0].mxu0
      %v8611 = vadd.f32 %v7752, %v8610
      %v8612 = vpop.f32.mrb[0].mxu0
      %v8613 = vadd.f32 %v7754, %v8612
      %v8614 = vpop.f32.mrb[0].mxu0
      %v8615 = vadd.f32 %v7756, %v8614
      %8616 = vmatprep.mubr.bf16.mxu0 %v6705
      %8617 = vmatmul.mubr.bf16.gmra.mrb[0].mxu0 %v6704
      %v8618 = vpop.f32.mrb[0].mxu0
      %v8619 = vadd.f32 %v7760, %v8618
      %v8620 = vpop.f32.mrb[0].mxu0
      %v8621 = vadd.f32 %v7762, %v8620
      %v8622 = vpop.f32.mrb[0].mxu0
      %v8623 = vadd.f32 %v7764, %v8622
      %v8624 = vpop.f32.mrb[0].mxu0
      %v8625 = vadd.f32 %v7766, %v8624
      %8626 = vdwg.mxu0
      %8627 = vmatprep.subr.bf16.mxu0 %v8363
      %8628 = vmatpush1.bf16.msra.mxu0 %v8362
      %8629 = vmatprep.subr.bf16.mxu0 %v8367
      %8630 = vmatpush1.bf16.msra.mxu0 %v8366
      %8631 = vmatprep.subr.bf16.mxu0 %v8371
      %8632 = vmatpush1.bf16.msra.mxu0 %v8370
      %8633 = vmatprep.subr.bf16.mxu0 %v8375
      %8634 = vmatpush1.bf16.msra.mxu0 %v8374
      %8635 = vmatprep.subr.bf16.mxu0 %v8379
      %8636 = vmatpush1.bf16.msra.mxu0 %v8378
      %8637 = vmatprep.subr.bf16.mxu0 %v8383
      %8638 = vmatpush1.bf16.msra.mxu0 %v8382
      %8639 = vmatprep.subr.bf16.mxu0 %v8387
      %8640 = vmatpush1.bf16.msra.mxu0 %v8386
      %8641 = vmatprep.subr.bf16.mxu0 %v8391
      %8642 = vmatpush1.bf16.msra.mxu0 %v8390
      %8643 = vmatprep.subr.bf16.mxu0 %v8395
      %8644 = vmatpush1.bf16.msra.mxu0 %v8394
      %8645 = vmatprep.subr.bf16.mxu0 %v8399
      %8646 = vmatpush1.bf16.msra.mxu0 %v8398
      %8647 = vmatprep.subr.bf16.mxu0 %v8403
      %8648 = vmatpush1.bf16.msra.mxu0 %v8402
      %8649 = vmatprep.subr.bf16.mxu0 %v8407
      %8650 = vmatpush1.bf16.msra.mxu0 %v8406
      %8651 = vmatprep.subr.bf16.mxu0 %v8411
      %8652 = vmatpush1.bf16.msra.mxu0 %v8410
      %8653 = vmatprep.subr.bf16.mxu0 %v8415
      %8654 = vmatpush1.bf16.msra.mxu0 %v8414
      %8655 = vmatprep.subr.bf16.mxu0 %v8419
      %8656 = vmatpush1.bf16.msra.mxu0 %v8418
      %8657 = vmatprep.subr.bf16.mxu0 %v8423
      %8658 = vmatpush1.bf16.msra.mxu0 %v8422
      %8659 = vmatprep.mubr.bf16.mxu0 %v6695
      %8660 = vmatmul.mubr.bf16.gmra.mrb[0].mxu0 %v6694
      %v8661 = vpop.f32.mrb[0].mxu0
      %v8662 = vadd.f32 %v8589, %v8661
      %v8663 = vpop.f32.mrb[0].mxu0
      %v8664 = vadd.f32 %v8591, %v8663
      %v8665 = vpop.f32.mrb[0].mxu0
      %v8666 = vadd.f32 %v8593, %v8665
      %v8667 = vpop.f32.mrb[0].mxu0
      %v8668 = vadd.f32 %v8595, %v8667
      %8669 = vmatprep.mubr.bf16.mxu0 %v6699
      %8670 = vmatmul.mubr.bf16.gmra.mrb[0].mxu0 %v6698
      %v8671 = vpop.f32.mrb[0].mxu0
      %v8672 = vadd.f32 %v8599, %v8671
      %v8673 = vpop.f32.mrb[0].mxu0
      %v8674 = vadd.f32 %v8601, %v8673
      %v8675 = vpop.f32.mrb[0].mxu0
      %v8676 = vadd.f32 %v8603, %v8675
      %v8677 = vpop.f32.mrb[0].mxu0
      %v8678 = vadd.f32 %v8605, %v8677
      %8679 = vmatprep.mubr.bf16.mxu0 %v6703
      %8680 = vmatmul.mubr.bf16.gmra.mrb[0].mxu0 %v6702
      %v8681 = vpop.f32.mrb[0].mxu0
      %v8682 = vadd.f32 %v8609, %v8681
      %v8683 = vpop.f32.mrb[0].mxu0
      %v8684 = vadd.f32 %v8611, %v8683
      %v8685 = vpop.f32.mrb[0].mxu0
      %v8686 = vadd.f32 %v8613, %v8685
      %v8687 = vpop.f32.mrb[0].mxu0
      %v8688 = vadd.f32 %v8615, %v8687
      %8689 = vmatprep.mubr.bf16.mxu0 %v6707
      %8690 = vmatmul.mubr.bf16.gmra.mrb[0].mxu0 %v6706
      %v8691 = vpop.f32.mrb[0].mxu0
      %v8692 = vadd.f32 %v8619, %v8691
      %v8693 = vpop.f32.mrb[0].mxu0
      %v8694 = vadd.f32 %v8621, %v8693
      %v8695 = vpop.f32.mrb[0].mxu0
      %v8696 = vadd.f32 %v8623, %v8695
      %v8697 = vpop.f32.mrb[0].mxu0
      %v8698 = vadd.f32 %v8625, %v8697
      %8699 = vdwg.mxu0
      %8700 = vmatprep.subr.bf16.mxu0 %v8301
      %8701 = vmatpush1.bf16.msra.mxu0 %v8300
      %8702 = vmatprep.subr.bf16.mxu0 %v8305
      %8703 = vmatpush1.bf16.msra.mxu0 %v8304
      %8704 = vmatprep.subr.bf16.mxu0 %v8309
      %8705 = vmatpush1.bf16.msra.mxu0 %v8308
      %8706 = vmatprep.subr.bf16.mxu0 %v8313
      %8707 = vmatpush1.bf16.msra.mxu0 %v8312
      %8708 = vmatprep.subr.bf16.mxu0 %v8317
      %8709 = vmatpush1.bf16.msra.mxu0 %v8316
      %8710 = vmatprep.subr.bf16.mxu0 %v8321
      %8711 = vmatpush1.bf16.msra.mxu0 %v8320
      %8712 = vmatprep.subr.bf16.mxu0 %v8325
      %8713 = vmatpush1.bf16.msra.mxu0 %v8324
      %8714 = vmatprep.subr.bf16.mxu0 %v8329
      %8715 = vmatpush1.bf16.msra.mxu0 %v8328
      %8716 = vmatprep.subr.bf16.mxu0 %v8333
      %8717 = vmatpush1.bf16.msra.mxu0 %v8332
      %8718 = vmatprep.subr.bf16.mxu0 %v8337
      %8719 = vmatpush1.bf16.msra.mxu0 %v8336
      %8720 = vmatprep.subr.bf16.mxu0 %v8341
      %8721 = vmatpush1.bf16.msra.mxu0 %v8340
      %8722 = vmatprep.subr.bf16.mxu0 %v8345
      %8723 = vmatpush1.bf16.msra.mxu0 %v8344
      %8724 = vmatprep.subr.bf16.mxu0 %v8349
      %8725 = vmatpush1.bf16.msra.mxu0 %v8348
      %8726 = vmatprep.subr.bf16.mxu0 %v8353
      %8727 = vmatpush1.bf16.msra.mxu0 %v8352
      %8728 = vmatprep.subr.bf16.mxu0 %v8357
      %8729 = vmatpush1.bf16.msra.mxu0 %v8356
      %8730 = vmatprep.subr.bf16.mxu0 %v8361
      %8731 = vmatpush1.bf16.msra.mxu0 %v8360
      %8732 = vmatprep.mubr.bf16.mxu0 %v6693
      %8733 = vmatmul.mubr.bf16.gmra.mrb[0].mxu0 %v6692
      %v8734 = vpop.f32.mrb[0].mxu0
      %v8735 = vadd.f32 %v7876, %v8734
      %v8736 = vpop.f32.mrb[0].mxu0
      %v8737 = vadd.f32 %v7878, %v8736
      %v8738 = vpop.f32.mrb[0].mxu0
      %v8739 = vadd.f32 %v7880, %v8738
      %v8740 = vpop.f32.mrb[0].mxu0
      %v8741 = vadd.f32 %v7882, %v8740
      %8742 = vmatprep.mubr.bf16.mxu0 %v6697
      %8743 = vmatmul.mubr.bf16.gmra.mrb[0].mxu0 %v6696
      %v8744 = vpop.f32.mrb[0].mxu0
      %v8745 = vadd.f32 %v7886, %v8744
      %v8746 = vpop.f32.mrb[0].mxu0
      %v8747 = vadd.f32 %v7888, %v8746
      %v8748 = vpop.f32.mrb[0].mxu0
      %v8749 = vadd.f32 %v7890, %v8748
      %v8750 = vpop.f32.mrb[0].mxu0
      %v8751 = vadd.f32 %v7892, %v8750
      %8752 = vmatprep.mubr.bf16.mxu0 %v6701
      %8753 = vmatmul.mubr.bf16.gmra.mrb[0].mxu0 %v6700
      %v8754 = vpop.f32.mrb[0].mxu0
      %v8755 = vadd.f32 %v7896, %v8754
      %v8756 = vpop.f32.mrb[0].mxu0
      %v8757 = vadd.f32 %v7898, %v8756
      %v8758 = vpop.f32.mrb[0].mxu0
      %v8759 = vadd.f32 %v7900, %v8758
      %v8760 = vpop.f32.mrb[0].mxu0
      %v8761 = vadd.f32 %v7902, %v8760
      %8762 = vmatprep.mubr.bf16.mxu0 %v6705
      %8763 = vmatmul.mubr.bf16.gmra.mrb[0].mxu0 %v6704
      %v8764 = vpop.f32.mrb[0].mxu0
      %v8765 = vadd.f32 %v7906, %v8764
      %v8766 = vpop.f32.mrb[0].mxu0
      %v8767 = vadd.f32 %v7908, %v8766
      %v8768 = vpop.f32.mrb[0].mxu0
      %v8769 = vadd.f32 %v7910, %v8768
      %v8770 = vpop.f32.mrb[0].mxu0
      %v8771 = vadd.f32 %v7912, %v8770
      %8772 = vdwg.mxu0
      %8773 = vmatprep.subr.bf16.mxu0 %v8365
      %8774 = vmatpush1.bf16.msra.mxu0 %v8364
      %8775 = vmatprep.subr.bf16.mxu0 %v8369
      %8776 = vmatpush1.bf16.msra.mxu0 %v8368
      %8777 = vmatprep.subr.bf16.mxu0 %v8373
      %8778 = vmatpush1.bf16.msra.mxu0 %v8372
      %8779 = vmatprep.subr.bf16.mxu0 %v8377
      %8780 = vmatpush1.bf16.msra.mxu0 %v8376
      %8781 = vmatprep.subr.bf16.mxu0 %v8381
      %8782 = vmatpush1.bf16.msra.mxu0 %v8380
      %8783 = vmatprep.subr.bf16.mxu0 %v8385
      %8784 = vmatpush1.bf16.msra.mxu0 %v8384
      %8785 = vmatprep.subr.bf16.mxu0 %v8389
      %8786 = vmatpush1.bf16.msra.mxu0 %v8388
      %8787 = vmatprep.subr.bf16.mxu0 %v8393
      %8788 = vmatpush1.bf16.msra.mxu0 %v8392
      %8789 = vmatprep.subr.bf16.mxu0 %v8397
      %8790 = vmatpush1.bf16.msra.mxu0 %v8396
      %8791 = vmatprep.subr.bf16.mxu0 %v8401
      %8792 = vmatpush1.bf16.msra.mxu0 %v8400
      %8793 = vmatprep.subr.bf16.mxu0 %v8405
      %8794 = vmatpush1.bf16.msra.mxu0 %v8404
      %8795 = vmatprep.subr.bf16.mxu0 %v8409
      %8796 = vmatpush1.bf16.msra.mxu0 %v8408
      %8797 = vmatprep.subr.bf16.mxu0 %v8413
      %8798 = vmatpush1.bf16.msra.mxu0 %v8412
      %8799 = vmatprep.subr.bf16.mxu0 %v8417
      %8800 = vmatpush1.bf16.msra.mxu0 %v8416
      %8801 = vmatprep.subr.bf16.mxu0 %v8421
      %8802 = vmatpush1.bf16.msra.mxu0 %v8420
      %8803 = vmatprep.subr.bf16.mxu0 %v8425
      %8804 = vmatpush1.bf16.msra.mxu0 %v8424
      %8805 = vmatprep.mubr.bf16.mxu0 %v6695
      %8806 = vmatmul.mubr.bf16.gmra.mrb[0].mxu0 %v6694
      %v8807 = vpop.f32.mrb[0].mxu0
      %v8808 = vadd.f32 %v8735, %v8807
      %v8809 = vpop.f32.mrb[0].mxu0
      %v8810 = vadd.f32 %v8737, %v8809
      %v8811 = vpop.f32.mrb[0].mxu0
      %v8812 = vadd.f32 %v8739, %v8811
      %v8813 = vpop.f32.mrb[0].mxu0
      %v8814 = vadd.f32 %v8741, %v8813
      %8815 = vmatprep.mubr.bf16.mxu0 %v6699
      %8816 = vmatmul.mubr.bf16.gmra.mrb[0].mxu0 %v6698
      %v8817 = vpop.f32.mrb[0].mxu0
      %v8818 = vadd.f32 %v8745, %v8817
      %v8819 = vpop.f32.mrb[0].mxu0
      %v8820 = vadd.f32 %v8747, %v8819
      %v8821 = vpop.f32.mrb[0].mxu0
      %v8822 = vadd.f32 %v8749, %v8821
      %v8823 = vpop.f32.mrb[0].mxu0
      %v8824 = vadd.f32 %v8751, %v8823
      %8825 = vmatprep.mubr.bf16.mxu0 %v6703
      %8826 = vmatmul.mubr.bf16.gmra.mrb[0].mxu0 %v6702
      %v8827 = vpop.f32.mrb[0].mxu0
      %v8828 = vadd.f32 %v8755, %v8827
      %v8829 = vpop.f32.mrb[0].mxu0
      %v8830 = vadd.f32 %v8757, %v8829
      %v8831 = vpop.f32.mrb[0].mxu0
      %v8832 = vadd.f32 %v8759, %v8831
      %v8833 = vpop.f32.mrb[0].mxu0
      %v8834 = vadd.f32 %v8761, %v8833
      %8835 = vmatprep.mubr.bf16.mxu0 %v6707
      %8836 = vmatmul.mubr.bf16.gmra.mrb[0].mxu0 %v6706
      %v8837 = vpop.f32.mrb[0].mxu0
      %v8838 = vadd.f32 %v8765, %v8837
      %v8839 = vpop.f32.mrb[0].mxu0
      %v8840 = vadd.f32 %v8767, %v8839
      %v8841 = vpop.f32.mrb[0].mxu0
      %v8842 = vadd.f32 %v8769, %v8841
      %v8843 = vpop.f32.mrb[0].mxu0
      %v8844 = vadd.f32 %v8771, %v8843
      %8845 = vdwg.mxu0
      %v8846 = vpack.c.bf16 %v6664, %v6660
      %v8847 = vpack.c.bf16 %v6665, %v6661
      %v8848 = vpack.c.bf16 %v6666, %v6662
      %v8849 = vpack.c.bf16 %v6667, %v6663
      %v8850 = vpack.c.bf16 %v6672, %v6668
      %v8851 = vpack.c.bf16 %v6673, %v6669
      %v8852 = vpack.c.bf16 %v6674, %v6670
      %v8853 = vpack.c.bf16 %v6675, %v6671
      %v8854 = vpack.c.bf16 %v6680, %v6676
      %v8855 = vpack.c.bf16 %v6681, %v6677
      %v8856 = vpack.c.bf16 %v6682, %v6678
      %v8857 = vpack.c.bf16 %v6683, %v6679
      %v8858 = vpack.c.bf16 %v6688, %v6684
      %v8859 = vpack.c.bf16 %v6689, %v6685
      %v8860 = vpack.c.bf16 %v6690, %v6686
      %v8861 = vpack.c.bf16 %v6691, %v6687
      %s8862 = scalar_lea.vmem %s5, 5120
      %v8863 = vld [vmem:[%s8862] sm:$0xff]
      %v8864 = vld [vmem:[%s8862 + $0x8] sm:$0xff]
      %v8865 = vld [vmem:[%s8862 + $0x10] sm:$0xff]
      %v8866 = vld [vmem:[%s8862 + $0x18] sm:$0xff]
      %v8867 = vld [vmem:[%s8862 + $0x20] sm:$0xff]
      %v8868 = vld [vmem:[%s8862 + $0x28] sm:$0xff]
      %v8869 = vld [vmem:[%s8862 + $0x30] sm:$0xff]
      %v8870 = vld [vmem:[%s8862 + $0x38] sm:$0xff]
      %v8871 = vld [vmem:[%s8862 + $0x40] sm:$0xff]
      %v8872 = vld [vmem:[%s8862 + $0x48] sm:$0xff]
      %v8873 = vld [vmem:[%s8862 + $0x50] sm:$0xff]
      %v8874 = vld [vmem:[%s8862 + $0x58] sm:$0xff]
      %v8875 = vld [vmem:[%s8862 + $0x60] sm:$0xff]
      %v8876 = vld [vmem:[%s8862 + $0x68] sm:$0xff]
      %v8877 = vld [vmem:[%s8862 + $0x70] sm:$0xff]
      %v8878 = vld [vmem:[%s8862 + $0x78] sm:$0xff]
      %v8879 = vld [vmem:[%s8862 + $0x80] sm:$0xff]
      %v8880 = vld [vmem:[%s8862 + $0x88] sm:$0xff]
      %v8881 = vld [vmem:[%s8862 + $0x90] sm:$0xff]
      %v8882 = vld [vmem:[%s8862 + $0x98] sm:$0xff]
      %v8883 = vld [vmem:[%s8862 + $0xa0] sm:$0xff]
      %v8884 = vld [vmem:[%s8862 + $0xa8] sm:$0xff]
      %v8885 = vld [vmem:[%s8862 + $0xb0] sm:$0xff]
      %v8886 = vld [vmem:[%s8862 + $0xb8] sm:$0xff]
      %v8887 = vld [vmem:[%s8862 + $0xc0] sm:$0xff]
      %v8888 = vld [vmem:[%s8862 + $0xc8] sm:$0xff]
      %v8889 = vld [vmem:[%s8862 + $0xd0] sm:$0xff]
      %v8890 = vld [vmem:[%s8862 + $0xd8] sm:$0xff]
      %v8891 = vld [vmem:[%s8862 + $0xe0] sm:$0xff]
      %v8892 = vld [vmem:[%s8862 + $0xe8] sm:$0xff]
      %v8893 = vld [vmem:[%s8862 + $0xf0] sm:$0xff]
      %v8894 = vld [vmem:[%s8862 + $0xf8] sm:$0xff]
      %v8895 = vld [vmem:[%s8862 + $0x100] sm:$0xff]
      %v8896 = vld [vmem:[%s8862 + $0x108] sm:$0xff]
      %v8897 = vld [vmem:[%s8862 + $0x110] sm:$0xff]
      %v8898 = vld [vmem:[%s8862 + $0x118] sm:$0xff]
      %v8899 = vld [vmem:[%s8862 + $0x120] sm:$0xff]
      %v8900 = vld [vmem:[%s8862 + $0x128] sm:$0xff]
      %v8901 = vld [vmem:[%s8862 + $0x130] sm:$0xff]
      %v8902 = vld [vmem:[%s8862 + $0x138] sm:$0xff]
      %v8903 = vld [vmem:[%s8862 + $0x140] sm:$0xff]
      %v8904 = vld [vmem:[%s8862 + $0x148] sm:$0xff]
      %v8905 = vld [vmem:[%s8862 + $0x150] sm:$0xff]
      %v8906 = vld [vmem:[%s8862 + $0x158] sm:$0xff]
      %v8907 = vld [vmem:[%s8862 + $0x160] sm:$0xff]
      %v8908 = vld [vmem:[%s8862 + $0x168] sm:$0xff]
      %v8909 = vld [vmem:[%s8862 + $0x170] sm:$0xff]
      %v8910 = vld [vmem:[%s8862 + $0x178] sm:$0xff]
      %v8911 = vld [vmem:[%s8862 + $0x180] sm:$0xff]
      %v8912 = vld [vmem:[%s8862 + $0x188] sm:$0xff]
      %v8913 = vld [vmem:[%s8862 + $0x190] sm:$0xff]
      %v8914 = vld [vmem:[%s8862 + $0x198] sm:$0xff]
      %v8915 = vld [vmem:[%s8862 + $0x1a0] sm:$0xff]
      %v8916 = vld [vmem:[%s8862 + $0x1a8] sm:$0xff]
      %v8917 = vld [vmem:[%s8862 + $0x1b0] sm:$0xff]
      %v8918 = vld [vmem:[%s8862 + $0x1b8] sm:$0xff]
      %v8919 = vld [vmem:[%s8862 + $0x1c0] sm:$0xff]
      %v8920 = vld [vmem:[%s8862 + $0x1c8] sm:$0xff]
      %v8921 = vld [vmem:[%s8862 + $0x1d0] sm:$0xff]
      %v8922 = vld [vmem:[%s8862 + $0x1d8] sm:$0xff]
      %v8923 = vld [vmem:[%s8862 + $0x1e0] sm:$0xff]
      %v8924 = vld [vmem:[%s8862 + $0x1e8] sm:$0xff]
      %v8925 = vld [vmem:[%s8862 + $0x1f0] sm:$0xff]
      %v8926 = vld [vmem:[%s8862 + $0x1f8] sm:$0xff]
      %v8927 = vld [vmem:[%s8862 + $0x200] sm:$0xff]
      %v8928 = vld [vmem:[%s8862 + $0x208] sm:$0xff]
      %v8929 = vld [vmem:[%s8862 + $0x210] sm:$0xff]
      %v8930 = vld [vmem:[%s8862 + $0x218] sm:$0xff]
      %v8931 = vld [vmem:[%s8862 + $0x220] sm:$0xff]
      %v8932 = vld [vmem:[%s8862 + $0x228] sm:$0xff]
      %v8933 = vld [vmem:[%s8862 + $0x230] sm:$0xff]
      %v8934 = vld [vmem:[%s8862 + $0x238] sm:$0xff]
      %v8935 = vld [vmem:[%s8862 + $0x240] sm:$0xff]
      %v8936 = vld [vmem:[%s8862 + $0x248] sm:$0xff]
      %v8937 = vld [vmem:[%s8862 + $0x250] sm:$0xff]
      %v8938 = vld [vmem:[%s8862 + $0x258] sm:$0xff]
      %v8939 = vld [vmem:[%s8862 + $0x260] sm:$0xff]
      %v8940 = vld [vmem:[%s8862 + $0x268] sm:$0xff]
      %v8941 = vld [vmem:[%s8862 + $0x270] sm:$0xff]
      %v8942 = vld [vmem:[%s8862 + $0x278] sm:$0xff]
      %v8943 = vld [vmem:[%s8862 + $0x280] sm:$0xff]
      %v8944 = vld [vmem:[%s8862 + $0x288] sm:$0xff]
      %v8945 = vld [vmem:[%s8862 + $0x290] sm:$0xff]
      %v8946 = vld [vmem:[%s8862 + $0x298] sm:$0xff]
      %v8947 = vld [vmem:[%s8862 + $0x2a0] sm:$0xff]
      %v8948 = vld [vmem:[%s8862 + $0x2a8] sm:$0xff]
      %v8949 = vld [vmem:[%s8862 + $0x2b0] sm:$0xff]
      %v8950 = vld [vmem:[%s8862 + $0x2b8] sm:$0xff]
      %v8951 = vld [vmem:[%s8862 + $0x2c0] sm:$0xff]
      %v8952 = vld [vmem:[%s8862 + $0x2c8] sm:$0xff]
      %v8953 = vld [vmem:[%s8862 + $0x2d0] sm:$0xff]
      %v8954 = vld [vmem:[%s8862 + $0x2d8] sm:$0xff]
      %v8955 = vld [vmem:[%s8862 + $0x2e0] sm:$0xff]
      %v8956 = vld [vmem:[%s8862 + $0x2e8] sm:$0xff]
      %v8957 = vld [vmem:[%s8862 + $0x2f0] sm:$0xff]
      %v8958 = vld [vmem:[%s8862 + $0x2f8] sm:$0xff]
      %v8959 = vld [vmem:[%s8862 + $0x300] sm:$0xff]
      %v8960 = vld [vmem:[%s8862 + $0x308] sm:$0xff]
      %v8961 = vld [vmem:[%s8862 + $0x310] sm:$0xff]
      %v8962 = vld [vmem:[%s8862 + $0x318] sm:$0xff]
      %v8963 = vld [vmem:[%s8862 + $0x320] sm:$0xff]
      %v8964 = vld [vmem:[%s8862 + $0x328] sm:$0xff]
      %v8965 = vld [vmem:[%s8862 + $0x330] sm:$0xff]
      %v8966 = vld [vmem:[%s8862 + $0x338] sm:$0xff]
      %v8967 = vld [vmem:[%s8862 + $0x340] sm:$0xff]
      %v8968 = vld [vmem:[%s8862 + $0x348] sm:$0xff]
      %v8969 = vld [vmem:[%s8862 + $0x350] sm:$0xff]
      %v8970 = vld [vmem:[%s8862 + $0x358] sm:$0xff]
      %v8971 = vld [vmem:[%s8862 + $0x360] sm:$0xff]
      %v8972 = vld [vmem:[%s8862 + $0x368] sm:$0xff]
      %v8973 = vld [vmem:[%s8862 + $0x370] sm:$0xff]
      %v8974 = vld [vmem:[%s8862 + $0x378] sm:$0xff]
      %v8975 = vld [vmem:[%s8862 + $0x380] sm:$0xff]
      %v8976 = vld [vmem:[%s8862 + $0x388] sm:$0xff]
      %v8977 = vld [vmem:[%s8862 + $0x390] sm:$0xff]
      %v8978 = vld [vmem:[%s8862 + $0x398] sm:$0xff]
      %v8979 = vld [vmem:[%s8862 + $0x3a0] sm:$0xff]
      %v8980 = vld [vmem:[%s8862 + $0x3a8] sm:$0xff]
      %v8981 = vld [vmem:[%s8862 + $0x3b0] sm:$0xff]
      %v8982 = vld [vmem:[%s8862 + $0x3b8] sm:$0xff]
      %v8983 = vld [vmem:[%s8862 + $0x3c0] sm:$0xff]
      %v8984 = vld [vmem:[%s8862 + $0x3c8] sm:$0xff]
      %v8985 = vld [vmem:[%s8862 + $0x3d0] sm:$0xff]
      %v8986 = vld [vmem:[%s8862 + $0x3d8] sm:$0xff]
      %v8987 = vld [vmem:[%s8862 + $0x3e0] sm:$0xff]
      %v8988 = vld [vmem:[%s8862 + $0x3e8] sm:$0xff]
      %v8989 = vld [vmem:[%s8862 + $0x3f0] sm:$0xff]
      %v8990 = vld [vmem:[%s8862 + $0x3f8] sm:$0xff]
      %v9119 = vunpack.c.l.b16 %v8863
      %v9120 = vunpack.c.h.b16 %v8863
      %v9121 = vunpack.c.l.b16 %v8864
      %v9122 = vunpack.c.h.b16 %v8864
      %v9123 = vunpack.c.l.b16 %v8865
      %v9124 = vunpack.c.h.b16 %v8865
      %v9125 = vunpack.c.l.b16 %v8866
      %v9126 = vunpack.c.h.b16 %v8866
      %v9127 = vunpack.c.l.b16 %v8867
      %v9128 = vunpack.c.h.b16 %v8867
      %v9129 = vunpack.c.l.b16 %v8868
      %v9130 = vunpack.c.h.b16 %v8868
      %v9131 = vunpack.c.l.b16 %v8869
      %v9132 = vunpack.c.h.b16 %v8869
      %v9133 = vunpack.c.l.b16 %v8870
      %v9134 = vunpack.c.h.b16 %v8870
      %v9135 = vunpack.c.l.b16 %v8871
      %v9136 = vunpack.c.h.b16 %v8871
      %v9137 = vunpack.c.l.b16 %v8872
      %v9138 = vunpack.c.h.b16 %v8872
      %v9139 = vunpack.c.l.b16 %v8873
      %v9140 = vunpack.c.h.b16 %v8873
      %v9141 = vunpack.c.l.b16 %v8874
      %v9142 = vunpack.c.h.b16 %v8874
      %v9143 = vunpack.c.l.b16 %v8875
      %v9144 = vunpack.c.h.b16 %v8875
      %v9145 = vunpack.c.l.b16 %v8876
      %v9146 = vunpack.c.h.b16 %v8876
      %v9147 = vunpack.c.l.b16 %v8877
      %v9148 = vunpack.c.h.b16 %v8877
      %v9149 = vunpack.c.l.b16 %v8878
      %v9150 = vunpack.c.h.b16 %v8878
      %v9151 = vunpack.c.l.b16 %v8879
      %v9152 = vunpack.c.h.b16 %v8879
      %v9153 = vunpack.c.l.b16 %v8880
      %v9154 = vunpack.c.h.b16 %v8880
      %v9155 = vunpack.c.l.b16 %v8881
      %v9156 = vunpack.c.h.b16 %v8881
      %v9157 = vunpack.c.l.b16 %v8882
      %v9158 = vunpack.c.h.b16 %v8882
      %v9159 = vunpack.c.l.b16 %v8883
      %v9160 = vunpack.c.h.b16 %v8883
      %v9161 = vunpack.c.l.b16 %v8884
      %v9162 = vunpack.c.h.b16 %v8884
      %v9163 = vunpack.c.l.b16 %v8885
      %v9164 = vunpack.c.h.b16 %v8885
      %v9165 = vunpack.c.l.b16 %v8886
      %v9166 = vunpack.c.h.b16 %v8886
      %v9167 = vunpack.c.l.b16 %v8887
      %v9168 = vunpack.c.h.b16 %v8887
      %v9169 = vunpack.c.l.b16 %v8888
      %v9170 = vunpack.c.h.b16 %v8888
      %v9171 = vunpack.c.l.b16 %v8889
      %v9172 = vunpack.c.h.b16 %v8889
      %v9173 = vunpack.c.l.b16 %v8890
      %v9174 = vunpack.c.h.b16 %v8890
      %v9175 = vunpack.c.l.b16 %v8891
      %v9176 = vunpack.c.h.b16 %v8891
      %v9177 = vunpack.c.l.b16 %v8892
      %v9178 = vunpack.c.h.b16 %v8892
      %v9179 = vunpack.c.l.b16 %v8893
      %v9180 = vunpack.c.h.b16 %v8893
      %v9181 = vunpack.c.l.b16 %v8894
      %v9182 = vunpack.c.h.b16 %v8894
      %v9183 = vunpack.c.l.b16 %v8895
      %v9184 = vunpack.c.h.b16 %v8895
      %v9185 = vunpack.c.l.b16 %v8896
      %v9186 = vunpack.c.h.b16 %v8896
      %v9187 = vunpack.c.l.b16 %v8897
      %v9188 = vunpack.c.h.b16 %v8897
      %v9189 = vunpack.c.l.b16 %v8898
      %v9190 = vunpack.c.h.b16 %v8898
      %v9191 = vunpack.c.l.b16 %v8899
      %v9192 = vunpack.c.h.b16 %v8899
      %v9193 = vunpack.c.l.b16 %v8900
      %v9194 = vunpack.c.h.b16 %v8900
      %v9195 = vunpack.c.l.b16 %v8901
      %v9196 = vunpack.c.h.b16 %v8901
      %v9197 = vunpack.c.l.b16 %v8902
      %v9198 = vunpack.c.h.b16 %v8902
      %v9199 = vunpack.c.l.b16 %v8903
      %v9200 = vunpack.c.h.b16 %v8903
      %v9201 = vunpack.c.l.b16 %v8904
      %v9202 = vunpack.c.h.b16 %v8904
      %v9203 = vunpack.c.l.b16 %v8905
      %v9204 = vunpack.c.h.b16 %v8905
      %v9205 = vunpack.c.l.b16 %v8906
      %v9206 = vunpack.c.h.b16 %v8906
      %v9207 = vunpack.c.l.b16 %v8907
      %v9208 = vunpack.c.h.b16 %v8907
      %v9209 = vunpack.c.l.b16 %v8908
      %v9210 = vunpack.c.h.b16 %v8908
      %v9211 = vunpack.c.l.b16 %v8909
      %v9212 = vunpack.c.h.b16 %v8909
      %v9213 = vunpack.c.l.b16 %v8910
      %v9214 = vunpack.c.h.b16 %v8910
      %v9215 = vunpack.c.l.b16 %v8911
      %v9216 = vunpack.c.h.b16 %v8911
      %v9217 = vunpack.c.l.b16 %v8912
      %v9218 = vunpack.c.h.b16 %v8912
      %v9219 = vunpack.c.l.b16 %v8913
      %v9220 = vunpack.c.h.b16 %v8913
      %v9221 = vunpack.c.l.b16 %v8914
      %v9222 = vunpack.c.h.b16 %v8914
      %v9223 = vunpack.c.l.b16 %v8915
      %v9224 = vunpack.c.h.b16 %v8915
      %v9225 = vunpack.c.l.b16 %v8916
      %v9226 = vunpack.c.h.b16 %v8916
      %v9227 = vunpack.c.l.b16 %v8917
      %v9228 = vunpack.c.h.b16 %v8917
      %v9229 = vunpack.c.l.b16 %v8918
      %v9230 = vunpack.c.h.b16 %v8918
      %v9231 = vunpack.c.l.b16 %v8919
      %v9232 = vunpack.c.h.b16 %v8919
      %v9233 = vunpack.c.l.b16 %v8920
      %v9234 = vunpack.c.h.b16 %v8920
      %v9235 = vunpack.c.l.b16 %v8921
      %v9236 = vunpack.c.h.b16 %v8921
      %v9237 = vunpack.c.l.b16 %v8922
      %v9238 = vunpack.c.h.b16 %v8922
      %v9239 = vunpack.c.l.b16 %v8923
      %v9240 = vunpack.c.h.b16 %v8923
      %v9241 = vunpack.c.l.b16 %v8924
      %v9242 = vunpack.c.h.b16 %v8924
      %v9243 = vunpack.c.l.b16 %v8925
      %v9244 = vunpack.c.h.b16 %v8925
      %v9245 = vunpack.c.l.b16 %v8926
      %v9246 = vunpack.c.h.b16 %v8926
      %v9247 = vunpack.c.l.b16 %v8927
      %v9248 = vunpack.c.h.b16 %v8927
      %v9249 = vunpack.c.l.b16 %v8928
      %v9250 = vunpack.c.h.b16 %v8928
      %v9251 = vunpack.c.l.b16 %v8929
      %v9252 = vunpack.c.h.b16 %v8929
      %v9253 = vunpack.c.l.b16 %v8930
      %v9254 = vunpack.c.h.b16 %v8930
      %v9255 = vunpack.c.l.b16 %v8931
      %v9256 = vunpack.c.h.b16 %v8931
      %v9257 = vunpack.c.l.b16 %v8932
      %v9258 = vunpack.c.h.b16 %v8932
      %v9259 = vunpack.c.l.b16 %v8933
      %v9260 = vunpack.c.h.b16 %v8933
      %v9261 = vunpack.c.l.b16 %v8934
      %v9262 = vunpack.c.h.b16 %v8934
      %v9263 = vunpack.c.l.b16 %v8935
      %v9264 = vunpack.c.h.b16 %v8935
      %v9265 = vunpack.c.l.b16 %v8936
      %v9266 = vunpack.c.h.b16 %v8936
      %v9267 = vunpack.c.l.b16 %v8937
      %v9268 = vunpack.c.h.b16 %v8937
      %v9269 = vunpack.c.l.b16 %v8938
      %v9270 = vunpack.c.h.b16 %v8938
      %v9271 = vunpack.c.l.b16 %v8939
      %v9272 = vunpack.c.h.b16 %v8939
      %v9273 = vunpack.c.l.b16 %v8940
      %v9274 = vunpack.c.h.b16 %v8940
      %v9275 = vunpack.c.l.b16 %v8941
      %v9276 = vunpack.c.h.b16 %v8941
      %v9277 = vunpack.c.l.b16 %v8942
      %v9278 = vunpack.c.h.b16 %v8942
      %v9279 = vunpack.c.l.b16 %v8943
      %v9280 = vunpack.c.h.b16 %v8943
      %v9281 = vunpack.c.l.b16 %v8944
      %v9282 = vunpack.c.h.b16 %v8944
      %v9283 = vunpack.c.l.b16 %v8945
      %v9284 = vunpack.c.h.b16 %v8945
      %v9285 = vunpack.c.l.b16 %v8946
      %v9286 = vunpack.c.h.b16 %v8946
      %v9287 = vunpack.c.l.b16 %v8947
      %v9288 = vunpack.c.h.b16 %v8947
      %v9289 = vunpack.c.l.b16 %v8948
      %v9290 = vunpack.c.h.b16 %v8948
      %v9291 = vunpack.c.l.b16 %v8949
      %v9292 = vunpack.c.h.b16 %v8949
      %v9293 = vunpack.c.l.b16 %v8950
      %v9294 = vunpack.c.h.b16 %v8950
      %v9295 = vunpack.c.l.b16 %v8951
      %v9296 = vunpack.c.h.b16 %v8951
      %v9297 = vunpack.c.l.b16 %v8952
      %v9298 = vunpack.c.h.b16 %v8952
      %v9299 = vunpack.c.l.b16 %v8953
      %v9300 = vunpack.c.h.b16 %v8953
      %v9301 = vunpack.c.l.b16 %v8954
      %v9302 = vunpack.c.h.b16 %v8954
      %v9303 = vunpack.c.l.b16 %v8955
      %v9304 = vunpack.c.h.b16 %v8955
      %v9305 = vunpack.c.l.b16 %v8956
      %v9306 = vunpack.c.h.b16 %v8956
      %v9307 = vunpack.c.l.b16 %v8957
      %v9308 = vunpack.c.h.b16 %v8957
      %v9309 = vunpack.c.l.b16 %v8958
      %v9310 = vunpack.c.h.b16 %v8958
      %v9311 = vunpack.c.l.b16 %v8959
      %v9312 = vunpack.c.h.b16 %v8959
      %v9313 = vunpack.c.l.b16 %v8960
      %v9314 = vunpack.c.h.b16 %v8960
      %v9315 = vunpack.c.l.b16 %v8961
      %v9316 = vunpack.c.h.b16 %v8961
      %v9317 = vunpack.c.l.b16 %v8962
      %v9318 = vunpack.c.h.b16 %v8962
      %v9319 = vunpack.c.l.b16 %v8963
      %v9320 = vunpack.c.h.b16 %v8963
      %v9321 = vunpack.c.l.b16 %v8964
      %v9322 = vunpack.c.h.b16 %v8964
      %v9323 = vunpack.c.l.b16 %v8965
      %v9324 = vunpack.c.h.b16 %v8965
      %v9325 = vunpack.c.l.b16 %v8966
      %v9326 = vunpack.c.h.b16 %v8966
      %v9327 = vunpack.c.l.b16 %v8967
      %v9328 = vunpack.c.h.b16 %v8967
      %v9329 = vunpack.c.l.b16 %v8968
      %v9330 = vunpack.c.h.b16 %v8968
      %v9331 = vunpack.c.l.b16 %v8969
      %v9332 = vunpack.c.h.b16 %v8969
      %v9333 = vunpack.c.l.b16 %v8970
      %v9334 = vunpack.c.h.b16 %v8970
      %v9335 = vunpack.c.l.b16 %v8971
      %v9336 = vunpack.c.h.b16 %v8971
      %v9337 = vunpack.c.l.b16 %v8972
      %v9338 = vunpack.c.h.b16 %v8972
      %v9339 = vunpack.c.l.b16 %v8973
      %v9340 = vunpack.c.h.b16 %v8973
      %v9341 = vunpack.c.l.b16 %v8974
      %v9342 = vunpack.c.h.b16 %v8974
      %v9343 = vunpack.c.l.b16 %v8975
      %v9344 = vunpack.c.h.b16 %v8975
      %v9345 = vunpack.c.l.b16 %v8976
      %v9346 = vunpack.c.h.b16 %v8976
      %v9347 = vunpack.c.l.b16 %v8977
      %v9348 = vunpack.c.h.b16 %v8977
      %v9349 = vunpack.c.l.b16 %v8978
      %v9350 = vunpack.c.h.b16 %v8978
      %v9351 = vunpack.c.l.b16 %v8979
      %v9352 = vunpack.c.h.b16 %v8979
      %v9353 = vunpack.c.l.b16 %v8980
      %v9354 = vunpack.c.h.b16 %v8980
      %v9355 = vunpack.c.l.b16 %v8981
      %v9356 = vunpack.c.h.b16 %v8981
      %v9357 = vunpack.c.l.b16 %v8982
      %v9358 = vunpack.c.h.b16 %v8982
      %v9359 = vunpack.c.l.b16 %v8983
      %v9360 = vunpack.c.h.b16 %v8983
      %v9361 = vunpack.c.l.b16 %v8984
      %v9362 = vunpack.c.h.b16 %v8984
      %v9363 = vunpack.c.l.b16 %v8985
      %v9364 = vunpack.c.h.b16 %v8985
      %v9365 = vunpack.c.l.b16 %v8986
      %v9366 = vunpack.c.h.b16 %v8986
      %v9367 = vunpack.c.l.b16 %v8987
      %v9368 = vunpack.c.h.b16 %v8987
      %v9369 = vunpack.c.l.b16 %v8988
      %v9370 = vunpack.c.h.b16 %v8988
      %v9371 = vunpack.c.l.b16 %v8989
      %v9372 = vunpack.c.h.b16 %v8989
      %v9373 = vunpack.c.l.b16 %v8990
      %v9374 = vunpack.c.h.b16 %v8990
      %v9375 = vpack.c.b16 %v9123, %v9119
      %v9376 = vpack.c.b16 %v9124, %v9120
      %v9377 = vpack.c.b16 %v9125, %v9121
      %v9378 = vpack.c.b16 %v9126, %v9122
      %v9379 = vpack.c.b16 %v9131, %v9127
      %v9380 = vpack.c.b16 %v9132, %v9128
      %v9381 = vpack.c.b16 %v9133, %v9129
      %v9382 = vpack.c.b16 %v9134, %v9130
      %v9383 = vpack.c.b16 %v9139, %v9135
      %v9384 = vpack.c.b16 %v9140, %v9136
      %v9385 = vpack.c.b16 %v9141, %v9137
      %v9386 = vpack.c.b16 %v9142, %v9138
      %v9387 = vpack.c.b16 %v9147, %v9143
      %v9388 = vpack.c.b16 %v9148, %v9144
      %v9389 = vpack.c.b16 %v9149, %v9145
      %v9390 = vpack.c.b16 %v9150, %v9146
      %v9391 = vpack.c.b16 %v9155, %v9151
      %v9392 = vpack.c.b16 %v9156, %v9152
      %v9393 = vpack.c.b16 %v9157, %v9153
      %v9394 = vpack.c.b16 %v9158, %v9154
      %v9395 = vpack.c.b16 %v9163, %v9159
      %v9396 = vpack.c.b16 %v9164, %v9160
      %v9397 = vpack.c.b16 %v9165, %v9161
      %v9398 = vpack.c.b16 %v9166, %v9162
      %v9399 = vpack.c.b16 %v9171, %v9167
      %v9400 = vpack.c.b16 %v9172, %v9168
      %v9401 = vpack.c.b16 %v9173, %v9169
      %v9402 = vpack.c.b16 %v9174, %v9170
      %v9403 = vpack.c.b16 %v9179, %v9175
      %v9404 = vpack.c.b16 %v9180, %v9176
      %v9405 = vpack.c.b16 %v9181, %v9177
      %v9406 = vpack.c.b16 %v9182, %v9178
      %v9407 = vpack.c.b16 %v9187, %v9183
      %v9408 = vpack.c.b16 %v9188, %v9184
      %v9409 = vpack.c.b16 %v9189, %v9185
      %v9410 = vpack.c.b16 %v9190, %v9186
      %v9411 = vpack.c.b16 %v9195, %v9191
      %v9412 = vpack.c.b16 %v9196, %v9192
      %v9413 = vpack.c.b16 %v9197, %v9193
      %v9414 = vpack.c.b16 %v9198, %v9194
      %v9415 = vpack.c.b16 %v9203, %v9199
      %v9416 = vpack.c.b16 %v9204, %v9200
      %v9417 = vpack.c.b16 %v9205, %v9201
      %v9418 = vpack.c.b16 %v9206, %v9202
      %v9419 = vpack.c.b16 %v9211, %v9207
      %v9420 = vpack.c.b16 %v9212, %v9208
      %v9421 = vpack.c.b16 %v9213, %v9209
      %v9422 = vpack.c.b16 %v9214, %v9210
      %v9423 = vpack.c.b16 %v9219, %v9215
      %v9424 = vpack.c.b16 %v9220, %v9216
      %v9425 = vpack.c.b16 %v9221, %v9217
      %v9426 = vpack.c.b16 %v9222, %v9218
      %v9427 = vpack.c.b16 %v9227, %v9223
      %v9428 = vpack.c.b16 %v9228, %v9224
      %v9429 = vpack.c.b16 %v9229, %v9225
      %v9430 = vpack.c.b16 %v9230, %v9226
      %v9431 = vpack.c.b16 %v9235, %v9231
      %v9432 = vpack.c.b16 %v9236, %v9232
      %v9433 = vpack.c.b16 %v9237, %v9233
      %v9434 = vpack.c.b16 %v9238, %v9234
      %v9435 = vpack.c.b16 %v9243, %v9239
      %v9436 = vpack.c.b16 %v9244, %v9240
      %v9437 = vpack.c.b16 %v9245, %v9241
      %v9438 = vpack.c.b16 %v9246, %v9242
      %v9439 = vpack.c.b16 %v9251, %v9247
      %v9440 = vpack.c.b16 %v9252, %v9248
      %v9441 = vpack.c.b16 %v9253, %v9249
      %v9442 = vpack.c.b16 %v9254, %v9250
      %v9443 = vpack.c.b16 %v9259, %v9255
      %v9444 = vpack.c.b16 %v9260, %v9256
      %v9445 = vpack.c.b16 %v9261, %v9257
      %v9446 = vpack.c.b16 %v9262, %v9258
      %v9447 = vpack.c.b16 %v9267, %v9263
      %v9448 = vpack.c.b16 %v9268, %v9264
      %v9449 = vpack.c.b16 %v9269, %v9265
      %v9450 = vpack.c.b16 %v9270, %v9266
      %v9451 = vpack.c.b16 %v9275, %v9271
      %v9452 = vpack.c.b16 %v9276, %v9272
      %v9453 = vpack.c.b16 %v9277, %v9273
      %v9454 = vpack.c.b16 %v9278, %v9274
      %v9455 = vpack.c.b16 %v9283, %v9279
      %v9456 = vpack.c.b16 %v9284, %v9280
      %v9457 = vpack.c.b16 %v9285, %v9281
      %v9458 = vpack.c.b16 %v9286, %v9282
      %v9459 = vpack.c.b16 %v9291, %v9287
      %v9460 = vpack.c.b16 %v9292, %v9288
      %v9461 = vpack.c.b16 %v9293, %v9289
      %v9462 = vpack.c.b16 %v9294, %v9290
      %v9463 = vpack.c.b16 %v9299, %v9295
      %v9464 = vpack.c.b16 %v9300, %v9296
      %v9465 = vpack.c.b16 %v9301, %v9297
      %v9466 = vpack.c.b16 %v9302, %v9298
      %v9467 = vpack.c.b16 %v9307, %v9303
      %v9468 = vpack.c.b16 %v9308, %v9304
      %v9469 = vpack.c.b16 %v9309, %v9305
      %v9470 = vpack.c.b16 %v9310, %v9306
      %v9471 = vpack.c.b16 %v9315, %v9311
      %v9472 = vpack.c.b16 %v9316, %v9312
      %v9473 = vpack.c.b16 %v9317, %v9313
      %v9474 = vpack.c.b16 %v9318, %v9314
      %v9475 = vpack.c.b16 %v9323, %v9319
      %v9476 = vpack.c.b16 %v9324, %v9320
      %v9477 = vpack.c.b16 %v9325, %v9321
      %v9478 = vpack.c.b16 %v9326, %v9322
      %v9479 = vpack.c.b16 %v9331, %v9327
      %v9480 = vpack.c.b16 %v9332, %v9328
      %v9481 = vpack.c.b16 %v9333, %v9329
      %v9482 = vpack.c.b16 %v9334, %v9330
      %v9483 = vpack.c.b16 %v9339, %v9335
      %v9484 = vpack.c.b16 %v9340, %v9336
      %v9485 = vpack.c.b16 %v9341, %v9337
      %v9486 = vpack.c.b16 %v9342, %v9338
      %v9487 = vpack.c.b16 %v9347, %v9343
      %v9488 = vpack.c.b16 %v9348, %v9344
      %v9489 = vpack.c.b16 %v9349, %v9345
      %v9490 = vpack.c.b16 %v9350, %v9346
      %v9491 = vpack.c.b16 %v9355, %v9351
      %v9492 = vpack.c.b16 %v9356, %v9352
      %v9493 = vpack.c.b16 %v9357, %v9353
      %v9494 = vpack.c.b16 %v9358, %v9354
      %v9495 = vpack.c.b16 %v9363, %v9359
      %v9496 = vpack.c.b16 %v9364, %v9360
      %v9497 = vpack.c.b16 %v9365, %v9361
      %v9498 = vpack.c.b16 %v9366, %v9362
      %v9499 = vpack.c.b16 %v9371, %v9367
      %v9500 = vpack.c.b16 %v9372, %v9368
      %v9501 = vpack.c.b16 %v9373, %v9369
      %v9502 = vpack.c.b16 %v9374, %v9370
      %9631 = vmatprep.subr.bf16.mxu0 %v9376
      %9632 = vmatpush1.bf16.msra.mxu0 %v9375
      %9633 = vmatprep.subr.bf16.mxu0 %v9380
      %9634 = vmatpush1.bf16.msra.mxu0 %v9379
      %9635 = vmatprep.subr.bf16.mxu0 %v9384
      %9636 = vmatpush1.bf16.msra.mxu0 %v9383
      %9637 = vmatprep.subr.bf16.mxu0 %v9388
      %9638 = vmatpush1.bf16.msra.mxu0 %v9387
      %9639 = vmatprep.subr.bf16.mxu0 %v9392
      %9640 = vmatpush1.bf16.msra.mxu0 %v9391
      %9641 = vmatprep.subr.bf16.mxu0 %v9396
      %9642 = vmatpush1.bf16.msra.mxu0 %v9395
      %9643 = vmatprep.subr.bf16.mxu0 %v9400
      %9644 = vmatpush1.bf16.msra.mxu0 %v9399
      %9645 = vmatprep.subr.bf16.mxu0 %v9404
      %9646 = vmatpush1.bf16.msra.mxu0 %v9403
      %9647 = vmatprep.subr.bf16.mxu0 %v9408
      %9648 = vmatpush1.bf16.msra.mxu0 %v9407
      %9649 = vmatprep.subr.bf16.mxu0 %v9412
      %9650 = vmatpush1.bf16.msra.mxu0 %v9411
      %9651 = vmatprep.subr.bf16.mxu0 %v9416
      %9652 = vmatpush1.bf16.msra.mxu0 %v9415
      %9653 = vmatprep.subr.bf16.mxu0 %v9420
      %9654 = vmatpush1.bf16.msra.mxu0 %v9419
      %9655 = vmatprep.subr.bf16.mxu0 %v9424
      %9656 = vmatpush1.bf16.msra.mxu0 %v9423
      %9657 = vmatprep.subr.bf16.mxu0 %v9428
      %9658 = vmatpush1.bf16.msra.mxu0 %v9427
      %9659 = vmatprep.subr.bf16.mxu0 %v9432
      %9660 = vmatpush1.bf16.msra.mxu0 %v9431
      %9661 = vmatprep.subr.bf16.mxu0 %v9436
      %9662 = vmatpush1.bf16.msra.mxu0 %v9435
      %9663 = vmatprep.mubr.bf16.mxu0 %v8847
      %9664 = vmatmul.mubr.bf16.gmra.mrb[0].mxu0 %v8846
      %v9665 = vpop.f32.mrb[0].mxu0
      %v9666 = vadd.f32 0.0, %v9665
      %v9667 = vpop.f32.mrb[0].mxu0
      %v9668 = vadd.f32 0.0, %v9667
      %v9669 = vpop.f32.mrb[0].mxu0
      %v9670 = vadd.f32 0.0, %v9669
      %v9671 = vpop.f32.mrb[0].mxu0
      %v9672 = vadd.f32 0.0, %v9671
      %9673 = vmatprep.mubr.bf16.mxu0 %v8851
      %9674 = vmatmul.mubr.bf16.gmra.mrb[0].mxu0 %v8850
      %v9675 = vpop.f32.mrb[0].mxu0
      %v9676 = vadd.f32 0.0, %v9675
      %v9677 = vpop.f32.mrb[0].mxu0
      %v9678 = vadd.f32 0.0, %v9677
      %v9679 = vpop.f32.mrb[0].mxu0
      %v9680 = vadd.f32 0.0, %v9679
      %v9681 = vpop.f32.mrb[0].mxu0
      %v9682 = vadd.f32 0.0, %v9681
      %9683 = vmatprep.mubr.bf16.mxu0 %v8855
      %9684 = vmatmul.mubr.bf16.gmra.mrb[0].mxu0 %v8854
      %v9685 = vpop.f32.mrb[0].mxu0
      %v9686 = vadd.f32 0.0, %v9685
      %v9687 = vpop.f32.mrb[0].mxu0
      %v9688 = vadd.f32 0.0, %v9687
      %v9689 = vpop.f32.mrb[0].mxu0
      %v9690 = vadd.f32 0.0, %v9689
      %v9691 = vpop.f32.mrb[0].mxu0
      %v9692 = vadd.f32 0.0, %v9691
      %9693 = vmatprep.mubr.bf16.mxu0 %v8859
      %9694 = vmatmul.mubr.bf16.gmra.mrb[0].mxu0 %v8858
      %v9695 = vpop.f32.mrb[0].mxu0
      %v9696 = vadd.f32 0.0, %v9695
      %v9697 = vpop.f32.mrb[0].mxu0
      %v9698 = vadd.f32 0.0, %v9697
      %v9699 = vpop.f32.mrb[0].mxu0
      %v9700 = vadd.f32 0.0, %v9699
      %v9701 = vpop.f32.mrb[0].mxu0
      %v9702 = vadd.f32 0.0, %v9701
      %9703 = vdwg.mxu0
      %9704 = vmatprep.subr.bf16.mxu0 %v9440
      %9705 = vmatpush1.bf16.msra.mxu0 %v9439
      %9706 = vmatprep.subr.bf16.mxu0 %v9444
      %9707 = vmatpush1.bf16.msra.mxu0 %v9443
      %9708 = vmatprep.subr.bf16.mxu0 %v9448
      %9709 = vmatpush1.bf16.msra.mxu0 %v9447
      %9710 = vmatprep.subr.bf16.mxu0 %v9452
      %9711 = vmatpush1.bf16.msra.mxu0 %v9451
      %9712 = vmatprep.subr.bf16.mxu0 %v9456
      %9713 = vmatpush1.bf16.msra.mxu0 %v9455
      %9714 = vmatprep.subr.bf16.mxu0 %v9460
      %9715 = vmatpush1.bf16.msra.mxu0 %v9459
      %9716 = vmatprep.subr.bf16.mxu0 %v9464
      %9717 = vmatpush1.bf16.msra.mxu0 %v9463
      %9718 = vmatprep.subr.bf16.mxu0 %v9468
      %9719 = vmatpush1.bf16.msra.mxu0 %v9467
      %9720 = vmatprep.subr.bf16.mxu0 %v9472
      %9721 = vmatpush1.bf16.msra.mxu0 %v9471
      %9722 = vmatprep.subr.bf16.mxu0 %v9476
      %9723 = vmatpush1.bf16.msra.mxu0 %v9475
      %9724 = vmatprep.subr.bf16.mxu0 %v9480
      %9725 = vmatpush1.bf16.msra.mxu0 %v9479
      %9726 = vmatprep.subr.bf16.mxu0 %v9484
      %9727 = vmatpush1.bf16.msra.mxu0 %v9483
      %9728 = vmatprep.subr.bf16.mxu0 %v9488
      %9729 = vmatpush1.bf16.msra.mxu0 %v9487
      %9730 = vmatprep.subr.bf16.mxu0 %v9492
      %9731 = vmatpush1.bf16.msra.mxu0 %v9491
      %9732 = vmatprep.subr.bf16.mxu0 %v9496
      %9733 = vmatpush1.bf16.msra.mxu0 %v9495
      %9734 = vmatprep.subr.bf16.mxu0 %v9500
      %9735 = vmatpush1.bf16.msra.mxu0 %v9499
      %9736 = vmatprep.mubr.bf16.mxu0 %v8849
      %9737 = vmatmul.mubr.bf16.gmra.mrb[0].mxu0 %v8848
      %v9738 = vpop.f32.mrb[0].mxu0
      %v9739 = vadd.f32 %v9666, %v9738
      %v9740 = vpop.f32.mrb[0].mxu0
      %v9741 = vadd.f32 %v9668, %v9740
      %v9742 = vpop.f32.mrb[0].mxu0
      %v9743 = vadd.f32 %v9670, %v9742
      %v9744 = vpop.f32.mrb[0].mxu0
      %v9745 = vadd.f32 %v9672, %v9744
      %9746 = vmatprep.mubr.bf16.mxu0 %v8853
      %9747 = vmatmul.mubr.bf16.gmra.mrb[0].mxu0 %v8852
      %v9748 = vpop.f32.mrb[0].mxu0
      %v9749 = vadd.f32 %v9676, %v9748
      %v9750 = vpop.f32.mrb[0].mxu0
      %v9751 = vadd.f32 %v9678, %v9750
      %v9752 = vpop.f32.mrb[0].mxu0
      %v9753 = vadd.f32 %v9680, %v9752
      %v9754 = vpop.f32.mrb[0].mxu0
      %v9755 = vadd.f32 %v9682, %v9754
      %9756 = vmatprep.mubr.bf16.mxu0 %v8857
      %9757 = vmatmul.mubr.bf16.gmra.mrb[0].mxu0 %v8856
      %v9758 = vpop.f32.mrb[0].mxu0
      %v9759 = vadd.f32 %v9686, %v9758
      %v9760 = vpop.f32.mrb[0].mxu0
      %v9761 = vadd.f32 %v9688, %v9760
      %v9762 = vpop.f32.mrb[0].mxu0
      %v9763 = vadd.f32 %v9690, %v9762
      %v9764 = vpop.f32.mrb[0].mxu0
      %v9765 = vadd.f32 %v9692, %v9764
      %9766 = vmatprep.mubr.bf16.mxu0 %v8861
      %9767 = vmatmul.mubr.bf16.gmra.mrb[0].mxu0 %v8860
      %v9768 = vpop.f32.mrb[0].mxu0
      %v9769 = vadd.f32 %v9696, %v9768
      %v9770 = vpop.f32.mrb[0].mxu0
      %v9771 = vadd.f32 %v9698, %v9770
      %v9772 = vpop.f32.mrb[0].mxu0
      %v9773 = vadd.f32 %v9700, %v9772
      %v9774 = vpop.f32.mrb[0].mxu0
      %v9775 = vadd.f32 %v9702, %v9774
      %9776 = vdwg.mxu0
      %9777 = vmatprep.subr.bf16.mxu0 %v9378
      %9778 = vmatpush1.bf16.msra.mxu0 %v9377
      %9779 = vmatprep.subr.bf16.mxu0 %v9382
      %9780 = vmatpush1.bf16.msra.mxu0 %v9381
      %9781 = vmatprep.subr.bf16.mxu0 %v9386
      %9782 = vmatpush1.bf16.msra.mxu0 %v9385
      %9783 = vmatprep.subr.bf16.mxu0 %v9390
      %9784 = vmatpush1.bf16.msra.mxu0 %v9389
      %9785 = vmatprep.subr.bf16.mxu0 %v9394
      %9786 = vmatpush1.bf16.msra.mxu0 %v9393
      %9787 = vmatprep.subr.bf16.mxu0 %v9398
      %9788 = vmatpush1.bf16.msra.mxu0 %v9397
      %9789 = vmatprep.subr.bf16.mxu0 %v9402
      %9790 = vmatpush1.bf16.msra.mxu0 %v9401
      %9791 = vmatprep.subr.bf16.mxu0 %v9406
      %9792 = vmatpush1.bf16.msra.mxu0 %v9405
      %9793 = vmatprep.subr.bf16.mxu0 %v9410
      %9794 = vmatpush1.bf16.msra.mxu0 %v9409
      %9795 = vmatprep.subr.bf16.mxu0 %v9414
      %9796 = vmatpush1.bf16.msra.mxu0 %v9413
      %9797 = vmatprep.subr.bf16.mxu0 %v9418
      %9798 = vmatpush1.bf16.msra.mxu0 %v9417
      %9799 = vmatprep.subr.bf16.mxu0 %v9422
      %9800 = vmatpush1.bf16.msra.mxu0 %v9421
      %9801 = vmatprep.subr.bf16.mxu0 %v9426
      %9802 = vmatpush1.bf16.msra.mxu0 %v9425
      %9803 = vmatprep.subr.bf16.mxu0 %v9430
      %9804 = vmatpush1.bf16.msra.mxu0 %v9429
      %9805 = vmatprep.subr.bf16.mxu0 %v9434
      %9806 = vmatpush1.bf16.msra.mxu0 %v9433
      %9807 = vmatprep.subr.bf16.mxu0 %v9438
      %9808 = vmatpush1.bf16.msra.mxu0 %v9437
      %9809 = vmatprep.mubr.bf16.mxu0 %v8847
      %9810 = vmatmul.mubr.bf16.gmra.mrb[0].mxu0 %v8846
      %v9811 = vpop.f32.mrb[0].mxu0
      %v9812 = vadd.f32 0.0, %v9811
      %v9813 = vpop.f32.mrb[0].mxu0
      %v9814 = vadd.f32 0.0, %v9813
      %v9815 = vpop.f32.mrb[0].mxu0
      %v9816 = vadd.f32 0.0, %v9815
      %v9817 = vpop.f32.mrb[0].mxu0
      %v9818 = vadd.f32 0.0, %v9817
      %9819 = vmatprep.mubr.bf16.mxu0 %v8851
      %9820 = vmatmul.mubr.bf16.gmra.mrb[0].mxu0 %v8850
      %v9821 = vpop.f32.mrb[0].mxu0
      %v9822 = vadd.f32 0.0, %v9821
      %v9823 = vpop.f32.mrb[0].mxu0
      %v9824 = vadd.f32 0.0, %v9823
      %v9825 = vpop.f32.mrb[0].mxu0
      %v9826 = vadd.f32 0.0, %v9825
      %v9827 = vpop.f32.mrb[0].mxu0
      %v9828 = vadd.f32 0.0, %v9827
      %9829 = vmatprep.mubr.bf16.mxu0 %v8855
      %9830 = vmatmul.mubr.bf16.gmra.mrb[0].mxu0 %v8854
      %v9831 = vpop.f32.mrb[0].mxu0
      %v9832 = vadd.f32 0.0, %v9831
      %v9833 = vpop.f32.mrb[0].mxu0
      %v9834 = vadd.f32 0.0, %v9833
      %v9835 = vpop.f32.mrb[0].mxu0
      %v9836 = vadd.f32 0.0, %v9835
      %v9837 = vpop.f32.mrb[0].mxu0
      %v9838 = vadd.f32 0.0, %v9837
      %9839 = vmatprep.mubr.bf16.mxu0 %v8859
      %9840 = vmatmul.mubr.bf16.gmra.mrb[0].mxu0 %v8858
      %v9841 = vpop.f32.mrb[0].mxu0
      %v9842 = vadd.f32 0.0, %v9841
      %v9843 = vpop.f32.mrb[0].mxu0
      %v9844 = vadd.f32 0.0, %v9843
      %v9845 = vpop.f32.mrb[0].mxu0
      %v9846 = vadd.f32 0.0, %v9845
      %v9847 = vpop.f32.mrb[0].mxu0
      %v9848 = vadd.f32 0.0, %v9847
      %9849 = vdwg.mxu0
      %9850 = vmatprep.subr.bf16.mxu0 %v9442
      %9851 = vmatpush1.bf16.msra.mxu0 %v9441
      %9852 = vmatprep.subr.bf16.mxu0 %v9446
      %9853 = vmatpush1.bf16.msra.mxu0 %v9445
      %9854 = vmatprep.subr.bf16.mxu0 %v9450
      %9855 = vmatpush1.bf16.msra.mxu0 %v9449
      %9856 = vmatprep.subr.bf16.mxu0 %v9454
      %9857 = vmatpush1.bf16.msra.mxu0 %v9453
      %9858 = vmatprep.subr.bf16.mxu0 %v9458
      %9859 = vmatpush1.bf16.msra.mxu0 %v9457
      %9860 = vmatprep.subr.bf16.mxu0 %v9462
      %9861 = vmatpush1.bf16.msra.mxu0 %v9461
      %9862 = vmatprep.subr.bf16.mxu0 %v9466
      %9863 = vmatpush1.bf16.msra.mxu0 %v9465
      %9864 = vmatprep.subr.bf16.mxu0 %v9470
      %9865 = vmatpush1.bf16.msra.mxu0 %v9469
      %9866 = vmatprep.subr.bf16.mxu0 %v9474
      %9867 = vmatpush1.bf16.msra.mxu0 %v9473
      %9868 = vmatprep.subr.bf16.mxu0 %v9478
      %9869 = vmatpush1.bf16.msra.mxu0 %v9477
      %9870 = vmatprep.subr.bf16.mxu0 %v9482
      %9871 = vmatpush1.bf16.msra.mxu0 %v9481
      %9872 = vmatprep.subr.bf16.mxu0 %v9486
      %9873 = vmatpush1.bf16.msra.mxu0 %v9485
      %9874 = vmatprep.subr.bf16.mxu0 %v9490
      %9875 = vmatpush1.bf16.msra.mxu0 %v9489
      %9876 = vmatprep.subr.bf16.mxu0 %v9494
      %9877 = vmatpush1.bf16.msra.mxu0 %v9493
      %9878 = vmatprep.subr.bf16.mxu0 %v9498
      %9879 = vmatpush1.bf16.msra.mxu0 %v9497
      %9880 = vmatprep.subr.bf16.mxu0 %v9502
      %9881 = vmatpush1.bf16.msra.mxu0 %v9501
      %9882 = vmatprep.mubr.bf16.mxu0 %v8849
      %9883 = vmatmul.mubr.bf16.gmra.mrb[0].mxu0 %v8848
      %v9884 = vpop.f32.mrb[0].mxu0
      %v9885 = vadd.f32 %v9812, %v9884
      %v9886 = vpop.f32.mrb[0].mxu0
      %v9887 = vadd.f32 %v9814, %v9886
      %v9888 = vpop.f32.mrb[0].mxu0
      %v9889 = vadd.f32 %v9816, %v9888
      %v9890 = vpop.f32.mrb[0].mxu0
      %v9891 = vadd.f32 %v9818, %v9890
      %9892 = vmatprep.mubr.bf16.mxu0 %v8853
      %9893 = vmatmul.mubr.bf16.gmra.mrb[0].mxu0 %v8852
      %v9894 = vpop.f32.mrb[0].mxu0
      %v9895 = vadd.f32 %v9822, %v9894
      %v9896 = vpop.f32.mrb[0].mxu0
      %v9897 = vadd.f32 %v9824, %v9896
      %v9898 = vpop.f32.mrb[0].mxu0
      %v9899 = vadd.f32 %v9826, %v9898
      %v9900 = vpop.f32.mrb[0].mxu0
      %v9901 = vadd.f32 %v9828, %v9900
      %9902 = vmatprep.mubr.bf16.mxu0 %v8857
      %9903 = vmatmul.mubr.bf16.gmra.mrb[0].mxu0 %v8856
      %v9904 = vpop.f32.mrb[0].mxu0
      %v9905 = vadd.f32 %v9832, %v9904
      %v9906 = vpop.f32.mrb[0].mxu0
      %v9907 = vadd.f32 %v9834, %v9906
      %v9908 = vpop.f32.mrb[0].mxu0
      %v9909 = vadd.f32 %v9836, %v9908
      %v9910 = vpop.f32.mrb[0].mxu0
      %v9911 = vadd.f32 %v9838, %v9910
      %9912 = vmatprep.mubr.bf16.mxu0 %v8861
      %9913 = vmatmul.mubr.bf16.gmra.mrb[0].mxu0 %v8860
      %v9914 = vpop.f32.mrb[0].mxu0
      %v9915 = vadd.f32 %v9842, %v9914
      %v9916 = vpop.f32.mrb[0].mxu0
      %v9917 = vadd.f32 %v9844, %v9916
      %v9918 = vpop.f32.mrb[0].mxu0
      %v9919 = vadd.f32 %v9846, %v9918
      %v9920 = vpop.f32.mrb[0].mxu0
      %v9921 = vadd.f32 %v9848, %v9920
      %9922 = vdwg.mxu0
      %v9923 = vadd.f32 %v8662, %v9739
      %v9924 = vadd.f32 %v8664, %v9741
      %v9925 = vadd.f32 %v8808, %v9885
      %v9926 = vadd.f32 %v8810, %v9887
      %v9927 = vadd.f32 %v8666, %v9743
      %v9928 = vadd.f32 %v8668, %v9745
      %v9929 = vadd.f32 %v8812, %v9889
      %v9930 = vadd.f32 %v8814, %v9891
      %v9931 = vadd.f32 %v8672, %v9749
      %v9932 = vadd.f32 %v8674, %v9751
      %v9933 = vadd.f32 %v8818, %v9895
      %v9934 = vadd.f32 %v8820, %v9897
      %v9935 = vadd.f32 %v8676, %v9753
      %v9936 = vadd.f32 %v8678, %v9755
      %v9937 = vadd.f32 %v8822, %v9899
      %v9938 = vadd.f32 %v8824, %v9901
      %v9939 = vadd.f32 %v8682, %v9759
      %v9940 = vadd.f32 %v8684, %v9761
      %v9941 = vadd.f32 %v8828, %v9905
      %v9942 = vadd.f32 %v8830, %v9907
      %v9943 = vadd.f32 %v8686, %v9763
      %v9944 = vadd.f32 %v8688, %v9765
      %v9945 = vadd.f32 %v8832, %v9909
      %v9946 = vadd.f32 %v8834, %v9911
      %v9947 = vadd.f32 %v8692, %v9769
      %v9948 = vadd.f32 %v8694, %v9771
      %v9949 = vadd.f32 %v8838, %v9915
      %v9950 = vadd.f32 %v8840, %v9917
      %v9951 = vadd.f32 %v8696, %v9773
      %v9952 = vadd.f32 %v8698, %v9775
      %v9953 = vadd.f32 %v8842, %v9919
      %v9954 = vadd.f32 %v8844, %v9921
      %v9955 = vmul.f32 %v9923, %v9923
      %v9956 = vmul.f32 %v9924, %v9924
      %v9957 = vmul.f32 %v9925, %v9925
      %v9958 = vmul.f32 %v9926, %v9926
      %v9959 = vmul.f32 %v9927, %v9927
      %v9960 = vmul.f32 %v9928, %v9928
      %v9961 = vmul.f32 %v9929, %v9929
      %v9962 = vmul.f32 %v9930, %v9930
      %v9963 = vmul.f32 %v9931, %v9931
      %v9964 = vmul.f32 %v9932, %v9932
      %v9965 = vmul.f32 %v9933, %v9933
      %v9966 = vmul.f32 %v9934, %v9934
      %v9967 = vmul.f32 %v9935, %v9935
      %v9968 = vmul.f32 %v9936, %v9936
      %v9969 = vmul.f32 %v9937, %v9937
      %v9970 = vmul.f32 %v9938, %v9938
      %v9971 = vmul.f32 %v9939, %v9939
      %v9972 = vmul.f32 %v9940, %v9940
      %v9973 = vmul.f32 %v9941, %v9941
      %v9974 = vmul.f32 %v9942, %v9942
      %v9975 = vmul.f32 %v9943, %v9943
      %v9976 = vmul.f32 %v9944, %v9944
      %v9977 = vmul.f32 %v9945, %v9945
      %v9978 = vmul.f32 %v9946, %v9946
      %v9979 = vmul.f32 %v9947, %v9947
      %v9980 = vmul.f32 %v9948, %v9948
      %v9981 = vmul.f32 %v9949, %v9949
      %v9982 = vmul.f32 %v9950, %v9950
      %v9983 = vmul.f32 %v9951, %v9951
      %v9984 = vmul.f32 %v9952, %v9952
      %v9985 = vmul.f32 %v9953, %v9953
      %v9986 = vmul.f32 %v9954, %v9954
      %v9987 = vadd.f32 %v9955, %v9959
      %v9988 = vrot.slane %v9987, 4
      %v9989 = vadd.f32 %v9987, %v9988
      %v9990 = vrot.slane %v9989, 2
      %v9991 = vadd.f32 %v9989, %v9990
      %v9992 = vrot.slane %v9991, 1
      %v9993 = vadd.f32 %v9991, %v9992
      %v9994 = vadd.f32 %v9956, %v9960
      %v9995 = vrot.slane %v9994, 4
      %v9996 = vadd.f32 %v9994, %v9995
      %v9997 = vrot.slane %v9996, 2
      %v9998 = vadd.f32 %v9996, %v9997
      %v9999 = vrot.slane %v9998, 1
      %v10000 = vadd.f32 %v9998, %v9999
      %v10001 = vadd.f32 %v9957, %v9961
      %v10002 = vrot.slane %v10001, 4
      %v10003 = vadd.f32 %v10001, %v10002
      %v10004 = vrot.slane %v10003, 2
      %v10005 = vadd.f32 %v10003, %v10004
      %v10006 = vrot.slane %v10005, 1
      %v10007 = vadd.f32 %v10005, %v10006
      %v10008 = vadd.f32 %v9958, %v9962
      %v10009 = vrot.slane %v10008, 4
      %v10010 = vadd.f32 %v10008, %v10009
      %v10011 = vrot.slane %v10010, 2
      %v10012 = vadd.f32 %v10010, %v10011
      %v10013 = vrot.slane %v10012, 1
      %v10014 = vadd.f32 %v10012, %v10013
      %v10015 = vadd.f32 %v9963, %v9967
      %v10016 = vrot.slane %v10015, 4
      %v10017 = vadd.f32 %v10015, %v10016
      %v10018 = vrot.slane %v10017, 2
      %v10019 = vadd.f32 %v10017, %v10018
      %v10020 = vrot.slane %v10019, 1
      %v10021 = vadd.f32 %v10019, %v10020
      %v10022 = vadd.f32 %v9964, %v9968
      %v10023 = vrot.slane %v10022, 4
      %v10024 = vadd.f32 %v10022, %v10023
      %v10025 = vrot.slane %v10024, 2
      %v10026 = vadd.f32 %v10024, %v10025
      %v10027 = vrot.slane %v10026, 1
      %v10028 = vadd.f32 %v10026, %v10027
      %v10029 = vadd.f32 %v9965, %v9969
      %v10030 = vrot.slane %v10029, 4
      %v10031 = vadd.f32 %v10029, %v10030
      %v10032 = vrot.slane %v10031, 2
      %v10033 = vadd.f32 %v10031, %v10032
      %v10034 = vrot.slane %v10033, 1
      %v10035 = vadd.f32 %v10033, %v10034
      %v10036 = vadd.f32 %v9966, %v9970
      %v10037 = vrot.slane %v10036, 4
      %v10038 = vadd.f32 %v10036, %v10037
      %v10039 = vrot.slane %v10038, 2
      %v10040 = vadd.f32 %v10038, %v10039
      %v10041 = vrot.slane %v10040, 1
      %v10042 = vadd.f32 %v10040, %v10041
      %v10043 = vadd.f32 %v9971, %v9975
      %v10044 = vrot.slane %v10043, 4
      %v10045 = vadd.f32 %v10043, %v10044
      %v10046 = vrot.slane %v10045, 2
      %v10047 = vadd.f32 %v10045, %v10046
      %v10048 = vrot.slane %v10047, 1
      %v10049 = vadd.f32 %v10047, %v10048
      %v10050 = vadd.f32 %v9972, %v9976
      %v10051 = vrot.slane %v10050, 4
      %v10052 = vadd.f32 %v10050, %v10051
      %v10053 = vrot.slane %v10052, 2
      %v10054 = vadd.f32 %v10052, %v10053
      %v10055 = vrot.slane %v10054, 1
      %v10056 = vadd.f32 %v10054, %v10055
      %v10057 = vadd.f32 %v9973, %v9977
      %v10058 = vrot.slane %v10057, 4
      %v10059 = vadd.f32 %v10057, %v10058
      %v10060 = vrot.slane %v10059, 2
      %v10061 = vadd.f32 %v10059, %v10060
      %v10062 = vrot.slane %v10061, 1
      %v10063 = vadd.f32 %v10061, %v10062
      %v10064 = vadd.f32 %v9974, %v9978
      %v10065 = vrot.slane %v10064, 4
      %v10066 = vadd.f32 %v10064, %v10065
      %v10067 = vrot.slane %v10066, 2
      %v10068 = vadd.f32 %v10066, %v10067
      %v10069 = vrot.slane %v10068, 1
      %v10070 = vadd.f32 %v10068, %v10069
      %v10071 = vadd.f32 %v9979, %v9983
      %v10072 = vrot.slane %v10071, 4
      %v10073 = vadd.f32 %v10071, %v10072
      %v10074 = vrot.slane %v10073, 2
      %v10075 = vadd.f32 %v10073, %v10074
      %v10076 = vrot.slane %v10075, 1
      %v10077 = vadd.f32 %v10075, %v10076
      %v10078 = vadd.f32 %v9980, %v9984
      %v10079 = vrot.slane %v10078, 4
      %v10080 = vadd.f32 %v10078, %v10079
      %v10081 = vrot.slane %v10080, 2
      %v10082 = vadd.f32 %v10080, %v10081
      %v10083 = vrot.slane %v10082, 1
      %v10084 = vadd.f32 %v10082, %v10083
      %v10085 = vadd.f32 %v9981, %v9985
      %v10086 = vrot.slane %v10085, 4
      %v10087 = vadd.f32 %v10085, %v10086
      %v10088 = vrot.slane %v10087, 2
      %v10089 = vadd.f32 %v10087, %v10088
      %v10090 = vrot.slane %v10089, 1
      %v10091 = vadd.f32 %v10089, %v10090
      %v10092 = vadd.f32 %v9982, %v9986
      %v10093 = vrot.slane %v10092, 4
      %v10094 = vadd.f32 %v10092, %v10093
      %v10095 = vrot.slane %v10094, 2
      %v10096 = vadd.f32 %v10094, %v10095
      %v10097 = vrot.slane %v10096, 1
      %v10098 = vadd.f32 %v10096, %v10097
      %v10099 = vrsqrt.pop %v9993
      %v10100 = vmul.f32 %v9993, %v10099
      %vm10101 = vcmp.eq.f32.partialorder %v9993, inf
      %v10102 = vsel %vm10101, %v9993, %v10100
      %vm10103 = vcmp.eq.f32.partialorder %v9993, 0.0
      %v10104 = vand.u32 %v9993, 2147483648
      %v10105 = vsel %vm10103, %v10104, %v10102
      %v10106 = vrsqrt.pop %v10000
      %v10107 = vmul.f32 %v10000, %v10106
      %vm10108 = vcmp.eq.f32.partialorder %v10000, inf
      %v10109 = vsel %vm10108, %v10000, %v10107
      %vm10110 = vcmp.eq.f32.partialorder %v10000, 0.0
      %v10111 = vand.u32 %v10000, 2147483648
      %v10112 = vsel %vm10110, %v10111, %v10109
      %v10113 = vrsqrt.pop %v10007
      %v10114 = vmul.f32 %v10007, %v10113
      %vm10115 = vcmp.eq.f32.partialorder %v10007, inf
      %v10116 = vsel %vm10115, %v10007, %v10114
      %vm10117 = vcmp.eq.f32.partialorder %v10007, 0.0
      %v10118 = vand.u32 %v10007, 2147483648
      %v10119 = vsel %vm10117, %v10118, %v10116
      %v10120 = vrsqrt.pop %v10014
      %v10121 = vmul.f32 %v10014, %v10120
      %vm10122 = vcmp.eq.f32.partialorder %v10014, inf
      %v10123 = vsel %vm10122, %v10014, %v10121
      %vm10124 = vcmp.eq.f32.partialorder %v10014, 0.0
      %v10125 = vand.u32 %v10014, 2147483648
      %v10126 = vsel %vm10124, %v10125, %v10123
      %v10127 = vrsqrt.pop %v10021
      %v10128 = vmul.f32 %v10021, %v10127
      %vm10129 = vcmp.eq.f32.partialorder %v10021, inf
      %v10130 = vsel %vm10129, %v10021, %v10128
      %vm10131 = vcmp.eq.f32.partialorder %v10021, 0.0
      %v10132 = vand.u32 %v10021, 2147483648
      %v10133 = vsel %vm10131, %v10132, %v10130
      %v10134 = vrsqrt.pop %v10028
      %v10135 = vmul.f32 %v10028, %v10134
      %vm10136 = vcmp.eq.f32.partialorder %v10028, inf
      %v10137 = vsel %vm10136, %v10028, %v10135
      %vm10138 = vcmp.eq.f32.partialorder %v10028, 0.0
      %v10139 = vand.u32 %v10028, 2147483648
      %v10140 = vsel %vm10138, %v10139, %v10137
      %v10141 = vrsqrt.pop %v10035
      %v10142 = vmul.f32 %v10035, %v10141
      %vm10143 = vcmp.eq.f32.partialorder %v10035, inf
      %v10144 = vsel %vm10143, %v10035, %v10142
      %vm10145 = vcmp.eq.f32.partialorder %v10035, 0.0
      %v10146 = vand.u32 %v10035, 2147483648
      %v10147 = vsel %vm10145, %v10146, %v10144
      %v10148 = vrsqrt.pop %v10042
      %v10149 = vmul.f32 %v10042, %v10148
      %vm10150 = vcmp.eq.f32.partialorder %v10042, inf
      %v10151 = vsel %vm10150, %v10042, %v10149
      %vm10152 = vcmp.eq.f32.partialorder %v10042, 0.0
      %v10153 = vand.u32 %v10042, 2147483648
      %v10154 = vsel %vm10152, %v10153, %v10151
      %v10155 = vrsqrt.pop %v10049
      %v10156 = vmul.f32 %v10049, %v10155
      %vm10157 = vcmp.eq.f32.partialorder %v10049, inf
      %v10158 = vsel %vm10157, %v10049, %v10156
      %vm10159 = vcmp.eq.f32.partialorder %v10049, 0.0
      %v10160 = vand.u32 %v10049, 2147483648
      %v10161 = vsel %vm10159, %v10160, %v10158
      %v10162 = vrsqrt.pop %v10056
      %v10163 = vmul.f32 %v10056, %v10162
      %vm10164 = vcmp.eq.f32.partialorder %v10056, inf
      %v10165 = vsel %vm10164, %v10056, %v10163
      %vm10166 = vcmp.eq.f32.partialorder %v10056, 0.0
      %v10167 = vand.u32 %v10056, 2147483648
      %v10168 = vsel %vm10166, %v10167, %v10165
      %v10169 = vrsqrt.pop %v10063
      %v10170 = vmul.f32 %v10063, %v10169
      %vm10171 = vcmp.eq.f32.partialorder %v10063, inf
      %v10172 = vsel %vm10171, %v10063, %v10170
      %vm10173 = vcmp.eq.f32.partialorder %v10063, 0.0
      %v10174 = vand.u32 %v10063, 2147483648
      %v10175 = vsel %vm10173, %v10174, %v10172
      %v10176 = vrsqrt.pop %v10070
      %v10177 = vmul.f32 %v10070, %v10176
      %vm10178 = vcmp.eq.f32.partialorder %v10070, inf
      %v10179 = vsel %vm10178, %v10070, %v10177
      %vm10180 = vcmp.eq.f32.partialorder %v10070, 0.0
      %v10181 = vand.u32 %v10070, 2147483648
      %v10182 = vsel %vm10180, %v10181, %v10179
      %v10183 = vrsqrt.pop %v10077
      %v10184 = vmul.f32 %v10077, %v10183
      %vm10185 = vcmp.eq.f32.partialorder %v10077, inf
      %v10186 = vsel %vm10185, %v10077, %v10184
      %vm10187 = vcmp.eq.f32.partialorder %v10077, 0.0
      %v10188 = vand.u32 %v10077, 2147483648
      %v10189 = vsel %vm10187, %v10188, %v10186
      %v10190 = vrsqrt.pop %v10084
      %v10191 = vmul.f32 %v10084, %v10190
      %vm10192 = vcmp.eq.f32.partialorder %v10084, inf
      %v10193 = vsel %vm10192, %v10084, %v10191
      %vm10194 = vcmp.eq.f32.partialorder %v10084, 0.0
      %v10195 = vand.u32 %v10084, 2147483648
      %v10196 = vsel %vm10194, %v10195, %v10193
      %v10197 = vrsqrt.pop %v10091
      %v10198 = vmul.f32 %v10091, %v10197
      %vm10199 = vcmp.eq.f32.partialorder %v10091, inf
      %v10200 = vsel %vm10199, %v10091, %v10198
      %vm10201 = vcmp.eq.f32.partialorder %v10091, 0.0
      %v10202 = vand.u32 %v10091, 2147483648
      %v10203 = vsel %vm10201, %v10202, %v10200
      %v10204 = vrsqrt.pop %v10098
      %v10205 = vmul.f32 %v10098, %v10204
      %vm10206 = vcmp.eq.f32.partialorder %v10098, inf
      %v10207 = vsel %vm10206, %v10098, %v10205
      %vm10208 = vcmp.eq.f32.partialorder %v10098, 0.0
      %v10209 = vand.u32 %v10098, 2147483648
      %v10210 = vsel %vm10208, %v10209, %v10207
      %v10211 = vmax.f32 %v10105, 1e-08
      %v10212 = vmax.f32 %v10112, 1e-08
      %v10213 = vmax.f32 %v10119, 1e-08
      %v10214 = vmax.f32 %v10126, 1e-08
      %v10215 = vmax.f32 %v10133, 1e-08
      %v10216 = vmax.f32 %v10140, 1e-08
      %v10217 = vmax.f32 %v10147, 1e-08
      %v10218 = vmax.f32 %v10154, 1e-08
      %v10219 = vmax.f32 %v10161, 1e-08
      %v10220 = vmax.f32 %v10168, 1e-08
      %v10221 = vmax.f32 %v10175, 1e-08
      %v10222 = vmax.f32 %v10182, 1e-08
      %v10223 = vmax.f32 %v10189, 1e-08
      %v10224 = vmax.f32 %v10196, 1e-08
      %v10225 = vmax.f32 %v10203, 1e-08
      %v10226 = vmax.f32 %v10210, 1e-08
      %v10227 = vtanh.pop %v10211
      %v10228 = vtanh.pop %v10212
      %v10229 = vtanh.pop %v10213
      %v10230 = vtanh.pop %v10214
      %v10231 = vtanh.pop %v10215
      %v10232 = vtanh.pop %v10216
      %v10233 = vtanh.pop %v10217
      %v10234 = vtanh.pop %v10218
      %v10235 = vtanh.pop %v10219
      %v10236 = vtanh.pop %v10220
      %v10237 = vtanh.pop %v10221
      %v10238 = vtanh.pop %v10222
      %v10239 = vtanh.pop %v10223
      %v10240 = vtanh.pop %v10224
      %v10241 = vtanh.pop %v10225
      %v10242 = vtanh.pop %v10226
      %v10243 = vrcp.pop %v10211
      %v10244 = vrcp.pop %v10212
      %v10245 = vrcp.pop %v10213
      %v10246 = vrcp.pop %v10214
      %v10247 = vrcp.pop %v10215
      %v10248 = vrcp.pop %v10216
      %v10249 = vrcp.pop %v10217
      %v10250 = vrcp.pop %v10218
      %v10251 = vrcp.pop %v10219
      %v10252 = vrcp.pop %v10220
      %v10253 = vrcp.pop %v10221
      %v10254 = vrcp.pop %v10222
      %v10255 = vrcp.pop %v10223
      %v10256 = vrcp.pop %v10224
      %v10257 = vrcp.pop %v10225
      %v10258 = vrcp.pop %v10226
      %v10259 = vmul.f32 %v10227, %v10243
      %v10260 = vmul.f32 %v10228, %v10244
      %v10261 = vmul.f32 %v10229, %v10245
      %v10262 = vmul.f32 %v10230, %v10246
      %v10263 = vmul.f32 %v10231, %v10247
      %v10264 = vmul.f32 %v10232, %v10248
      %v10265 = vmul.f32 %v10233, %v10249
      %v10266 = vmul.f32 %v10234, %v10250
      %v10267 = vmul.f32 %v10235, %v10251
      %v10268 = vmul.f32 %v10236, %v10252
      %v10269 = vmul.f32 %v10237, %v10253
      %v10270 = vmul.f32 %v10238, %v10254
      %v10271 = vmul.f32 %v10239, %v10255
      %v10272 = vmul.f32 %v10240, %v10256
      %v10273 = vmul.f32 %v10241, %v10257
      %v10274 = vmul.f32 %v10242, %v10258
      %v10275 = vmul.f32 %v9923, %v10259
      %v10276 = vmul.f32 %v9924, %v10260
      %v10277 = vmul.f32 %v9925, %v10261
      %v10278 = vmul.f32 %v9926, %v10262
      %v10279 = vmul.f32 %v9927, %v10259
      %v10280 = vmul.f32 %v9928, %v10260
      %v10281 = vmul.f32 %v9929, %v10261
      %v10282 = vmul.f32 %v9930, %v10262
      %v10283 = vmul.f32 %v9931, %v10263
      %v10284 = vmul.f32 %v9932, %v10264
      %v10285 = vmul.f32 %v9933, %v10265
      %v10286 = vmul.f32 %v9934, %v10266
      %v10287 = vmul.f32 %v9935, %v10263
      %v10288 = vmul.f32 %v9936, %v10264
      %v10289 = vmul.f32 %v9937, %v10265
      %v10290 = vmul.f32 %v9938, %v10266
      %v10291 = vmul.f32 %v9939, %v10267
      %v10292 = vmul.f32 %v9940, %v10268
      %v10293 = vmul.f32 %v9941, %v10269
      %v10294 = vmul.f32 %v9942, %v10270
      %v10295 = vmul.f32 %v9943, %v10267
      %v10296 = vmul.f32 %v9944, %v10268
      %v10297 = vmul.f32 %v9945, %v10269
      %v10298 = vmul.f32 %v9946, %v10270
      %v10299 = vmul.f32 %v9947, %v10271
      %v10300 = vmul.f32 %v9948, %v10272
      %v10301 = vmul.f32 %v9949, %v10273
      %v10302 = vmul.f32 %v9950, %v10274
      %v10303 = vmul.f32 %v9951, %v10271
      %v10304 = vmul.f32 %v9952, %v10272
      %v10305 = vmul.f32 %v9953, %v10273
      %v10306 = vmul.f32 %v9954, %v10274
      %v10307 = vmax.f32 %v10275, 0.0
      %v10308 = vmax.f32 %v10276, 0.0
      %v10309 = vmax.f32 %v10277, 0.0
      %v10310 = vmax.f32 %v10278, 0.0
      %v10311 = vmax.f32 %v10279, 0.0
      %v10312 = vmax.f32 %v10280, 0.0
      %v10313 = vmax.f32 %v10281, 0.0
      %v10314 = vmax.f32 %v10282, 0.0
      %v10315 = vmax.f32 %v10283, 0.0
      %v10316 = vmax.f32 %v10284, 0.0
      %v10317 = vmax.f32 %v10285, 0.0
      %v10318 = vmax.f32 %v10286, 0.0
      %v10319 = vmax.f32 %v10287, 0.0
      %v10320 = vmax.f32 %v10288, 0.0
      %v10321 = vmax.f32 %v10289, 0.0
      %v10322 = vmax.f32 %v10290, 0.0
      %v10323 = vmax.f32 %v10291, 0.0
      %v10324 = vmax.f32 %v10292, 0.0
      %v10325 = vmax.f32 %v10293, 0.0
      %v10326 = vmax.f32 %v10294, 0.0
      %v10327 = vmax.f32 %v10295, 0.0
      %v10328 = vmax.f32 %v10296, 0.0
      %v10329 = vmax.f32 %v10297, 0.0
      %v10330 = vmax.f32 %v10298, 0.0
      %v10331 = vmax.f32 %v10299, 0.0
      %v10332 = vmax.f32 %v10300, 0.0
      %v10333 = vmax.f32 %v10301, 0.0
      %v10334 = vmax.f32 %v10302, 0.0
      %v10335 = vmax.f32 %v10303, 0.0
      %v10336 = vmax.f32 %v10304, 0.0
      %v10337 = vmax.f32 %v10305, 0.0
      %v10338 = vmax.f32 %v10306, 0.0
      %v10339 = vmul.f32 %v10307, %v10307
      %v10340 = vmul.f32 %v10308, %v10308
      %v10341 = vmul.f32 %v10309, %v10309
      %v10342 = vmul.f32 %v10310, %v10310
      %v10343 = vmul.f32 %v10311, %v10311
      %v10344 = vmul.f32 %v10312, %v10312
      %v10345 = vmul.f32 %v10313, %v10313
      %v10346 = vmul.f32 %v10314, %v10314
      %v10347 = vmul.f32 %v10315, %v10315
      %v10348 = vmul.f32 %v10316, %v10316
      %v10349 = vmul.f32 %v10317, %v10317
      %v10350 = vmul.f32 %v10318, %v10318
      %v10351 = vmul.f32 %v10319, %v10319
      %v10352 = vmul.f32 %v10320, %v10320
      %v10353 = vmul.f32 %v10321, %v10321
      %v10354 = vmul.f32 %v10322, %v10322
      %v10355 = vmul.f32 %v10323, %v10323
      %v10356 = vmul.f32 %v10324, %v10324
      %v10357 = vmul.f32 %v10325, %v10325
      %v10358 = vmul.f32 %v10326, %v10326
      %v10359 = vmul.f32 %v10327, %v10327
      %v10360 = vmul.f32 %v10328, %v10328
      %v10361 = vmul.f32 %v10329, %v10329
      %v10362 = vmul.f32 %v10330, %v10330
      %v10363 = vmul.f32 %v10331, %v10331
      %v10364 = vmul.f32 %v10332, %v10332
      %v10365 = vmul.f32 %v10333, %v10333
      %v10366 = vmul.f32 %v10334, %v10334
      %v10367 = vmul.f32 %v10335, %v10335
      %v10368 = vmul.f32 %v10336, %v10336
      %v10369 = vmul.f32 %v10337, %v10337
      %v10370 = vmul.f32 %v10338, %v10338
      %v10371 = vpack.c.bf16 %v10343, %v10339
      %v10372 = vpack.c.bf16 %v10344, %v10340
      %v10373 = vpack.c.bf16 %v10345, %v10341
      %v10374 = vpack.c.bf16 %v10346, %v10342
      %v10375 = vpack.c.bf16 %v10351, %v10347
      %v10376 = vpack.c.bf16 %v10352, %v10348
      %v10377 = vpack.c.bf16 %v10353, %v10349
      %v10378 = vpack.c.bf16 %v10354, %v10350
      %v10379 = vpack.c.bf16 %v10359, %v10355
      %v10380 = vpack.c.bf16 %v10360, %v10356
      %v10381 = vpack.c.bf16 %v10361, %v10357
      %v10382 = vpack.c.bf16 %v10362, %v10358
      %v10383 = vpack.c.bf16 %v10367, %v10363
      %v10384 = vpack.c.bf16 %v10368, %v10364
      %v10385 = vpack.c.bf16 %v10369, %v10365
      %v10386 = vpack.c.bf16 %v10370, %v10366
      %10387 = vmatprep.subr.bf16.mxu0 0
      %10388 = vmatpush1.bf16.msra.mxu0 %v947
      %10389 = vmatprep.subr.bf16.mxu0 0
      %10390 = vmatpush1.bf16.msra.mxu0 %v948
      %10391 = vmatprep.subr.bf16.mxu0 0
      %10392 = vmatpush1.bf16.msra.mxu0 %v949
      %10393 = vmatprep.subr.bf16.mxu0 0
      %10394 = vmatpush1.bf16.msra.mxu0 %v950
      %10395 = vmatprep.subr.bf16.mxu0 0
      %10396 = vmatpush1.bf16.msra.mxu0 %v951
      %10397 = vmatprep.subr.bf16.mxu0 0
      %10398 = vmatpush1.bf16.msra.mxu0 %v952
      %10399 = vmatprep.subr.bf16.mxu0 0
      %10400 = vmatpush1.bf16.msra.mxu0 %v953
      %10401 = vmatprep.subr.bf16.mxu0 0
      %10402 = vmatpush1.bf16.msra.mxu0 %v954
      %10403 = vmatprep.subr.bf16.mxu0 0
      %10404 = vmatpush1.bf16.msra.mxu0 %v955
      %10405 = vmatprep.subr.bf16.mxu0 0
      %10406 = vmatpush1.bf16.msra.mxu0 %v956
      %10407 = vmatprep.subr.bf16.mxu0 0
      %10408 = vmatpush1.bf16.msra.mxu0 %v957
      %10409 = vmatprep.subr.bf16.mxu0 0
      %10410 = vmatpush1.bf16.msra.mxu0 %v958
      %10411 = vmatprep.subr.bf16.mxu0 0
      %10412 = vmatpush1.bf16.msra.mxu0 %v959
      %10413 = vmatprep.subr.bf16.mxu0 0
      %10414 = vmatpush1.bf16.msra.mxu0 %v960
      %10415 = vmatprep.subr.bf16.mxu0 0
      %10416 = vmatpush1.bf16.msra.mxu0 %v961
      %10417 = vmatprep.subr.bf16.mxu0 0
      %10418 = vmatpush1.bf16.msra.mxu0 %v962
      %10419 = vmatprep.mubr.bf16.mxu0 %v10372
      %10420 = vmatmul.mubr.bf16.gmra.mrb[0].mxu0 %v10371
      %v10421 = vpop.f32.mrb[0].mxu0
      %v10422 = vadd.f32 0.0, %v10421
      %v10423 = vpop.f32.mrb[0].mxu0
      %v10424 = vpop.f32.mrb[0].mxu0
      %v10425 = vadd.f32 0.0, %v10424
      %v10426 = vpop.f32.mrb[0].mxu0
      %10427 = vmatprep.mubr.bf16.mxu0 %v10376
      %10428 = vmatmul.mubr.bf16.gmra.mrb[0].mxu0 %v10375
      %v10429 = vpop.f32.mrb[0].mxu0
      %v10430 = vadd.f32 0.0, %v10429
      %v10431 = vpop.f32.mrb[0].mxu0
      %v10432 = vpop.f32.mrb[0].mxu0
      %v10433 = vadd.f32 0.0, %v10432
      %v10434 = vpop.f32.mrb[0].mxu0
      %10435 = vmatprep.mubr.bf16.mxu0 %v10380
      %10436 = vmatmul.mubr.bf16.gmra.mrb[0].mxu0 %v10379
      %v10437 = vpop.f32.mrb[0].mxu0
      %v10438 = vadd.f32 0.0, %v10437
      %v10439 = vpop.f32.mrb[0].mxu0
      %v10440 = vpop.f32.mrb[0].mxu0
      %v10441 = vadd.f32 0.0, %v10440
      %v10442 = vpop.f32.mrb[0].mxu0
      %10443 = vmatprep.mubr.bf16.mxu0 %v10384
      %10444 = vmatmul.mubr.bf16.gmra.mrb[0].mxu0 %v10383
      %v10445 = vpop.f32.mrb[0].mxu0
      %v10446 = vadd.f32 0.0, %v10445
      %v10447 = vpop.f32.mrb[0].mxu0
      %v10448 = vpop.f32.mrb[0].mxu0
      %v10449 = vadd.f32 0.0, %v10448
      %v10450 = vpop.f32.mrb[0].mxu0
      %10451 = vdwg.mxu0
      %10452 = vmatprep.subr.bf16.mxu0 0
      %10453 = vmatpush1.bf16.msra.mxu0 %v963
      %10454 = vmatprep.subr.bf16.mxu0 0
      %10455 = vmatpush1.bf16.msra.mxu0 %v964
      %10456 = vmatprep.subr.bf16.mxu0 0
      %10457 = vmatpush1.bf16.msra.mxu0 %v965
      %10458 = vmatprep.subr.bf16.mxu0 0
      %10459 = vmatpush1.bf16.msra.mxu0 %v966
      %10460 = vmatprep.subr.bf16.mxu0 0
      %10461 = vmatpush1.bf16.msra.mxu0 %v967
      %10462 = vmatprep.subr.bf16.mxu0 0
      %10463 = vmatpush1.bf16.msra.mxu0 %v968
      %10464 = vmatprep.subr.bf16.mxu0 0
      %10465 = vmatpush1.bf16.msra.mxu0 %v969
      %10466 = vmatprep.subr.bf16.mxu0 0
      %10467 = vmatpush1.bf16.msra.mxu0 %v970
      %10468 = vmatprep.subr.bf16.mxu0 0
      %10469 = vmatpush1.bf16.msra.mxu0 %v971
      %10470 = vmatprep.subr.bf16.mxu0 0
      %10471 = vmatpush1.bf16.msra.mxu0 %v972
      %10472 = vmatprep.subr.bf16.mxu0 0
      %10473 = vmatpush1.bf16.msra.mxu0 %v973
      %10474 = vmatprep.subr.bf16.mxu0 0
      %10475 = vmatpush1.bf16.msra.mxu0 %v974
      %10476 = vmatprep.subr.bf16.mxu0 0
      %10477 = vmatpush1.bf16.msra.mxu0 %v975
      %10478 = vmatprep.subr.bf16.mxu0 0
      %10479 = vmatpush1.bf16.msra.mxu0 %v976
      %10480 = vmatprep.subr.bf16.mxu0 0
      %10481 = vmatpush1.bf16.msra.mxu0 %v977
      %10482 = vmatprep.subr.bf16.mxu0 0
      %10483 = vmatpush1.bf16.msra.mxu0 %v978
      %10484 = vmatprep.mubr.bf16.mxu0 %v10374
      %10485 = vmatmul.mubr.bf16.gmra.mrb[0].mxu0 %v10373
      %v10486 = vpop.f32.mrb[0].mxu0
      %v10487 = vadd.f32 %v10422, %v10486
      %v10488 = vpop.f32.mrb[0].mxu0
      %v10489 = vpop.f32.mrb[0].mxu0
      %v10490 = vadd.f32 %v10425, %v10489
      %v10491 = vpop.f32.mrb[0].mxu0
      %10492 = vmatprep.mubr.bf16.mxu0 %v10378
      %10493 = vmatmul.mubr.bf16.gmra.mrb[0].mxu0 %v10377
      %v10494 = vpop.f32.mrb[0].mxu0
      %v10495 = vadd.f32 %v10430, %v10494
      %v10496 = vpop.f32.mrb[0].mxu0
      %v10497 = vpop.f32.mrb[0].mxu0
      %v10498 = vadd.f32 %v10433, %v10497
      %v10499 = vpop.f32.mrb[0].mxu0
      %10500 = vmatprep.mubr.bf16.mxu0 %v10382
      %10501 = vmatmul.mubr.bf16.gmra.mrb[0].mxu0 %v10381
      %v10502 = vpop.f32.mrb[0].mxu0
      %v10503 = vadd.f32 %v10438, %v10502
      %v10504 = vpop.f32.mrb[0].mxu0
      %v10505 = vpop.f32.mrb[0].mxu0
      %v10506 = vadd.f32 %v10441, %v10505
      %v10507 = vpop.f32.mrb[0].mxu0
      %10508 = vmatprep.mubr.bf16.mxu0 %v10386
      %10509 = vmatmul.mubr.bf16.gmra.mrb[0].mxu0 %v10385
      %v10510 = vpop.f32.mrb[0].mxu0
      %v10511 = vadd.f32 %v10446, %v10510
      %v10512 = vpop.f32.mrb[0].mxu0
      %v10513 = vpop.f32.mrb[0].mxu0
      %v10514 = vadd.f32 %v10449, %v10513
      %v10515 = vpop.f32.mrb[0].mxu0
      %10516 = vdwg.mxu0
      %v10517 = vmax.f32 %v10487, 0.0
      %v10518 = vmax.f32 %v10490, 0.0
      %v10519 = vmax.f32 %v10495, 0.0
      %v10520 = vmax.f32 %v10498, 0.0
      %v10521 = vmax.f32 %v10503, 0.0
      %v10522 = vmax.f32 %v10506, 0.0
      %v10523 = vmax.f32 %v10511, 0.0
      %v10524 = vmax.f32 %v10514, 0.0
      %v10525 = vrsqrt.pop %v10517
      %v10526 = vmul.f32 %v10517, %v10525
      %vm10527 = vcmp.eq.f32.partialorder %v10517, inf
      %v10528 = vsel %vm10527, %v10517, %v10526
      %vm10529 = vcmp.eq.f32.partialorder %v10517, 0.0
      %v10530 = vand.u32 %v10517, 2147483648
      %v10531 = vsel %vm10529, %v10530, %v10528
      %v10532 = vrsqrt.pop %v10518
      %v10533 = vmul.f32 %v10518, %v10532
      %vm10534 = vcmp.eq.f32.partialorder %v10518, inf
      %v10535 = vsel %vm10534, %v10518, %v10533
      %vm10536 = vcmp.eq.f32.partialorder %v10518, 0.0
      %v10537 = vand.u32 %v10518, 2147483648
      %v10538 = vsel %vm10536, %v10537, %v10535
      %v10539 = vrsqrt.pop %v10519
      %v10540 = vmul.f32 %v10519, %v10539
      %vm10541 = vcmp.eq.f32.partialorder %v10519, inf
      %v10542 = vsel %vm10541, %v10519, %v10540
      %vm10543 = vcmp.eq.f32.partialorder %v10519, 0.0
      %v10544 = vand.u32 %v10519, 2147483648
      %v10545 = vsel %vm10543, %v10544, %v10542
      %v10546 = vrsqrt.pop %v10520
      %v10547 = vmul.f32 %v10520, %v10546
      %vm10548 = vcmp.eq.f32.partialorder %v10520, inf
      %v10549 = vsel %vm10548, %v10520, %v10547
      %vm10550 = vcmp.eq.f32.partialorder %v10520, 0.0
      %v10551 = vand.u32 %v10520, 2147483648
      %v10552 = vsel %vm10550, %v10551, %v10549
      %v10553 = vrsqrt.pop %v10521
      %v10554 = vmul.f32 %v10521, %v10553
      %vm10555 = vcmp.eq.f32.partialorder %v10521, inf
      %v10556 = vsel %vm10555, %v10521, %v10554
      %vm10557 = vcmp.eq.f32.partialorder %v10521, 0.0
      %v10558 = vand.u32 %v10521, 2147483648
      %v10559 = vsel %vm10557, %v10558, %v10556
      %v10560 = vrsqrt.pop %v10522
      %v10561 = vmul.f32 %v10522, %v10560
      %vm10562 = vcmp.eq.f32.partialorder %v10522, inf
      %v10563 = vsel %vm10562, %v10522, %v10561
      %vm10564 = vcmp.eq.f32.partialorder %v10522, 0.0
      %v10565 = vand.u32 %v10522, 2147483648
      %v10566 = vsel %vm10564, %v10565, %v10563
      %v10567 = vrsqrt.pop %v10523
      %v10568 = vmul.f32 %v10523, %v10567
      %vm10569 = vcmp.eq.f32.partialorder %v10523, inf
      %v10570 = vsel %vm10569, %v10523, %v10568
      %vm10571 = vcmp.eq.f32.partialorder %v10523, 0.0
      %v10572 = vand.u32 %v10523, 2147483648
      %v10573 = vsel %vm10571, %v10572, %v10570
      %v10574 = vrsqrt.pop %v10524
      %v10575 = vmul.f32 %v10524, %v10574
      %vm10576 = vcmp.eq.f32.partialorder %v10524, inf
      %v10577 = vsel %vm10576, %v10524, %v10575
      %vm10578 = vcmp.eq.f32.partialorder %v10524, 0.0
      %v10579 = vand.u32 %v10524, 2147483648
      %v10580 = vsel %vm10578, %v10579, %v10577
      %v10581 = vmax.f32 %v10531, 1e-08
      %v10582 = vmax.f32 %v10538, 1e-08
      %v10583 = vmax.f32 %v10545, 1e-08
      %v10584 = vmax.f32 %v10552, 1e-08
      %v10585 = vmax.f32 %v10559, 1e-08
      %v10586 = vmax.f32 %v10566, 1e-08
      %v10587 = vmax.f32 %v10573, 1e-08
      %v10588 = vmax.f32 %v10580, 1e-08
      %v10589 = vmin.f32 %v10581, 0.999999
      %v10590 = vmin.f32 %v10582, 0.999999
      %v10591 = vmin.f32 %v10583, 0.999999
      %v10592 = vmin.f32 %v10584, 0.999999
      %v10593 = vmin.f32 %v10585, 0.999999
      %v10594 = vmin.f32 %v10586, 0.999999
      %v10595 = vmin.f32 %v10587, 0.999999
      %v10596 = vmin.f32 %v10588, 0.999999
      %v10597 = vadd.f32 %v10589, 1.0
      %v10598 = vadd.f32 %v10590, 1.0
      %v10599 = vadd.f32 %v10591, 1.0
      %v10600 = vadd.f32 %v10592, 1.0
      %v10601 = vadd.f32 %v10593, 1.0
      %v10602 = vadd.f32 %v10594, 1.0
      %v10603 = vadd.f32 %v10595, 1.0
      %v10604 = vadd.f32 %v10596, 1.0
      %v10605 = vsub.f32 1.0, %v10589
      %v10606 = vsub.f32 1.0, %v10590
      %v10607 = vsub.f32 1.0, %v10591
      %v10608 = vsub.f32 1.0, %v10592
      %v10609 = vsub.f32 1.0, %v10593
      %v10610 = vsub.f32 1.0, %v10594
      %v10611 = vsub.f32 1.0, %v10595
      %v10612 = vsub.f32 1.0, %v10596
      %v10613 = vrcp.pop %v10605
      %v10614 = vmul.f32 %v10597, %v10613
      %v10615 = vrcp.pop %v10606
      %v10616 = vmul.f32 %v10598, %v10615
      %v10617 = vrcp.pop %v10607
      %v10618 = vmul.f32 %v10599, %v10617
      %v10619 = vrcp.pop %v10608
      %v10620 = vmul.f32 %v10600, %v10619
      %v10621 = vrcp.pop %v10609
      %v10622 = vmul.f32 %v10601, %v10621
      %v10623 = vrcp.pop %v10610
      %v10624 = vmul.f32 %v10602, %v10623
      %v10625 = vrcp.pop %v10611
      %v10626 = vmul.f32 %v10603, %v10625
      %v10627 = vrcp.pop %v10612
      %v10628 = vmul.f32 %v10604, %v10627
      %v10629 = vlog2.pop %v10614
      %v10630 = vmul.f32 %v10629, 0.6931472
      %v10631 = vlog2.pop %v10616
      %v10632 = vmul.f32 %v10631, 0.6931472
      %v10633 = vlog2.pop %v10618
      %v10634 = vmul.f32 %v10633, 0.6931472
      %v10635 = vlog2.pop %v10620
      %v10636 = vmul.f32 %v10635, 0.6931472
      %v10637 = vlog2.pop %v10622
      %v10638 = vmul.f32 %v10637, 0.6931472
      %v10639 = vlog2.pop %v10624
      %v10640 = vmul.f32 %v10639, 0.6931472
      %v10641 = vlog2.pop %v10626
      %v10642 = vmul.f32 %v10641, 0.6931472
      %v10643 = vlog2.pop %v10628
      %v10644 = vmul.f32 %v10643, 0.6931472
      %v10645 = vrcp.pop %v10581
      %v10646 = vrcp.pop %v10582
      %v10647 = vrcp.pop %v10583
      %v10648 = vrcp.pop %v10584
      %v10649 = vrcp.pop %v10585
      %v10650 = vrcp.pop %v10586
      %v10651 = vrcp.pop %v10587
      %v10652 = vrcp.pop %v10588
      %v10653 = vmul.f32 %v10630, %v10645
      %v10654 = vmul.f32 %v10632, %v10646
      %v10655 = vmul.f32 %v10634, %v10647
      %v10656 = vmul.f32 %v10636, %v10648
      %v10657 = vmul.f32 %v10638, %v10649
      %v10658 = vmul.f32 %v10640, %v10650
      %v10659 = vmul.f32 %v10642, %v10651
      %v10660 = vmul.f32 %v10644, %v10652
      %v10661 = vpack.c.bf16 %v10654, %v10653
      %v10662 = vpack.c.bf16 %v10656, %v10655
      %v10663 = vpack.c.bf16 %v10658, %v10657
      %v10664 = vpack.c.bf16 %v10660, %v10659
      %10665 = vmatprep.subr.bf16.mxu0 %v1370
      %10666 = vmatpush1.bf16.msra.mxu0 %v1369
      %10667 = vmatprep.subr.bf16.mxu0 %v1374
      %10668 = vmatpush1.bf16.msra.mxu0 %v1373
      %10669 = vmatprep.subr.bf16.mxu0 %v1378
      %10670 = vmatpush1.bf16.msra.mxu0 %v1377
      %10671 = vmatprep.subr.bf16.mxu0 %v1382
      %10672 = vmatpush1.bf16.msra.mxu0 %v1381
      %10673 = vmatprep.subr.bf16.mxu0 %v1386
      %10674 = vmatpush1.bf16.msra.mxu0 %v1385
      %10675 = vmatprep.subr.bf16.mxu0 %v1390
      %10676 = vmatpush1.bf16.msra.mxu0 %v1389
      %10677 = vmatprep.subr.bf16.mxu0 %v1394
      %10678 = vmatpush1.bf16.msra.mxu0 %v1393
      %10679 = vmatprep.subr.bf16.mxu0 %v1398
      %10680 = vmatpush1.bf16.msra.mxu0 %v1397
      %10681 = vmatprep.subr.bf16.mxu0 0
      %10682 = vmatpush1.bf16.msra.mxu0 0
      %10683 = vmatprep.subr.bf16.mxu0 0
      %10684 = vmatpush1.bf16.msra.mxu0 0
      %10685 = vmatprep.subr.bf16.mxu0 0
      %10686 = vmatpush1.bf16.msra.mxu0 0
      %10687 = vmatprep.subr.bf16.mxu0 0
      %10688 = vmatpush1.bf16.msra.mxu0 0
      %10689 = vmatprep.subr.bf16.mxu0 0
      %10690 = vmatpush1.bf16.msra.mxu0 0
      %10691 = vmatprep.subr.bf16.mxu0 0
      %10692 = vmatpush1.bf16.msra.mxu0 0
      %10693 = vmatprep.subr.bf16.mxu0 0
      %10694 = vmatpush1.bf16.msra.mxu0 0
      %10695 = vmatprep.subr.bf16.mxu0 0
      %10696 = vmatpush1.bf16.msra.mxu0 0
      %10697 = vmatprep.mubr.bf16.mxu0 0
      %10698 = vmatmul.mubr.bf16.gmra.mrb[0].mxu0 %v10661
      %v10699 = vpop.f32.mrb[0].mxu0
      %v10700 = vadd.f32 0.0, %v10699
      %v10701 = vpop.f32.mrb[0].mxu0
      %v10702 = vadd.f32 0.0, %v10701
      %v10703 = vpop.f32.mrb[0].mxu0
      %v10704 = vadd.f32 0.0, %v10703
      %v10705 = vpop.f32.mrb[0].mxu0
      %v10706 = vadd.f32 0.0, %v10705
      %10707 = vmatprep.mubr.bf16.mxu0 0
      %10708 = vmatmul.mubr.bf16.gmra.mrb[0].mxu0 %v10662
      %v10709 = vpop.f32.mrb[0].mxu0
      %v10710 = vadd.f32 0.0, %v10709
      %v10711 = vpop.f32.mrb[0].mxu0
      %v10712 = vadd.f32 0.0, %v10711
      %v10713 = vpop.f32.mrb[0].mxu0
      %v10714 = vadd.f32 0.0, %v10713
      %v10715 = vpop.f32.mrb[0].mxu0
      %v10716 = vadd.f32 0.0, %v10715
      %10717 = vmatprep.mubr.bf16.mxu0 0
      %10718 = vmatmul.mubr.bf16.gmra.mrb[0].mxu0 %v10663
      %v10719 = vpop.f32.mrb[0].mxu0
      %v10720 = vadd.f32 0.0, %v10719
      %v10721 = vpop.f32.mrb[0].mxu0
      %v10722 = vadd.f32 0.0, %v10721
      %v10723 = vpop.f32.mrb[0].mxu0
      %v10724 = vadd.f32 0.0, %v10723
      %v10725 = vpop.f32.mrb[0].mxu0
      %v10726 = vadd.f32 0.0, %v10725
      %10727 = vmatprep.mubr.bf16.mxu0 0
      %10728 = vmatmul.mubr.bf16.gmra.mrb[0].mxu0 %v10664
      %v10729 = vpop.f32.mrb[0].mxu0
      %v10730 = vadd.f32 0.0, %v10729
      %v10731 = vpop.f32.mrb[0].mxu0
      %v10732 = vadd.f32 0.0, %v10731
      %v10733 = vpop.f32.mrb[0].mxu0
      %v10734 = vadd.f32 0.0, %v10733
      %v10735 = vpop.f32.mrb[0].mxu0
      %v10736 = vadd.f32 0.0, %v10735
      %10737 = vdwg.mxu0
      %10738 = vmatprep.subr.bf16.mxu0 %v1372
      %10739 = vmatpush1.bf16.msra.mxu0 %v1371
      %10740 = vmatprep.subr.bf16.mxu0 %v1376
      %10741 = vmatpush1.bf16.msra.mxu0 %v1375
      %10742 = vmatprep.subr.bf16.mxu0 %v1380
      %10743 = vmatpush1.bf16.msra.mxu0 %v1379
      %10744 = vmatprep.subr.bf16.mxu0 %v1384
      %10745 = vmatpush1.bf16.msra.mxu0 %v1383
      %10746 = vmatprep.subr.bf16.mxu0 %v1388
      %10747 = vmatpush1.bf16.msra.mxu0 %v1387
      %10748 = vmatprep.subr.bf16.mxu0 %v1392
      %10749 = vmatpush1.bf16.msra.mxu0 %v1391
      %10750 = vmatprep.subr.bf16.mxu0 %v1396
      %10751 = vmatpush1.bf16.msra.mxu0 %v1395
      %10752 = vmatprep.subr.bf16.mxu0 %v1400
      %10753 = vmatpush1.bf16.msra.mxu0 %v1399
      %10754 = vmatprep.subr.bf16.mxu0 0
      %10755 = vmatpush1.bf16.msra.mxu0 0
      %10756 = vmatprep.subr.bf16.mxu0 0
      %10757 = vmatpush1.bf16.msra.mxu0 0
      %10758 = vmatprep.subr.bf16.mxu0 0
      %10759 = vmatpush1.bf16.msra.mxu0 0
      %10760 = vmatprep.subr.bf16.mxu0 0
      %10761 = vmatpush1.bf16.msra.mxu0 0
      %10762 = vmatprep.subr.bf16.mxu0 0
      %10763 = vmatpush1.bf16.msra.mxu0 0
      %10764 = vmatprep.subr.bf16.mxu0 0
      %10765 = vmatpush1.bf16.msra.mxu0 0
      %10766 = vmatprep.subr.bf16.mxu0 0
      %10767 = vmatpush1.bf16.msra.mxu0 0
      %10768 = vmatprep.subr.bf16.mxu0 0
      %10769 = vmatpush1.bf16.msra.mxu0 0
      %10770 = vmatprep.mubr.bf16.mxu0 0
      %10771 = vmatmul.mubr.bf16.gmra.mrb[0].mxu0 %v10661
      %v10772 = vpop.f32.mrb[0].mxu0
      %v10773 = vadd.f32 0.0, %v10772
      %v10774 = vpop.f32.mrb[0].mxu0
      %v10775 = vadd.f32 0.0, %v10774
      %v10776 = vpop.f32.mrb[0].mxu0
      %v10777 = vadd.f32 0.0, %v10776
      %v10778 = vpop.f32.mrb[0].mxu0
      %v10779 = vadd.f32 0.0, %v10778
      %10780 = vmatprep.mubr.bf16.mxu0 0
      %10781 = vmatmul.mubr.bf16.gmra.mrb[0].mxu0 %v10662
      %v10782 = vpop.f32.mrb[0].mxu0
      %v10783 = vadd.f32 0.0, %v10782
      %v10784 = vpop.f32.mrb[0].mxu0
      %v10785 = vadd.f32 0.0, %v10784
      %v10786 = vpop.f32.mrb[0].mxu0
      %v10787 = vadd.f32 0.0, %v10786
      %v10788 = vpop.f32.mrb[0].mxu0
      %v10789 = vadd.f32 0.0, %v10788
      %10790 = vmatprep.mubr.bf16.mxu0 0
      %10791 = vmatmul.mubr.bf16.gmra.mrb[0].mxu0 %v10663
      %v10792 = vpop.f32.mrb[0].mxu0
      %v10793 = vadd.f32 0.0, %v10792
      %v10794 = vpop.f32.mrb[0].mxu0
      %v10795 = vadd.f32 0.0, %v10794
      %v10796 = vpop.f32.mrb[0].mxu0
      %v10797 = vadd.f32 0.0, %v10796
      %v10798 = vpop.f32.mrb[0].mxu0
      %v10799 = vadd.f32 0.0, %v10798
      %10800 = vmatprep.mubr.bf16.mxu0 0
      %10801 = vmatmul.mubr.bf16.gmra.mrb[0].mxu0 %v10664
      %v10802 = vpop.f32.mrb[0].mxu0
      %v10803 = vadd.f32 0.0, %v10802
      %v10804 = vpop.f32.mrb[0].mxu0
      %v10805 = vadd.f32 0.0, %v10804
      %v10806 = vpop.f32.mrb[0].mxu0
      %v10807 = vadd.f32 0.0, %v10806
      %v10808 = vpop.f32.mrb[0].mxu0
      %v10809 = vadd.f32 0.0, %v10808
      %10810 = vdwg.mxu0
      %v10811 = vmul.f32 %v10700, %v10307
      %v10812 = vmul.f32 %v10702, %v10308
      %v10813 = vmul.f32 %v10773, %v10309
      %v10814 = vmul.f32 %v10775, %v10310
      %v10815 = vmul.f32 %v10704, %v10311
      %v10816 = vmul.f32 %v10706, %v10312
      %v10817 = vmul.f32 %v10777, %v10313
      %v10818 = vmul.f32 %v10779, %v10314
      %v10819 = vmul.f32 %v10710, %v10315
      %v10820 = vmul.f32 %v10712, %v10316
      %v10821 = vmul.f32 %v10783, %v10317
      %v10822 = vmul.f32 %v10785, %v10318
      %v10823 = vmul.f32 %v10714, %v10319
      %v10824 = vmul.f32 %v10716, %v10320
      %v10825 = vmul.f32 %v10787, %v10321
      %v10826 = vmul.f32 %v10789, %v10322
      %v10827 = vmul.f32 %v10720, %v10323
      %v10828 = vmul.f32 %v10722, %v10324
      %v10829 = vmul.f32 %v10793, %v10325
      %v10830 = vmul.f32 %v10795, %v10326
      %v10831 = vmul.f32 %v10724, %v10327
      %v10832 = vmul.f32 %v10726, %v10328
      %v10833 = vmul.f32 %v10797, %v10329
      %v10834 = vmul.f32 %v10799, %v10330
      %v10835 = vmul.f32 %v10730, %v10331
      %v10836 = vmul.f32 %v10732, %v10332
      %v10837 = vmul.f32 %v10803, %v10333
      %v10838 = vmul.f32 %v10805, %v10334
      %v10839 = vmul.f32 %v10734, %v10335
      %v10840 = vmul.f32 %v10736, %v10336
      %v10841 = vmul.f32 %v10807, %v10337
      %v10842 = vmul.f32 %v10809, %v10338
      %v10843 = vpack.c.bf16 %v10815, %v10811
      %v10844 = vpack.c.bf16 %v10816, %v10812
      %v10845 = vpack.c.bf16 %v10817, %v10813
      %v10846 = vpack.c.bf16 %v10818, %v10814
      %v10847 = vpack.c.bf16 %v10823, %v10819
      %v10848 = vpack.c.bf16 %v10824, %v10820
      %v10849 = vpack.c.bf16 %v10825, %v10821
      %v10850 = vpack.c.bf16 %v10826, %v10822
      %v10851 = vpack.c.bf16 %v10831, %v10827
      %v10852 = vpack.c.bf16 %v10832, %v10828
      %v10853 = vpack.c.bf16 %v10833, %v10829
      %v10854 = vpack.c.bf16 %v10834, %v10830
      %v10855 = vpack.c.bf16 %v10839, %v10835
      %v10856 = vpack.c.bf16 %v10840, %v10836
      %v10857 = vpack.c.bf16 %v10841, %v10837
      %v10858 = vpack.c.bf16 %v10842, %v10838
      %v10859 = vld [vmem:[%s6] sm:$0xff]
      %v10860 = vld [vmem:[%s6 + $0x8] sm:$0xff]
      %v10861 = vld [vmem:[%s6 + $0x10] sm:$0xff]
      %v10862 = vld [vmem:[%s6 + $0x18] sm:$0xff]
      %v10863 = vld [vmem:[%s6 + $0x20] sm:$0xff]
      %v10864 = vld [vmem:[%s6 + $0x28] sm:$0xff]
      %v10865 = vld [vmem:[%s6 + $0x30] sm:$0xff]
      %v10866 = vld [vmem:[%s6 + $0x38] sm:$0xff]
      %v10867 = vld [vmem:[%s6 + $0x40] sm:$0xff]
      %v10868 = vld [vmem:[%s6 + $0x48] sm:$0xff]
      %v10869 = vld [vmem:[%s6 + $0x50] sm:$0xff]
      %v10870 = vld [vmem:[%s6 + $0x58] sm:$0xff]
      %v10871 = vld [vmem:[%s6 + $0x60] sm:$0xff]
      %v10872 = vld [vmem:[%s6 + $0x68] sm:$0xff]
      %v10873 = vld [vmem:[%s6 + $0x70] sm:$0xff]
      %v10874 = vld [vmem:[%s6 + $0x78] sm:$0xff]
      %v10875 = vld [vmem:[%s6 + $0x80] sm:$0xff]
      %v10876 = vld [vmem:[%s6 + $0x88] sm:$0xff]
      %v10877 = vld [vmem:[%s6 + $0x90] sm:$0xff]
      %v10878 = vld [vmem:[%s6 + $0x98] sm:$0xff]
      %v10879 = vld [vmem:[%s6 + $0xa0] sm:$0xff]
      %v10880 = vld [vmem:[%s6 + $0xa8] sm:$0xff]
      %v10881 = vld [vmem:[%s6 + $0xb0] sm:$0xff]
      %v10882 = vld [vmem:[%s6 + $0xb8] sm:$0xff]
      %v10883 = vld [vmem:[%s6 + $0xc0] sm:$0xff]
      %v10884 = vld [vmem:[%s6 + $0xc8] sm:$0xff]
      %v10885 = vld [vmem:[%s6 + $0xd0] sm:$0xff]
      %v10886 = vld [vmem:[%s6 + $0xd8] sm:$0xff]
      %v10887 = vld [vmem:[%s6 + $0xe0] sm:$0xff]
      %v10888 = vld [vmem:[%s6 + $0xe8] sm:$0xff]
      %v10889 = vld [vmem:[%s6 + $0xf0] sm:$0xff]
      %v10890 = vld [vmem:[%s6 + $0xf8] sm:$0xff]
      %v10891 = vld [vmem:[%s6 + $0x100] sm:$0xff]
      %v10892 = vld [vmem:[%s6 + $0x108] sm:$0xff]
      %v10893 = vld [vmem:[%s6 + $0x110] sm:$0xff]
      %v10894 = vld [vmem:[%s6 + $0x118] sm:$0xff]
      %v10895 = vld [vmem:[%s6 + $0x120] sm:$0xff]
      %v10896 = vld [vmem:[%s6 + $0x128] sm:$0xff]
      %v10897 = vld [vmem:[%s6 + $0x130] sm:$0xff]
      %v10898 = vld [vmem:[%s6 + $0x138] sm:$0xff]
      %v10899 = vld [vmem:[%s6 + $0x140] sm:$0xff]
      %v10900 = vld [vmem:[%s6 + $0x148] sm:$0xff]
      %v10901 = vld [vmem:[%s6 + $0x150] sm:$0xff]
      %v10902 = vld [vmem:[%s6 + $0x158] sm:$0xff]
      %v10903 = vld [vmem:[%s6 + $0x160] sm:$0xff]
      %v10904 = vld [vmem:[%s6 + $0x168] sm:$0xff]
      %v10905 = vld [vmem:[%s6 + $0x170] sm:$0xff]
      %v10906 = vld [vmem:[%s6 + $0x178] sm:$0xff]
      %v10907 = vld [vmem:[%s6 + $0x180] sm:$0xff]
      %v10908 = vld [vmem:[%s6 + $0x188] sm:$0xff]
      %v10909 = vld [vmem:[%s6 + $0x190] sm:$0xff]
      %v10910 = vld [vmem:[%s6 + $0x198] sm:$0xff]
      %v10911 = vld [vmem:[%s6 + $0x1a0] sm:$0xff]
      %v10912 = vld [vmem:[%s6 + $0x1a8] sm:$0xff]
      %v10913 = vld [vmem:[%s6 + $0x1b0] sm:$0xff]
      %v10914 = vld [vmem:[%s6 + $0x1b8] sm:$0xff]
      %v10915 = vld [vmem:[%s6 + $0x1c0] sm:$0xff]
      %v10916 = vld [vmem:[%s6 + $0x1c8] sm:$0xff]
      %v10917 = vld [vmem:[%s6 + $0x1d0] sm:$0xff]
      %v10918 = vld [vmem:[%s6 + $0x1d8] sm:$0xff]
      %v10919 = vld [vmem:[%s6 + $0x1e0] sm:$0xff]
      %v10920 = vld [vmem:[%s6 + $0x1e8] sm:$0xff]
      %v10921 = vld [vmem:[%s6 + $0x1f0] sm:$0xff]
      %v10922 = vld [vmem:[%s6 + $0x1f8] sm:$0xff]
      %v10923 = vld [vmem:[%s7] sm:$0x3]
      %v10925 = vlaneseq
      %v10926 = vshrl.u32 %v10925, 7
      %v10927 = vsub.s32 0, %v10926
      %v10928 = vrot.slane %v10923, %v10927
      %v10929 = vlaneseq
      %v10930 = vshrl.u32 %v10929, 7
      %v10931 = vsub.s32 1, %v10930
      %v10932 = vrot.slane %v10923, %v10931
      %v10999 = vunpack.c.l.b16 %v10859
      %v11000 = vunpack.c.h.b16 %v10859
      %v11001 = vunpack.c.l.b16 %v10860
      %v11002 = vunpack.c.h.b16 %v10860
      %v11003 = vunpack.c.l.b16 %v10861
      %v11004 = vunpack.c.h.b16 %v10861
      %v11005 = vunpack.c.l.b16 %v10862
      %v11006 = vunpack.c.h.b16 %v10862
      %v11007 = vunpack.c.l.b16 %v10863
      %v11008 = vunpack.c.h.b16 %v10863
      %v11009 = vunpack.c.l.b16 %v10864
      %v11010 = vunpack.c.h.b16 %v10864
      %v11011 = vunpack.c.l.b16 %v10865
      %v11012 = vunpack.c.h.b16 %v10865
      %v11013 = vunpack.c.l.b16 %v10866
      %v11014 = vunpack.c.h.b16 %v10866
      %v11015 = vunpack.c.l.b16 %v10867
      %v11016 = vunpack.c.h.b16 %v10867
      %v11017 = vunpack.c.l.b16 %v10868
      %v11018 = vunpack.c.h.b16 %v10868
      %v11019 = vunpack.c.l.b16 %v10869
      %v11020 = vunpack.c.h.b16 %v10869
      %v11021 = vunpack.c.l.b16 %v10870
      %v11022 = vunpack.c.h.b16 %v10870
      %v11023 = vunpack.c.l.b16 %v10871
      %v11024 = vunpack.c.h.b16 %v10871
      %v11025 = vunpack.c.l.b16 %v10872
      %v11026 = vunpack.c.h.b16 %v10872
      %v11027 = vunpack.c.l.b16 %v10873
      %v11028 = vunpack.c.h.b16 %v10873
      %v11029 = vunpack.c.l.b16 %v10874
      %v11030 = vunpack.c.h.b16 %v10874
      %v11031 = vunpack.c.l.b16 %v10875
      %v11032 = vunpack.c.h.b16 %v10875
      %v11033 = vunpack.c.l.b16 %v10876
      %v11034 = vunpack.c.h.b16 %v10876
      %v11035 = vunpack.c.l.b16 %v10877
      %v11036 = vunpack.c.h.b16 %v10877
      %v11037 = vunpack.c.l.b16 %v10878
      %v11038 = vunpack.c.h.b16 %v10878
      %v11039 = vunpack.c.l.b16 %v10879
      %v11040 = vunpack.c.h.b16 %v10879
      %v11041 = vunpack.c.l.b16 %v10880
      %v11042 = vunpack.c.h.b16 %v10880
      %v11043 = vunpack.c.l.b16 %v10881
      %v11044 = vunpack.c.h.b16 %v10881
      %v11045 = vunpack.c.l.b16 %v10882
      %v11046 = vunpack.c.h.b16 %v10882
      %v11047 = vunpack.c.l.b16 %v10883
      %v11048 = vunpack.c.h.b16 %v10883
      %v11049 = vunpack.c.l.b16 %v10884
      %v11050 = vunpack.c.h.b16 %v10884
      %v11051 = vunpack.c.l.b16 %v10885
      %v11052 = vunpack.c.h.b16 %v10885
      %v11053 = vunpack.c.l.b16 %v10886
      %v11054 = vunpack.c.h.b16 %v10886
      %v11055 = vunpack.c.l.b16 %v10887
      %v11056 = vunpack.c.h.b16 %v10887
      %v11057 = vunpack.c.l.b16 %v10888
      %v11058 = vunpack.c.h.b16 %v10888
      %v11059 = vunpack.c.l.b16 %v10889
      %v11060 = vunpack.c.h.b16 %v10889
      %v11061 = vunpack.c.l.b16 %v10890
      %v11062 = vunpack.c.h.b16 %v10890
      %v11063 = vunpack.c.l.b16 %v10891
      %v11064 = vunpack.c.h.b16 %v10891
      %v11065 = vunpack.c.l.b16 %v10892
      %v11066 = vunpack.c.h.b16 %v10892
      %v11067 = vunpack.c.l.b16 %v10893
      %v11068 = vunpack.c.h.b16 %v10893
      %v11069 = vunpack.c.l.b16 %v10894
      %v11070 = vunpack.c.h.b16 %v10894
      %v11071 = vunpack.c.l.b16 %v10895
      %v11072 = vunpack.c.h.b16 %v10895
      %v11073 = vunpack.c.l.b16 %v10896
      %v11074 = vunpack.c.h.b16 %v10896
      %v11075 = vunpack.c.l.b16 %v10897
      %v11076 = vunpack.c.h.b16 %v10897
      %v11077 = vunpack.c.l.b16 %v10898
      %v11078 = vunpack.c.h.b16 %v10898
      %v11079 = vunpack.c.l.b16 %v10899
      %v11080 = vunpack.c.h.b16 %v10899
      %v11081 = vunpack.c.l.b16 %v10900
      %v11082 = vunpack.c.h.b16 %v10900
      %v11083 = vunpack.c.l.b16 %v10901
      %v11084 = vunpack.c.h.b16 %v10901
      %v11085 = vunpack.c.l.b16 %v10902
      %v11086 = vunpack.c.h.b16 %v10902
      %v11087 = vunpack.c.l.b16 %v10903
      %v11088 = vunpack.c.h.b16 %v10903
      %v11089 = vunpack.c.l.b16 %v10904
      %v11090 = vunpack.c.h.b16 %v10904
      %v11091 = vunpack.c.l.b16 %v10905
      %v11092 = vunpack.c.h.b16 %v10905
      %v11093 = vunpack.c.l.b16 %v10906
      %v11094 = vunpack.c.h.b16 %v10906
      %v11095 = vunpack.c.l.b16 %v10907
      %v11096 = vunpack.c.h.b16 %v10907
      %v11097 = vunpack.c.l.b16 %v10908
      %v11098 = vunpack.c.h.b16 %v10908
      %v11099 = vunpack.c.l.b16 %v10909
      %v11100 = vunpack.c.h.b16 %v10909
      %v11101 = vunpack.c.l.b16 %v10910
      %v11102 = vunpack.c.h.b16 %v10910
      %v11103 = vunpack.c.l.b16 %v10911
      %v11104 = vunpack.c.h.b16 %v10911
      %v11105 = vunpack.c.l.b16 %v10912
      %v11106 = vunpack.c.h.b16 %v10912
      %v11107 = vunpack.c.l.b16 %v10913
      %v11108 = vunpack.c.h.b16 %v10913
      %v11109 = vunpack.c.l.b16 %v10914
      %v11110 = vunpack.c.h.b16 %v10914
      %v11111 = vunpack.c.l.b16 %v10915
      %v11112 = vunpack.c.h.b16 %v10915
      %v11113 = vunpack.c.l.b16 %v10916
      %v11114 = vunpack.c.h.b16 %v10916
      %v11115 = vunpack.c.l.b16 %v10917
      %v11116 = vunpack.c.h.b16 %v10917
      %v11117 = vunpack.c.l.b16 %v10918
      %v11118 = vunpack.c.h.b16 %v10918
      %v11119 = vunpack.c.l.b16 %v10919
      %v11120 = vunpack.c.h.b16 %v10919
      %v11121 = vunpack.c.l.b16 %v10920
      %v11122 = vunpack.c.h.b16 %v10920
      %v11123 = vunpack.c.l.b16 %v10921
      %v11124 = vunpack.c.h.b16 %v10921
      %v11125 = vunpack.c.l.b16 %v10922
      %v11126 = vunpack.c.h.b16 %v10922
      %v11127 = vpack.c.b16 %v11001, %v10999
      %v11128 = vpack.c.b16 %v11002, %v11000
      %v11129 = vpack.c.b16 %v11005, %v11003
      %v11130 = vpack.c.b16 %v11006, %v11004
      %v11131 = vpack.c.b16 %v11009, %v11007
      %v11132 = vpack.c.b16 %v11010, %v11008
      %v11133 = vpack.c.b16 %v11013, %v11011
      %v11134 = vpack.c.b16 %v11014, %v11012
      %v11135 = vpack.c.b16 %v11017, %v11015
      %v11136 = vpack.c.b16 %v11018, %v11016
      %v11137 = vpack.c.b16 %v11021, %v11019
      %v11138 = vpack.c.b16 %v11022, %v11020
      %v11139 = vpack.c.b16 %v11025, %v11023
      %v11140 = vpack.c.b16 %v11026, %v11024
      %v11141 = vpack.c.b16 %v11029, %v11027
      %v11142 = vpack.c.b16 %v11030, %v11028
      %v11143 = vpack.c.b16 %v11033, %v11031
      %v11144 = vpack.c.b16 %v11034, %v11032
      %v11145 = vpack.c.b16 %v11037, %v11035
      %v11146 = vpack.c.b16 %v11038, %v11036
      %v11147 = vpack.c.b16 %v11041, %v11039
      %v11148 = vpack.c.b16 %v11042, %v11040
      %v11149 = vpack.c.b16 %v11045, %v11043
      %v11150 = vpack.c.b16 %v11046, %v11044
      %v11151 = vpack.c.b16 %v11049, %v11047
      %v11152 = vpack.c.b16 %v11050, %v11048
      %v11153 = vpack.c.b16 %v11053, %v11051
      %v11154 = vpack.c.b16 %v11054, %v11052
      %v11155 = vpack.c.b16 %v11057, %v11055
      %v11156 = vpack.c.b16 %v11058, %v11056
      %v11157 = vpack.c.b16 %v11061, %v11059
      %v11158 = vpack.c.b16 %v11062, %v11060
      %v11159 = vpack.c.b16 %v11065, %v11063
      %v11160 = vpack.c.b16 %v11066, %v11064
      %v11161 = vpack.c.b16 %v11069, %v11067
      %v11162 = vpack.c.b16 %v11070, %v11068
      %v11163 = vpack.c.b16 %v11073, %v11071
      %v11164 = vpack.c.b16 %v11074, %v11072
      %v11165 = vpack.c.b16 %v11077, %v11075
      %v11166 = vpack.c.b16 %v11078, %v11076
      %v11167 = vpack.c.b16 %v11081, %v11079
      %v11168 = vpack.c.b16 %v11082, %v11080
      %v11169 = vpack.c.b16 %v11085, %v11083
      %v11170 = vpack.c.b16 %v11086, %v11084
      %v11171 = vpack.c.b16 %v11089, %v11087
      %v11172 = vpack.c.b16 %v11090, %v11088
      %v11173 = vpack.c.b16 %v11093, %v11091
      %v11174 = vpack.c.b16 %v11094, %v11092
      %v11175 = vpack.c.b16 %v11097, %v11095
      %v11176 = vpack.c.b16 %v11098, %v11096
      %v11177 = vpack.c.b16 %v11101, %v11099
      %v11178 = vpack.c.b16 %v11102, %v11100
      %v11179 = vpack.c.b16 %v11105, %v11103
      %v11180 = vpack.c.b16 %v11106, %v11104
      %v11181 = vpack.c.b16 %v11109, %v11107
      %v11182 = vpack.c.b16 %v11110, %v11108
      %v11183 = vpack.c.b16 %v11113, %v11111
      %v11184 = vpack.c.b16 %v11114, %v11112
      %v11185 = vpack.c.b16 %v11117, %v11115
      %v11186 = vpack.c.b16 %v11118, %v11116
      %v11187 = vpack.c.b16 %v11121, %v11119
      %v11188 = vpack.c.b16 %v11122, %v11120
      %v11189 = vpack.c.b16 %v11125, %v11123
      %v11190 = vpack.c.b16 %v11126, %v11124
      %11255 = vmatprep.subr.bf16.mxu0 %v11128
      %11256 = vmatpush1.bf16.msra.mxu0 %v11127
      %11257 = vmatprep.subr.bf16.mxu0 %v11130
      %11258 = vmatpush1.bf16.msra.mxu0 %v11129
      %11259 = vmatprep.subr.bf16.mxu0 %v11132
      %11260 = vmatpush1.bf16.msra.mxu0 %v11131
      %11261 = vmatprep.subr.bf16.mxu0 %v11134
      %11262 = vmatpush1.bf16.msra.mxu0 %v11133
      %11263 = vmatprep.subr.bf16.mxu0 %v11136
      %11264 = vmatpush1.bf16.msra.mxu0 %v11135
      %11265 = vmatprep.subr.bf16.mxu0 %v11138
      %11266 = vmatpush1.bf16.msra.mxu0 %v11137
      %11267 = vmatprep.subr.bf16.mxu0 %v11140
      %11268 = vmatpush1.bf16.msra.mxu0 %v11139
      %11269 = vmatprep.subr.bf16.mxu0 %v11142
      %11270 = vmatpush1.bf16.msra.mxu0 %v11141
      %11271 = vmatprep.subr.bf16.mxu0 %v11144
      %11272 = vmatpush1.bf16.msra.mxu0 %v11143
      %11273 = vmatprep.subr.bf16.mxu0 %v11146
      %11274 = vmatpush1.bf16.msra.mxu0 %v11145
      %11275 = vmatprep.subr.bf16.mxu0 %v11148
      %11276 = vmatpush1.bf16.msra.mxu0 %v11147
      %11277 = vmatprep.subr.bf16.mxu0 %v11150
      %11278 = vmatpush1.bf16.msra.mxu0 %v11149
      %11279 = vmatprep.subr.bf16.mxu0 %v11152
      %11280 = vmatpush1.bf16.msra.mxu0 %v11151
      %11281 = vmatprep.subr.bf16.mxu0 %v11154
      %11282 = vmatpush1.bf16.msra.mxu0 %v11153
      %11283 = vmatprep.subr.bf16.mxu0 %v11156
      %11284 = vmatpush1.bf16.msra.mxu0 %v11155
      %11285 = vmatprep.subr.bf16.mxu0 %v11158
      %11286 = vmatpush1.bf16.msra.mxu0 %v11157
      %11287 = vmatprep.mubr.bf16.mxu0 %v10844
      %11288 = vmatmul.mubr.bf16.gmra.mrb[0].mxu0 %v10843
      %v11289 = vpop.f32.mrb[0].mxu0
      %v11290 = vadd.f32 %v10928, %v11289
      %v11291 = vpop.f32.mrb[0].mxu0
      %v11292 = vadd.f32 %v10932, %v11291
      %v11293 = vpop.f32.mrb[0].mxu0
      %v11294 = vadd.f32 %v10928, %v11293
      %v11295 = vpop.f32.mrb[0].mxu0
      %v11296 = vadd.f32 %v10932, %v11295
      %11297 = vmatprep.mubr.bf16.mxu0 %v10848
      %11298 = vmatmul.mubr.bf16.gmra.mrb[0].mxu0 %v10847
      %v11299 = vpop.f32.mrb[0].mxu0
      %v11300 = vadd.f32 %v10928, %v11299
      %v11301 = vpop.f32.mrb[0].mxu0
      %v11302 = vadd.f32 %v10932, %v11301
      %v11303 = vpop.f32.mrb[0].mxu0
      %v11304 = vadd.f32 %v10928, %v11303
      %v11305 = vpop.f32.mrb[0].mxu0
      %v11306 = vadd.f32 %v10932, %v11305
      %11307 = vmatprep.mubr.bf16.mxu0 %v10852
      %11308 = vmatmul.mubr.bf16.gmra.mrb[0].mxu0 %v10851
      %v11309 = vpop.f32.mrb[0].mxu0
      %v11310 = vadd.f32 %v10928, %v11309
      %v11311 = vpop.f32.mrb[0].mxu0
      %v11312 = vadd.f32 %v10932, %v11311
      %v11313 = vpop.f32.mrb[0].mxu0
      %v11314 = vadd.f32 %v10928, %v11313
      %v11315 = vpop.f32.mrb[0].mxu0
      %v11316 = vadd.f32 %v10932, %v11315
      %11317 = vmatprep.mubr.bf16.mxu0 %v10856
      %11318 = vmatmul.mubr.bf16.gmra.mrb[0].mxu0 %v10855
      %v11319 = vpop.f32.mrb[0].mxu0
      %v11320 = vadd.f32 %v10928, %v11319
      %v11321 = vpop.f32.mrb[0].mxu0
      %v11322 = vadd.f32 %v10932, %v11321
      %v11323 = vpop.f32.mrb[0].mxu0
      %v11324 = vadd.f32 %v10928, %v11323
      %v11325 = vpop.f32.mrb[0].mxu0
      %v11326 = vadd.f32 %v10932, %v11325
      %11327 = vdwg.mxu0
      %11328 = vmatprep.subr.bf16.mxu0 %v11160
      %11329 = vmatpush1.bf16.msra.mxu0 %v11159
      %11330 = vmatprep.subr.bf16.mxu0 %v11162
      %11331 = vmatpush1.bf16.msra.mxu0 %v11161
      %11332 = vmatprep.subr.bf16.mxu0 %v11164
      %11333 = vmatpush1.bf16.msra.mxu0 %v11163
      %11334 = vmatprep.subr.bf16.mxu0 %v11166
      %11335 = vmatpush1.bf16.msra.mxu0 %v11165
      %11336 = vmatprep.subr.bf16.mxu0 %v11168
      %11337 = vmatpush1.bf16.msra.mxu0 %v11167
      %11338 = vmatprep.subr.bf16.mxu0 %v11170
      %11339 = vmatpush1.bf16.msra.mxu0 %v11169
      %11340 = vmatprep.subr.bf16.mxu0 %v11172
      %11341 = vmatpush1.bf16.msra.mxu0 %v11171
      %11342 = vmatprep.subr.bf16.mxu0 %v11174
      %11343 = vmatpush1.bf16.msra.mxu0 %v11173
      %11344 = vmatprep.subr.bf16.mxu0 %v11176
      %11345 = vmatpush1.bf16.msra.mxu0 %v11175
      %11346 = vmatprep.subr.bf16.mxu0 %v11178
      %11347 = vmatpush1.bf16.msra.mxu0 %v11177
      %11348 = vmatprep.subr.bf16.mxu0 %v11180
      %11349 = vmatpush1.bf16.msra.mxu0 %v11179
      %11350 = vmatprep.subr.bf16.mxu0 %v11182
      %11351 = vmatpush1.bf16.msra.mxu0 %v11181
      %11352 = vmatprep.subr.bf16.mxu0 %v11184
      %11353 = vmatpush1.bf16.msra.mxu0 %v11183
      %11354 = vmatprep.subr.bf16.mxu0 %v11186
      %11355 = vmatpush1.bf16.msra.mxu0 %v11185
      %11356 = vmatprep.subr.bf16.mxu0 %v11188
      %11357 = vmatpush1.bf16.msra.mxu0 %v11187
      %11358 = vmatprep.subr.bf16.mxu0 %v11190
      %11359 = vmatpush1.bf16.msra.mxu0 %v11189
      %11360 = vmatprep.mubr.bf16.mxu0 %v10846
      %11361 = vmatmul.mubr.bf16.gmra.mrb[0].mxu0 %v10845
      %v11362 = vpop.f32.mrb[0].mxu0
      %v11363 = vadd.f32 %v11290, %v11362
      %v11364 = vpop.f32.mrb[0].mxu0
      %v11365 = vadd.f32 %v11292, %v11364
      %v11366 = vpop.f32.mrb[0].mxu0
      %v11367 = vadd.f32 %v11294, %v11366
      %v11368 = vpop.f32.mrb[0].mxu0
      %v11369 = vadd.f32 %v11296, %v11368
      %11370 = vmatprep.mubr.bf16.mxu0 %v10850
      %11371 = vmatmul.mubr.bf16.gmra.mrb[0].mxu0 %v10849
      %v11372 = vpop.f32.mrb[0].mxu0
      %v11373 = vadd.f32 %v11300, %v11372
      %v11374 = vpop.f32.mrb[0].mxu0
      %v11375 = vadd.f32 %v11302, %v11374
      %v11376 = vpop.f32.mrb[0].mxu0
      %v11377 = vadd.f32 %v11304, %v11376
      %v11378 = vpop.f32.mrb[0].mxu0
      %v11379 = vadd.f32 %v11306, %v11378
      %11380 = vmatprep.mubr.bf16.mxu0 %v10854
      %11381 = vmatmul.mubr.bf16.gmra.mrb[0].mxu0 %v10853
      %v11382 = vpop.f32.mrb[0].mxu0
      %v11383 = vadd.f32 %v11310, %v11382
      %v11384 = vpop.f32.mrb[0].mxu0
      %v11385 = vadd.f32 %v11312, %v11384
      %v11386 = vpop.f32.mrb[0].mxu0
      %v11387 = vadd.f32 %v11314, %v11386
      %v11388 = vpop.f32.mrb[0].mxu0
      %v11389 = vadd.f32 %v11316, %v11388
      %11390 = vmatprep.mubr.bf16.mxu0 %v10858
      %11391 = vmatmul.mubr.bf16.gmra.mrb[0].mxu0 %v10857
      %v11392 = vpop.f32.mrb[0].mxu0
      %v11393 = vadd.f32 %v11320, %v11392
      %v11394 = vpop.f32.mrb[0].mxu0
      %v11395 = vadd.f32 %v11322, %v11394
      %v11396 = vpop.f32.mrb[0].mxu0
      %v11397 = vadd.f32 %v11324, %v11396
      %v11398 = vpop.f32.mrb[0].mxu0
      %v11399 = vadd.f32 %v11326, %v11398
      %11400 = vdwg.mxu0
      %11401 = vst [vmem:[%s312] sm:$0xff] %v11363
      %11402 = vst [vmem:[%s312 + $0x8] sm:$0xff] %v11365
      %11403 = vst [vmem:[%s312 + $0x10] sm:$0xff] %v11367
      %11404 = vst [vmem:[%s312 + $0x18] sm:$0xff] %v11369
      %11405 = vst [vmem:[%s312 + $0x20] sm:$0xff] %v11373
      %11406 = vst [vmem:[%s312 + $0x28] sm:$0xff] %v11375
      %11407 = vst [vmem:[%s312 + $0x30] sm:$0xff] %v11377
      %11408 = vst [vmem:[%s312 + $0x38] sm:$0xff] %v11379
      %11409 = vst [vmem:[%s312 + $0x40] sm:$0xff] %v11383
      %11410 = vst [vmem:[%s312 + $0x48] sm:$0xff] %v11385
      %11411 = vst [vmem:[%s312 + $0x50] sm:$0xff] %v11387
      %11412 = vst [vmem:[%s312 + $0x58] sm:$0xff] %v11389
      %11413 = vst [vmem:[%s312 + $0x60] sm:$0xff] %v11393
      %11414 = vst [vmem:[%s312 + $0x68] sm:$0xff] %v11395
      %11415 = vst [vmem:[%s312 + $0x70] sm:$0xff] %v11397
      %11416 = vst [vmem:[%s312 + $0x78] sm:$0xff] %v11399
      %s11417 = smul.u32 4, %s19
      %p11418 = scmp.lt.s32.totalorder %s11417, 7
      %s11419 = scalar_select %p11418, %s11417, 7
      %s11420 = smul.addr %s11419, 4
      %s11421 = smul.addr %s11420, 8
      %s11422 = scalar_lea.vmem %s8, %s11421
      // Predicated region
      $region53: #{hyperbolic_cnn_encoder.1} parent=51 // pred_check
        %p11423 = pneg %p210
      $region54: #{hyperbolic_cnn_encoder.1} parent=51 // pred_check_branch
        %11425 = sbr.rel (%p11423) target = $region56
      $region55: #{hyperbolic_cnn_encoder.1} parent=51 // pred_region
        %s11426 = smul.u32 4, %s19
      $region56: #{hyperbolic_cnn_encoder.1} parent=51 // pred_fallthru
        _
    $region52: #{hyperbolic_cnn_encoder.1} parent=5 // pred_fallthru
      _
    %p11427 = scmp.le.s32.totalorder 2, %s14
    // Predicated region
    $region57: #{hyperbolic_cnn_encoder.1} parent=5 // pred_check
      %p11428 = pneg %p11427
    $region58: #{hyperbolic_cnn_encoder.1} parent=5 // pred_check_branch
      %11430 = sbr.rel (%p11428) target = $region60
    $region59: #{hyperbolic_cnn_encoder.1} parent=5 // pred_region
      %s11431 = ssub.s32 %s14, 2
      // Predicated region
      $region61: #{hyperbolic_cnn_encoder.1} parent=59 // pred_check
        %p11432 = pneg %p216
      $region62: #{hyperbolic_cnn_encoder.1} parent=59 // pred_check_branch
        %11434 = sbr.rel (%p11432) target = $region64
      $region63: #{hyperbolic_cnn_encoder.1} parent=59 // pred_region
        %s11435 = smul.u32 4, %s20
        %p11436 = scmp.lt.s32.totalorder %s11435, 7
        %s11437 = scalar_select %p11436, %s11435, 7
        %s11438 = smul.addr %s11437, 4
        %s11439 = smul.addr %s11438, 8
        %s11440 = scalar_lea.vmem %s8, %s11439
      $region64: #{hyperbolic_cnn_encoder.1} parent=59 // pred_fallthru
        _
    $region60: #{hyperbolic_cnn_encoder.1} parent=5 // pred_fallthru
      _
  $region6: #{hyperbolic_cnn_encoder.1} parent=0 // loop_footer
    %s18 = sadd.s32 1, %s14
  $region7: #{hyperbolic_cnn_encoder.1} parent=0 // loop_footer_branch
    %13 = sbr.rel target = $region3
  $region8: #{hyperbolic_cnn_encoder.1} parent=0 // loop_exit
    _

</llo_original>
